<compile_context>
chip_gen: v5e
topology: v5e:2x2
jax: 0.10.0
libtpu: 0.0.40
codegen_flags: <defaults>
</compile_context>

<pallas_src>
import functools
import math

import jax
import jax.numpy as jnp
import numpy as np
from jax.experimental import pallas as pl
from jax.experimental.pallas import tpu as pltpu

EPS = 1e-5  # BatchNorm eps (PyTorch default)


# ----------------------------------------------------------------------------
# Pallas kernels
# ----------------------------------------------------------------------------
def _stem_kernel(x_ref, w_ref, b_ref, o_ref):
    # First 3x3 conv (im2col'd rows) + folded-BN bias + ReLU.
    y = jnp.dot(x_ref[...], w_ref[...], preferred_element_type=jnp.float32)
    o_ref[...] = jnp.maximum(y + b_ref[...], 0.0).astype(o_ref.dtype)


def _ir_block_kernel(*refs, expand, use_res, center, tap_ids):
    # One whole InvertedResidual block, intermediates kept in VMEM/vregs:
    #   [expand 1x1 + ReLU] -> depthwise 3x3 + ReLU -> project 1x1 [-> + x]
    it = iter(refs)
    x_ref = next(it)
    if expand:
        w_exp_ref = next(it)
        b_exp_ref = next(it)
    sel_ref = None if center else next(it)
    w_dw_ref = next(it)
    b_dw_ref = next(it)
    w_proj_ref = next(it)
    b_proj_ref = next(it)
    o_ref = next(it)

    x = x_ref[...]                                            # (M_in, C_in) f32

    # --- expansion 1x1 conv (BN scale folded into weights) ---
    if expand:
        h = jnp.dot(x.astype(jnp.bfloat16), w_exp_ref[...],
                    preferred_element_type=jnp.float32)
        h = jnp.maximum(h + b_exp_ref[...], 0.0)              # (M_in, C_hid) f32
    else:
        h = x

    # --- depthwise 3x3 conv ---
    if center:
        # 1x1 spatial: only the centre tap of the padded 3x3 window is valid.
        acc = h * w_dw_ref[4]                                 # (M, C_hid)
    else:
        hb = h.astype(jnp.bfloat16)
        acc = None
        # Unrolled per-tap accumulate: tap gather = 0/1 selection matmul (MXU),
        # per-channel depthwise weight = VPU multiply.
        for j, tap in enumerate(tap_ids):
            t = jnp.dot(sel_ref[j], hb, preferred_element_type=jnp.float32)
            t = t * w_dw_ref[tap]                             # (M_out, C_hid)
            acc = t if acc is None else acc + t
    acc = jnp.maximum(acc + b_dw_ref[...], 0.0)

    # --- projection 1x1 conv (no activation) + residual ---
    y = jnp.dot(acc.astype(jnp.bfloat16), w_proj_ref[...],
                preferred_element_type=jnp.float32) + b_proj_ref[...]
    if use_res:
        y = y + x
    o_ref[...] = y.astype(o_ref.dtype)


def _tail_kernel(x_ref, w_ref, b_ref, pool_ref, fcw_ref, fcb_ref, o_ref, *, inv_hw):
    # Final 1x1 conv + BN + ReLU, global average pool (as a matmul), Linear.
    h = jnp.dot(x_ref[...].astype(jnp.bfloat16), w_ref[...],
                preferred_element_type=jnp.float32)
    h = jnp.maximum(h + b_ref[...], 0.0)                      # (N*HW, C_last)
    pooled = jnp.dot(pool_ref[...], h.astype(jnp.bfloat16),
                     preferred_element_type=jnp.float32) * inv_hw   # (N, C_last)
    logits = jnp.dot(pooled.astype(jnp.bfloat16), fcw_ref[...],
                     preferred_element_type=jnp.float32) + fcb_ref[...]
    o_ref[...] = logits.astype(o_ref.dtype)


# ----------------------------------------------------------------------------
# pallas_call wrappers (full-array single blocks; everything fits in VMEM)
# ----------------------------------------------------------------------------
def _full_spec(shape):
    nd = len(shape)
    return pl.BlockSpec(shape, lambda i, _nd=nd: (0,) * _nd)


_COMPILER_PARAMS = pltpu.CompilerParams(dimension_semantics=("arbitrary",))


def _stem_call(pm, stem):
    m = pm.shape[0]
    cout = stem['w'].shape[1]
    return pl.pallas_call(
        _stem_kernel,
        out_shape=jax.ShapeDtypeStruct((m, cout), jnp.float32),
        grid=(1,),
        in_specs=[_full_spec(pm.shape), _full_spec(stem['w'].shape),
                  _full_spec(stem['b'].shape)],
        out_specs=_full_spec((m, cout)),
        compiler_params=_COMPILER_PARAMS,
    )(pm, stem['w'], stem['b'])


def _ir_block_call(x, blk):
    args = [x]
    if blk['expand']:
        args += [blk['w_exp'], blk['b_exp']]
    if not blk['center']:
        args.append(blk['sel'])
    args += [blk['w_dw'], blk['b_dw'], blk['w_proj'], blk['b_proj']]
    m_out, c_out = blk['m_out'], blk['c_out']
    kernel = functools.partial(_ir_block_kernel, expand=blk['expand'],
                               use_res=blk['use_res'], center=blk['center'],
                               tap_ids=blk['tap_ids'])
    return pl.pallas_call(
        kernel,
        out_shape=jax.ShapeDtypeStruct((m_out, c_out), jnp.float32),
        grid=(1,),
        in_specs=[_full_spec(a.shape) for a in args],
        out_specs=_full_spec((m_out, c_out)),
        compiler_params=_COMPILER_PARAMS,
    )(*args)


def _tail_call(x, tail):
    n = tail['pool'].shape[0]
    nc = tail['fc_w'].shape[1]
    args = (x, tail['w'], tail['b'], tail['pool'], tail['fc_w'], tail['fc_b'])
    kernel = functools.partial(_tail_kernel, inv_hw=tail['inv_hw'])
    return pl.pallas_call(
        kernel,
        out_shape=jax.ShapeDtypeStruct((n, nc), jnp.float32),
        grid=(1,),
        in_specs=[_full_spec(a.shape) for a in args],
        out_specs=_full_spec((n, nc)),
        compiler_params=_COMPILER_PARAMS,
    )(*args)


# ----------------------------------------------------------------------------
# Glue: im2col for the stem conv only (raw input, 3 channels — tiny) and
# precomputed depthwise tap-selection matrices (static, built once).
# ----------------------------------------------------------------------------
def _out_hw(h, w, stride):
    return (h + 2 - 3) // stride + 1, (w + 2 - 3) // stride + 1


def _extract_patches_3x3(x, stride):
    # x: (N, H, W, C), padding=1. Returns (9, N, Ho, Wo, C) in (kh, kw) order.
    n, h, w, c = x.shape
    xp = jnp.pad(x, ((0, 0), (1, 1), (1, 1), (0, 0)))
    ho, wo = _out_hw(h, w, stride)
    pats = []
    for kh in range(3):
        for kw in range(3):
            sl = xp[:, kh:kh + stride * (ho - 1) + 1:stride,
                       kw:kw + stride * (wo - 1) + 1:stride, :]
            pats.append(sl)
    return jnp.stack(pats, axis=0), ho, wo


def _dw_selection(batch, h, w, stride):
    # 0/1 selection matrix per 3x3 tap mapping flattened (n,i,j) output rows to
    # flattened input rows (padding=1 => out-of-range taps are all-zero rows).
    ho, wo = _out_hw(h, w, stride)
    m_in, m_out = batch * h * w, batch * ho * wo
    sels, tap_ids = [], []
    for kh in range(3):
        for kw in range(3):
            s = np.zeros((m_out, m_in), np.float32)
            valid = False
            for n in range(batch):
                for i in range(ho):
                    for j in range(wo):
                        ih = i * stride + kh - 1
                        iw = j * stride + kw - 1
                        if 0 <= ih < h and 0 <= iw < w:
                            s[n * ho * wo + i * wo + j,
                              n * h * w + ih * w + iw] = 1.0
                            valid = True
            if valid:
                sels.append(s)
                tap_ids.append(kh * 3 + kw)
    sel = jnp.asarray(np.stack(sels, axis=0), dtype=jnp.bfloat16)
    return sel, tuple(tap_ids)


# ----------------------------------------------------------------------------
# Parameter / plan construction ('tiny' config, PyTorch init recipe,
# inference-mode BN folded into the conv weights).
# ----------------------------------------------------------------------------
def build_mobilenet_tiny(key, batch, in_h, in_w, input_channel=3, num_classes=10):
    settings = [[1, 8, 1, 1], [6, 16, 2, 2], [6, 16, 3, 2], [6, 24, 4, 2],
                [6, 32, 3, 1], [6, 64, 3, 2], [6, 128, 1, 1]]   # 'tiny'
    first_channels = 8
    last_channel = 256
    bn_scale = 1.0 / math.sqrt(1.0 + EPS)   # gamma=1, beta=0, mean=0, var=1

    keys = list(jax.random.split(key, 256))
    kidx = [0]

    def nk():
        k = keys[kidx[0]]
        kidx[0] += 1
        return k

    def normal(shape, std):
        return std * jax.random.normal(nk(), shape, jnp.float32)

    # stem: 3x3 conv stride 2 (torch weight (Cout,Cin,3,3) -> ours (9*Cin, Cout))
    std = math.sqrt(2.0 / (3 * 3 * first_channels))
    stem_w = normal((9, input_channel, first_channels), std).reshape(
        9 * input_channel, first_channels) * bn_scale
    stem = dict(w=stem_w.astype(jnp.bfloat16),
                b=jnp.zeros((1, first_channels), jnp.float32),
                stride=2)
    h, w = _out_hw(in_h, in_w, 2)

    blocks = []
    inp = first_channels
    for t, c, n, s in settings:
        oup = c
        for i in range(n):
            stride = s if i == 0 else 1
            hidden = int(round(inp * t))
            expand = (t != 1)
            use_res = (stride == 1 and inp == oup)
            center = (h == 1 and w == 1)   # only centre tap of padded 3x3 valid
            blk = dict(expand=expand, use_res=use_res, center=center)
            if expand:
                blk['w_exp'] = (normal((inp, hidden), math.sqrt(2.0 / hidden))
                                * bn_scale).astype(jnp.bfloat16)
                blk['b_exp'] = jnp.zeros((1, hidden), jnp.float32)
            blk['w_dw'] = normal((9, 1, hidden),
                                 math.sqrt(2.0 / (9 * hidden))) * bn_scale
            blk['b_dw'] = jnp.zeros((1, hidden), jnp.float32)
            blk['w_proj'] = (normal((hidden, oup), math.sqrt(2.0 / oup))
                             * bn_scale).astype(jnp.bfloat16)
            blk['b_proj'] = jnp.zeros((1, oup), jnp.float32)
            if center:
                blk['sel'] = None
                blk['tap_ids'] = (4,)
            else:
                blk['sel'], blk['tap_ids'] = _dw_selection(batch, h, w, stride)
            ho, wo = _out_hw(h, w, stride)
            blk['m_out'] = batch * ho * wo
            blk['c_out'] = oup
            blocks.append(blk)
            inp = oup
            h, w = ho, wo

    # tail: final 1x1 conv (BN folded) + global avg pool + Linear classifier
    w_last = (normal((inp, last_channel), math.sqrt(2.0 / last_channel))
              * bn_scale).astype(jnp.bfloat16)
    b_last = jnp.zeros((1, last_channel), jnp.float32)
    fc_w = normal((last_channel, num_classes), 0.01).astype(jnp.bfloat16)
    fc_b = jnp.zeros((1, num_classes), jnp.float32)
    hw = h * w
    pool = np.zeros((batch, batch * hw), np.float32)
    for n in range(batch):
        pool[n, n * hw:(n + 1) * hw] = 1.0
    tail = dict(w=w_last, b=b_last, fc_w=fc_w, fc_b=fc_b,
                pool=jnp.asarray(pool, dtype=jnp.bfloat16),
                inv_hw=1.0 / float(hw))
    return dict(stem=stem, blocks=blocks, tail=tail)


# ----------------------------------------------------------------------------
# Forward pass
# ----------------------------------------------------------------------------
def mobilenetv2_forward(x_nchw, model):
    x = jnp.transpose(x_nchw, (0, 2, 3, 1)).astype(jnp.float32)   # NCHW -> NHWC
    n, _, _, cin = x.shape
    # im2col only for the stem conv (raw 3-channel input; cheap XLA glue).
    patches, ho, wo = _extract_patches_3x3(x, model['stem']['stride'])
    pm = patches.transpose(1, 2, 3, 0, 4).reshape(n * ho * wo, 9 * cin)
    x = _stem_call(pm.astype(jnp.bfloat16), model['stem'])        # (M, C0) f32
    for blk in model['blocks']:
        x = _ir_block_call(x, blk)                                # (M', C') f32
    return _tail_call(x, model['tail'])                           # (N, classes)


# TODO(synk): PReLU activation branch of the PyTorch module is not exercised
# (default activation='relu'); only the ReLU path is implemented.
# TODO(synk): only the 'tiny' config is wired (the 'ori'/'lv' settings and
# widen_factor scaling would reuse the same kernels with different channel
# counts); BatchNorm is inference-mode (running stats) folded into weights.

if __name__ == "__main__":
    key = jax.random.PRNGKey(0)
    k_param, k_input = jax.random.split(key)

    num_classes = 10
    N, CIN, H, W = 2, 3, 16, 16

    model = build_mobilenet_tiny(k_param, batch=N, in_h=H, in_w=W,
                                 input_channel=CIN, num_classes=num_classes)

    x = jax.random.normal(k_input, (N, CIN, H, W), jnp.float32)   # NCHW like PyTorch

    fwd = jax.jit(lambda inp: mobilenetv2_forward(inp, model))
    logits = fwd(x)
    jax.block_until_ready(logits)
    assert logits.shape == (N, num_classes), logits.shape
    print("KERNEL_OK")
</pallas_src>

<mosaic_0001>
module attributes {stable_mosaic.version = 11 : i64} {
  func.func @_stem_kernel(%arg0: i32, %arg1: memref<128x27xbf16, #tpu.memory_space<vmem>>, %arg2: memref<27x8xbf16, #tpu.memory_space<vmem>>, %arg3: memref<1x8xf32, #tpu.memory_space<vmem>>, %arg4: memref<128x8xf32, #tpu.memory_space<vmem>>) attributes {dimension_semantics = [#tpu.dimension_semantics<arbitrary>], iteration_bounds = array<i64: 1>, scalar_prefetch = 0 : i64, scratch_operands = 0 : i64, tpu.core_type = #tpu.core_type<tc>, window_params = [{pipeline_mode = #tpu.pipeline_mode<synchronous>, transform_indices = @transform_0, window_bounds = array<i64: 128, 27>}, {pipeline_mode = #tpu.pipeline_mode<synchronous>, transform_indices = @transform_1, window_bounds = array<i64: 27, 8>}, {pipeline_mode = #tpu.pipeline_mode<synchronous>, transform_indices = @transform_2, window_bounds = array<i64: 1, 8>}, {pipeline_mode = #tpu.pipeline_mode<synchronous>, transform_indices = @transform_3, window_bounds = array<i64: 128, 8>}]} {
    %c0 = arith.constant 0 : index
    %c0_0 = arith.constant 0 : index
    %0 = vector.load %arg1[%c0, %c0_0] : memref<128x27xbf16, #tpu.memory_space<vmem>>, vector<128x27xbf16>
    %c0_1 = arith.constant 0 : index
    %c0_2 = arith.constant 0 : index
    %1 = vector.load %arg2[%c0_1, %c0_2] : memref<27x8xbf16, #tpu.memory_space<vmem>>, vector<27x8xbf16>
    %cst = arith.constant dense<0.000000e+00> : vector<128x8xf32>
    %2 = tpu.matmul %0, %1, %cst {dimension_numbers = #tpu.dot_dimension_numbers<[1], [0], [0], [1], [0, 0, 1, 1], [], []>} : vector<128x27xbf16>, vector<27x8xbf16>, vector<128x8xf32> -> vector<128x8xf32>
    %c0_3 = arith.constant 0 : index
    %c0_4 = arith.constant 0 : index
    %3 = vector.load %arg3[%c0_3, %c0_4] : memref<1x8xf32, #tpu.memory_space<vmem>>, vector<1x8xf32>
    %4 = vector.broadcast %3 : vector<1x8xf32> to vector<128x8xf32>
    %5 = arith.addf %2, %4 : vector<128x8xf32>
    %cst_5 = arith.constant 0.000000e+00 : f32
    %6 = vector.broadcast %cst_5 : f32 to vector<128x8xf32>
    %7 = arith.maximumf %5, %6 : vector<128x8xf32>
    %c0_6 = arith.constant 0 : index
    %c0_7 = arith.constant 0 : index
    %8 = vector.load %arg4[%c0_6, %c0_7] : memref<128x8xf32, #tpu.memory_space<vmem>>, vector<128x8xf32>
    tpu.vector_store %arg4[%c0_6, %c0_7], %7 {strides = array<i32>} : memref<128x8xf32, #tpu.memory_space<vmem>>, vector<128x8xf32>,
    return
  }
  func.func @transform_0(%arg0: i32) -> (i32, i32) {
    %c0_i32 = arith.constant 0 : i32
    %c0_i32_0 = arith.constant 0 : i32
    %c0_i32_1 = arith.constant 0 : i32
    return %c0_i32, %c0_i32_0 : i32, i32
  }
  func.func @transform_1(%arg0: i32) -> (i32, i32) {
    %c0_i32 = arith.constant 0 : i32
    %c0_i32_0 = arith.constant 0 : i32
    %c0_i32_1 = arith.constant 0 : i32
    return %c0_i32, %c0_i32_0 : i32, i32
  }
  func.func @transform_2(%arg0: i32) -> (i32, i32) {
    %c0_i32 = arith.constant 0 : i32
    %c0_i32_0 = arith.constant 0 : i32
    %c0_i32_1 = arith.constant 0 : i32
    return %c0_i32, %c0_i32_0 : i32, i32
  }
  func.func @transform_3(%arg0: i32) -> (i32, i32) {
    %c0_i32 = arith.constant 0 : i32
    %c0_i32_0 = arith.constant 0 : i32
    %c0_i32_1 = arith.constant 0 : i32
    return %c0_i32, %c0_i32_0 : i32, i32
  }
}

module attributes {stable_mosaic.version = 11 : i64} {
  func.func @_ir_block_kernel(%arg0: i32, %arg1: memref<128x8xf32, #tpu.memory_space<vmem>>, %arg2: memref<9x128x128xbf16, #tpu.memory_space<vmem>>, %arg3: memref<9x1x8xf32, #tpu.memory_space<vmem>>, %arg4: memref<1x8xf32, #tpu.memory_space<vmem>>, %arg5: memref<8x8xbf16, #tpu.memory_space<vmem>>, %arg6: memref<1x8xf32, #tpu.memory_space<vmem>>, %arg7: memref<128x8xf32, #tpu.memory_space<vmem>>) attributes {dimension_semantics = [#tpu.dimension_semantics<arbitrary>], iteration_bounds = array<i64: 1>, scalar_prefetch = 0 : i64, scratch_operands = 0 : i64, tpu.core_type = #tpu.core_type<tc>, window_params = [{pipeline_mode = #tpu.pipeline_mode<synchronous>, transform_indices = @transform_0, window_bounds = array<i64: 128, 8>}, {pipeline_mode = #tpu.pipeline_mode<synchronous>, transform_indices = @transform_1, window_bounds = array<i64: 9, 128, 128>}, {pipeline_mode = #tpu.pipeline_mode<synchronous>, transform_indices = @transform_2, window_bounds = array<i64: 9, 1, 8>}, {pipeline_mode = #tpu.pipeline_mode<synchronous>, transform_indices = @transform_3, window_bounds = array<i64: 1, 8>}, {pipeline_mode = #tpu.pipeline_mode<synchronous>, transform_indices = @transform_4, window_bounds = array<i64: 8, 8>}, {pipeline_mode = #tpu.pipeline_mode<synchronous>, transform_indices = @transform_5, window_bounds = array<i64: 1, 8>}, {pipeline_mode = #tpu.pipeline_mode<synchronous>, transform_indices = @transform_6, window_bounds = array<i64: 128, 8>}]} {
    %c0 = arith.constant 0 : index
    %c0_0 = arith.constant 0 : index
    %0 = vector.load %arg1[%c0, %c0_0] : memref<128x8xf32, #tpu.memory_space<vmem>>, vector<128x8xf32>
    %1 = arith.truncf %0 : vector<128x8xf32> to vector<128x8xbf16>
    %c0_1 = arith.constant 0 : index
    %c0_2 = arith.constant 0 : index
    %c0_3 = arith.constant 0 : index
    %2 = vector.load %arg2[%c0_1, %c0_2, %c0_3] : memref<9x128x128xbf16, #tpu.memory_space<vmem>>, vector<1x128x128xbf16>
    %3 = vector.shape_cast %2 : vector<1x128x128xbf16> to vector<128x128xbf16>
    %cst = arith.constant dense<0.000000e+00> : vector<128x8xf32>
    %4 = tpu.matmul %3, %1, %cst {dimension_numbers = #tpu.dot_dimension_numbers<[1], [0], [0], [1], [0, 0, 1, 1], [], []>} : vector<128x128xbf16>, vector<128x8xbf16>, vector<128x8xf32> -> vector<128x8xf32>
    %c0_4 = arith.constant 0 : index
    %c0_5 = arith.constant 0 : index
    %c0_6 = arith.constant 0 : index
    %5 = vector.load %arg3[%c0_4, %c0_5, %c0_6] : memref<9x1x8xf32, #tpu.memory_space<vmem>>, vector<1x1x8xf32>
    %6 = vector.shape_cast %5 : vector<1x1x8xf32> to vector<1x8xf32>
    %7 = vector.broadcast %6 : vector<1x8xf32> to vector<128x8xf32>
    %8 = arith.mulf %4, %7 : vector<128x8xf32>
    %c1 = arith.constant 1 : index
    %c0_7 = arith.constant 0 : index
    %c0_8 = arith.constant 0 : index
    %9 = vector.load %arg2[%c1, %c0_7, %c0_8] : memref<9x128x128xbf16, #tpu.memory_space<vmem>>, vector<1x128x128xbf16>
    %10 = vector.shape_cast %9 : vector<1x128x128xbf16> to vector<128x128xbf16>
    %cst_9 = arith.constant dense<0.000000e+00> : vector<128x8xf32>
    %11 = tpu.matmul %10, %1, %cst_9 {dimension_numbers = #tpu.dot_dimension_numbers<[1], [0], [0], [1], [0, 0, 1, 1], [], []>} : vector<128x128xbf16>, vector<128x8xbf16>, vector<128x8xf32> -> vector<128x8xf32>
    %c1_10 = arith.constant 1 : index
    %c0_11 = arith.constant 0 : index
    %c0_12 = arith.constant 0 : index
    %12 = vector.load %arg3[%c1_10, %c0_11, %c0_12] : memref<9x1x8xf32, #tpu.memory_space<vmem>>, vector<1x1x8xf32>
    %13 = vector.shape_cast %12 : vector<1x1x8xf32> to vector<1x8xf32>
    %14 = vector.broadcast %13 : vector<1x8xf32> to vector<128x8xf32>
    %15 = arith.mulf %11, %14 : vector<128x8xf32>
    %16 = arith.addf %8, %15 : vector<128x8xf32>
    %c2 = arith.constant 2 : index
    %c0_13 = arith.constant 0 : index
    %c0_14 = arith.constant 0 : index
    %17 = vector.load %arg2[%c2, %c0_13, %c0_14] : memref<9x128x128xbf16, #tpu.memory_space<vmem>>, vector<1x128x128xbf16>
    %18 = vector.shape_cast %17 : vector<1x128x128xbf16> to vector<128x128xbf16>
    %cst_15 = arith.constant dense<0.000000e+00> : vector<128x8xf32>
    %19 = tpu.matmul %18, %1, %cst_15 {dimension_numbers = #tpu.dot_dimension_numbers<[1], [0], [0], [1], [0, 0, 1, 1], [], []>} : vector<128x128xbf16>, vector<128x8xbf16>, vector<128x8xf32> -> vector<128x8xf32>
    %c2_16 = arith.constant 2 : index
    %c0_17 = arith.constant 0 : index
    %c0_18 = arith.constant 0 : index
    %20 = vector.load %arg3[%c2_16, %c0_17, %c0_18] : memref<9x1x8xf32, #tpu.memory_space<vmem>>, vector<1x1x8xf32>
    %21 = vector.shape_cast %20 : vector<1x1x8xf32> to vector<1x8xf32>
    %22 = vector.broadcast %21 : vector<1x8xf32> to vector<128x8xf32>
    %23 = arith.mulf %19, %22 : vector<128x8xf32>
    %24 = arith.addf %16, %23 : vector<128x8xf32>
    %c3 = arith.constant 3 : index
    %c0_19 = arith.constant 0 : index
    %c0_20 = arith.constant 0 : index
    %25 = vector.load %arg2[%c3, %c0_19, %c0_20] : memref<9x128x128xbf16, #tpu.memory_space<vmem>>, vector<1x128x128xbf16>
    %26 = vector.shape_cast %25 : vector<1x128x128xbf16> to vector<128x128xbf16>
    %cst_21 = arith.constant dense<0.000000e+00> : vector<128x8xf32>
    %27 = tpu.matmul %26, %1, %cst_21 {dimension_numbers = #tpu.dot_dimension_numbers<[1], [0], [0], [1], [0, 0, 1, 1], [], []>} : vector<128x128xbf16>, vector<128x8xbf16>, vector<128x8xf32> -> vector<128x8xf32>
    %c3_22 = arith.constant 3 : index
    %c0_23 = arith.constant 0 : index
    %c0_24 = arith.constant 0 : index
    %28 = vector.load %arg3[%c3_22, %c0_23, %c0_24] : memref<9x1x8xf32, #tpu.memory_space<vmem>>, vector<1x1x8xf32>
    %29 = vector.shape_cast %28 : vector<1x1x8xf32> to vector<1x8xf32>
    %30 = vector.broadcast %29 : vector<1x8xf32> to vector<128x8xf32>
    %31 = arith.mulf %27, %30 : vector<128x8xf32>
    %32 = arith.addf %24, %31 : vector<128x8xf32>
    %c4 = arith.constant 4 : index
    %c0_25 = arith.constant 0 : index
    %c0_26 = arith.constant 0 : index
    %33 = vector.load %arg2[%c4, %c0_25, %c0_26] : memref<9x128x128xbf16, #tpu.memory_space<vmem>>, vector<1x128x128xbf16>
    %34 = vector.shape_cast %33 : vector<1x128x128xbf16> to vector<128x128xbf16>
    %cst_27 = arith.constant dense<0.000000e+00> : vector<128x8xf32>
    %35 = tpu.matmul %34, %1, %cst_27 {dimension_numbers = #tpu.dot_dimension_numbers<[1], [0], [0], [1], [0, 0, 1, 1], [], []>} : vector<128x128xbf16>, vector<128x8xbf16>, vector<128x8xf32> -> vector<128x8xf32>
    %c4_28 = arith.constant 4 : index
    %c0_29 = arith.constant 0 : index
    %c0_30 = arith.constant 0 : index
    %36 = vector.load %arg3[%c4_28, %c0_29, %c0_30] : memref<9x1x8xf32, #tpu.memory_space<vmem>>, vector<1x1x8xf32>
    %37 = vector.shape_cast %36 : vector<1x1x8xf32> to vector<1x8xf32>
    %38 = vector.broadcast %37 : vector<1x8xf32> to vector<128x8xf32>
    %39 = arith.mulf %35, %38 : vector<128x8xf32>
    %40 = arith.addf %32, %39 : vector<128x8xf32>
    %c5 = arith.constant 5 : index
    %c0_31 = arith.constant 0 : index
    %c0_32 = arith.constant 0 : index
    %41 = vector.load %arg2[%c5, %c0_31, %c0_32] : memref<9x128x128xbf16, #tpu.memory_space<vmem>>, vector<1x128x128xbf16>
    %42 = vector.shape_cast %41 : vector<1x128x128xbf16> to vector<128x128xbf16>
    %cst_33 = arith.constant dense<0.000000e+00> : vector<128x8xf32>
    %43 = tpu.matmul %42, %1, %cst_33 {dimension_numbers = #tpu.dot_dimension_numbers<[1], [0], [0], [1], [0, 0, 1, 1], [], []>} : vector<128x128xbf16>, vector<128x8xbf16>, vector<128x8xf32> -> vector<128x8xf32>
    %c5_34 = arith.constant 5 : index
    %c0_35 = arith.constant 0 : index
    %c0_36 = arith.constant 0 : index
    %44 = vector.load %arg3[%c5_34, %c0_35, %c0_36] : memref<9x1x8xf32, #tpu.memory_space<vmem>>, vector<1x1x8xf32>
    %45 = vector.shape_cast %44 : vector<1x1x8xf32> to vector<1x8xf32>
    %46 = vector.broadcast %45 : vector<1x8xf32> to vector<128x8xf32>
    %47 = arith.mulf %43, %46 : vector<128x8xf32>
    %48 = arith.addf %40, %47 : vector<128x8xf32>
    %c6 = arith.constant 6 : index
    %c0_37 = arith.constant 0 : index
    %c0_38 = arith.constant 0 : index
    %49 = vector.load %arg2[%c6, %c0_37, %c0_38] : memref<9x128x128xbf16, #tpu.memory_space<vmem>>, vector<1x128x128xbf16>
    %50 = vector.shape_cast %49 : vector<1x128x128xbf16> to vector<128x128xbf16>
    %cst_39 = arith.constant dense<0.000000e+00> : vector<128x8xf32>
    %51 = tpu.matmul %50, %1, %cst_39 {dimension_numbers = #tpu.dot_dimension_numbers<[1], [0], [0], [1], [0, 0, 1, 1], [], []>} : vector<128x128xbf16>, vector<128x8xbf16>, vector<128x8xf32> -> vector<128x8xf32>
    %c6_40 = arith.constant 6 : index
    %c0_41 = arith.constant 0 : index
    %c0_42 = arith.constant 0 : index
    %52 = vector.load %arg3[%c6_40, %c0_41, %c0_42] : memref<9x1x8xf32, #tpu.memory_space<vmem>>, vector<1x1x8xf32>
    %53 = vector.shape_cast %52 : vector<1x1x8xf32> to vector<1x8xf32>
    %54 = vector.broadcast %53 : vector<1x8xf32> to vector<128x8xf32>
    %55 = arith.mulf %51, %54 : vector<128x8xf32>
    %56 = arith.addf %48, %55 : vector<128x8xf32>
    %c7 = arith.constant 7 : index
    %c0_43 = arith.constant 0 : index
    %c0_44 = arith.constant 0 : index
    %57 = vector.load %arg2[%c7, %c0_43, %c0_44] : memref<9x128x128xbf16, #tpu.memory_space<vmem>>, vector<1x128x128xbf16>
    %58 = vector.shape_cast %57 : vector<1x128x128xbf16> to vector<128x128xbf16>
    %cst_45 = arith.constant dense<0.000000e+00> : vector<128x8xf32>
    %59 = tpu.matmul %58, %1, %cst_45 {dimension_numbers = #tpu.dot_dimension_numbers<[1], [0], [0], [1], [0, 0, 1, 1], [], []>} : vector<128x128xbf16>, vector<128x8xbf16>, vector<128x8xf32> -> vector<128x8xf32>
    %c7_46 = arith.constant 7 : index
    %c0_47 = arith.constant 0 : index
    %c0_48 = arith.constant 0 : index
    %60 = vector.load %arg3[%c7_46, %c0_47, %c0_48] : memref<9x1x8xf32, #tpu.memory_space<vmem>>, vector<1x1x8xf32>
    %61 = vector.shape_cast %60 : vector<1x1x8xf32> to vector<1x8xf32>
    %62 = vector.broadcast %61 : vector<1x8xf32> to vector<128x8xf32>
    %63 = arith.mulf %59, %62 : vector<128x8xf32>
    %64 = arith.addf %56, %63 : vector<128x8xf32>
    %c8 = arith.constant 8 : index
    %c0_49 = arith.constant 0 : index
    %c0_50 = arith.constant 0 : index
    %65 = vector.load %arg2[%c8, %c0_49, %c0_50] : memref<9x128x128xbf16, #tpu.memory_space<vmem>>, vector<1x128x128xbf16>
    %66 = vector.shape_cast %65 : vector<1x128x128xbf16> to vector<128x128xbf16>
    %cst_51 = arith.constant dense<0.000000e+00> : vector<128x8xf32>
    %67 = tpu.matmul %66, %1, %cst_51 {dimension_numbers = #tpu.dot_dimension_numbers<[1], [0], [0], [1], [0, 0, 1, 1], [], []>} : vector<128x128xbf16>, vector<128x8xbf16>, vector<128x8xf32> -> vector<128x8xf32>
    %c8_52 = arith.constant 8 : index
    %c0_53 = arith.constant 0 : index
    %c0_54 = arith.constant 0 : index
    %68 = vector.load %arg3[%c8_52, %c0_53, %c0_54] : memref<9x1x8xf32, #tpu.memory_space<vmem>>, vector<1x1x8xf32>
    %69 = vector.shape_cast %68 : vector<1x1x8xf32> to vector<1x8xf32>
    %70 = vector.broadcast %69 : vector<1x8xf32> to vector<128x8xf32>
    %71 = arith.mulf %67, %70 : vector<128x8xf32>
    %72 = arith.addf %64, %71 : vector<128x8xf32>
    %c0_55 = arith.constant 0 : index
    %c0_56 = arith.constant 0 : index
    %73 = vector.load %arg4[%c0_55, %c0_56] : memref<1x8xf32, #tpu.memory_space<vmem>>, vector<1x8xf32>
    %74 = vector.broadcast %73 : vector<1x8xf32> to vector<128x8xf32>
    %75 = arith.addf %72, %74 : vector<128x8xf32>
    %cst_57 = arith.constant 0.000000e+00 : f32
    %76 = vector.broadcast %cst_57 : f32 to vector<128x8xf32>
    %77 = arith.maximumf %75, %76 : vector<128x8xf32>
    %78 = arith.truncf %77 : vector<128x8xf32> to vector<128x8xbf16>
    %c0_58 = arith.constant 0 : index
    %c0_59 = arith.constant 0 : index
    %79 = vector.load %arg5[%c0_58, %c0_59] : memref<8x8xbf16, #tpu.memory_space<vmem>>, vector<8x8xbf16>
    %cst_60 = arith.constant dense<0.000000e+00> : vector<128x8xf32>
    %80 = tpu.matmul %78, %79, %cst_60 {dimension_numbers = #tpu.dot_dimension_numbers<[1], [0], [0], [1], [0, 0, 1, 1], [], []>} : vector<128x8xbf16>, vector<8x8xbf16>, vector<128x8xf32> -> vector<128x8xf32>
    %c0_61 = arith.constant 0 : index
    %c0_62 = arith.constant 0 : index
    %81 = vector.load %arg6[%c0_61, %c0_62] : memref<1x8xf32, #tpu.memory_space<vmem>>, vector<1x8xf32>
    %82 = vector.broadcast %81 : vector<1x8xf32> to vector<128x8xf32>
    %83 = arith.addf %80, %82 : vector<128x8xf32>
    %84 = arith.addf %83, %0 : vector<128x8xf32>
    %c0_63 = arith.constant 0 : index
    %c0_64 = arith.constant 0 : index
    %85 = vector.load %arg7[%c0_63, %c0_64] : memref<128x8xf32, #tpu.memory_space<vmem>>, vector<128x8xf32>
    tpu.vector_store %arg7[%c0_63, %c0_64], %84 {strides = array<i32>} : memref<128x8xf32, #tpu.memory_space<vmem>>, vector<128x8xf32>,
    return
  }
  func.func @transform_0(%arg0: i32) -> (i32, i32) {
    %c0_i32 = arith.constant 0 : i32
    %c0_i32_0 = arith.constant 0 : i32
    %c0_i32_1 = arith.constant 0 : i32
    return %c0_i32, %c0_i32_0 : i32, i32
  }
  func.func @transform_1(%arg0: i32) -> (i32, i32, i32) {
    %c0_i32 = arith.constant 0 : i32
    %c0_i32_0 = arith.constant 0 : i32
    %c0_i32_1 = arith.constant 0 : i32
    %c0_i32_2 = arith.constant 0 : i32
    return %c0_i32, %c0_i32_0, %c0_i32_1 : i32, i32, i32
  }
  func.func @transform_2(%arg0: i32) -> (i32, i32, i32) {
    %c0_i32 = arith.constant 0 : i32
    %c0_i32_0 = arith.constant 0 : i32
    %c0_i32_1 = arith.constant 0 : i32
    %c0_i32_2 = arith.constant 0 : i32
    return %c0_i32, %c0_i32_0, %c0_i32_1 : i32, i32, i32
  }
  func.func @transform_3(%arg0: i32) -> (i32, i32) {
    %c0_i32 = arith.constant 0 : i32
    %c0_i32_0 = arith.constant 0 : i32
    %c0_i32_1 = arith.constant 0 : i32
    return %c0_i32, %c0_i32_0 : i32, i32
  }
  func.func @transform_4(%arg0: i32) -> (i32, i32) {
    %c0_i32 = arith.constant 0 : i32
    %c0_i32_0 = arith.constant 0 : i32
    %c0_i32_1 = arith.constant 0 : i32
    return %c0_i32, %c0_i32_0 : i32, i32
  }
  func.func @transform_5(%arg0: i32) -> (i32, i32) {
    %c0_i32 = arith.constant 0 : i32
    %c0_i32_0 = arith.constant 0 : i32
    %c0_i32_1 = arith.constant 0 : i32
    return %c0_i32, %c0_i32_0 : i32, i32
  }
  func.func @transform_6(%arg0: i32) -> (i32, i32) {
    %c0_i32 = arith.constant 0 : i32
    %c0_i32_0 = arith.constant 0 : i32
    %c0_i32_1 = arith.constant 0 : i32
    return %c0_i32, %c0_i32_0 : i32, i32
  }
}

module attributes {stable_mosaic.version = 11 : i64} {
  func.func @_ir_block_kernel(%arg0: i32, %arg1: memref<128x8xf32, #tpu.memory_space<vmem>>, %arg2: memref<8x48xbf16, #tpu.memory_space<vmem>>, %arg3: memref<1x48xf32, #tpu.memory_space<vmem>>, %arg4: memref<9x32x128xbf16, #tpu.memory_space<vmem>>, %arg5: memref<9x1x48xf32, #tpu.memory_space<vmem>>, %arg6: memref<1x48xf32, #tpu.memory_space<vmem>>, %arg7: memref<48x16xbf16, #tpu.memory_space<vmem>>, %arg8: memref<1x16xf32, #tpu.memory_space<vmem>>, %arg9: memref<32x16xf32, #tpu.memory_space<vmem>>) attributes {dimension_semantics = [#tpu.dimension_semantics<arbitrary>], iteration_bounds = array<i64: 1>, scalar_prefetch = 0 : i64, scratch_operands = 0 : i64, tpu.core_type = #tpu.core_type<tc>, window_params = [{pipeline_mode = #tpu.pipeline_mode<synchronous>, transform_indices = @transform_0, window_bounds = array<i64: 128, 8>}, {pipeline_mode = #tpu.pipeline_mode<synchronous>, transform_indices = @transform_1, window_bounds = array<i64: 8, 48>}, {pipeline_mode = #tpu.pipeline_mode<synchronous>, transform_indices = @transform_2, window_bounds = array<i64: 1, 48>}, {pipeline_mode = #tpu.pipeline_mode<synchronous>, transform_indices = @transform_3, window_bounds = array<i64: 9, 32, 128>}, {pipeline_mode = #tpu.pipeline_mode<synchronous>, transform_indices = @transform_4, window_bounds = array<i64: 9, 1, 48>}, {pipeline_mode = #tpu.pipeline_mode<synchronous>, transform_indices = @transform_5, window_bounds = array<i64: 1, 48>}, {pipeline_mode = #tpu.pipeline_mode<synchronous>, transform_indices = @transform_6, window_bounds = array<i64: 48, 16>}, {pipeline_mode = #tpu.pipeline_mode<synchronous>, transform_indices = @transform_7, window_bounds = array<i64: 1, 16>}, {pipeline_mode = #tpu.pipeline_mode<synchronous>, transform_indices = @transform_8, window_bounds = array<i64: 32, 16>}]} {
    %c0 = arith.constant 0 : index
    %c0_0 = arith.constant 0 : index
    %0 = vector.load %arg1[%c0, %c0_0] : memref<128x8xf32, #tpu.memory_space<vmem>>, vector<128x8xf32>
    %1 = arith.truncf %0 : vector<128x8xf32> to vector<128x8xbf16>
    %c0_1 = arith.constant 0 : index
    %c0_2 = arith.constant 0 : index
    %2 = vector.load %arg2[%c0_1, %c0_2] : memref<8x48xbf16, #tpu.memory_space<vmem>>, vector<8x48xbf16>
    %cst = arith.constant dense<0.000000e+00> : vector<128x48xf32>
    %3 = tpu.matmul %1, %2, %cst {dimension_numbers = #tpu.dot_dimension_numbers<[1], [0], [0], [1], [0, 0, 1, 1], [], []>} : vector<128x8xbf16>, vector<8x48xbf16>, vector<128x48xf32> -> vector<128x48xf32>
    %c0_3 = arith.constant 0 : index
    %c0_4 = arith.constant 0 : index
    %4 = vector.load %arg3[%c0_3, %c0_4] : memref<1x48xf32, #tpu.memory_space<vmem>>, vector<1x48xf32>
    %5 = vector.broadcast %4 : vector<1x48xf32> to vector<128x48xf32>
    %6 = arith.addf %3, %5 : vector<128x48xf32>
    %cst_5 = arith.constant 0.000000e+00 : f32
    %7 = vector.broadcast %cst_5 : f32 to vector<128x48xf32>
    %8 = arith.maximumf %6, %7 : vector<128x48xf32>
    %9 = arith.truncf %8 : vector<128x48xf32> to vector<128x48xbf16>
    %c0_6 = arith.constant 0 : index
    %c0_7 = arith.constant 0 : index
    %c0_8 = arith.constant 0 : index
    %10 = vector.load %arg4[%c0_6, %c0_7, %c0_8] : memref<9x32x128xbf16, #tpu.memory_space<vmem>>, vector<1x32x128xbf16>
    %11 = vector.shape_cast %10 : vector<1x32x128xbf16> to vector<32x128xbf16>
    %cst_9 = arith.constant dense<0.000000e+00> : vector<32x48xf32>
    %12 = tpu.matmul %11, %9, %cst_9 {dimension_numbers = #tpu.dot_dimension_numbers<[1], [0], [0], [1], [0, 0, 1, 1], [], []>} : vector<32x128xbf16>, vector<128x48xbf16>, vector<32x48xf32> -> vector<32x48xf32>
    %c0_10 = arith.constant 0 : index
    %c0_11 = arith.constant 0 : index
    %c0_12 = arith.constant 0 : index
    %13 = vector.load %arg5[%c0_10, %c0_11, %c0_12] : memref<9x1x48xf32, #tpu.memory_space<vmem>>, vector<1x1x48xf32>
    %14 = vector.shape_cast %13 : vector<1x1x48xf32> to vector<1x48xf32>
    %15 = vector.broadcast %14 : vector<1x48xf32> to vector<32x48xf32>
    %16 = arith.mulf %12, %15 : vector<32x48xf32>
    %c1 = arith.constant 1 : index
    %c0_13 = arith.constant 0 : index
    %c0_14 = arith.constant 0 : index
    %17 = vector.load %arg4[%c1, %c0_13, %c0_14] : memref<9x32x128xbf16, #tpu.memory_space<vmem>>, vector<1x32x128xbf16>
    %18 = vector.shape_cast %17 : vector<1x32x128xbf16> to vector<32x128xbf16>
    %cst_15 = arith.constant dense<0.000000e+00> : vector<32x48xf32>
    %19 = tpu.matmul %18, %9, %cst_15 {dimension_numbers = #tpu.dot_dimension_numbers<[1], [0], [0], [1], [0, 0, 1, 1], [], []>} : vector<32x128xbf16>, vector<128x48xbf16>, vector<32x48xf32> -> vector<32x48xf32>
    %c1_16 = arith.constant 1 : index
    %c0_17 = arith.constant 0 : index
    %c0_18 = arith.constant 0 : index
    %20 = vector.load %arg5[%c1_16, %c0_17, %c0_18] : memref<9x1x48xf32, #tpu.memory_space<vmem>>, vector<1x1x48xf32>
    %21 = vector.shape_cast %20 : vector<1x1x48xf32> to vector<1x48xf32>
    %22 = vector.broadcast %21 : vector<1x48xf32> to vector<32x48xf32>
    %23 = arith.mulf %19, %22 : vector<32x48xf32>
    %24 = arith.addf %16, %23 : vector<32x48xf32>
    %c2 = arith.constant 2 : index
    %c0_19 = arith.constant 0 : index
    %c0_20 = arith.constant 0 : index
    %25 = vector.load %arg4[%c2, %c0_19, %c0_20] : memref<9x32x128xbf16, #tpu.memory_space<vmem>>, vector<1x32x128xbf16>
    %26 = vector.shape_cast %25 : vector<1x32x128xbf16> to vector<32x128xbf16>
    %cst_21 = arith.constant dense<0.000000e+00> : vector<32x48xf32>
    %27 = tpu.matmul %26, %9, %cst_21 {dimension_numbers = #tpu.dot_dimension_numbers<[1], [0], [0], [1], [0, 0, 1, 1], [], []>} : vector<32x128xbf16>, vector<128x48xbf16>, vector<32x48xf32> -> vector<32x48xf32>
    %c2_22 = arith.constant 2 : index
    %c0_23 = arith.constant 0 : index
    %c0_24 = arith.constant 0 : index
    %28 = vector.load %arg5[%c2_22, %c0_23, %c0_24] : memref<9x1x48xf32, #tpu.memory_space<vmem>>, vector<1x1x48xf32>
    %29 = vector.shape_cast %28 : vector<1x1x48xf32> to vector<1x48xf32>
    %30 = vector.broadcast %29 : vector<1x48xf32> to vector<32x48xf32>
    %31 = arith.mulf %27, %30 : vector<32x48xf32>
    %32 = arith.addf %24, %31 : vector<32x48xf32>
    %c3 = arith.constant 3 : index
    %c0_25 = arith.constant 0 : index
    %c0_26 = arith.constant 0 : index
    %33 = vector.load %arg4[%c3, %c0_25, %c0_26] : memref<9x32x128xbf16, #tpu.memory_space<vmem>>, vector<1x32x128xbf16>
    %34 = vector.shape_cast %33 : vector<1x32x128xbf16> to vector<32x128xbf16>
    %cst_27 = arith.constant dense<0.000000e+00> : vector<32x48xf32>
    %35 = tpu.matmul %34, %9, %cst_27 {dimension_numbers = #tpu.dot_dimension_numbers<[1], [0], [0], [1], [0, 0, 1, 1], [], []>} : vector<32x128xbf16>, vector<128x48xbf16>, vector<32x48xf32> -> vector<32x48xf32>
    %c3_28 = arith.constant 3 : index
    %c0_29 = arith.constant 0 : index
    %c0_30 = arith.constant 0 : index
    %36 = vector.load %arg5[%c3_28, %c0_29, %c0_30] : memref<9x1x48xf32, #tpu.memory_space<vmem>>, vector<1x1x48xf32>
    %37 = vector.shape_cast %36 : vector<1x1x48xf32> to vector<1x48xf32>
    %38 = vector.broadcast %37 : vector<1x48xf32> to vector<32x48xf32>
    %39 = arith.mulf %35, %38 : vector<32x48xf32>
    %40 = arith.addf %32, %39 : vector<32x48xf32>
    %c4 = arith.constant 4 : index
    %c0_31 = arith.constant 0 : index
    %c0_32 = arith.constant 0 : index
    %41 = vector.load %arg4[%c4, %c0_31, %c0_32] : memref<9x32x128xbf16, #tpu.memory_space<vmem>>, vector<1x32x128xbf16>
    %42 = vector.shape_cast %41 : vector<1x32x128xbf16> to vector<32x128xbf16>
    %cst_33 = arith.constant dense<0.000000e+00> : vector<32x48xf32>
    %43 = tpu.matmul %42, %9, %cst_33 {dimension_numbers = #tpu.dot_dimension_numbers<[1], [0], [0], [1], [0, 0, 1, 1], [], []>} : vector<32x128xbf16>, vector<128x48xbf16>, vector<32x48xf32> -> vector<32x48xf32>
    %c4_34 = arith.constant 4 : index
    %c0_35 = arith.constant 0 : index
    %c0_36 = arith.constant 0 : index
    %44 = vector.load %arg5[%c4_34, %c0_35, %c0_36] : memref<9x1x48xf32, #tpu.memory_space<vmem>>, vector<1x1x48xf32>
    %45 = vector.shape_cast %44 : vector<1x1x48xf32> to vector<1x48xf32>
    %46 = vector.broadcast %45 : vector<1x48xf32> to vector<32x48xf32>
    %47 = arith.mulf %43, %46 : vector<32x48xf32>
    %48 = arith.addf %40, %47 : vector<32x48xf32>
    %c5 = arith.constant 5 : index
    %c0_37 = arith.constant 0 : index
    %c0_38 = arith.constant 0 : index
    %49 = vector.load %arg4[%c5, %c0_37, %c0_38] : memref<9x32x128xbf16, #tpu.memory_space<vmem>>, vector<1x32x128xbf16>
    %50 = vector.shape_cast %49 : vector<1x32x128xbf16> to vector<32x128xbf16>
    %cst_39 = arith.constant dense<0.000000e+00> : vector<32x48xf32>
    %51 = tpu.matmul %50, %9, %cst_39 {dimension_numbers = #tpu.dot_dimension_numbers<[1], [0], [0], [1], [0, 0, 1, 1], [], []>} : vector<32x128xbf16>, vector<128x48xbf16>, vector<32x48xf32> -> vector<32x48xf32>
    %c5_40 = arith.constant 5 : index
    %c0_41 = arith.constant 0 : index
    %c0_42 = arith.constant 0 : index
    %52 = vector.load %arg5[%c5_40, %c0_41, %c0_42] : memref<9x1x48xf32, #tpu.memory_space<vmem>>, vector<1x1x48xf32>
    %53 = vector.shape_cast %52 : vector<1x1x48xf32> to vector<1x48xf32>
    %54 = vector.broadcast %53 : vector<1x48xf32> to vector<32x48xf32>
    %55 = arith.mulf %51, %54 : vector<32x48xf32>
    %56 = arith.addf %48, %55 : vector<32x48xf32>
    %c6 = arith.constant 6 : index
    %c0_43 = arith.constant 0 : index
    %c0_44 = arith.constant 0 : index
    %57 = vector.load %arg4[%c6, %c0_43, %c0_44] : memref<9x32x128xbf16, #tpu.memory_space<vmem>>, vector<1x32x128xbf16>
    %58 = vector.shape_cast %57 : vector<1x32x128xbf16> to vector<32x128xbf16>
    %cst_45 = arith.constant dense<0.000000e+00> : vector<32x48xf32>
    %59 = tpu.matmul %58, %9, %cst_45 {dimension_numbers = #tpu.dot_dimension_numbers<[1], [0], [0], [1], [0, 0, 1, 1], [], []>} : vector<32x128xbf16>, vector<128x48xbf16>, vector<32x48xf32> -> vector<32x48xf32>
    %c6_46 = arith.constant 6 : index
    %c0_47 = arith.constant 0 : index
    %c0_48 = arith.constant 0 : index
    %60 = vector.load %arg5[%c6_46, %c0_47, %c0_48] : memref<9x1x48xf32, #tpu.memory_space<vmem>>, vector<1x1x48xf32>
    %61 = vector.shape_cast %60 : vector<1x1x48xf32> to vector<1x48xf32>
    %62 = vector.broadcast %61 : vector<1x48xf32> to vector<32x48xf32>
    %63 = arith.mulf %59, %62 : vector<32x48xf32>
    %64 = arith.addf %56, %63 : vector<32x48xf32>
    %c7 = arith.constant 7 : index
    %c0_49 = arith.constant 0 : index
    %c0_50 = arith.constant 0 : index
    %65 = vector.load %arg4[%c7, %c0_49, %c0_50] : memref<9x32x128xbf16, #tpu.memory_space<vmem>>, vector<1x32x128xbf16>
    %66 = vector.shape_cast %65 : vector<1x32x128xbf16> to vector<32x128xbf16>
    %cst_51 = arith.constant dense<0.000000e+00> : vector<32x48xf32>
    %67 = tpu.matmul %66, %9, %cst_51 {dimension_numbers = #tpu.dot_dimension_numbers<[1], [0], [0], [1], [0, 0, 1, 1], [], []>} : vector<32x128xbf16>, vector<128x48xbf16>, vector<32x48xf32> -> vector<32x48xf32>
    %c7_52 = arith.constant 7 : index
    %c0_53 = arith.constant 0 : index
    %c0_54 = arith.constant 0 : index
    %68 = vector.load %arg5[%c7_52, %c0_53, %c0_54] : memref<9x1x48xf32, #tpu.memory_space<vmem>>, vector<1x1x48xf32>
    %69 = vector.shape_cast %68 : vector<1x1x48xf32> to vector<1x48xf32>
    %70 = vector.broadcast %69 : vector<1x48xf32> to vector<32x48xf32>
    %71 = arith.mulf %67, %70 : vector<32x48xf32>
    %72 = arith.addf %64, %71 : vector<32x48xf32>
    %c8 = arith.constant 8 : index
    %c0_55 = arith.constant 0 : index
    %c0_56 = arith.constant 0 : index
    %73 = vector.load %arg4[%c8, %c0_55, %c0_56] : memref<9x32x128xbf16, #tpu.memory_space<vmem>>, vector<1x32x128xbf16>
    %74 = vector.shape_cast %73 : vector<1x32x128xbf16> to vector<32x128xbf16>
    %cst_57 = arith.constant dense<0.000000e+00> : vector<32x48xf32>
    %75 = tpu.matmul %74, %9, %cst_57 {dimension_numbers = #tpu.dot_dimension_numbers<[1], [0], [0], [1], [0, 0, 1, 1], [], []>} : vector<32x128xbf16>, vector<128x48xbf16>, vector<32x48xf32> -> vector<32x48xf32>
    %c8_58 = arith.constant 8 : index
    %c0_59 = arith.constant 0 : index
    %c0_60 = arith.constant 0 : index
    %76 = vector.load %arg5[%c8_58, %c0_59, %c0_60] : memref<9x1x48xf32, #tpu.memory_space<vmem>>, vector<1x1x48xf32>
    %77 = vector.shape_cast %76 : vector<1x1x48xf32> to vector<1x48xf32>
    %78 = vector.broadcast %77 : vector<1x48xf32> to vector<32x48xf32>
    %79 = arith.mulf %75, %78 : vector<32x48xf32>
    %80 = arith.addf %72, %79 : vector<32x48xf32>
    %c0_61 = arith.constant 0 : index
    %c0_62 = arith.constant 0 : index
    %81 = vector.load %arg6[%c0_61, %c0_62] : memref<1x48xf32, #tpu.memory_space<vmem>>, vector<1x48xf32>
    %82 = vector.broadcast %81 : vector<1x48xf32> to vector<32x48xf32>
    %83 = arith.addf %80, %82 : vector<32x48xf32>
    %cst_63 = arith.constant 0.000000e+00 : f32
    %84 = vector.broadcast %cst_63 : f32 to vector<32x48xf32>
    %85 = arith.maximumf %83, %84 : vector<32x48xf32>
    %86 = arith.truncf %85 : vector<32x48xf32> to vector<32x48xbf16>
    %c0_64 = arith.constant 0 : index
    %c0_65 = arith.constant 0 : index
    %87 = vector.load %arg7[%c0_64, %c0_65] : memref<48x16xbf16, #tpu.memory_space<vmem>>, vector<48x16xbf16>
    %cst_66 = arith.constant dense<0.000000e+00> : vector<32x16xf32>
    %88 = tpu.matmul %86, %87, %cst_66 {dimension_numbers = #tpu.dot_dimension_numbers<[1], [0], [0], [1], [0, 0, 1, 1], [], []>} : vector<32x48xbf16>, vector<48x16xbf16>, vector<32x16xf32> -> vector<32x16xf32>
    %c0_67 = arith.constant 0 : index
    %c0_68 = arith.constant 0 : index
    %89 = vector.load %arg8[%c0_67, %c0_68] : memref<1x16xf32, #tpu.memory_space<vmem>>, vector<1x16xf32>
    %90 = vector.broadcast %89 : vector<1x16xf32> to vector<32x16xf32>
    %91 = arith.addf %88, %90 : vector<32x16xf32>
    %c0_69 = arith.constant 0 : index
    %c0_70 = arith.constant 0 : index
    %92 = vector.load %arg9[%c0_69, %c0_70] : memref<32x16xf32, #tpu.memory_space<vmem>>, vector<32x16xf32>
    tpu.vector_store %arg9[%c0_69, %c0_70], %91 {strides = array<i32>} : memref<32x16xf32, #tpu.memory_space<vmem>>, vector<32x16xf32>,
    return
  }
  func.func @transform_0(%arg0: i32) -> (i32, i32) {
    %c0_i32 = arith.constant 0 : i32
    %c0_i32_0 = arith.constant 0 : i32
    %c0_i32_1 = arith.constant 0 : i32
    return %c0_i32, %c0_i32_0 : i32, i32
  }
  func.func @transform_1(%arg0: i32) -> (i32, i32) {
    %c0_i32 = arith.constant 0 : i32
    %c0_i32_0 = arith.constant 0 : i32
    %c0_i32_1 = arith.constant 0 : i32
    return %c0_i32, %c0_i32_0 : i32, i32
  }
  func.func @transform_2(%arg0: i32) -> (i32, i32) {
    %c0_i32 = arith.constant 0 : i32
    %c0_i32_0 = arith.constant 0 : i32
    %c0_i32_1 = arith.constant 0 : i32
    return %c0_i32, %c0_i32_0 : i32, i32
  }
  func.func @transform_3(%arg0: i32) -> (i32, i32, i32) {
    %c0_i32 = arith.constant 0 : i32
    %c0_i32_0 = arith.constant 0 : i32
    %c0_i32_1 = arith.constant 0 : i32
    %c0_i32_2 = arith.constant 0 : i32
    return %c0_i32, %c0_i32_0, %c0_i32_1 : i32, i32, i32
  }
  func.func @transform_4(%arg0: i32) -> (i32, i32, i32) {
    %c0_i32 = arith.constant 0 : i32
    %c0_i32_0 = arith.constant 0 : i32
    %c0_i32_1 = arith.constant 0 : i32
    %c0_i32_2 = arith.constant 0 : i32
    return %c0_i32, %c0_i32_0, %c0_i32_1 : i32, i32, i32
  }
  func.func @transform_5(%arg0: i32) -> (i32, i32) {
    %c0_i32 = arith.constant 0 : i32
    %c0_i32_0 = arith.constant 0 : i32
    %c0_i32_1 = arith.constant 0 : i32
    return %c0_i32, %c0_i32_0 : i32, i32
  }
  func.func @transform_6(%arg0: i32) -> (i32, i32) {
    %c0_i32 = arith.constant 0 : i32
    %c0_i32_0 = arith.constant 0 : i32
    %c0_i32_1 = arith.constant 0 : i32
    return %c0_i32, %c0_i32_0 : i32, i32
  }
  func.func @transform_7(%arg0: i32) -> (i32, i32) {
    %c0_i32 = arith.constant 0 : i32
    %c0_i32_0 = arith.constant 0 : i32
    %c0_i32_1 = arith.constant 0 : i32
    return %c0_i32, %c0_i32_0 : i32, i32
  }
  func.func @transform_8(%arg0: i32) -> (i32, i32) {
    %c0_i32 = arith.constant 0 : i32
    %c0_i32_0 = arith.constant 0 : i32
    %c0_i32_1 = arith.constant 0 : i32
    return %c0_i32, %c0_i32_0 : i32, i32
  }
}

module attributes {stable_mosaic.version = 11 : i64} {
  func.func @_ir_block_kernel(%arg0: i32, %arg1: memref<32x16xf32, #tpu.memory_space<vmem>>, %arg2: memref<16x96xbf16, #tpu.memory_space<vmem>>, %arg3: memref<1x96xf32, #tpu.memory_space<vmem>>, %arg4: memref<9x32x32xbf16, #tpu.memory_space<vmem>>, %arg5: memref<9x1x96xf32, #tpu.memory_space<vmem>>, %arg6: memref<1x96xf32, #tpu.memory_space<vmem>>, %arg7: memref<96x16xbf16, #tpu.memory_space<vmem>>, %arg8: memref<1x16xf32, #tpu.memory_space<vmem>>, %arg9: memref<32x16xf32, #tpu.memory_space<vmem>>) attributes {dimension_semantics = [#tpu.dimension_semantics<arbitrary>], iteration_bounds = array<i64: 1>, scalar_prefetch = 0 : i64, scratch_operands = 0 : i64, tpu.core_type = #tpu.core_type<tc>, window_params = [{pipeline_mode = #tpu.pipeline_mode<synchronous>, transform_indices = @transform_0, window_bounds = array<i64: 32, 16>}, {pipeline_mode = #tpu.pipeline_mode<synchronous>, transform_indices = @transform_1, window_bounds = array<i64: 16, 96>}, {pipeline_mode = #tpu.pipeline_mode<synchronous>, transform_indices = @transform_2, window_bounds = array<i64: 1, 96>}, {pipeline_mode = #tpu.pipeline_mode<synchronous>, transform_indices = @transform_3, window_bounds = array<i64: 9, 32, 32>}, {pipeline_mode = #tpu.pipeline_mode<synchronous>, transform_indices = @transform_4, window_bounds = array<i64: 9, 1, 96>}, {pipeline_mode = #tpu.pipeline_mode<synchronous>, transform_indices = @transform_5, window_bounds = array<i64: 1, 96>}, {pipeline_mode = #tpu.pipeline_mode<synchronous>, transform_indices = @transform_6, window_bounds = array<i64: 96, 16>}, {pipeline_mode = #tpu.pipeline_mode<synchronous>, transform_indices = @transform_7, window_bounds = array<i64: 1, 16>}, {pipeline_mode = #tpu.pipeline_mode<synchronous>, transform_indices = @transform_8, window_bounds = array<i64: 32, 16>}]} {
    %c0 = arith.constant 0 : index
    %c0_0 = arith.constant 0 : index
    %0 = vector.load %arg1[%c0, %c0_0] : memref<32x16xf32, #tpu.memory_space<vmem>>, vector<32x16xf32>
    %1 = arith.truncf %0 : vector<32x16xf32> to vector<32x16xbf16>
    %c0_1 = arith.constant 0 : index
    %c0_2 = arith.constant 0 : index
    %2 = vector.load %arg2[%c0_1, %c0_2] : memref<16x96xbf16, #tpu.memory_space<vmem>>, vector<16x96xbf16>
    %cst = arith.constant dense<0.000000e+00> : vector<32x96xf32>
    %3 = tpu.matmul %1, %2, %cst {dimension_numbers = #tpu.dot_dimension_numbers<[1], [0], [0], [1], [0, 0, 1, 1], [], []>} : vector<32x16xbf16>, vector<16x96xbf16>, vector<32x96xf32> -> vector<32x96xf32>
    %c0_3 = arith.constant 0 : index
    %c0_4 = arith.constant 0 : index
    %4 = vector.load %arg3[%c0_3, %c0_4] : memref<1x96xf32, #tpu.memory_space<vmem>>, vector<1x96xf32>
    %5 = vector.broadcast %4 : vector<1x96xf32> to vector<32x96xf32>
    %6 = arith.addf %3, %5 : vector<32x96xf32>
    %cst_5 = arith.constant 0.000000e+00 : f32
    %7 = vector.broadcast %cst_5 : f32 to vector<32x96xf32>
    %8 = arith.maximumf %6, %7 : vector<32x96xf32>
    %9 = arith.truncf %8 : vector<32x96xf32> to vector<32x96xbf16>
    %c0_6 = arith.constant 0 : index
    %c0_7 = arith.constant 0 : index
    %c0_8 = arith.constant 0 : index
    %10 = vector.load %arg4[%c0_6, %c0_7, %c0_8] : memref<9x32x32xbf16, #tpu.memory_space<vmem>>, vector<1x32x32xbf16>
    %11 = vector.shape_cast %10 : vector<1x32x32xbf16> to vector<32x32xbf16>
    %cst_9 = arith.constant dense<0.000000e+00> : vector<32x96xf32>
    %12 = tpu.matmul %11, %9, %cst_9 {dimension_numbers = #tpu.dot_dimension_numbers<[1], [0], [0], [1], [0, 0, 1, 1], [], []>} : vector<32x32xbf16>, vector<32x96xbf16>, vector<32x96xf32> -> vector<32x96xf32>
    %c0_10 = arith.constant 0 : index
    %c0_11 = arith.constant 0 : index
    %c0_12 = arith.constant 0 : index
    %13 = vector.load %arg5[%c0_10, %c0_11, %c0_12] : memref<9x1x96xf32, #tpu.memory_space<vmem>>, vector<1x1x96xf32>
    %14 = vector.shape_cast %13 : vector<1x1x96xf32> to vector<1x96xf32>
    %15 = vector.broadcast %14 : vector<1x96xf32> to vector<32x96xf32>
    %16 = arith.mulf %12, %15 : vector<32x96xf32>
    %c1 = arith.constant 1 : index
    %c0_13 = arith.constant 0 : index
    %c0_14 = arith.constant 0 : index
    %17 = vector.load %arg4[%c1, %c0_13, %c0_14] : memref<9x32x32xbf16, #tpu.memory_space<vmem>>, vector<1x32x32xbf16>
    %18 = vector.shape_cast %17 : vector<1x32x32xbf16> to vector<32x32xbf16>
    %cst_15 = arith.constant dense<0.000000e+00> : vector<32x96xf32>
    %19 = tpu.matmul %18, %9, %cst_15 {dimension_numbers = #tpu.dot_dimension_numbers<[1], [0], [0], [1], [0, 0, 1, 1], [], []>} : vector<32x32xbf16>, vector<32x96xbf16>, vector<32x96xf32> -> vector<32x96xf32>
    %c1_16 = arith.constant 1 : index
    %c0_17 = arith.constant 0 : index
    %c0_18 = arith.constant 0 : index
    %20 = vector.load %arg5[%c1_16, %c0_17, %c0_18] : memref<9x1x96xf32, #tpu.memory_space<vmem>>, vector<1x1x96xf32>
    %21 = vector.shape_cast %20 : vector<1x1x96xf32> to vector<1x96xf32>
    %22 = vector.broadcast %21 : vector<1x96xf32> to vector<32x96xf32>
    %23 = arith.mulf %19, %22 : vector<32x96xf32>
    %24 = arith.addf %16, %23 : vector<32x96xf32>
    %c2 = arith.constant 2 : index
    %c0_19 = arith.constant 0 : index
    %c0_20 = arith.constant 0 : index
    %25 = vector.load %arg4[%c2, %c0_19, %c0_20] : memref<9x32x32xbf16, #tpu.memory_space<vmem>>, vector<1x32x32xbf16>
    %26 = vector.shape_cast %25 : vector<1x32x32xbf16> to vector<32x32xbf16>
    %cst_21 = arith.constant dense<0.000000e+00> : vector<32x96xf32>
    %27 = tpu.matmul %26, %9, %cst_21 {dimension_numbers = #tpu.dot_dimension_numbers<[1], [0], [0], [1], [0, 0, 1, 1], [], []>} : vector<32x32xbf16>, vector<32x96xbf16>, vector<32x96xf32> -> vector<32x96xf32>
    %c2_22 = arith.constant 2 : index
    %c0_23 = arith.constant 0 : index
    %c0_24 = arith.constant 0 : index
    %28 = vector.load %arg5[%c2_22, %c0_23, %c0_24] : memref<9x1x96xf32, #tpu.memory_space<vmem>>, vector<1x1x96xf32>
    %29 = vector.shape_cast %28 : vector<1x1x96xf32> to vector<1x96xf32>
    %30 = vector.broadcast %29 : vector<1x96xf32> to vector<32x96xf32>
    %31 = arith.mulf %27, %30 : vector<32x96xf32>
    %32 = arith.addf %24, %31 : vector<32x96xf32>
    %c3 = arith.constant 3 : index
    %c0_25 = arith.constant 0 : index
    %c0_26 = arith.constant 0 : index
    %33 = vector.load %arg4[%c3, %c0_25, %c0_26] : memref<9x32x32xbf16, #tpu.memory_space<vmem>>, vector<1x32x32xbf16>
    %34 = vector.shape_cast %33 : vector<1x32x32xbf16> to vector<32x32xbf16>
    %cst_27 = arith.constant dense<0.000000e+00> : vector<32x96xf32>
    %35 = tpu.matmul %34, %9, %cst_27 {dimension_numbers = #tpu.dot_dimension_numbers<[1], [0], [0], [1], [0, 0, 1, 1], [], []>} : vector<32x32xbf16>, vector<32x96xbf16>, vector<32x96xf32> -> vector<32x96xf32>
    %c3_28 = arith.constant 3 : index
    %c0_29 = arith.constant 0 : index
    %c0_30 = arith.constant 0 : index
    %36 = vector.load %arg5[%c3_28, %c0_29, %c0_30] : memref<9x1x96xf32, #tpu.memory_space<vmem>>, vector<1x1x96xf32>
    %37 = vector.shape_cast %36 : vector<1x1x96xf32> to vector<1x96xf32>
    %38 = vector.broadcast %37 : vector<1x96xf32> to vector<32x96xf32>
    %39 = arith.mulf %35, %38 : vector<32x96xf32>
    %40 = arith.addf %32, %39 : vector<32x96xf32>
    %c4 = arith.constant 4 : index
    %c0_31 = arith.constant 0 : index
    %c0_32 = arith.constant 0 : index
    %41 = vector.load %arg4[%c4, %c0_31, %c0_32] : memref<9x32x32xbf16, #tpu.memory_space<vmem>>, vector<1x32x32xbf16>
    %42 = vector.shape_cast %41 : vector<1x32x32xbf16> to vector<32x32xbf16>
    %cst_33 = arith.constant dense<0.000000e+00> : vector<32x96xf32>
    %43 = tpu.matmul %42, %9, %cst_33 {dimension_numbers = #tpu.dot_dimension_numbers<[1], [0], [0], [1], [0, 0, 1, 1], [], []>} : vector<32x32xbf16>, vector<32x96xbf16>, vector<32x96xf32> -> vector<32x96xf32>
    %c4_34 = arith.constant 4 : index
    %c0_35 = arith.constant 0 : index
    %c0_36 = arith.constant 0 : index
    %44 = vector.load %arg5[%c4_34, %c0_35, %c0_36] : memref<9x1x96xf32, #tpu.memory_space<vmem>>, vector<1x1x96xf32>
    %45 = vector.shape_cast %44 : vector<1x1x96xf32> to vector<1x96xf32>
    %46 = vector.broadcast %45 : vector<1x96xf32> to vector<32x96xf32>
    %47 = arith.mulf %43, %46 : vector<32x96xf32>
    %48 = arith.addf %40, %47 : vector<32x96xf32>
    %c5 = arith.constant 5 : index
    %c0_37 = arith.constant 0 : index
    %c0_38 = arith.constant 0 : index
    %49 = vector.load %arg4[%c5, %c0_37, %c0_38] : memref<9x32x32xbf16, #tpu.memory_space<vmem>>, vector<1x32x32xbf16>
    %50 = vector.shape_cast %49 : vector<1x32x32xbf16> to vector<32x32xbf16>
    %cst_39 = arith.constant dense<0.000000e+00> : vector<32x96xf32>
    %51 = tpu.matmul %50, %9, %cst_39 {dimension_numbers = #tpu.dot_dimension_numbers<[1], [0], [0], [1], [0, 0, 1, 1], [], []>} : vector<32x32xbf16>, vector<32x96xbf16>, vector<32x96xf32> -> vector<32x96xf32>
    %c5_40 = arith.constant 5 : index
    %c0_41 = arith.constant 0 : index
    %c0_42 = arith.constant 0 : index
    %52 = vector.load %arg5[%c5_40, %c0_41, %c0_42] : memref<9x1x96xf32, #tpu.memory_space<vmem>>, vector<1x1x96xf32>
    %53 = vector.shape_cast %52 : vector<1x1x96xf32> to vector<1x96xf32>
    %54 = vector.broadcast %53 : vector<1x96xf32> to vector<32x96xf32>
    %55 = arith.mulf %51, %54 : vector<32x96xf32>
    %56 = arith.addf %48, %55 : vector<32x96xf32>
    %c6 = arith.constant 6 : index
    %c0_43 = arith.constant 0 : index
    %c0_44 = arith.constant 0 : index
    %57 = vector.load %arg4[%c6, %c0_43, %c0_44] : memref<9x32x32xbf16, #tpu.memory_space<vmem>>, vector<1x32x32xbf16>
    %58 = vector.shape_cast %57 : vector<1x32x32xbf16> to vector<32x32xbf16>
    %cst_45 = arith.constant dense<0.000000e+00> : vector<32x96xf32>
    %59 = tpu.matmul %58, %9, %cst_45 {dimension_numbers = #tpu.dot_dimension_numbers<[1], [0], [0], [1], [0, 0, 1, 1], [], []>} : vector<32x32xbf16>, vector<32x96xbf16>, vector<32x96xf32> -> vector<32x96xf32>
    %c6_46 = arith.constant 6 : index
    %c0_47 = arith.constant 0 : index
    %c0_48 = arith.constant 0 : index
    %60 = vector.load %arg5[%c6_46, %c0_47, %c0_48] : memref<9x1x96xf32, #tpu.memory_space<vmem>>, vector<1x1x96xf32>
    %61 = vector.shape_cast %60 : vector<1x1x96xf32> to vector<1x96xf32>
    %62 = vector.broadcast %61 : vector<1x96xf32> to vector<32x96xf32>
    %63 = arith.mulf %59, %62 : vector<32x96xf32>
    %64 = arith.addf %56, %63 : vector<32x96xf32>
    %c7 = arith.constant 7 : index
    %c0_49 = arith.constant 0 : index
    %c0_50 = arith.constant 0 : index
    %65 = vector.load %arg4[%c7, %c0_49, %c0_50] : memref<9x32x32xbf16, #tpu.memory_space<vmem>>, vector<1x32x32xbf16>
    %66 = vector.shape_cast %65 : vector<1x32x32xbf16> to vector<32x32xbf16>
    %cst_51 = arith.constant dense<0.000000e+00> : vector<32x96xf32>
    %67 = tpu.matmul %66, %9, %cst_51 {dimension_numbers = #tpu.dot_dimension_numbers<[1], [0], [0], [1], [0, 0, 1, 1], [], []>} : vector<32x32xbf16>, vector<32x96xbf16>, vector<32x96xf32> -> vector<32x96xf32>
    %c7_52 = arith.constant 7 : index
    %c0_53 = arith.constant 0 : index
    %c0_54 = arith.constant 0 : index
    %68 = vector.load %arg5[%c7_52, %c0_53, %c0_54] : memref<9x1x96xf32, #tpu.memory_space<vmem>>, vector<1x1x96xf32>
    %69 = vector.shape_cast %68 : vector<1x1x96xf32> to vector<1x96xf32>
    %70 = vector.broadcast %69 : vector<1x96xf32> to vector<32x96xf32>
    %71 = arith.mulf %67, %70 : vector<32x96xf32>
    %72 = arith.addf %64, %71 : vector<32x96xf32>
    %c8 = arith.constant 8 : index
    %c0_55 = arith.constant 0 : index
    %c0_56 = arith.constant 0 : index
    %73 = vector.load %arg4[%c8, %c0_55, %c0_56] : memref<9x32x32xbf16, #tpu.memory_space<vmem>>, vector<1x32x32xbf16>
    %74 = vector.shape_cast %73 : vector<1x32x32xbf16> to vector<32x32xbf16>
    %cst_57 = arith.constant dense<0.000000e+00> : vector<32x96xf32>
    %75 = tpu.matmul %74, %9, %cst_57 {dimension_numbers = #tpu.dot_dimension_numbers<[1], [0], [0], [1], [0, 0, 1, 1], [], []>} : vector<32x32xbf16>, vector<32x96xbf16>, vector<32x96xf32> -> vector<32x96xf32>
    %c8_58 = arith.constant 8 : index
    %c0_59 = arith.constant 0 : index
    %c0_60 = arith.constant 0 : index
    %76 = vector.load %arg5[%c8_58, %c0_59, %c0_60] : memref<9x1x96xf32, #tpu.memory_space<vmem>>, vector<1x1x96xf32>
    %77 = vector.shape_cast %76 : vector<1x1x96xf32> to vector<1x96xf32>
    %78 = vector.broadcast %77 : vector<1x96xf32> to vector<32x96xf32>
    %79 = arith.mulf %75, %78 : vector<32x96xf32>
    %80 = arith.addf %72, %79 : vector<32x96xf32>
    %c0_61 = arith.constant 0 : index
    %c0_62 = arith.constant 0 : index
    %81 = vector.load %arg6[%c0_61, %c0_62] : memref<1x96xf32, #tpu.memory_space<vmem>>, vector<1x96xf32>
    %82 = vector.broadcast %81 : vector<1x96xf32> to vector<32x96xf32>
    %83 = arith.addf %80, %82 : vector<32x96xf32>
    %cst_63 = arith.constant 0.000000e+00 : f32
    %84 = vector.broadcast %cst_63 : f32 to vector<32x96xf32>
    %85 = arith.maximumf %83, %84 : vector<32x96xf32>
    %86 = arith.truncf %85 : vector<32x96xf32> to vector<32x96xbf16>
    %c0_64 = arith.constant 0 : index
    %c0_65 = arith.constant 0 : index
    %87 = vector.load %arg7[%c0_64, %c0_65] : memref<96x16xbf16, #tpu.memory_space<vmem>>, vector<96x16xbf16>
    %cst_66 = arith.constant dense<0.000000e+00> : vector<32x16xf32>
    %88 = tpu.matmul %86, %87, %cst_66 {dimension_numbers = #tpu.dot_dimension_numbers<[1], [0], [0], [1], [0, 0, 1, 1], [], []>} : vector<32x96xbf16>, vector<96x16xbf16>, vector<32x16xf32> -> vector<32x16xf32>
    %c0_67 = arith.constant 0 : index
    %c0_68 = arith.constant 0 : index
    %89 = vector.load %arg8[%c0_67, %c0_68] : memref<1x16xf32, #tpu.memory_space<vmem>>, vector<1x16xf32>
    %90 = vector.broadcast %89 : vector<1x16xf32> to vector<32x16xf32>
    %91 = arith.addf %88, %90 : vector<32x16xf32>
    %92 = arith.addf %91, %0 : vector<32x16xf32>
    %c0_69 = arith.constant 0 : index
    %c0_70 = arith.constant 0 : index
    %93 = vector.load %arg9[%c0_69, %c0_70] : memref<32x16xf32, #tpu.memory_space<vmem>>, vector<32x16xf32>
    tpu.vector_store %arg9[%c0_69, %c0_70], %92 {strides = array<i32>} : memref<32x16xf32, #tpu.memory_space<vmem>>, vector<32x16xf32>,
    return
  }
  func.func @transform_0(%arg0: i32) -> (i32, i32) {
    %c0_i32 = arith.constant 0 : i32
    %c0_i32_0 = arith.constant 0 : i32
    %c0_i32_1 = arith.constant 0 : i32
    return %c0_i32, %c0_i32_0 : i32, i32
  }
  func.func @transform_1(%arg0: i32) -> (i32, i32) {
    %c0_i32 = arith.constant 0 : i32
    %c0_i32_0 = arith.constant 0 : i32
    %c0_i32_1 = arith.constant 0 : i32
    return %c0_i32, %c0_i32_0 : i32, i32
  }
  func.func @transform_2(%arg0: i32) -> (i32, i32) {
    %c0_i32 = arith.constant 0 : i32
    %c0_i32_0 = arith.constant 0 : i32
    %c0_i32_1 = arith.constant 0 : i32
    return %c0_i32, %c0_i32_0 : i32, i32
  }
  func.func @transform_3(%arg0: i32) -> (i32, i32, i32) {
    %c0_i32 = arith.constant 0 : i32
    %c0_i32_0 = arith.constant 0 : i32
    %c0_i32_1 = arith.constant 0 : i32
    %c0_i32_2 = arith.constant 0 : i32
    return %c0_i32, %c0_i32_0, %c0_i32_1 : i32, i32, i32
  }
  func.func @transform_4(%arg0: i32) -> (i32, i32, i32) {
    %c0_i32 = arith.constant 0 : i32
    %c0_i32_0 = arith.constant 0 : i32
    %c0_i32_1 = arith.constant 0 : i32
    %c0_i32_2 = arith.constant 0 : i32
    return %c0_i32, %c0_i32_0, %c0_i32_1 : i32, i32, i32
  }
  func.func @transform_5(%arg0: i32) -> (i32, i32) {
    %c0_i32 = arith.constant 0 : i32
    %c0_i32_0 = arith.constant 0 : i32
    %c0_i32_1 = arith.constant 0 : i32
    return %c0_i32, %c0_i32_0 : i32, i32
  }
  func.func @transform_6(%arg0: i32) -> (i32, i32) {
    %c0_i32 = arith.constant 0 : i32
    %c0_i32_0 = arith.constant 0 : i32
    %c0_i32_1 = arith.constant 0 : i32
    return %c0_i32, %c0_i32_0 : i32, i32
  }
  func.func @transform_7(%arg0: i32) -> (i32, i32) {
    %c0_i32 = arith.constant 0 : i32
    %c0_i32_0 = arith.constant 0 : i32
    %c0_i32_1 = arith.constant 0 : i32
    return %c0_i32, %c0_i32_0 : i32, i32
  }
  func.func @transform_8(%arg0: i32) -> (i32, i32) {
    %c0_i32 = arith.constant 0 : i32
    %c0_i32_0 = arith.constant 0 : i32
    %c0_i32_1 = arith.constant 0 : i32
    return %c0_i32, %c0_i32_0 : i32, i32
  }
}

module attributes {stable_mosaic.version = 11 : i64} {
  func.func @_ir_block_kernel(%arg0: i32, %arg1: memref<8x16xf32, #tpu.memory_space<vmem>>, %arg2: memref<16x96xbf16, #tpu.memory_space<vmem>>, %arg3: memref<1x96xf32, #tpu.memory_space<vmem>>, %arg4: memref<9x8x8xbf16, #tpu.memory_space<vmem>>, %arg5: memref<9x1x96xf32, #tpu.memory_space<vmem>>, %arg6: memref<1x96xf32, #tpu.memory_space<vmem>>, %arg7: memref<96x16xbf16, #tpu.memory_space<vmem>>, %arg8: memref<1x16xf32, #tpu.memory_space<vmem>>, %arg9: memref<8x16xf32, #tpu.memory_space<vmem>>) attributes {dimension_semantics = [#tpu.dimension_semantics<arbitrary>], iteration_bounds = array<i64: 1>, scalar_prefetch = 0 : i64, scratch_operands = 0 : i64, tpu.core_type = #tpu.core_type<tc>, window_params = [{pipeline_mode = #tpu.pipeline_mode<synchronous>, transform_indices = @transform_0, window_bounds = array<i64: 8, 16>}, {pipeline_mode = #tpu.pipeline_mode<synchronous>, transform_indices = @transform_1, window_bounds = array<i64: 16, 96>}, {pipeline_mode = #tpu.pipeline_mode<synchronous>, transform_indices = @transform_2, window_bounds = array<i64: 1, 96>}, {pipeline_mode = #tpu.pipeline_mode<synchronous>, transform_indices = @transform_3, window_bounds = array<i64: 9, 8, 8>}, {pipeline_mode = #tpu.pipeline_mode<synchronous>, transform_indices = @transform_4, window_bounds = array<i64: 9, 1, 96>}, {pipeline_mode = #tpu.pipeline_mode<synchronous>, transform_indices = @transform_5, window_bounds = array<i64: 1, 96>}, {pipeline_mode = #tpu.pipeline_mode<synchronous>, transform_indices = @transform_6, window_bounds = array<i64: 96, 16>}, {pipeline_mode = #tpu.pipeline_mode<synchronous>, transform_indices = @transform_7, window_bounds = array<i64: 1, 16>}, {pipeline_mode = #tpu.pipeline_mode<synchronous>, transform_indices = @transform_8, window_bounds = array<i64: 8, 16>}]} {
    %c0 = arith.constant 0 : index
    %c0_0 = arith.constant 0 : index
    %0 = vector.load %arg1[%c0, %c0_0] : memref<8x16xf32, #tpu.memory_space<vmem>>, vector<8x16xf32>
    %1 = arith.truncf %0 : vector<8x16xf32> to vector<8x16xbf16>
    %c0_1 = arith.constant 0 : index
    %c0_2 = arith.constant 0 : index
    %2 = vector.load %arg2[%c0_1, %c0_2] : memref<16x96xbf16, #tpu.memory_space<vmem>>, vector<16x96xbf16>
    %cst = arith.constant dense<0.000000e+00> : vector<8x96xf32>
    %3 = tpu.matmul %1, %2, %cst {dimension_numbers = #tpu.dot_dimension_numbers<[1], [0], [0], [1], [0, 0, 1, 1], [], []>} : vector<8x16xbf16>, vector<16x96xbf16>, vector<8x96xf32> -> vector<8x96xf32>
    %c0_3 = arith.constant 0 : index
    %c0_4 = arith.constant 0 : index
    %4 = vector.load %arg3[%c0_3, %c0_4] : memref<1x96xf32, #tpu.memory_space<vmem>>, vector<1x96xf32>
    %5 = vector.broadcast %4 : vector<1x96xf32> to vector<8x96xf32>
    %6 = arith.addf %3, %5 : vector<8x96xf32>
    %cst_5 = arith.constant 0.000000e+00 : f32
    %7 = vector.broadcast %cst_5 : f32 to vector<8x96xf32>
    %8 = arith.maximumf %6, %7 : vector<8x96xf32>
    %9 = arith.truncf %8 : vector<8x96xf32> to vector<8x96xbf16>
    %c0_6 = arith.constant 0 : index
    %c0_7 = arith.constant 0 : index
    %c0_8 = arith.constant 0 : index
    %10 = vector.load %arg4[%c0_6, %c0_7, %c0_8] : memref<9x8x8xbf16, #tpu.memory_space<vmem>>, vector<1x8x8xbf16>
    %11 = vector.shape_cast %10 : vector<1x8x8xbf16> to vector<8x8xbf16>
    %cst_9 = arith.constant dense<0.000000e+00> : vector<8x96xf32>
    %12 = tpu.matmul %11, %9, %cst_9 {dimension_numbers = #tpu.dot_dimension_numbers<[1], [0], [0], [1], [0, 0, 1, 1], [], []>} : vector<8x8xbf16>, vector<8x96xbf16>, vector<8x96xf32> -> vector<8x96xf32>
    %c0_10 = arith.constant 0 : index
    %c0_11 = arith.constant 0 : index
    %c0_12 = arith.constant 0 : index
    %13 = vector.load %arg5[%c0_10, %c0_11, %c0_12] : memref<9x1x96xf32, #tpu.memory_space<vmem>>, vector<1x1x96xf32>
    %14 = vector.shape_cast %13 : vector<1x1x96xf32> to vector<1x96xf32>
    %15 = vector.broadcast %14 : vector<1x96xf32> to vector<8x96xf32>
    %16 = arith.mulf %12, %15 : vector<8x96xf32>
    %c1 = arith.constant 1 : index
    %c0_13 = arith.constant 0 : index
    %c0_14 = arith.constant 0 : index
    %17 = vector.load %arg4[%c1, %c0_13, %c0_14] : memref<9x8x8xbf16, #tpu.memory_space<vmem>>, vector<1x8x8xbf16>
    %18 = vector.shape_cast %17 : vector<1x8x8xbf16> to vector<8x8xbf16>
    %cst_15 = arith.constant dense<0.000000e+00> : vector<8x96xf32>
    %19 = tpu.matmul %18, %9, %cst_15 {dimension_numbers = #tpu.dot_dimension_numbers<[1], [0], [0], [1], [0, 0, 1, 1], [], []>} : vector<8x8xbf16>, vector<8x96xbf16>, vector<8x96xf32> -> vector<8x96xf32>
    %c1_16 = arith.constant 1 : index
    %c0_17 = arith.constant 0 : index
    %c0_18 = arith.constant 0 : index
    %20 = vector.load %arg5[%c1_16, %c0_17, %c0_18] : memref<9x1x96xf32, #tpu.memory_space<vmem>>, vector<1x1x96xf32>
    %21 = vector.shape_cast %20 : vector<1x1x96xf32> to vector<1x96xf32>
    %22 = vector.broadcast %21 : vector<1x96xf32> to vector<8x96xf32>
    %23 = arith.mulf %19, %22 : vector<8x96xf32>
    %24 = arith.addf %16, %23 : vector<8x96xf32>
    %c2 = arith.constant 2 : index
    %c0_19 = arith.constant 0 : index
    %c0_20 = arith.constant 0 : index
    %25 = vector.load %arg4[%c2, %c0_19, %c0_20] : memref<9x8x8xbf16, #tpu.memory_space<vmem>>, vector<1x8x8xbf16>
    %26 = vector.shape_cast %25 : vector<1x8x8xbf16> to vector<8x8xbf16>
    %cst_21 = arith.constant dense<0.000000e+00> : vector<8x96xf32>
    %27 = tpu.matmul %26, %9, %cst_21 {dimension_numbers = #tpu.dot_dimension_numbers<[1], [0], [0], [1], [0, 0, 1, 1], [], []>} : vector<8x8xbf16>, vector<8x96xbf16>, vector<8x96xf32> -> vector<8x96xf32>
    %c2_22 = arith.constant 2 : index
    %c0_23 = arith.constant 0 : index
    %c0_24 = arith.constant 0 : index
    %28 = vector.load %arg5[%c2_22, %c0_23, %c0_24] : memref<9x1x96xf32, #tpu.memory_space<vmem>>, vector<1x1x96xf32>
    %29 = vector.shape_cast %28 : vector<1x1x96xf32> to vector<1x96xf32>
    %30 = vector.broadcast %29 : vector<1x96xf32> to vector<8x96xf32>
    %31 = arith.mulf %27, %30 : vector<8x96xf32>
    %32 = arith.addf %24, %31 : vector<8x96xf32>
    %c3 = arith.constant 3 : index
    %c0_25 = arith.constant 0 : index
    %c0_26 = arith.constant 0 : index
    %33 = vector.load %arg4[%c3, %c0_25, %c0_26] : memref<9x8x8xbf16, #tpu.memory_space<vmem>>, vector<1x8x8xbf16>
    %34 = vector.shape_cast %33 : vector<1x8x8xbf16> to vector<8x8xbf16>
    %cst_27 = arith.constant dense<0.000000e+00> : vector<8x96xf32>
    %35 = tpu.matmul %34, %9, %cst_27 {dimension_numbers = #tpu.dot_dimension_numbers<[1], [0], [0], [1], [0, 0, 1, 1], [], []>} : vector<8x8xbf16>, vector<8x96xbf16>, vector<8x96xf32> -> vector<8x96xf32>
    %c3_28 = arith.constant 3 : index
    %c0_29 = arith.constant 0 : index
    %c0_30 = arith.constant 0 : index
    %36 = vector.load %arg5[%c3_28, %c0_29, %c0_30] : memref<9x1x96xf32, #tpu.memory_space<vmem>>, vector<1x1x96xf32>
    %37 = vector.shape_cast %36 : vector<1x1x96xf32> to vector<1x96xf32>
    %38 = vector.broadcast %37 : vector<1x96xf32> to vector<8x96xf32>
    %39 = arith.mulf %35, %38 : vector<8x96xf32>
    %40 = arith.addf %32, %39 : vector<8x96xf32>
    %c4 = arith.constant 4 : index
    %c0_31 = arith.constant 0 : index
    %c0_32 = arith.constant 0 : index
    %41 = vector.load %arg4[%c4, %c0_31, %c0_32] : memref<9x8x8xbf16, #tpu.memory_space<vmem>>, vector<1x8x8xbf16>
    %42 = vector.shape_cast %41 : vector<1x8x8xbf16> to vector<8x8xbf16>
    %cst_33 = arith.constant dense<0.000000e+00> : vector<8x96xf32>
    %43 = tpu.matmul %42, %9, %cst_33 {dimension_numbers = #tpu.dot_dimension_numbers<[1], [0], [0], [1], [0, 0, 1, 1], [], []>} : vector<8x8xbf16>, vector<8x96xbf16>, vector<8x96xf32> -> vector<8x96xf32>
    %c4_34 = arith.constant 4 : index
    %c0_35 = arith.constant 0 : index
    %c0_36 = arith.constant 0 : index
    %44 = vector.load %arg5[%c4_34, %c0_35, %c0_36] : memref<9x1x96xf32, #tpu.memory_space<vmem>>, vector<1x1x96xf32>
    %45 = vector.shape_cast %44 : vector<1x1x96xf32> to vector<1x96xf32>
    %46 = vector.broadcast %45 : vector<1x96xf32> to vector<8x96xf32>
    %47 = arith.mulf %43, %46 : vector<8x96xf32>
    %48 = arith.addf %40, %47 : vector<8x96xf32>
    %c5 = arith.constant 5 : index
    %c0_37 = arith.constant 0 : index
    %c0_38 = arith.constant 0 : index
    %49 = vector.load %arg4[%c5, %c0_37, %c0_38] : memref<9x8x8xbf16, #tpu.memory_space<vmem>>, vector<1x8x8xbf16>
    %50 = vector.shape_cast %49 : vector<1x8x8xbf16> to vector<8x8xbf16>
    %cst_39 = arith.constant dense<0.000000e+00> : vector<8x96xf32>
    %51 = tpu.matmul %50, %9, %cst_39 {dimension_numbers = #tpu.dot_dimension_numbers<[1], [0], [0], [1], [0, 0, 1, 1], [], []>} : vector<8x8xbf16>, vector<8x96xbf16>, vector<8x96xf32> -> vector<8x96xf32>
    %c5_40 = arith.constant 5 : index
    %c0_41 = arith.constant 0 : index
    %c0_42 = arith.constant 0 : index
    %52 = vector.load %arg5[%c5_40, %c0_41, %c0_42] : memref<9x1x96xf32, #tpu.memory_space<vmem>>, vector<1x1x96xf32>
    %53 = vector.shape_cast %52 : vector<1x1x96xf32> to vector<1x96xf32>
    %54 = vector.broadcast %53 : vector<1x96xf32> to vector<8x96xf32>
    %55 = arith.mulf %51, %54 : vector<8x96xf32>
    %56 = arith.addf %48, %55 : vector<8x96xf32>
    %c6 = arith.constant 6 : index
    %c0_43 = arith.constant 0 : index
    %c0_44 = arith.constant 0 : index
    %57 = vector.load %arg4[%c6, %c0_43, %c0_44] : memref<9x8x8xbf16, #tpu.memory_space<vmem>>, vector<1x8x8xbf16>
    %58 = vector.shape_cast %57 : vector<1x8x8xbf16> to vector<8x8xbf16>
    %cst_45 = arith.constant dense<0.000000e+00> : vector<8x96xf32>
    %59 = tpu.matmul %58, %9, %cst_45 {dimension_numbers = #tpu.dot_dimension_numbers<[1], [0], [0], [1], [0, 0, 1, 1], [], []>} : vector<8x8xbf16>, vector<8x96xbf16>, vector<8x96xf32> -> vector<8x96xf32>
    %c6_46 = arith.constant 6 : index
    %c0_47 = arith.constant 0 : index
    %c0_48 = arith.constant 0 : index
    %60 = vector.load %arg5[%c6_46, %c0_47, %c0_48] : memref<9x1x96xf32, #tpu.memory_space<vmem>>, vector<1x1x96xf32>
    %61 = vector.shape_cast %60 : vector<1x1x96xf32> to vector<1x96xf32>
    %62 = vector.broadcast %61 : vector<1x96xf32> to vector<8x96xf32>
    %63 = arith.mulf %59, %62 : vector<8x96xf32>
    %64 = arith.addf %56, %63 : vector<8x96xf32>
    %c7 = arith.constant 7 : index
    %c0_49 = arith.constant 0 : index
    %c0_50 = arith.constant 0 : index
    %65 = vector.load %arg4[%c7, %c0_49, %c0_50] : memref<9x8x8xbf16, #tpu.memory_space<vmem>>, vector<1x8x8xbf16>
    %66 = vector.shape_cast %65 : vector<1x8x8xbf16> to vector<8x8xbf16>
    %cst_51 = arith.constant dense<0.000000e+00> : vector<8x96xf32>
    %67 = tpu.matmul %66, %9, %cst_51 {dimension_numbers = #tpu.dot_dimension_numbers<[1], [0], [0], [1], [0, 0, 1, 1], [], []>} : vector<8x8xbf16>, vector<8x96xbf16>, vector<8x96xf32> -> vector<8x96xf32>
    %c7_52 = arith.constant 7 : index
    %c0_53 = arith.constant 0 : index
    %c0_54 = arith.constant 0 : index
    %68 = vector.load %arg5[%c7_52, %c0_53, %c0_54] : memref<9x1x96xf32, #tpu.memory_space<vmem>>, vector<1x1x96xf32>
    %69 = vector.shape_cast %68 : vector<1x1x96xf32> to vector<1x96xf32>
    %70 = vector.broadcast %69 : vector<1x96xf32> to vector<8x96xf32>
    %71 = arith.mulf %67, %70 : vector<8x96xf32>
    %72 = arith.addf %64, %71 : vector<8x96xf32>
    %c8 = arith.constant 8 : index
    %c0_55 = arith.constant 0 : index
    %c0_56 = arith.constant 0 : index
    %73 = vector.load %arg4[%c8, %c0_55, %c0_56] : memref<9x8x8xbf16, #tpu.memory_space<vmem>>, vector<1x8x8xbf16>
    %74 = vector.shape_cast %73 : vector<1x8x8xbf16> to vector<8x8xbf16>
    %cst_57 = arith.constant dense<0.000000e+00> : vector<8x96xf32>
    %75 = tpu.matmul %74, %9, %cst_57 {dimension_numbers = #tpu.dot_dimension_numbers<[1], [0], [0], [1], [0, 0, 1, 1], [], []>} : vector<8x8xbf16>, vector<8x96xbf16>, vector<8x96xf32> -> vector<8x96xf32>
    %c8_58 = arith.constant 8 : index
    %c0_59 = arith.constant 0 : index
    %c0_60 = arith.constant 0 : index
    %76 = vector.load %arg5[%c8_58, %c0_59, %c0_60] : memref<9x1x96xf32, #tpu.memory_space<vmem>>, vector<1x1x96xf32>
    %77 = vector.shape_cast %76 : vector<1x1x96xf32> to vector<1x96xf32>
    %78 = vector.broadcast %77 : vector<1x96xf32> to vector<8x96xf32>
    %79 = arith.mulf %75, %78 : vector<8x96xf32>
    %80 = arith.addf %72, %79 : vector<8x96xf32>
    %c0_61 = arith.constant 0 : index
    %c0_62 = arith.constant 0 : index
    %81 = vector.load %arg6[%c0_61, %c0_62] : memref<1x96xf32, #tpu.memory_space<vmem>>, vector<1x96xf32>
    %82 = vector.broadcast %81 : vector<1x96xf32> to vector<8x96xf32>
    %83 = arith.addf %80, %82 : vector<8x96xf32>
    %cst_63 = arith.constant 0.000000e+00 : f32
    %84 = vector.broadcast %cst_63 : f32 to vector<8x96xf32>
    %85 = arith.maximumf %83, %84 : vector<8x96xf32>
    %86 = arith.truncf %85 : vector<8x96xf32> to vector<8x96xbf16>
    %c0_64 = arith.constant 0 : index
    %c0_65 = arith.constant 0 : index
    %87 = vector.load %arg7[%c0_64, %c0_65] : memref<96x16xbf16, #tpu.memory_space<vmem>>, vector<96x16xbf16>
    %cst_66 = arith.constant dense<0.000000e+00> : vector<8x16xf32>
    %88 = tpu.matmul %86, %87, %cst_66 {dimension_numbers = #tpu.dot_dimension_numbers<[1], [0], [0], [1], [0, 0, 1, 1], [], []>} : vector<8x96xbf16>, vector<96x16xbf16>, vector<8x16xf32> -> vector<8x16xf32>
    %c0_67 = arith.constant 0 : index
    %c0_68 = arith.constant 0 : index
    %89 = vector.load %arg8[%c0_67, %c0_68] : memref<1x16xf32, #tpu.memory_space<vmem>>, vector<1x16xf32>
    %90 = vector.broadcast %89 : vector<1x16xf32> to vector<8x16xf32>
    %91 = arith.addf %88, %90 : vector<8x16xf32>
    %92 = arith.addf %91, %0 : vector<8x16xf32>
    %c0_69 = arith.constant 0 : index
    %c0_70 = arith.constant 0 : index
    %93 = vector.load %arg9[%c0_69, %c0_70] : memref<8x16xf32, #tpu.memory_space<vmem>>, vector<8x16xf32>
    tpu.vector_store %arg9[%c0_69, %c0_70], %92 {strides = array<i32>} : memref<8x16xf32, #tpu.memory_space<vmem>>, vector<8x16xf32>,
    return
  }
  func.func @transform_0(%arg0: i32) -> (i32, i32) {
    %c0_i32 = arith.constant 0 : i32
    %c0_i32_0 = arith.constant 0 : i32
    %c0_i32_1 = arith.constant 0 : i32
    return %c0_i32, %c0_i32_0 : i32, i32
  }
  func.func @transform_1(%arg0: i32) -> (i32, i32) {
    %c0_i32 = arith.constant 0 : i32
    %c0_i32_0 = arith.constant 0 : i32
    %c0_i32_1 = arith.constant 0 : i32
    return %c0_i32, %c0_i32_0 : i32, i32
  }
  func.func @transform_2(%arg0: i32) -> (i32, i32) {
    %c0_i32 = arith.constant 0 : i32
    %c0_i32_0 = arith.constant 0 : i32
    %c0_i32_1 = arith.constant 0 : i32
    return %c0_i32, %c0_i32_0 : i32, i32
  }
  func.func @transform_3(%arg0: i32) -> (i32, i32, i32) {
    %c0_i32 = arith.constant 0 : i32
    %c0_i32_0 = arith.constant 0 : i32
    %c0_i32_1 = arith.constant 0 : i32
    %c0_i32_2 = arith.constant 0 : i32
    return %c0_i32, %c0_i32_0, %c0_i32_1 : i32, i32, i32
  }
  func.func @transform_4(%arg0: i32) -> (i32, i32, i32) {
    %c0_i32 = arith.constant 0 : i32
    %c0_i32_0 = arith.constant 0 : i32
    %c0_i32_1 = arith.constant 0 : i32
    %c0_i32_2 = arith.constant 0 : i32
    return %c0_i32, %c0_i32_0, %c0_i32_1 : i32, i32, i32
  }
  func.func @transform_5(%arg0: i32) -> (i32, i32) {
    %c0_i32 = arith.constant 0 : i32
    %c0_i32_0 = arith.constant 0 : i32
    %c0_i32_1 = arith.constant 0 : i32
    return %c0_i32, %c0_i32_0 : i32, i32
  }
  func.func @transform_6(%arg0: i32) -> (i32, i32) {
    %c0_i32 = arith.constant 0 : i32
    %c0_i32_0 = arith.constant 0 : i32
    %c0_i32_1 = arith.constant 0 : i32
    return %c0_i32, %c0_i32_0 : i32, i32
  }
  func.func @transform_7(%arg0: i32) -> (i32, i32) {
    %c0_i32 = arith.constant 0 : i32
    %c0_i32_0 = arith.constant 0 : i32
    %c0_i32_1 = arith.constant 0 : i32
    return %c0_i32, %c0_i32_0 : i32, i32
  }
  func.func @transform_8(%arg0: i32) -> (i32, i32) {
    %c0_i32 = arith.constant 0 : i32
    %c0_i32_0 = arith.constant 0 : i32
    %c0_i32_1 = arith.constant 0 : i32
    return %c0_i32, %c0_i32_0 : i32, i32
  }
}

module attributes {stable_mosaic.version = 11 : i64} {
  func.func @_ir_block_kernel(%arg0: i32, %arg1: memref<32x16xf32, #tpu.memory_space<vmem>>, %arg2: memref<16x96xbf16, #tpu.memory_space<vmem>>, %arg3: memref<1x96xf32, #tpu.memory_space<vmem>>, %arg4: memref<9x8x32xbf16, #tpu.memory_space<vmem>>, %arg5: memref<9x1x96xf32, #tpu.memory_space<vmem>>, %arg6: memref<1x96xf32, #tpu.memory_space<vmem>>, %arg7: memref<96x16xbf16, #tpu.memory_space<vmem>>, %arg8: memref<1x16xf32, #tpu.memory_space<vmem>>, %arg9: memref<8x16xf32, #tpu.memory_space<vmem>>) attributes {dimension_semantics = [#tpu.dimension_semantics<arbitrary>], iteration_bounds = array<i64: 1>, scalar_prefetch = 0 : i64, scratch_operands = 0 : i64, tpu.core_type = #tpu.core_type<tc>, window_params = [{pipeline_mode = #tpu.pipeline_mode<synchronous>, transform_indices = @transform_0, window_bounds = array<i64: 32, 16>}, {pipeline_mode = #tpu.pipeline_mode<synchronous>, transform_indices = @transform_1, window_bounds = array<i64: 16, 96>}, {pipeline_mode = #tpu.pipeline_mode<synchronous>, transform_indices = @transform_2, window_bounds = array<i64: 1, 96>}, {pipeline_mode = #tpu.pipeline_mode<synchronous>, transform_indices = @transform_3, window_bounds = array<i64: 9, 8, 32>}, {pipeline_mode = #tpu.pipeline_mode<synchronous>, transform_indices = @transform_4, window_bounds = array<i64: 9, 1, 96>}, {pipeline_mode = #tpu.pipeline_mode<synchronous>, transform_indices = @transform_5, window_bounds = array<i64: 1, 96>}, {pipeline_mode = #tpu.pipeline_mode<synchronous>, transform_indices = @transform_6, window_bounds = array<i64: 96, 16>}, {pipeline_mode = #tpu.pipeline_mode<synchronous>, transform_indices = @transform_7, window_bounds = array<i64: 1, 16>}, {pipeline_mode = #tpu.pipeline_mode<synchronous>, transform_indices = @transform_8, window_bounds = array<i64: 8, 16>}]} {
    %c0 = arith.constant 0 : index
    %c0_0 = arith.constant 0 : index
    %0 = vector.load %arg1[%c0, %c0_0] : memref<32x16xf32, #tpu.memory_space<vmem>>, vector<32x16xf32>
    %1 = arith.truncf %0 : vector<32x16xf32> to vector<32x16xbf16>
    %c0_1 = arith.constant 0 : index
    %c0_2 = arith.constant 0 : index
    %2 = vector.load %arg2[%c0_1, %c0_2] : memref<16x96xbf16, #tpu.memory_space<vmem>>, vector<16x96xbf16>
    %cst = arith.constant dense<0.000000e+00> : vector<32x96xf32>
    %3 = tpu.matmul %1, %2, %cst {dimension_numbers = #tpu.dot_dimension_numbers<[1], [0], [0], [1], [0, 0, 1, 1], [], []>} : vector<32x16xbf16>, vector<16x96xbf16>, vector<32x96xf32> -> vector<32x96xf32>
    %c0_3 = arith.constant 0 : index
    %c0_4 = arith.constant 0 : index
    %4 = vector.load %arg3[%c0_3, %c0_4] : memref<1x96xf32, #tpu.memory_space<vmem>>, vector<1x96xf32>
    %5 = vector.broadcast %4 : vector<1x96xf32> to vector<32x96xf32>
    %6 = arith.addf %3, %5 : vector<32x96xf32>
    %cst_5 = arith.constant 0.000000e+00 : f32
    %7 = vector.broadcast %cst_5 : f32 to vector<32x96xf32>
    %8 = arith.maximumf %6, %7 : vector<32x96xf32>
    %9 = arith.truncf %8 : vector<32x96xf32> to vector<32x96xbf16>
    %c0_6 = arith.constant 0 : index
    %c0_7 = arith.constant 0 : index
    %c0_8 = arith.constant 0 : index
    %10 = vector.load %arg4[%c0_6, %c0_7, %c0_8] : memref<9x8x32xbf16, #tpu.memory_space<vmem>>, vector<1x8x32xbf16>
    %11 = vector.shape_cast %10 : vector<1x8x32xbf16> to vector<8x32xbf16>
    %cst_9 = arith.constant dense<0.000000e+00> : vector<8x96xf32>
    %12 = tpu.matmul %11, %9, %cst_9 {dimension_numbers = #tpu.dot_dimension_numbers<[1], [0], [0], [1], [0, 0, 1, 1], [], []>} : vector<8x32xbf16>, vector<32x96xbf16>, vector<8x96xf32> -> vector<8x96xf32>
    %c0_10 = arith.constant 0 : index
    %c0_11 = arith.constant 0 : index
    %c0_12 = arith.constant 0 : index
    %13 = vector.load %arg5[%c0_10, %c0_11, %c0_12] : memref<9x1x96xf32, #tpu.memory_space<vmem>>, vector<1x1x96xf32>
    %14 = vector.shape_cast %13 : vector<1x1x96xf32> to vector<1x96xf32>
    %15 = vector.broadcast %14 : vector<1x96xf32> to vector<8x96xf32>
    %16 = arith.mulf %12, %15 : vector<8x96xf32>
    %c1 = arith.constant 1 : index
    %c0_13 = arith.constant 0 : index
    %c0_14 = arith.constant 0 : index
    %17 = vector.load %arg4[%c1, %c0_13, %c0_14] : memref<9x8x32xbf16, #tpu.memory_space<vmem>>, vector<1x8x32xbf16>
    %18 = vector.shape_cast %17 : vector<1x8x32xbf16> to vector<8x32xbf16>
    %cst_15 = arith.constant dense<0.000000e+00> : vector<8x96xf32>
    %19 = tpu.matmul %18, %9, %cst_15 {dimension_numbers = #tpu.dot_dimension_numbers<[1], [0], [0], [1], [0, 0, 1, 1], [], []>} : vector<8x32xbf16>, vector<32x96xbf16>, vector<8x96xf32> -> vector<8x96xf32>
    %c1_16 = arith.constant 1 : index
    %c0_17 = arith.constant 0 : index
    %c0_18 = arith.constant 0 : index
    %20 = vector.load %arg5[%c1_16, %c0_17, %c0_18] : memref<9x1x96xf32, #tpu.memory_space<vmem>>, vector<1x1x96xf32>
    %21 = vector.shape_cast %20 : vector<1x1x96xf32> to vector<1x96xf32>
    %22 = vector.broadcast %21 : vector<1x96xf32> to vector<8x96xf32>
    %23 = arith.mulf %19, %22 : vector<8x96xf32>
    %24 = arith.addf %16, %23 : vector<8x96xf32>
    %c2 = arith.constant 2 : index
    %c0_19 = arith.constant 0 : index
    %c0_20 = arith.constant 0 : index
    %25 = vector.load %arg4[%c2, %c0_19, %c0_20] : memref<9x8x32xbf16, #tpu.memory_space<vmem>>, vector<1x8x32xbf16>
    %26 = vector.shape_cast %25 : vector<1x8x32xbf16> to vector<8x32xbf16>
    %cst_21 = arith.constant dense<0.000000e+00> : vector<8x96xf32>
    %27 = tpu.matmul %26, %9, %cst_21 {dimension_numbers = #tpu.dot_dimension_numbers<[1], [0], [0], [1], [0, 0, 1, 1], [], []>} : vector<8x32xbf16>, vector<32x96xbf16>, vector<8x96xf32> -> vector<8x96xf32>
    %c2_22 = arith.constant 2 : index
    %c0_23 = arith.constant 0 : index
    %c0_24 = arith.constant 0 : index
    %28 = vector.load %arg5[%c2_22, %c0_23, %c0_24] : memref<9x1x96xf32, #tpu.memory_space<vmem>>, vector<1x1x96xf32>
    %29 = vector.shape_cast %28 : vector<1x1x96xf32> to vector<1x96xf32>
    %30 = vector.broadcast %29 : vector<1x96xf32> to vector<8x96xf32>
    %31 = arith.mulf %27, %30 : vector<8x96xf32>
    %32 = arith.addf %24, %31 : vector<8x96xf32>
    %c3 = arith.constant 3 : index
    %c0_25 = arith.constant 0 : index
    %c0_26 = arith.constant 0 : index
    %33 = vector.load %arg4[%c3, %c0_25, %c0_26] : memref<9x8x32xbf16, #tpu.memory_space<vmem>>, vector<1x8x32xbf16>
    %34 = vector.shape_cast %33 : vector<1x8x32xbf16> to vector<8x32xbf16>
    %cst_27 = arith.constant dense<0.000000e+00> : vector<8x96xf32>
    %35 = tpu.matmul %34, %9, %cst_27 {dimension_numbers = #tpu.dot_dimension_numbers<[1], [0], [0], [1], [0, 0, 1, 1], [], []>} : vector<8x32xbf16>, vector<32x96xbf16>, vector<8x96xf32> -> vector<8x96xf32>
    %c3_28 = arith.constant 3 : index
    %c0_29 = arith.constant 0 : index
    %c0_30 = arith.constant 0 : index
    %36 = vector.load %arg5[%c3_28, %c0_29, %c0_30] : memref<9x1x96xf32, #tpu.memory_space<vmem>>, vector<1x1x96xf32>
    %37 = vector.shape_cast %36 : vector<1x1x96xf32> to vector<1x96xf32>
    %38 = vector.broadcast %37 : vector<1x96xf32> to vector<8x96xf32>
    %39 = arith.mulf %35, %38 : vector<8x96xf32>
    %40 = arith.addf %32, %39 : vector<8x96xf32>
    %c4 = arith.constant 4 : index
    %c0_31 = arith.constant 0 : index
    %c0_32 = arith.constant 0 : index
    %41 = vector.load %arg4[%c4, %c0_31, %c0_32] : memref<9x8x32xbf16, #tpu.memory_space<vmem>>, vector<1x8x32xbf16>
    %42 = vector.shape_cast %41 : vector<1x8x32xbf16> to vector<8x32xbf16>
    %cst_33 = arith.constant dense<0.000000e+00> : vector<8x96xf32>
    %43 = tpu.matmul %42, %9, %cst_33 {dimension_numbers = #tpu.dot_dimension_numbers<[1], [0], [0], [1], [0, 0, 1, 1], [], []>} : vector<8x32xbf16>, vector<32x96xbf16>, vector<8x96xf32> -> vector<8x96xf32>
    %c4_34 = arith.constant 4 : index
    %c0_35 = arith.constant 0 : index
    %c0_36 = arith.constant 0 : index
    %44 = vector.load %arg5[%c4_34, %c0_35, %c0_36] : memref<9x1x96xf32, #tpu.memory_space<vmem>>, vector<1x1x96xf32>
    %45 = vector.shape_cast %44 : vector<1x1x96xf32> to vector<1x96xf32>
    %46 = vector.broadcast %45 : vector<1x96xf32> to vector<8x96xf32>
    %47 = arith.mulf %43, %46 : vector<8x96xf32>
    %48 = arith.addf %40, %47 : vector<8x96xf32>
    %c5 = arith.constant 5 : index
    %c0_37 = arith.constant 0 : index
    %c0_38 = arith.constant 0 : index
    %49 = vector.load %arg4[%c5, %c0_37, %c0_38] : memref<9x8x32xbf16, #tpu.memory_space<vmem>>, vector<1x8x32xbf16>
    %50 = vector.shape_cast %49 : vector<1x8x32xbf16> to vector<8x32xbf16>
    %cst_39 = arith.constant dense<0.000000e+00> : vector<8x96xf32>
    %51 = tpu.matmul %50, %9, %cst_39 {dimension_numbers = #tpu.dot_dimension_numbers<[1], [0], [0], [1], [0, 0, 1, 1], [], []>} : vector<8x32xbf16>, vector<32x96xbf16>, vector<8x96xf32> -> vector<8x96xf32>
    %c5_40 = arith.constant 5 : index
    %c0_41 = arith.constant 0 : index
    %c0_42 = arith.constant 0 : index
    %52 = vector.load %arg5[%c5_40, %c0_41, %c0_42] : memref<9x1x96xf32, #tpu.memory_space<vmem>>, vector<1x1x96xf32>
    %53 = vector.shape_cast %52 : vector<1x1x96xf32> to vector<1x96xf32>
    %54 = vector.broadcast %53 : vector<1x96xf32> to vector<8x96xf32>
    %55 = arith.mulf %51, %54 : vector<8x96xf32>
    %56 = arith.addf %48, %55 : vector<8x96xf32>
    %c6 = arith.constant 6 : index
    %c0_43 = arith.constant 0 : index
    %c0_44 = arith.constant 0 : index
    %57 = vector.load %arg4[%c6, %c0_43, %c0_44] : memref<9x8x32xbf16, #tpu.memory_space<vmem>>, vector<1x8x32xbf16>
    %58 = vector.shape_cast %57 : vector<1x8x32xbf16> to vector<8x32xbf16>
    %cst_45 = arith.constant dense<0.000000e+00> : vector<8x96xf32>
    %59 = tpu.matmul %58, %9, %cst_45 {dimension_numbers = #tpu.dot_dimension_numbers<[1], [0], [0], [1], [0, 0, 1, 1], [], []>} : vector<8x32xbf16>, vector<32x96xbf16>, vector<8x96xf32> -> vector<8x96xf32>
    %c6_46 = arith.constant 6 : index
    %c0_47 = arith.constant 0 : index
    %c0_48 = arith.constant 0 : index
    %60 = vector.load %arg5[%c6_46, %c0_47, %c0_48] : memref<9x1x96xf32, #tpu.memory_space<vmem>>, vector<1x1x96xf32>
    %61 = vector.shape_cast %60 : vector<1x1x96xf32> to vector<1x96xf32>
    %62 = vector.broadcast %61 : vector<1x96xf32> to vector<8x96xf32>
    %63 = arith.mulf %59, %62 : vector<8x96xf32>
    %64 = arith.addf %56, %63 : vector<8x96xf32>
    %c7 = arith.constant 7 : index
    %c0_49 = arith.constant 0 : index
    %c0_50 = arith.constant 0 : index
    %65 = vector.load %arg4[%c7, %c0_49, %c0_50] : memref<9x8x32xbf16, #tpu.memory_space<vmem>>, vector<1x8x32xbf16>
    %66 = vector.shape_cast %65 : vector<1x8x32xbf16> to vector<8x32xbf16>
    %cst_51 = arith.constant dense<0.000000e+00> : vector<8x96xf32>
    %67 = tpu.matmul %66, %9, %cst_51 {dimension_numbers = #tpu.dot_dimension_numbers<[1], [0], [0], [1], [0, 0, 1, 1], [], []>} : vector<8x32xbf16>, vector<32x96xbf16>, vector<8x96xf32> -> vector<8x96xf32>
    %c7_52 = arith.constant 7 : index
    %c0_53 = arith.constant 0 : index
    %c0_54 = arith.constant 0 : index
    %68 = vector.load %arg5[%c7_52, %c0_53, %c0_54] : memref<9x1x96xf32, #tpu.memory_space<vmem>>, vector<1x1x96xf32>
    %69 = vector.shape_cast %68 : vector<1x1x96xf32> to vector<1x96xf32>
    %70 = vector.broadcast %69 : vector<1x96xf32> to vector<8x96xf32>
    %71 = arith.mulf %67, %70 : vector<8x96xf32>
    %72 = arith.addf %64, %71 : vector<8x96xf32>
    %c8 = arith.constant 8 : index
    %c0_55 = arith.constant 0 : index
    %c0_56 = arith.constant 0 : index
    %73 = vector.load %arg4[%c8, %c0_55, %c0_56] : memref<9x8x32xbf16, #tpu.memory_space<vmem>>, vector<1x8x32xbf16>
    %74 = vector.shape_cast %73 : vector<1x8x32xbf16> to vector<8x32xbf16>
    %cst_57 = arith.constant dense<0.000000e+00> : vector<8x96xf32>
    %75 = tpu.matmul %74, %9, %cst_57 {dimension_numbers = #tpu.dot_dimension_numbers<[1], [0], [0], [1], [0, 0, 1, 1], [], []>} : vector<8x32xbf16>, vector<32x96xbf16>, vector<8x96xf32> -> vector<8x96xf32>
    %c8_58 = arith.constant 8 : index
    %c0_59 = arith.constant 0 : index
    %c0_60 = arith.constant 0 : index
    %76 = vector.load %arg5[%c8_58, %c0_59, %c0_60] : memref<9x1x96xf32, #tpu.memory_space<vmem>>, vector<1x1x96xf32>
    %77 = vector.shape_cast %76 : vector<1x1x96xf32> to vector<1x96xf32>
    %78 = vector.broadcast %77 : vector<1x96xf32> to vector<8x96xf32>
    %79 = arith.mulf %75, %78 : vector<8x96xf32>
    %80 = arith.addf %72, %79 : vector<8x96xf32>
    %c0_61 = arith.constant 0 : index
    %c0_62 = arith.constant 0 : index
    %81 = vector.load %arg6[%c0_61, %c0_62] : memref<1x96xf32, #tpu.memory_space<vmem>>, vector<1x96xf32>
    %82 = vector.broadcast %81 : vector<1x96xf32> to vector<8x96xf32>
    %83 = arith.addf %80, %82 : vector<8x96xf32>
    %cst_63 = arith.constant 0.000000e+00 : f32
    %84 = vector.broadcast %cst_63 : f32 to vector<8x96xf32>
    %85 = arith.maximumf %83, %84 : vector<8x96xf32>
    %86 = arith.truncf %85 : vector<8x96xf32> to vector<8x96xbf16>
    %c0_64 = arith.constant 0 : index
    %c0_65 = arith.constant 0 : index
    %87 = vector.load %arg7[%c0_64, %c0_65] : memref<96x16xbf16, #tpu.memory_space<vmem>>, vector<96x16xbf16>
    %cst_66 = arith.constant dense<0.000000e+00> : vector<8x16xf32>
    %88 = tpu.matmul %86, %87, %cst_66 {dimension_numbers = #tpu.dot_dimension_numbers<[1], [0], [0], [1], [0, 0, 1, 1], [], []>} : vector<8x96xbf16>, vector<96x16xbf16>, vector<8x16xf32> -> vector<8x16xf32>
    %c0_67 = arith.constant 0 : index
    %c0_68 = arith.constant 0 : index
    %89 = vector.load %arg8[%c0_67, %c0_68] : memref<1x16xf32, #tpu.memory_space<vmem>>, vector<1x16xf32>
    %90 = vector.broadcast %89 : vector<1x16xf32> to vector<8x16xf32>
    %91 = arith.addf %88, %90 : vector<8x16xf32>
    %c0_69 = arith.constant 0 : index
    %c0_70 = arith.constant 0 : index
    %92 = vector.load %arg9[%c0_69, %c0_70] : memref<8x16xf32, #tpu.memory_space<vmem>>, vector<8x16xf32>
    tpu.vector_store %arg9[%c0_69, %c0_70], %91 {strides = array<i32>} : memref<8x16xf32, #tpu.memory_space<vmem>>, vector<8x16xf32>,
    return
  }
  func.func @transform_0(%arg0: i32) -> (i32, i32) {
    %c0_i32 = arith.constant 0 : i32
    %c0_i32_0 = arith.constant 0 : i32
    %c0_i32_1 = arith.constant 0 : i32
    return %c0_i32, %c0_i32_0 : i32, i32
  }
  func.func @transform_1(%arg0: i32) -> (i32, i32) {
    %c0_i32 = arith.constant 0 : i32
    %c0_i32_0 = arith.constant 0 : i32
    %c0_i32_1 = arith.constant 0 : i32
    return %c0_i32, %c0_i32_0 : i32, i32
  }
  func.func @transform_2(%arg0: i32) -> (i32, i32) {
    %c0_i32 = arith.constant 0 : i32
    %c0_i32_0 = arith.constant 0 : i32
    %c0_i32_1 = arith.constant 0 : i32
    return %c0_i32, %c0_i32_0 : i32, i32
  }
  func.func @transform_3(%arg0: i32) -> (i32, i32, i32) {
    %c0_i32 = arith.constant 0 : i32
    %c0_i32_0 = arith.constant 0 : i32
    %c0_i32_1 = arith.constant 0 : i32
    %c0_i32_2 = arith.constant 0 : i32
    return %c0_i32, %c0_i32_0, %c0_i32_1 : i32, i32, i32
  }
  func.func @transform_4(%arg0: i32) -> (i32, i32, i32) {
    %c0_i32 = arith.constant 0 : i32
    %c0_i32_0 = arith.constant 0 : i32
    %c0_i32_1 = arith.constant 0 : i32
    %c0_i32_2 = arith.constant 0 : i32
    return %c0_i32, %c0_i32_0, %c0_i32_1 : i32, i32, i32
  }
  func.func @transform_5(%arg0: i32) -> (i32, i32) {
    %c0_i32 = arith.constant 0 : i32
    %c0_i32_0 = arith.constant 0 : i32
    %c0_i32_1 = arith.constant 0 : i32
    return %c0_i32, %c0_i32_0 : i32, i32
  }
  func.func @transform_6(%arg0: i32) -> (i32, i32) {
    %c0_i32 = arith.constant 0 : i32
    %c0_i32_0 = arith.constant 0 : i32
    %c0_i32_1 = arith.constant 0 : i32
    return %c0_i32, %c0_i32_0 : i32, i32
  }
  func.func @transform_7(%arg0: i32) -> (i32, i32) {
    %c0_i32 = arith.constant 0 : i32
    %c0_i32_0 = arith.constant 0 : i32
    %c0_i32_1 = arith.constant 0 : i32
    return %c0_i32, %c0_i32_0 : i32, i32
  }
  func.func @transform_8(%arg0: i32) -> (i32, i32) {
    %c0_i32 = arith.constant 0 : i32
    %c0_i32_0 = arith.constant 0 : i32
    %c0_i32_1 = arith.constant 0 : i32
    return %c0_i32, %c0_i32_0 : i32, i32
  }
}

module attributes {stable_mosaic.version = 11 : i64} {
  func.func @_ir_block_kernel(%arg0: i32, %arg1: memref<8x16xf32, #tpu.memory_space<vmem>>, %arg2: memref<16x96xbf16, #tpu.memory_space<vmem>>, %arg3: memref<1x96xf32, #tpu.memory_space<vmem>>, %arg4: memref<9x8x8xbf16, #tpu.memory_space<vmem>>, %arg5: memref<9x1x96xf32, #tpu.memory_space<vmem>>, %arg6: memref<1x96xf32, #tpu.memory_space<vmem>>, %arg7: memref<96x16xbf16, #tpu.memory_space<vmem>>, %arg8: memref<1x16xf32, #tpu.memory_space<vmem>>, %arg9: memref<8x16xf32, #tpu.memory_space<vmem>>) attributes {dimension_semantics = [#tpu.dimension_semantics<arbitrary>], iteration_bounds = array<i64: 1>, scalar_prefetch = 0 : i64, scratch_operands = 0 : i64, tpu.core_type = #tpu.core_type<tc>, window_params = [{pipeline_mode = #tpu.pipeline_mode<synchronous>, transform_indices = @transform_0, window_bounds = array<i64: 8, 16>}, {pipeline_mode = #tpu.pipeline_mode<synchronous>, transform_indices = @transform_1, window_bounds = array<i64: 16, 96>}, {pipeline_mode = #tpu.pipeline_mode<synchronous>, transform_indices = @transform_2, window_bounds = array<i64: 1, 96>}, {pipeline_mode = #tpu.pipeline_mode<synchronous>, transform_indices = @transform_3, window_bounds = array<i64: 9, 8, 8>}, {pipeline_mode = #tpu.pipeline_mode<synchronous>, transform_indices = @transform_4, window_bounds = array<i64: 9, 1, 96>}, {pipeline_mode = #tpu.pipeline_mode<synchronous>, transform_indices = @transform_5, window_bounds = array<i64: 1, 96>}, {pipeline_mode = #tpu.pipeline_mode<synchronous>, transform_indices = @transform_6, window_bounds = array<i64: 96, 16>}, {pipeline_mode = #tpu.pipeline_mode<synchronous>, transform_indices = @transform_7, window_bounds = array<i64: 1, 16>}, {pipeline_mode = #tpu.pipeline_mode<synchronous>, transform_indices = @transform_8, window_bounds = array<i64: 8, 16>}]} {
    %c0 = arith.constant 0 : index
    %c0_0 = arith.constant 0 : index
    %0 = vector.load %arg1[%c0, %c0_0] : memref<8x16xf32, #tpu.memory_space<vmem>>, vector<8x16xf32>
    %1 = arith.truncf %0 : vector<8x16xf32> to vector<8x16xbf16>
    %c0_1 = arith.constant 0 : index
    %c0_2 = arith.constant 0 : index
    %2 = vector.load %arg2[%c0_1, %c0_2] : memref<16x96xbf16, #tpu.memory_space<vmem>>, vector<16x96xbf16>
    %cst = arith.constant dense<0.000000e+00> : vector<8x96xf32>
    %3 = tpu.matmul %1, %2, %cst {dimension_numbers = #tpu.dot_dimension_numbers<[1], [0], [0], [1], [0, 0, 1, 1], [], []>} : vector<8x16xbf16>, vector<16x96xbf16>, vector<8x96xf32> -> vector<8x96xf32>
    %c0_3 = arith.constant 0 : index
    %c0_4 = arith.constant 0 : index
    %4 = vector.load %arg3[%c0_3, %c0_4] : memref<1x96xf32, #tpu.memory_space<vmem>>, vector<1x96xf32>
    %5 = vector.broadcast %4 : vector<1x96xf32> to vector<8x96xf32>
    %6 = arith.addf %3, %5 : vector<8x96xf32>
    %cst_5 = arith.constant 0.000000e+00 : f32
    %7 = vector.broadcast %cst_5 : f32 to vector<8x96xf32>
    %8 = arith.maximumf %6, %7 : vector<8x96xf32>
    %9 = arith.truncf %8 : vector<8x96xf32> to vector<8x96xbf16>
    %c0_6 = arith.constant 0 : index
    %c0_7 = arith.constant 0 : index
    %c0_8 = arith.constant 0 : index
    %10 = vector.load %arg4[%c0_6, %c0_7, %c0_8] : memref<9x8x8xbf16, #tpu.memory_space<vmem>>, vector<1x8x8xbf16>
    %11 = vector.shape_cast %10 : vector<1x8x8xbf16> to vector<8x8xbf16>
    %cst_9 = arith.constant dense<0.000000e+00> : vector<8x96xf32>
    %12 = tpu.matmul %11, %9, %cst_9 {dimension_numbers = #tpu.dot_dimension_numbers<[1], [0], [0], [1], [0, 0, 1, 1], [], []>} : vector<8x8xbf16>, vector<8x96xbf16>, vector<8x96xf32> -> vector<8x96xf32>
    %c0_10 = arith.constant 0 : index
    %c0_11 = arith.constant 0 : index
    %c0_12 = arith.constant 0 : index
    %13 = vector.load %arg5[%c0_10, %c0_11, %c0_12] : memref<9x1x96xf32, #tpu.memory_space<vmem>>, vector<1x1x96xf32>
    %14 = vector.shape_cast %13 : vector<1x1x96xf32> to vector<1x96xf32>
    %15 = vector.broadcast %14 : vector<1x96xf32> to vector<8x96xf32>
    %16 = arith.mulf %12, %15 : vector<8x96xf32>
    %c1 = arith.constant 1 : index
    %c0_13 = arith.constant 0 : index
    %c0_14 = arith.constant 0 : index
    %17 = vector.load %arg4[%c1, %c0_13, %c0_14] : memref<9x8x8xbf16, #tpu.memory_space<vmem>>, vector<1x8x8xbf16>
    %18 = vector.shape_cast %17 : vector<1x8x8xbf16> to vector<8x8xbf16>
    %cst_15 = arith.constant dense<0.000000e+00> : vector<8x96xf32>
    %19 = tpu.matmul %18, %9, %cst_15 {dimension_numbers = #tpu.dot_dimension_numbers<[1], [0], [0], [1], [0, 0, 1, 1], [], []>} : vector<8x8xbf16>, vector<8x96xbf16>, vector<8x96xf32> -> vector<8x96xf32>
    %c1_16 = arith.constant 1 : index
    %c0_17 = arith.constant 0 : index
    %c0_18 = arith.constant 0 : index
    %20 = vector.load %arg5[%c1_16, %c0_17, %c0_18] : memref<9x1x96xf32, #tpu.memory_space<vmem>>, vector<1x1x96xf32>
    %21 = vector.shape_cast %20 : vector<1x1x96xf32> to vector<1x96xf32>
    %22 = vector.broadcast %21 : vector<1x96xf32> to vector<8x96xf32>
    %23 = arith.mulf %19, %22 : vector<8x96xf32>
    %24 = arith.addf %16, %23 : vector<8x96xf32>
    %c2 = arith.constant 2 : index
    %c0_19 = arith.constant 0 : index
    %c0_20 = arith.constant 0 : index
    %25 = vector.load %arg4[%c2, %c0_19, %c0_20] : memref<9x8x8xbf16, #tpu.memory_space<vmem>>, vector<1x8x8xbf16>
    %26 = vector.shape_cast %25 : vector<1x8x8xbf16> to vector<8x8xbf16>
    %cst_21 = arith.constant dense<0.000000e+00> : vector<8x96xf32>
    %27 = tpu.matmul %26, %9, %cst_21 {dimension_numbers = #tpu.dot_dimension_numbers<[1], [0], [0], [1], [0, 0, 1, 1], [], []>} : vector<8x8xbf16>, vector<8x96xbf16>, vector<8x96xf32> -> vector<8x96xf32>
    %c2_22 = arith.constant 2 : index
    %c0_23 = arith.constant 0 : index
    %c0_24 = arith.constant 0 : index
    %28 = vector.load %arg5[%c2_22, %c0_23, %c0_24] : memref<9x1x96xf32, #tpu.memory_space<vmem>>, vector<1x1x96xf32>
    %29 = vector.shape_cast %28 : vector<1x1x96xf32> to vector<1x96xf32>
    %30 = vector.broadcast %29 : vector<1x96xf32> to vector<8x96xf32>
    %31 = arith.mulf %27, %30 : vector<8x96xf32>
    %32 = arith.addf %24, %31 : vector<8x96xf32>
    %c3 = arith.constant 3 : index
    %c0_25 = arith.constant 0 : index
    %c0_26 = arith.constant 0 : index
    %33 = vector.load %arg4[%c3, %c0_25, %c0_26] : memref<9x8x8xbf16, #tpu.memory_space<vmem>>, vector<1x8x8xbf16>
    %34 = vector.shape_cast %33 : vector<1x8x8xbf16> to vector<8x8xbf16>
    %cst_27 = arith.constant dense<0.000000e+00> : vector<8x96xf32>
    %35 = tpu.matmul %34, %9, %cst_27 {dimension_numbers = #tpu.dot_dimension_numbers<[1], [0], [0], [1], [0, 0, 1, 1], [], []>} : vector<8x8xbf16>, vector<8x96xbf16>, vector<8x96xf32> -> vector<8x96xf32>
    %c3_28 = arith.constant 3 : index
    %c0_29 = arith.constant 0 : index
    %c0_30 = arith.constant 0 : index
    %36 = vector.load %arg5[%c3_28, %c0_29, %c0_30] : memref<9x1x96xf32, #tpu.memory_space<vmem>>, vector<1x1x96xf32>
    %37 = vector.shape_cast %36 : vector<1x1x96xf32> to vector<1x96xf32>
    %38 = vector.broadcast %37 : vector<1x96xf32> to vector<8x96xf32>
    %39 = arith.mulf %35, %38 : vector<8x96xf32>
    %40 = arith.addf %32, %39 : vector<8x96xf32>
    %c4 = arith.constant 4 : index
    %c0_31 = arith.constant 0 : index
    %c0_32 = arith.constant 0 : index
    %41 = vector.load %arg4[%c4, %c0_31, %c0_32] : memref<9x8x8xbf16, #tpu.memory_space<vmem>>, vector<1x8x8xbf16>
    %42 = vector.shape_cast %41 : vector<1x8x8xbf16> to vector<8x8xbf16>
    %cst_33 = arith.constant dense<0.000000e+00> : vector<8x96xf32>
    %43 = tpu.matmul %42, %9, %cst_33 {dimension_numbers = #tpu.dot_dimension_numbers<[1], [0], [0], [1], [0, 0, 1, 1], [], []>} : vector<8x8xbf16>, vector<8x96xbf16>, vector<8x96xf32> -> vector<8x96xf32>
    %c4_34 = arith.constant 4 : index
    %c0_35 = arith.constant 0 : index
    %c0_36 = arith.constant 0 : index
    %44 = vector.load %arg5[%c4_34, %c0_35, %c0_36] : memref<9x1x96xf32, #tpu.memory_space<vmem>>, vector<1x1x96xf32>
    %45 = vector.shape_cast %44 : vector<1x1x96xf32> to vector<1x96xf32>
    %46 = vector.broadcast %45 : vector<1x96xf32> to vector<8x96xf32>
    %47 = arith.mulf %43, %46 : vector<8x96xf32>
    %48 = arith.addf %40, %47 : vector<8x96xf32>
    %c5 = arith.constant 5 : index
    %c0_37 = arith.constant 0 : index
    %c0_38 = arith.constant 0 : index
    %49 = vector.load %arg4[%c5, %c0_37, %c0_38] : memref<9x8x8xbf16, #tpu.memory_space<vmem>>, vector<1x8x8xbf16>
    %50 = vector.shape_cast %49 : vector<1x8x8xbf16> to vector<8x8xbf16>
    %cst_39 = arith.constant dense<0.000000e+00> : vector<8x96xf32>
    %51 = tpu.matmul %50, %9, %cst_39 {dimension_numbers = #tpu.dot_dimension_numbers<[1], [0], [0], [1], [0, 0, 1, 1], [], []>} : vector<8x8xbf16>, vector<8x96xbf16>, vector<8x96xf32> -> vector<8x96xf32>
    %c5_40 = arith.constant 5 : index
    %c0_41 = arith.constant 0 : index
    %c0_42 = arith.constant 0 : index
    %52 = vector.load %arg5[%c5_40, %c0_41, %c0_42] : memref<9x1x96xf32, #tpu.memory_space<vmem>>, vector<1x1x96xf32>
    %53 = vector.shape_cast %52 : vector<1x1x96xf32> to vector<1x96xf32>
    %54 = vector.broadcast %53 : vector<1x96xf32> to vector<8x96xf32>
    %55 = arith.mulf %51, %54 : vector<8x96xf32>
    %56 = arith.addf %48, %55 : vector<8x96xf32>
    %c6 = arith.constant 6 : index
    %c0_43 = arith.constant 0 : index
    %c0_44 = arith.constant 0 : index
    %57 = vector.load %arg4[%c6, %c0_43, %c0_44] : memref<9x8x8xbf16, #tpu.memory_space<vmem>>, vector<1x8x8xbf16>
    %58 = vector.shape_cast %57 : vector<1x8x8xbf16> to vector<8x8xbf16>
    %cst_45 = arith.constant dense<0.000000e+00> : vector<8x96xf32>
    %59 = tpu.matmul %58, %9, %cst_45 {dimension_numbers = #tpu.dot_dimension_numbers<[1], [0], [0], [1], [0, 0, 1, 1], [], []>} : vector<8x8xbf16>, vector<8x96xbf16>, vector<8x96xf32> -> vector<8x96xf32>
    %c6_46 = arith.constant 6 : index
    %c0_47 = arith.constant 0 : index
    %c0_48 = arith.constant 0 : index
    %60 = vector.load %arg5[%c6_46, %c0_47, %c0_48] : memref<9x1x96xf32, #tpu.memory_space<vmem>>, vector<1x1x96xf32>
    %61 = vector.shape_cast %60 : vector<1x1x96xf32> to vector<1x96xf32>
    %62 = vector.broadcast %61 : vector<1x96xf32> to vector<8x96xf32>
    %63 = arith.mulf %59, %62 : vector<8x96xf32>
    %64 = arith.addf %56, %63 : vector<8x96xf32>
    %c7 = arith.constant 7 : index
    %c0_49 = arith.constant 0 : index
    %c0_50 = arith.constant 0 : index
    %65 = vector.load %arg4[%c7, %c0_49, %c0_50] : memref<9x8x8xbf16, #tpu.memory_space<vmem>>, vector<1x8x8xbf16>
    %66 = vector.shape_cast %65 : vector<1x8x8xbf16> to vector<8x8xbf16>
    %cst_51 = arith.constant dense<0.000000e+00> : vector<8x96xf32>
    %67 = tpu.matmul %66, %9, %cst_51 {dimension_numbers = #tpu.dot_dimension_numbers<[1], [0], [0], [1], [0, 0, 1, 1], [], []>} : vector<8x8xbf16>, vector<8x96xbf16>, vector<8x96xf32> -> vector<8x96xf32>
    %c7_52 = arith.constant 7 : index
    %c0_53 = arith.constant 0 : index
    %c0_54 = arith.constant 0 : index
    %68 = vector.load %arg5[%c7_52, %c0_53, %c0_54] : memref<9x1x96xf32, #tpu.memory_space<vmem>>, vector<1x1x96xf32>
    %69 = vector.shape_cast %68 : vector<1x1x96xf32> to vector<1x96xf32>
    %70 = vector.broadcast %69 : vector<1x96xf32> to vector<8x96xf32>
    %71 = arith.mulf %67, %70 : vector<8x96xf32>
    %72 = arith.addf %64, %71 : vector<8x96xf32>
    %c8 = arith.constant 8 : index
    %c0_55 = arith.constant 0 : index
    %c0_56 = arith.constant 0 : index
    %73 = vector.load %arg4[%c8, %c0_55, %c0_56] : memref<9x8x8xbf16, #tpu.memory_space<vmem>>, vector<1x8x8xbf16>
    %74 = vector.shape_cast %73 : vector<1x8x8xbf16> to vector<8x8xbf16>
    %cst_57 = arith.constant dense<0.000000e+00> : vector<8x96xf32>
    %75 = tpu.matmul %74, %9, %cst_57 {dimension_numbers = #tpu.dot_dimension_numbers<[1], [0], [0], [1], [0, 0, 1, 1], [], []>} : vector<8x8xbf16>, vector<8x96xbf16>, vector<8x96xf32> -> vector<8x96xf32>
    %c8_58 = arith.constant 8 : index
    %c0_59 = arith.constant 0 : index
    %c0_60 = arith.constant 0 : index
    %76 = vector.load %arg5[%c8_58, %c0_59, %c0_60] : memref<9x1x96xf32, #tpu.memory_space<vmem>>, vector<1x1x96xf32>
    %77 = vector.shape_cast %76 : vector<1x1x96xf32> to vector<1x96xf32>
    %78 = vector.broadcast %77 : vector<1x96xf32> to vector<8x96xf32>
    %79 = arith.mulf %75, %78 : vector<8x96xf32>
    %80 = arith.addf %72, %79 : vector<8x96xf32>
    %c0_61 = arith.constant 0 : index
    %c0_62 = arith.constant 0 : index
    %81 = vector.load %arg6[%c0_61, %c0_62] : memref<1x96xf32, #tpu.memory_space<vmem>>, vector<1x96xf32>
    %82 = vector.broadcast %81 : vector<1x96xf32> to vector<8x96xf32>
    %83 = arith.addf %80, %82 : vector<8x96xf32>
    %cst_63 = arith.constant 0.000000e+00 : f32
    %84 = vector.broadcast %cst_63 : f32 to vector<8x96xf32>
    %85 = arith.maximumf %83, %84 : vector<8x96xf32>
    %86 = arith.truncf %85 : vector<8x96xf32> to vector<8x96xbf16>
    %c0_64 = arith.constant 0 : index
    %c0_65 = arith.constant 0 : index
    %87 = vector.load %arg7[%c0_64, %c0_65] : memref<96x16xbf16, #tpu.memory_space<vmem>>, vector<96x16xbf16>
    %cst_66 = arith.constant dense<0.000000e+00> : vector<8x16xf32>
    %88 = tpu.matmul %86, %87, %cst_66 {dimension_numbers = #tpu.dot_dimension_numbers<[1], [0], [0], [1], [0, 0, 1, 1], [], []>} : vector<8x96xbf16>, vector<96x16xbf16>, vector<8x16xf32> -> vector<8x16xf32>
    %c0_67 = arith.constant 0 : index
    %c0_68 = arith.constant 0 : index
    %89 = vector.load %arg8[%c0_67, %c0_68] : memref<1x16xf32, #tpu.memory_space<vmem>>, vector<1x16xf32>
    %90 = vector.broadcast %89 : vector<1x16xf32> to vector<8x16xf32>
    %91 = arith.addf %88, %90 : vector<8x16xf32>
    %92 = arith.addf %91, %0 : vector<8x16xf32>
    %c0_69 = arith.constant 0 : index
    %c0_70 = arith.constant 0 : index
    %93 = vector.load %arg9[%c0_69, %c0_70] : memref<8x16xf32, #tpu.memory_space<vmem>>, vector<8x16xf32>
    tpu.vector_store %arg9[%c0_69, %c0_70], %92 {strides = array<i32>} : memref<8x16xf32, #tpu.memory_space<vmem>>, vector<8x16xf32>,
    return
  }
  func.func @transform_0(%arg0: i32) -> (i32, i32) {
    %c0_i32 = arith.constant 0 : i32
    %c0_i32_0 = arith.constant 0 : i32
    %c0_i32_1 = arith.constant 0 : i32
    return %c0_i32, %c0_i32_0 : i32, i32
  }
  func.func @transform_1(%arg0: i32) -> (i32, i32) {
    %c0_i32 = arith.constant 0 : i32
    %c0_i32_0 = arith.constant 0 : i32
    %c0_i32_1 = arith.constant 0 : i32
    return %c0_i32, %c0_i32_0 : i32, i32
  }
  func.func @transform_2(%arg0: i32) -> (i32, i32) {
    %c0_i32 = arith.constant 0 : i32
    %c0_i32_0 = arith.constant 0 : i32
    %c0_i32_1 = arith.constant 0 : i32
    return %c0_i32, %c0_i32_0 : i32, i32
  }
  func.func @transform_3(%arg0: i32) -> (i32, i32, i32) {
    %c0_i32 = arith.constant 0 : i32
    %c0_i32_0 = arith.constant 0 : i32
    %c0_i32_1 = arith.constant 0 : i32
    %c0_i32_2 = arith.constant 0 : i32
    return %c0_i32, %c0_i32_0, %c0_i32_1 : i32, i32, i32
  }
  func.func @transform_4(%arg0: i32) -> (i32, i32, i32) {
    %c0_i32 = arith.constant 0 : i32
    %c0_i32_0 = arith.constant 0 : i32
    %c0_i32_1 = arith.constant 0 : i32
    %c0_i32_2 = arith.constant 0 : i32
    return %c0_i32, %c0_i32_0, %c0_i32_1 : i32, i32, i32
  }
  func.func @transform_5(%arg0: i32) -> (i32, i32) {
    %c0_i32 = arith.constant 0 : i32
    %c0_i32_0 = arith.constant 0 : i32
    %c0_i32_1 = arith.constant 0 : i32
    return %c0_i32, %c0_i32_0 : i32, i32
  }
  func.func @transform_6(%arg0: i32) -> (i32, i32) {
    %c0_i32 = arith.constant 0 : i32
    %c0_i32_0 = arith.constant 0 : i32
    %c0_i32_1 = arith.constant 0 : i32
    return %c0_i32, %c0_i32_0 : i32, i32
  }
  func.func @transform_7(%arg0: i32) -> (i32, i32) {
    %c0_i32 = arith.constant 0 : i32
    %c0_i32_0 = arith.constant 0 : i32
    %c0_i32_1 = arith.constant 0 : i32
    return %c0_i32, %c0_i32_0 : i32, i32
  }
  func.func @transform_8(%arg0: i32) -> (i32, i32) {
    %c0_i32 = arith.constant 0 : i32
    %c0_i32_0 = arith.constant 0 : i32
    %c0_i32_1 = arith.constant 0 : i32
    return %c0_i32, %c0_i32_0 : i32, i32
  }
}

module attributes {stable_mosaic.version = 11 : i64} {
  func.func @_ir_block_kernel(%arg0: i32, %arg1: memref<2x24xf32, #tpu.memory_space<vmem>>, %arg2: memref<24x144xbf16, #tpu.memory_space<vmem>>, %arg3: memref<1x144xf32, #tpu.memory_space<vmem>>, %arg4: memref<9x1x144xf32, #tpu.memory_space<vmem>>, %arg5: memref<1x144xf32, #tpu.memory_space<vmem>>, %arg6: memref<144x24xbf16, #tpu.memory_space<vmem>>, %arg7: memref<1x24xf32, #tpu.memory_space<vmem>>, %arg8: memref<2x24xf32, #tpu.memory_space<vmem>>) attributes {dimension_semantics = [#tpu.dimension_semantics<arbitrary>], iteration_bounds = array<i64: 1>, scalar_prefetch = 0 : i64, scratch_operands = 0 : i64, tpu.core_type = #tpu.core_type<tc>, window_params = [{pipeline_mode = #tpu.pipeline_mode<synchronous>, transform_indices = @transform_0, window_bounds = array<i64: 2, 24>}, {pipeline_mode = #tpu.pipeline_mode<synchronous>, transform_indices = @transform_1, window_bounds = array<i64: 24, 144>}, {pipeline_mode = #tpu.pipeline_mode<synchronous>, transform_indices = @transform_2, window_bounds = array<i64: 1, 144>}, {pipeline_mode = #tpu.pipeline_mode<synchronous>, transform_indices = @transform_3, window_bounds = array<i64: 9, 1, 144>}, {pipeline_mode = #tpu.pipeline_mode<synchronous>, transform_indices = @transform_4, window_bounds = array<i64: 1, 144>}, {pipeline_mode = #tpu.pipeline_mode<synchronous>, transform_indices = @transform_5, window_bounds = array<i64: 144, 24>}, {pipeline_mode = #tpu.pipeline_mode<synchronous>, transform_indices = @transform_6, window_bounds = array<i64: 1, 24>}, {pipeline_mode = #tpu.pipeline_mode<synchronous>, transform_indices = @transform_7, window_bounds = array<i64: 2, 24>}]} {
    %c0 = arith.constant 0 : index
    %c0_0 = arith.constant 0 : index
    %0 = vector.load %arg1[%c0, %c0_0] : memref<2x24xf32, #tpu.memory_space<vmem>>, vector<2x24xf32>
    %1 = arith.truncf %0 : vector<2x24xf32> to vector<2x24xbf16>
    %c0_1 = arith.constant 0 : index
    %c0_2 = arith.constant 0 : index
    %2 = vector.load %arg2[%c0_1, %c0_2] : memref<24x144xbf16, #tpu.memory_space<vmem>>, vector<24x144xbf16>
    %cst = arith.constant dense<0.000000e+00> : vector<2x144xf32>
    %3 = tpu.matmul %1, %2, %cst {dimension_numbers = #tpu.dot_dimension_numbers<[1], [0], [0], [1], [0, 0, 1, 1], [], []>} : vector<2x24xbf16>, vector<24x144xbf16>, vector<2x144xf32> -> vector<2x144xf32>
    %c0_3 = arith.constant 0 : index
    %c0_4 = arith.constant 0 : index
    %4 = vector.load %arg3[%c0_3, %c0_4] : memref<1x144xf32, #tpu.memory_space<vmem>>, vector<1x144xf32>
    %5 = vector.broadcast %4 : vector<1x144xf32> to vector<2x144xf32>
    %6 = arith.addf %3, %5 : vector<2x144xf32>
    %cst_5 = arith.constant 0.000000e+00 : f32
    %7 = vector.broadcast %cst_5 : f32 to vector<2x144xf32>
    %8 = arith.maximumf %6, %7 : vector<2x144xf32>
    %c4 = arith.constant 4 : index
    %c0_6 = arith.constant 0 : index
    %c0_7 = arith.constant 0 : index
    %9 = vector.load %arg4[%c4, %c0_6, %c0_7] : memref<9x1x144xf32, #tpu.memory_space<vmem>>, vector<1x1x144xf32>
    %10 = vector.shape_cast %9 : vector<1x1x144xf32> to vector<1x144xf32>
    %11 = vector.broadcast %10 : vector<1x144xf32> to vector<2x144xf32>
    %12 = arith.mulf %8, %11 : vector<2x144xf32>
    %c0_8 = arith.constant 0 : index
    %c0_9 = arith.constant 0 : index
    %13 = vector.load %arg5[%c0_8, %c0_9] : memref<1x144xf32, #tpu.memory_space<vmem>>, vector<1x144xf32>
    %14 = vector.broadcast %13 : vector<1x144xf32> to vector<2x144xf32>
    %15 = arith.addf %12, %14 : vector<2x144xf32>
    %cst_10 = arith.constant 0.000000e+00 : f32
    %16 = vector.broadcast %cst_10 : f32 to vector<2x144xf32>
    %17 = arith.maximumf %15, %16 : vector<2x144xf32>
    %18 = arith.truncf %17 : vector<2x144xf32> to vector<2x144xbf16>
    %c0_11 = arith.constant 0 : index
    %c0_12 = arith.constant 0 : index
    %19 = vector.load %arg6[%c0_11, %c0_12] : memref<144x24xbf16, #tpu.memory_space<vmem>>, vector<144x24xbf16>
    %cst_13 = arith.constant dense<0.000000e+00> : vector<2x24xf32>
    %20 = tpu.matmul %18, %19, %cst_13 {dimension_numbers = #tpu.dot_dimension_numbers<[1], [0], [0], [1], [0, 0, 1, 1], [], []>} : vector<2x144xbf16>, vector<144x24xbf16>, vector<2x24xf32> -> vector<2x24xf32>
    %c0_14 = arith.constant 0 : index
    %c0_15 = arith.constant 0 : index
    %21 = vector.load %arg7[%c0_14, %c0_15] : memref<1x24xf32, #tpu.memory_space<vmem>>, vector<1x24xf32>
    %22 = vector.broadcast %21 : vector<1x24xf32> to vector<2x24xf32>
    %23 = arith.addf %20, %22 : vector<2x24xf32>
    %24 = arith.addf %23, %0 : vector<2x24xf32>
    %c0_16 = arith.constant 0 : index
    %c0_17 = arith.constant 0 : index
    %25 = vector.load %arg8[%c0_16, %c0_17] : memref<2x24xf32, #tpu.memory_space<vmem>>, vector<2x24xf32>
    tpu.vector_store %arg8[%c0_16, %c0_17], %24 {strides = array<i32>} : memref<2x24xf32, #tpu.memory_space<vmem>>, vector<2x24xf32>,
    return
  }
  func.func @transform_0(%arg0: i32) -> (i32, i32) {
    %c0_i32 = arith.constant 0 : i32
    %c0_i32_0 = arith.constant 0 : i32
    %c0_i32_1 = arith.constant 0 : i32
    return %c0_i32, %c0_i32_0 : i32, i32
  }
  func.func @transform_1(%arg0: i32) -> (i32, i32) {
    %c0_i32 = arith.constant 0 : i32
    %c0_i32_0 = arith.constant 0 : i32
    %c0_i32_1 = arith.constant 0 : i32
    return %c0_i32, %c0_i32_0 : i32, i32
  }
  func.func @transform_2(%arg0: i32) -> (i32, i32) {
    %c0_i32 = arith.constant 0 : i32
    %c0_i32_0 = arith.constant 0 : i32
    %c0_i32_1 = arith.constant 0 : i32
    return %c0_i32, %c0_i32_0 : i32, i32
  }
  func.func @transform_3(%arg0: i32) -> (i32, i32, i32) {
    %c0_i32 = arith.constant 0 : i32
    %c0_i32_0 = arith.constant 0 : i32
    %c0_i32_1 = arith.constant 0 : i32
    %c0_i32_2 = arith.constant 0 : i32
    return %c0_i32, %c0_i32_0, %c0_i32_1 : i32, i32, i32
  }
  func.func @transform_4(%arg0: i32) -> (i32, i32) {
    %c0_i32 = arith.constant 0 : i32
    %c0_i32_0 = arith.constant 0 : i32
    %c0_i32_1 = arith.constant 0 : i32
    return %c0_i32, %c0_i32_0 : i32, i32
  }
  func.func @transform_5(%arg0: i32) -> (i32, i32) {
    %c0_i32 = arith.constant 0 : i32
    %c0_i32_0 = arith.constant 0 : i32
    %c0_i32_1 = arith.constant 0 : i32
    return %c0_i32, %c0_i32_0 : i32, i32
  }
  func.func @transform_6(%arg0: i32) -> (i32, i32) {
    %c0_i32 = arith.constant 0 : i32
    %c0_i32_0 = arith.constant 0 : i32
    %c0_i32_1 = arith.constant 0 : i32
    return %c0_i32, %c0_i32_0 : i32, i32
  }
  func.func @transform_7(%arg0: i32) -> (i32, i32) {
    %c0_i32 = arith.constant 0 : i32
    %c0_i32_0 = arith.constant 0 : i32
    %c0_i32_1 = arith.constant 0 : i32
    return %c0_i32, %c0_i32_0 : i32, i32
  }
}

module attributes {stable_mosaic.version = 11 : i64} {
  func.func @_ir_block_kernel(%arg0: i32, %arg1: memref<2x24xf32, #tpu.memory_space<vmem>>, %arg2: memref<24x144xbf16, #tpu.memory_space<vmem>>, %arg3: memref<1x144xf32, #tpu.memory_space<vmem>>, %arg4: memref<9x1x144xf32, #tpu.memory_space<vmem>>, %arg5: memref<1x144xf32, #tpu.memory_space<vmem>>, %arg6: memref<144x32xbf16, #tpu.memory_space<vmem>>, %arg7: memref<1x32xf32, #tpu.memory_space<vmem>>, %arg8: memref<2x32xf32, #tpu.memory_space<vmem>>) attributes {dimension_semantics = [#tpu.dimension_semantics<arbitrary>], iteration_bounds = array<i64: 1>, scalar_prefetch = 0 : i64, scratch_operands = 0 : i64, tpu.core_type = #tpu.core_type<tc>, window_params = [{pipeline_mode = #tpu.pipeline_mode<synchronous>, transform_indices = @transform_0, window_bounds = array<i64: 2, 24>}, {pipeline_mode = #tpu.pipeline_mode<synchronous>, transform_indices = @transform_1, window_bounds = array<i64: 24, 144>}, {pipeline_mode = #tpu.pipeline_mode<synchronous>, transform_indices = @transform_2, window_bounds = array<i64: 1, 144>}, {pipeline_mode = #tpu.pipeline_mode<synchronous>, transform_indices = @transform_3, window_bounds = array<i64: 9, 1, 144>}, {pipeline_mode = #tpu.pipeline_mode<synchronous>, transform_indices = @transform_4, window_bounds = array<i64: 1, 144>}, {pipeline_mode = #tpu.pipeline_mode<synchronous>, transform_indices = @transform_5, window_bounds = array<i64: 144, 32>}, {pipeline_mode = #tpu.pipeline_mode<synchronous>, transform_indices = @transform_6, window_bounds = array<i64: 1, 32>}, {pipeline_mode = #tpu.pipeline_mode<synchronous>, transform_indices = @transform_7, window_bounds = array<i64: 2, 32>}]} {
    %c0 = arith.constant 0 : index
    %c0_0 = arith.constant 0 : index
    %0 = vector.load %arg1[%c0, %c0_0] : memref<2x24xf32, #tpu.memory_space<vmem>>, vector<2x24xf32>
    %1 = arith.truncf %0 : vector<2x24xf32> to vector<2x24xbf16>
    %c0_1 = arith.constant 0 : index
    %c0_2 = arith.constant 0 : index
    %2 = vector.load %arg2[%c0_1, %c0_2] : memref<24x144xbf16, #tpu.memory_space<vmem>>, vector<24x144xbf16>
    %cst = arith.constant dense<0.000000e+00> : vector<2x144xf32>
    %3 = tpu.matmul %1, %2, %cst {dimension_numbers = #tpu.dot_dimension_numbers<[1], [0], [0], [1], [0, 0, 1, 1], [], []>} : vector<2x24xbf16>, vector<24x144xbf16>, vector<2x144xf32> -> vector<2x144xf32>
    %c0_3 = arith.constant 0 : index
    %c0_4 = arith.constant 0 : index
    %4 = vector.load %arg3[%c0_3, %c0_4] : memref<1x144xf32, #tpu.memory_space<vmem>>, vector<1x144xf32>
    %5 = vector.broadcast %4 : vector<1x144xf32> to vector<2x144xf32>
    %6 = arith.addf %3, %5 : vector<2x144xf32>
    %cst_5 = arith.constant 0.000000e+00 : f32
    %7 = vector.broadcast %cst_5 : f32 to vector<2x144xf32>
    %8 = arith.maximumf %6, %7 : vector<2x144xf32>
    %c4 = arith.constant 4 : index
    %c0_6 = arith.constant 0 : index
    %c0_7 = arith.constant 0 : index
    %9 = vector.load %arg4[%c4, %c0_6, %c0_7] : memref<9x1x144xf32, #tpu.memory_space<vmem>>, vector<1x1x144xf32>
    %10 = vector.shape_cast %9 : vector<1x1x144xf32> to vector<1x144xf32>
    %11 = vector.broadcast %10 : vector<1x144xf32> to vector<2x144xf32>
    %12 = arith.mulf %8, %11 : vector<2x144xf32>
    %c0_8 = arith.constant 0 : index
    %c0_9 = arith.constant 0 : index
    %13 = vector.load %arg5[%c0_8, %c0_9] : memref<1x144xf32, #tpu.memory_space<vmem>>, vector<1x144xf32>
    %14 = vector.broadcast %13 : vector<1x144xf32> to vector<2x144xf32>
    %15 = arith.addf %12, %14 : vector<2x144xf32>
    %cst_10 = arith.constant 0.000000e+00 : f32
    %16 = vector.broadcast %cst_10 : f32 to vector<2x144xf32>
    %17 = arith.maximumf %15, %16 : vector<2x144xf32>
    %18 = arith.truncf %17 : vector<2x144xf32> to vector<2x144xbf16>
    %c0_11 = arith.constant 0 : index
    %c0_12 = arith.constant 0 : index
    %19 = vector.load %arg6[%c0_11, %c0_12] : memref<144x32xbf16, #tpu.memory_space<vmem>>, vector<144x32xbf16>
    %cst_13 = arith.constant dense<0.000000e+00> : vector<2x32xf32>
    %20 = tpu.matmul %18, %19, %cst_13 {dimension_numbers = #tpu.dot_dimension_numbers<[1], [0], [0], [1], [0, 0, 1, 1], [], []>} : vector<2x144xbf16>, vector<144x32xbf16>, vector<2x32xf32> -> vector<2x32xf32>
    %c0_14 = arith.constant 0 : index
    %c0_15 = arith.constant 0 : index
    %21 = vector.load %arg7[%c0_14, %c0_15] : memref<1x32xf32, #tpu.memory_space<vmem>>, vector<1x32xf32>
    %22 = vector.broadcast %21 : vector<1x32xf32> to vector<2x32xf32>
    %23 = arith.addf %20, %22 : vector<2x32xf32>
    %c0_16 = arith.constant 0 : index
    %c0_17 = arith.constant 0 : index
    %24 = vector.load %arg8[%c0_16, %c0_17] : memref<2x32xf32, #tpu.memory_space<vmem>>, vector<2x32xf32>
    tpu.vector_store %arg8[%c0_16, %c0_17], %23 {strides = array<i32>} : memref<2x32xf32, #tpu.memory_space<vmem>>, vector<2x32xf32>,
    return
  }
  func.func @transform_0(%arg0: i32) -> (i32, i32) {
    %c0_i32 = arith.constant 0 : i32
    %c0_i32_0 = arith.constant 0 : i32
    %c0_i32_1 = arith.constant 0 : i32
    return %c0_i32, %c0_i32_0 : i32, i32
  }
  func.func @transform_1(%arg0: i32) -> (i32, i32) {
    %c0_i32 = arith.constant 0 : i32
    %c0_i32_0 = arith.constant 0 : i32
    %c0_i32_1 = arith.constant 0 : i32
    return %c0_i32, %c0_i32_0 : i32, i32
  }
  func.func @transform_2(%arg0: i32) -> (i32, i32) {
    %c0_i32 = arith.constant 0 : i32
    %c0_i32_0 = arith.constant 0 : i32
    %c0_i32_1 = arith.constant 0 : i32
    return %c0_i32, %c0_i32_0 : i32, i32
  }
  func.func @transform_3(%arg0: i32) -> (i32, i32, i32) {
    %c0_i32 = arith.constant 0 : i32
    %c0_i32_0 = arith.constant 0 : i32
    %c0_i32_1 = arith.constant 0 : i32
    %c0_i32_2 = arith.constant 0 : i32
    return %c0_i32, %c0_i32_0, %c0_i32_1 : i32, i32, i32
  }
  func.func @transform_4(%arg0: i32) -> (i32, i32) {
    %c0_i32 = arith.constant 0 : i32
    %c0_i32_0 = arith.constant 0 : i32
    %c0_i32_1 = arith.constant 0 : i32
    return %c0_i32, %c0_i32_0 : i32, i32
  }
  func.func @transform_5(%arg0: i32) -> (i32, i32) {
    %c0_i32 = arith.constant 0 : i32
    %c0_i32_0 = arith.constant 0 : i32
    %c0_i32_1 = arith.constant 0 : i32
    return %c0_i32, %c0_i32_0 : i32, i32
  }
  func.func @transform_6(%arg0: i32) -> (i32, i32) {
    %c0_i32 = arith.constant 0 : i32
    %c0_i32_0 = arith.constant 0 : i32
    %c0_i32_1 = arith.constant 0 : i32
    return %c0_i32, %c0_i32_0 : i32, i32
  }
  func.func @transform_7(%arg0: i32) -> (i32, i32) {
    %c0_i32 = arith.constant 0 : i32
    %c0_i32_0 = arith.constant 0 : i32
    %c0_i32_1 = arith.constant 0 : i32
    return %c0_i32, %c0_i32_0 : i32, i32
  }
}

module attributes {stable_mosaic.version = 11 : i64} {
  func.func @_ir_block_kernel(%arg0: i32, %arg1: memref<8x16xf32, #tpu.memory_space<vmem>>, %arg2: memref<16x96xbf16, #tpu.memory_space<vmem>>, %arg3: memref<1x96xf32, #tpu.memory_space<vmem>>, %arg4: memref<4x2x8xbf16, #tpu.memory_space<vmem>>, %arg5: memref<9x1x96xf32, #tpu.memory_space<vmem>>, %arg6: memref<1x96xf32, #tpu.memory_space<vmem>>, %arg7: memref<96x24xbf16, #tpu.memory_space<vmem>>, %arg8: memref<1x24xf32, #tpu.memory_space<vmem>>, %arg9: memref<2x24xf32, #tpu.memory_space<vmem>>) attributes {dimension_semantics = [#tpu.dimension_semantics<arbitrary>], iteration_bounds = array<i64: 1>, scalar_prefetch = 0 : i64, scratch_operands = 0 : i64, tpu.core_type = #tpu.core_type<tc>, window_params = [{pipeline_mode = #tpu.pipeline_mode<synchronous>, transform_indices = @transform_0, window_bounds = array<i64: 8, 16>}, {pipeline_mode = #tpu.pipeline_mode<synchronous>, transform_indices = @transform_1, window_bounds = array<i64: 16, 96>}, {pipeline_mode = #tpu.pipeline_mode<synchronous>, transform_indices = @transform_2, window_bounds = array<i64: 1, 96>}, {pipeline_mode = #tpu.pipeline_mode<synchronous>, transform_indices = @transform_3, window_bounds = array<i64: 4, 2, 8>}, {pipeline_mode = #tpu.pipeline_mode<synchronous>, transform_indices = @transform_4, window_bounds = array<i64: 9, 1, 96>}, {pipeline_mode = #tpu.pipeline_mode<synchronous>, transform_indices = @transform_5, window_bounds = array<i64: 1, 96>}, {pipeline_mode = #tpu.pipeline_mode<synchronous>, transform_indices = @transform_6, window_bounds = array<i64: 96, 24>}, {pipeline_mode = #tpu.pipeline_mode<synchronous>, transform_indices = @transform_7, window_bounds = array<i64: 1, 24>}, {pipeline_mode = #tpu.pipeline_mode<synchronous>, transform_indices = @transform_8, window_bounds = array<i64: 2, 24>}]} {
    %c0 = arith.constant 0 : index
    %c0_0 = arith.constant 0 : index
    %0 = vector.load %arg1[%c0, %c0_0] : memref<8x16xf32, #tpu.memory_space<vmem>>, vector<8x16xf32>
    %1 = arith.truncf %0 : vector<8x16xf32> to vector<8x16xbf16>
    %c0_1 = arith.constant 0 : index
    %c0_2 = arith.constant 0 : index
    %2 = vector.load %arg2[%c0_1, %c0_2] : memref<16x96xbf16, #tpu.memory_space<vmem>>, vector<16x96xbf16>
    %cst = arith.constant dense<0.000000e+00> : vector<8x96xf32>
    %3 = tpu.matmul %1, %2, %cst {dimension_numbers = #tpu.dot_dimension_numbers<[1], [0], [0], [1], [0, 0, 1, 1], [], []>} : vector<8x16xbf16>, vector<16x96xbf16>, vector<8x96xf32> -> vector<8x96xf32>
    %c0_3 = arith.constant 0 : index
    %c0_4 = arith.constant 0 : index
    %4 = vector.load %arg3[%c0_3, %c0_4] : memref<1x96xf32, #tpu.memory_space<vmem>>, vector<1x96xf32>
    %5 = vector.broadcast %4 : vector<1x96xf32> to vector<8x96xf32>
    %6 = arith.addf %3, %5 : vector<8x96xf32>
    %cst_5 = arith.constant 0.000000e+00 : f32
    %7 = vector.broadcast %cst_5 : f32 to vector<8x96xf32>
    %8 = arith.maximumf %6, %7 : vector<8x96xf32>
    %9 = arith.truncf %8 : vector<8x96xf32> to vector<8x96xbf16>
    %c0_6 = arith.constant 0 : index
    %c0_7 = arith.constant 0 : index
    %c0_8 = arith.constant 0 : index
    %10 = vector.load %arg4[%c0_6, %c0_7, %c0_8] : memref<4x2x8xbf16, #tpu.memory_space<vmem>>, vector<1x2x8xbf16>
    %11 = vector.shape_cast %10 : vector<1x2x8xbf16> to vector<2x8xbf16>
    %cst_9 = arith.constant dense<0.000000e+00> : vector<2x96xf32>
    %12 = tpu.matmul %11, %9, %cst_9 {dimension_numbers = #tpu.dot_dimension_numbers<[1], [0], [0], [1], [0, 0, 1, 1], [], []>} : vector<2x8xbf16>, vector<8x96xbf16>, vector<2x96xf32> -> vector<2x96xf32>
    %c4 = arith.constant 4 : index
    %c0_10 = arith.constant 0 : index
    %c0_11 = arith.constant 0 : index
    %13 = vector.load %arg5[%c4, %c0_10, %c0_11] : memref<9x1x96xf32, #tpu.memory_space<vmem>>, vector<1x1x96xf32>
    %14 = vector.shape_cast %13 : vector<1x1x96xf32> to vector<1x96xf32>
    %15 = vector.broadcast %14 : vector<1x96xf32> to vector<2x96xf32>
    %16 = arith.mulf %12, %15 : vector<2x96xf32>
    %c1 = arith.constant 1 : index
    %c0_12 = arith.constant 0 : index
    %c0_13 = arith.constant 0 : index
    %17 = vector.load %arg4[%c1, %c0_12, %c0_13] : memref<4x2x8xbf16, #tpu.memory_space<vmem>>, vector<1x2x8xbf16>
    %18 = vector.shape_cast %17 : vector<1x2x8xbf16> to vector<2x8xbf16>
    %cst_14 = arith.constant dense<0.000000e+00> : vector<2x96xf32>
    %19 = tpu.matmul %18, %9, %cst_14 {dimension_numbers = #tpu.dot_dimension_numbers<[1], [0], [0], [1], [0, 0, 1, 1], [], []>} : vector<2x8xbf16>, vector<8x96xbf16>, vector<2x96xf32> -> vector<2x96xf32>
    %c5 = arith.constant 5 : index
    %c0_15 = arith.constant 0 : index
    %c0_16 = arith.constant 0 : index
    %20 = vector.load %arg5[%c5, %c0_15, %c0_16] : memref<9x1x96xf32, #tpu.memory_space<vmem>>, vector<1x1x96xf32>
    %21 = vector.shape_cast %20 : vector<1x1x96xf32> to vector<1x96xf32>
    %22 = vector.broadcast %21 : vector<1x96xf32> to vector<2x96xf32>
    %23 = arith.mulf %19, %22 : vector<2x96xf32>
    %24 = arith.addf %16, %23 : vector<2x96xf32>
    %c2 = arith.constant 2 : index
    %c0_17 = arith.constant 0 : index
    %c0_18 = arith.constant 0 : index
    %25 = vector.load %arg4[%c2, %c0_17, %c0_18] : memref<4x2x8xbf16, #tpu.memory_space<vmem>>, vector<1x2x8xbf16>
    %26 = vector.shape_cast %25 : vector<1x2x8xbf16> to vector<2x8xbf16>
    %cst_19 = arith.constant dense<0.000000e+00> : vector<2x96xf32>
    %27 = tpu.matmul %26, %9, %cst_19 {dimension_numbers = #tpu.dot_dimension_numbers<[1], [0], [0], [1], [0, 0, 1, 1], [], []>} : vector<2x8xbf16>, vector<8x96xbf16>, vector<2x96xf32> -> vector<2x96xf32>
    %c7 = arith.constant 7 : index
    %c0_20 = arith.constant 0 : index
    %c0_21 = arith.constant 0 : index
    %28 = vector.load %arg5[%c7, %c0_20, %c0_21] : memref<9x1x96xf32, #tpu.memory_space<vmem>>, vector<1x1x96xf32>
    %29 = vector.shape_cast %28 : vector<1x1x96xf32> to vector<1x96xf32>
    %30 = vector.broadcast %29 : vector<1x96xf32> to vector<2x96xf32>
    %31 = arith.mulf %27, %30 : vector<2x96xf32>
    %32 = arith.addf %24, %31 : vector<2x96xf32>
    %c3 = arith.constant 3 : index
    %c0_22 = arith.constant 0 : index
    %c0_23 = arith.constant 0 : index
    %33 = vector.load %arg4[%c3, %c0_22, %c0_23] : memref<4x2x8xbf16, #tpu.memory_space<vmem>>, vector<1x2x8xbf16>
    %34 = vector.shape_cast %33 : vector<1x2x8xbf16> to vector<2x8xbf16>
    %cst_24 = arith.constant dense<0.000000e+00> : vector<2x96xf32>
    %35 = tpu.matmul %34, %9, %cst_24 {dimension_numbers = #tpu.dot_dimension_numbers<[1], [0], [0], [1], [0, 0, 1, 1], [], []>} : vector<2x8xbf16>, vector<8x96xbf16>, vector<2x96xf32> -> vector<2x96xf32>
    %c8 = arith.constant 8 : index
    %c0_25 = arith.constant 0 : index
    %c0_26 = arith.constant 0 : index
    %36 = vector.load %arg5[%c8, %c0_25, %c0_26] : memref<9x1x96xf32, #tpu.memory_space<vmem>>, vector<1x1x96xf32>
    %37 = vector.shape_cast %36 : vector<1x1x96xf32> to vector<1x96xf32>
    %38 = vector.broadcast %37 : vector<1x96xf32> to vector<2x96xf32>
    %39 = arith.mulf %35, %38 : vector<2x96xf32>
    %40 = arith.addf %32, %39 : vector<2x96xf32>
    %c0_27 = arith.constant 0 : index
    %c0_28 = arith.constant 0 : index
    %41 = vector.load %arg6[%c0_27, %c0_28] : memref<1x96xf32, #tpu.memory_space<vmem>>, vector<1x96xf32>
    %42 = vector.broadcast %41 : vector<1x96xf32> to vector<2x96xf32>
    %43 = arith.addf %40, %42 : vector<2x96xf32>
    %cst_29 = arith.constant 0.000000e+00 : f32
    %44 = vector.broadcast %cst_29 : f32 to vector<2x96xf32>
    %45 = arith.maximumf %43, %44 : vector<2x96xf32>
    %46 = arith.truncf %45 : vector<2x96xf32> to vector<2x96xbf16>
    %c0_30 = arith.constant 0 : index
    %c0_31 = arith.constant 0 : index
    %47 = vector.load %arg7[%c0_30, %c0_31] : memref<96x24xbf16, #tpu.memory_space<vmem>>, vector<96x24xbf16>
    %cst_32 = arith.constant dense<0.000000e+00> : vector<2x24xf32>
    %48 = tpu.matmul %46, %47, %cst_32 {dimension_numbers = #tpu.dot_dimension_numbers<[1], [0], [0], [1], [0, 0, 1, 1], [], []>} : vector<2x96xbf16>, vector<96x24xbf16>, vector<2x24xf32> -> vector<2x24xf32>
    %c0_33 = arith.constant 0 : index
    %c0_34 = arith.constant 0 : index
    %49 = vector.load %arg8[%c0_33, %c0_34] : memref<1x24xf32, #tpu.memory_space<vmem>>, vector<1x24xf32>
    %50 = vector.broadcast %49 : vector<1x24xf32> to vector<2x24xf32>
    %51 = arith.addf %48, %50 : vector<2x24xf32>
    %c0_35 = arith.constant 0 : index
    %c0_36 = arith.constant 0 : index
    %52 = vector.load %arg9[%c0_35, %c0_36] : memref<2x24xf32, #tpu.memory_space<vmem>>, vector<2x24xf32>
    tpu.vector_store %arg9[%c0_35, %c0_36], %51 {strides = array<i32>} : memref<2x24xf32, #tpu.memory_space<vmem>>, vector<2x24xf32>,
    return
  }
  func.func @transform_0(%arg0: i32) -> (i32, i32) {
    %c0_i32 = arith.constant 0 : i32
    %c0_i32_0 = arith.constant 0 : i32
    %c0_i32_1 = arith.constant 0 : i32
    return %c0_i32, %c0_i32_0 : i32, i32
  }
  func.func @transform_1(%arg0: i32) -> (i32, i32) {
    %c0_i32 = arith.constant 0 : i32
    %c0_i32_0 = arith.constant 0 : i32
    %c0_i32_1 = arith.constant 0 : i32
    return %c0_i32, %c0_i32_0 : i32, i32
  }
  func.func @transform_2(%arg0: i32) -> (i32, i32) {
    %c0_i32 = arith.constant 0 : i32
    %c0_i32_0 = arith.constant 0 : i32
    %c0_i32_1 = arith.constant 0 : i32
    return %c0_i32, %c0_i32_0 : i32, i32
  }
  func.func @transform_3(%arg0: i32) -> (i32, i32, i32) {
    %c0_i32 = arith.constant 0 : i32
    %c0_i32_0 = arith.constant 0 : i32
    %c0_i32_1 = arith.constant 0 : i32
    %c0_i32_2 = arith.constant 0 : i32
    return %c0_i32, %c0_i32_0, %c0_i32_1 : i32, i32, i32
  }
  func.func @transform_4(%arg0: i32) -> (i32, i32, i32) {
    %c0_i32 = arith.constant 0 : i32
    %c0_i32_0 = arith.constant 0 : i32
    %c0_i32_1 = arith.constant 0 : i32
    %c0_i32_2 = arith.constant 0 : i32
    return %c0_i32, %c0_i32_0, %c0_i32_1 : i32, i32, i32
  }
  func.func @transform_5(%arg0: i32) -> (i32, i32) {
    %c0_i32 = arith.constant 0 : i32
    %c0_i32_0 = arith.constant 0 : i32
    %c0_i32_1 = arith.constant 0 : i32
    return %c0_i32, %c0_i32_0 : i32, i32
  }
  func.func @transform_6(%arg0: i32) -> (i32, i32) {
    %c0_i32 = arith.constant 0 : i32
    %c0_i32_0 = arith.constant 0 : i32
    %c0_i32_1 = arith.constant 0 : i32
    return %c0_i32, %c0_i32_0 : i32, i32
  }
  func.func @transform_7(%arg0: i32) -> (i32, i32) {
    %c0_i32 = arith.constant 0 : i32
    %c0_i32_0 = arith.constant 0 : i32
    %c0_i32_1 = arith.constant 0 : i32
    return %c0_i32, %c0_i32_0 : i32, i32
  }
  func.func @transform_8(%arg0: i32) -> (i32, i32) {
    %c0_i32 = arith.constant 0 : i32
    %c0_i32_0 = arith.constant 0 : i32
    %c0_i32_1 = arith.constant 0 : i32
    return %c0_i32, %c0_i32_0 : i32, i32
  }
}

module attributes {stable_mosaic.version = 11 : i64} {
  func.func @_ir_block_kernel(%arg0: i32, %arg1: memref<2x32xf32, #tpu.memory_space<vmem>>, %arg2: memref<32x192xbf16, #tpu.memory_space<vmem>>, %arg3: memref<1x192xf32, #tpu.memory_space<vmem>>, %arg4: memref<9x1x192xf32, #tpu.memory_space<vmem>>, %arg5: memref<1x192xf32, #tpu.memory_space<vmem>>, %arg6: memref<192x32xbf16, #tpu.memory_space<vmem>>, %arg7: memref<1x32xf32, #tpu.memory_space<vmem>>, %arg8: memref<2x32xf32, #tpu.memory_space<vmem>>) attributes {dimension_semantics = [#tpu.dimension_semantics<arbitrary>], iteration_bounds = array<i64: 1>, scalar_prefetch = 0 : i64, scratch_operands = 0 : i64, tpu.core_type = #tpu.core_type<tc>, window_params = [{pipeline_mode = #tpu.pipeline_mode<synchronous>, transform_indices = @transform_0, window_bounds = array<i64: 2, 32>}, {pipeline_mode = #tpu.pipeline_mode<synchronous>, transform_indices = @transform_1, window_bounds = array<i64: 32, 192>}, {pipeline_mode = #tpu.pipeline_mode<synchronous>, transform_indices = @transform_2, window_bounds = array<i64: 1, 192>}, {pipeline_mode = #tpu.pipeline_mode<synchronous>, transform_indices = @transform_3, window_bounds = array<i64: 9, 1, 192>}, {pipeline_mode = #tpu.pipeline_mode<synchronous>, transform_indices = @transform_4, window_bounds = array<i64: 1, 192>}, {pipeline_mode = #tpu.pipeline_mode<synchronous>, transform_indices = @transform_5, window_bounds = array<i64: 192, 32>}, {pipeline_mode = #tpu.pipeline_mode<synchronous>, transform_indices = @transform_6, window_bounds = array<i64: 1, 32>}, {pipeline_mode = #tpu.pipeline_mode<synchronous>, transform_indices = @transform_7, window_bounds = array<i64: 2, 32>}]} {
    %c0 = arith.constant 0 : index
    %c0_0 = arith.constant 0 : index
    %0 = vector.load %arg1[%c0, %c0_0] : memref<2x32xf32, #tpu.memory_space<vmem>>, vector<2x32xf32>
    %1 = arith.truncf %0 : vector<2x32xf32> to vector<2x32xbf16>
    %c0_1 = arith.constant 0 : index
    %c0_2 = arith.constant 0 : index
    %2 = vector.load %arg2[%c0_1, %c0_2] : memref<32x192xbf16, #tpu.memory_space<vmem>>, vector<32x192xbf16>
    %cst = arith.constant dense<0.000000e+00> : vector<2x192xf32>
    %3 = tpu.matmul %1, %2, %cst {dimension_numbers = #tpu.dot_dimension_numbers<[1], [0], [0], [1], [0, 0, 1, 1], [], []>} : vector<2x32xbf16>, vector<32x192xbf16>, vector<2x192xf32> -> vector<2x192xf32>
    %c0_3 = arith.constant 0 : index
    %c0_4 = arith.constant 0 : index
    %4 = vector.load %arg3[%c0_3, %c0_4] : memref<1x192xf32, #tpu.memory_space<vmem>>, vector<1x192xf32>
    %5 = vector.broadcast %4 : vector<1x192xf32> to vector<2x192xf32>
    %6 = arith.addf %3, %5 : vector<2x192xf32>
    %cst_5 = arith.constant 0.000000e+00 : f32
    %7 = vector.broadcast %cst_5 : f32 to vector<2x192xf32>
    %8 = arith.maximumf %6, %7 : vector<2x192xf32>
    %c4 = arith.constant 4 : index
    %c0_6 = arith.constant 0 : index
    %c0_7 = arith.constant 0 : index
    %9 = vector.load %arg4[%c4, %c0_6, %c0_7] : memref<9x1x192xf32, #tpu.memory_space<vmem>>, vector<1x1x192xf32>
    %10 = vector.shape_cast %9 : vector<1x1x192xf32> to vector<1x192xf32>
    %11 = vector.broadcast %10 : vector<1x192xf32> to vector<2x192xf32>
    %12 = arith.mulf %8, %11 : vector<2x192xf32>
    %c0_8 = arith.constant 0 : index
    %c0_9 = arith.constant 0 : index
    %13 = vector.load %arg5[%c0_8, %c0_9] : memref<1x192xf32, #tpu.memory_space<vmem>>, vector<1x192xf32>
    %14 = vector.broadcast %13 : vector<1x192xf32> to vector<2x192xf32>
    %15 = arith.addf %12, %14 : vector<2x192xf32>
    %cst_10 = arith.constant 0.000000e+00 : f32
    %16 = vector.broadcast %cst_10 : f32 to vector<2x192xf32>
    %17 = arith.maximumf %15, %16 : vector<2x192xf32>
    %18 = arith.truncf %17 : vector<2x192xf32> to vector<2x192xbf16>
    %c0_11 = arith.constant 0 : index
    %c0_12 = arith.constant 0 : index
    %19 = vector.load %arg6[%c0_11, %c0_12] : memref<192x32xbf16, #tpu.memory_space<vmem>>, vector<192x32xbf16>
    %cst_13 = arith.constant dense<0.000000e+00> : vector<2x32xf32>
    %20 = tpu.matmul %18, %19, %cst_13 {dimension_numbers = #tpu.dot_dimension_numbers<[1], [0], [0], [1], [0, 0, 1, 1], [], []>} : vector<2x192xbf16>, vector<192x32xbf16>, vector<2x32xf32> -> vector<2x32xf32>
    %c0_14 = arith.constant 0 : index
    %c0_15 = arith.constant 0 : index
    %21 = vector.load %arg7[%c0_14, %c0_15] : memref<1x32xf32, #tpu.memory_space<vmem>>, vector<1x32xf32>
    %22 = vector.broadcast %21 : vector<1x32xf32> to vector<2x32xf32>
    %23 = arith.addf %20, %22 : vector<2x32xf32>
    %24 = arith.addf %23, %0 : vector<2x32xf32>
    %c0_16 = arith.constant 0 : index
    %c0_17 = arith.constant 0 : index
    %25 = vector.load %arg8[%c0_16, %c0_17] : memref<2x32xf32, #tpu.memory_space<vmem>>, vector<2x32xf32>
    tpu.vector_store %arg8[%c0_16, %c0_17], %24 {strides = array<i32>} : memref<2x32xf32, #tpu.memory_space<vmem>>, vector<2x32xf32>,
    return
  }
  func.func @transform_0(%arg0: i32) -> (i32, i32) {
    %c0_i32 = arith.constant 0 : i32
    %c0_i32_0 = arith.constant 0 : i32
    %c0_i32_1 = arith.constant 0 : i32
    return %c0_i32, %c0_i32_0 : i32, i32
  }
  func.func @transform_1(%arg0: i32) -> (i32, i32) {
    %c0_i32 = arith.constant 0 : i32
    %c0_i32_0 = arith.constant 0 : i32
    %c0_i32_1 = arith.constant 0 : i32
    return %c0_i32, %c0_i32_0 : i32, i32
  }
  func.func @transform_2(%arg0: i32) -> (i32, i32) {
    %c0_i32 = arith.constant 0 : i32
    %c0_i32_0 = arith.constant 0 : i32
    %c0_i32_1 = arith.constant 0 : i32
    return %c0_i32, %c0_i32_0 : i32, i32
  }
  func.func @transform_3(%arg0: i32) -> (i32, i32, i32) {
    %c0_i32 = arith.constant 0 : i32
    %c0_i32_0 = arith.constant 0 : i32
    %c0_i32_1 = arith.constant 0 : i32
    %c0_i32_2 = arith.constant 0 : i32
    return %c0_i32, %c0_i32_0, %c0_i32_1 : i32, i32, i32
  }
  func.func @transform_4(%arg0: i32) -> (i32, i32) {
    %c0_i32 = arith.constant 0 : i32
    %c0_i32_0 = arith.constant 0 : i32
    %c0_i32_1 = arith.constant 0 : i32
    return %c0_i32, %c0_i32_0 : i32, i32
  }
  func.func @transform_5(%arg0: i32) -> (i32, i32) {
    %c0_i32 = arith.constant 0 : i32
    %c0_i32_0 = arith.constant 0 : i32
    %c0_i32_1 = arith.constant 0 : i32
    return %c0_i32, %c0_i32_0 : i32, i32
  }
  func.func @transform_6(%arg0: i32) -> (i32, i32) {
    %c0_i32 = arith.constant 0 : i32
    %c0_i32_0 = arith.constant 0 : i32
    %c0_i32_1 = arith.constant 0 : i32
    return %c0_i32, %c0_i32_0 : i32, i32
  }
  func.func @transform_7(%arg0: i32) -> (i32, i32) {
    %c0_i32 = arith.constant 0 : i32
    %c0_i32_0 = arith.constant 0 : i32
    %c0_i32_1 = arith.constant 0 : i32
    return %c0_i32, %c0_i32_0 : i32, i32
  }
}

module attributes {stable_mosaic.version = 11 : i64} {
  func.func @_ir_block_kernel(%arg0: i32, %arg1: memref<2x32xf32, #tpu.memory_space<vmem>>, %arg2: memref<32x192xbf16, #tpu.memory_space<vmem>>, %arg3: memref<1x192xf32, #tpu.memory_space<vmem>>, %arg4: memref<9x1x192xf32, #tpu.memory_space<vmem>>, %arg5: memref<1x192xf32, #tpu.memory_space<vmem>>, %arg6: memref<192x64xbf16, #tpu.memory_space<vmem>>, %arg7: memref<1x64xf32, #tpu.memory_space<vmem>>, %arg8: memref<2x64xf32, #tpu.memory_space<vmem>>) attributes {dimension_semantics = [#tpu.dimension_semantics<arbitrary>], iteration_bounds = array<i64: 1>, scalar_prefetch = 0 : i64, scratch_operands = 0 : i64, tpu.core_type = #tpu.core_type<tc>, window_params = [{pipeline_mode = #tpu.pipeline_mode<synchronous>, transform_indices = @transform_0, window_bounds = array<i64: 2, 32>}, {pipeline_mode = #tpu.pipeline_mode<synchronous>, transform_indices = @transform_1, window_bounds = array<i64: 32, 192>}, {pipeline_mode = #tpu.pipeline_mode<synchronous>, transform_indices = @transform_2, window_bounds = array<i64: 1, 192>}, {pipeline_mode = #tpu.pipeline_mode<synchronous>, transform_indices = @transform_3, window_bounds = array<i64: 9, 1, 192>}, {pipeline_mode = #tpu.pipeline_mode<synchronous>, transform_indices = @transform_4, window_bounds = array<i64: 1, 192>}, {pipeline_mode = #tpu.pipeline_mode<synchronous>, transform_indices = @transform_5, window_bounds = array<i64: 192, 64>}, {pipeline_mode = #tpu.pipeline_mode<synchronous>, transform_indices = @transform_6, window_bounds = array<i64: 1, 64>}, {pipeline_mode = #tpu.pipeline_mode<synchronous>, transform_indices = @transform_7, window_bounds = array<i64: 2, 64>}]} {
    %c0 = arith.constant 0 : index
    %c0_0 = arith.constant 0 : index
    %0 = vector.load %arg1[%c0, %c0_0] : memref<2x32xf32, #tpu.memory_space<vmem>>, vector<2x32xf32>
    %1 = arith.truncf %0 : vector<2x32xf32> to vector<2x32xbf16>
    %c0_1 = arith.constant 0 : index
    %c0_2 = arith.constant 0 : index
    %2 = vector.load %arg2[%c0_1, %c0_2] : memref<32x192xbf16, #tpu.memory_space<vmem>>, vector<32x192xbf16>
    %cst = arith.constant dense<0.000000e+00> : vector<2x192xf32>
    %3 = tpu.matmul %1, %2, %cst {dimension_numbers = #tpu.dot_dimension_numbers<[1], [0], [0], [1], [0, 0, 1, 1], [], []>} : vector<2x32xbf16>, vector<32x192xbf16>, vector<2x192xf32> -> vector<2x192xf32>
    %c0_3 = arith.constant 0 : index
    %c0_4 = arith.constant 0 : index
    %4 = vector.load %arg3[%c0_3, %c0_4] : memref<1x192xf32, #tpu.memory_space<vmem>>, vector<1x192xf32>
    %5 = vector.broadcast %4 : vector<1x192xf32> to vector<2x192xf32>
    %6 = arith.addf %3, %5 : vector<2x192xf32>
    %cst_5 = arith.constant 0.000000e+00 : f32
    %7 = vector.broadcast %cst_5 : f32 to vector<2x192xf32>
    %8 = arith.maximumf %6, %7 : vector<2x192xf32>
    %c4 = arith.constant 4 : index
    %c0_6 = arith.constant 0 : index
    %c0_7 = arith.constant 0 : index
    %9 = vector.load %arg4[%c4, %c0_6, %c0_7] : memref<9x1x192xf32, #tpu.memory_space<vmem>>, vector<1x1x192xf32>
    %10 = vector.shape_cast %9 : vector<1x1x192xf32> to vector<1x192xf32>
    %11 = vector.broadcast %10 : vector<1x192xf32> to vector<2x192xf32>
    %12 = arith.mulf %8, %11 : vector<2x192xf32>
    %c0_8 = arith.constant 0 : index
    %c0_9 = arith.constant 0 : index
    %13 = vector.load %arg5[%c0_8, %c0_9] : memref<1x192xf32, #tpu.memory_space<vmem>>, vector<1x192xf32>
    %14 = vector.broadcast %13 : vector<1x192xf32> to vector<2x192xf32>
    %15 = arith.addf %12, %14 : vector<2x192xf32>
    %cst_10 = arith.constant 0.000000e+00 : f32
    %16 = vector.broadcast %cst_10 : f32 to vector<2x192xf32>
    %17 = arith.maximumf %15, %16 : vector<2x192xf32>
    %18 = arith.truncf %17 : vector<2x192xf32> to vector<2x192xbf16>
    %c0_11 = arith.constant 0 : index
    %c0_12 = arith.constant 0 : index
    %19 = vector.load %arg6[%c0_11, %c0_12] : memref<192x64xbf16, #tpu.memory_space<vmem>>, vector<192x64xbf16>
    %cst_13 = arith.constant dense<0.000000e+00> : vector<2x64xf32>
    %20 = tpu.matmul %18, %19, %cst_13 {dimension_numbers = #tpu.dot_dimension_numbers<[1], [0], [0], [1], [0, 0, 1, 1], [], []>} : vector<2x192xbf16>, vector<192x64xbf16>, vector<2x64xf32> -> vector<2x64xf32>
    %c0_14 = arith.constant 0 : index
    %c0_15 = arith.constant 0 : index
    %21 = vector.load %arg7[%c0_14, %c0_15] : memref<1x64xf32, #tpu.memory_space<vmem>>, vector<1x64xf32>
    %22 = vector.broadcast %21 : vector<1x64xf32> to vector<2x64xf32>
    %23 = arith.addf %20, %22 : vector<2x64xf32>
    %c0_16 = arith.constant 0 : index
    %c0_17 = arith.constant 0 : index
    %24 = vector.load %arg8[%c0_16, %c0_17] : memref<2x64xf32, #tpu.memory_space<vmem>>, vector<2x64xf32>
    tpu.vector_store %arg8[%c0_16, %c0_17], %23 {strides = array<i32>} : memref<2x64xf32, #tpu.memory_space<vmem>>, vector<2x64xf32>,
    return
  }
  func.func @transform_0(%arg0: i32) -> (i32, i32) {
    %c0_i32 = arith.constant 0 : i32
    %c0_i32_0 = arith.constant 0 : i32
    %c0_i32_1 = arith.constant 0 : i32
    return %c0_i32, %c0_i32_0 : i32, i32
  }
  func.func @transform_1(%arg0: i32) -> (i32, i32) {
    %c0_i32 = arith.constant 0 : i32
    %c0_i32_0 = arith.constant 0 : i32
    %c0_i32_1 = arith.constant 0 : i32
    return %c0_i32, %c0_i32_0 : i32, i32
  }
  func.func @transform_2(%arg0: i32) -> (i32, i32) {
    %c0_i32 = arith.constant 0 : i32
    %c0_i32_0 = arith.constant 0 : i32
    %c0_i32_1 = arith.constant 0 : i32
    return %c0_i32, %c0_i32_0 : i32, i32
  }
  func.func @transform_3(%arg0: i32) -> (i32, i32, i32) {
    %c0_i32 = arith.constant 0 : i32
    %c0_i32_0 = arith.constant 0 : i32
    %c0_i32_1 = arith.constant 0 : i32
    %c0_i32_2 = arith.constant 0 : i32
    return %c0_i32, %c0_i32_0, %c0_i32_1 : i32, i32, i32
  }
  func.func @transform_4(%arg0: i32) -> (i32, i32) {
    %c0_i32 = arith.constant 0 : i32
    %c0_i32_0 = arith.constant 0 : i32
    %c0_i32_1 = arith.constant 0 : i32
    return %c0_i32, %c0_i32_0 : i32, i32
  }
  func.func @transform_5(%arg0: i32) -> (i32, i32) {
    %c0_i32 = arith.constant 0 : i32
    %c0_i32_0 = arith.constant 0 : i32
    %c0_i32_1 = arith.constant 0 : i32
    return %c0_i32, %c0_i32_0 : i32, i32
  }
  func.func @transform_6(%arg0: i32) -> (i32, i32) {
    %c0_i32 = arith.constant 0 : i32
    %c0_i32_0 = arith.constant 0 : i32
    %c0_i32_1 = arith.constant 0 : i32
    return %c0_i32, %c0_i32_0 : i32, i32
  }
  func.func @transform_7(%arg0: i32) -> (i32, i32) {
    %c0_i32 = arith.constant 0 : i32
    %c0_i32_0 = arith.constant 0 : i32
    %c0_i32_1 = arith.constant 0 : i32
    return %c0_i32, %c0_i32_0 : i32, i32
  }
}

module attributes {stable_mosaic.version = 11 : i64} {
  func.func @_ir_block_kernel(%arg0: i32, %arg1: memref<2x64xf32, #tpu.memory_space<vmem>>, %arg2: memref<64x384xbf16, #tpu.memory_space<vmem>>, %arg3: memref<1x384xf32, #tpu.memory_space<vmem>>, %arg4: memref<9x1x384xf32, #tpu.memory_space<vmem>>, %arg5: memref<1x384xf32, #tpu.memory_space<vmem>>, %arg6: memref<384x64xbf16, #tpu.memory_space<vmem>>, %arg7: memref<1x64xf32, #tpu.memory_space<vmem>>, %arg8: memref<2x64xf32, #tpu.memory_space<vmem>>) attributes {dimension_semantics = [#tpu.dimension_semantics<arbitrary>], iteration_bounds = array<i64: 1>, scalar_prefetch = 0 : i64, scratch_operands = 0 : i64, tpu.core_type = #tpu.core_type<tc>, window_params = [{pipeline_mode = #tpu.pipeline_mode<synchronous>, transform_indices = @transform_0, window_bounds = array<i64: 2, 64>}, {pipeline_mode = #tpu.pipeline_mode<synchronous>, transform_indices = @transform_1, window_bounds = array<i64: 64, 384>}, {pipeline_mode = #tpu.pipeline_mode<synchronous>, transform_indices = @transform_2, window_bounds = array<i64: 1, 384>}, {pipeline_mode = #tpu.pipeline_mode<synchronous>, transform_indices = @transform_3, window_bounds = array<i64: 9, 1, 384>}, {pipeline_mode = #tpu.pipeline_mode<synchronous>, transform_indices = @transform_4, window_bounds = array<i64: 1, 384>}, {pipeline_mode = #tpu.pipeline_mode<synchronous>, transform_indices = @transform_5, window_bounds = array<i64: 384, 64>}, {pipeline_mode = #tpu.pipeline_mode<synchronous>, transform_indices = @transform_6, window_bounds = array<i64: 1, 64>}, {pipeline_mode = #tpu.pipeline_mode<synchronous>, transform_indices = @transform_7, window_bounds = array<i64: 2, 64>}]} {
    %c0 = arith.constant 0 : index
    %c0_0 = arith.constant 0 : index
    %0 = vector.load %arg1[%c0, %c0_0] : memref<2x64xf32, #tpu.memory_space<vmem>>, vector<2x64xf32>
    %1 = arith.truncf %0 : vector<2x64xf32> to vector<2x64xbf16>
    %c0_1 = arith.constant 0 : index
    %c0_2 = arith.constant 0 : index
    %2 = vector.load %arg2[%c0_1, %c0_2] : memref<64x384xbf16, #tpu.memory_space<vmem>>, vector<64x384xbf16>
    %cst = arith.constant dense<0.000000e+00> : vector<2x384xf32>
    %3 = tpu.matmul %1, %2, %cst {dimension_numbers = #tpu.dot_dimension_numbers<[1], [0], [0], [1], [0, 0, 1, 1], [], []>} : vector<2x64xbf16>, vector<64x384xbf16>, vector<2x384xf32> -> vector<2x384xf32>
    %c0_3 = arith.constant 0 : index
    %c0_4 = arith.constant 0 : index
    %4 = vector.load %arg3[%c0_3, %c0_4] : memref<1x384xf32, #tpu.memory_space<vmem>>, vector<1x384xf32>
    %5 = vector.broadcast %4 : vector<1x384xf32> to vector<2x384xf32>
    %6 = arith.addf %3, %5 : vector<2x384xf32>
    %cst_5 = arith.constant 0.000000e+00 : f32
    %7 = vector.broadcast %cst_5 : f32 to vector<2x384xf32>
    %8 = arith.maximumf %6, %7 : vector<2x384xf32>
    %c4 = arith.constant 4 : index
    %c0_6 = arith.constant 0 : index
    %c0_7 = arith.constant 0 : index
    %9 = vector.load %arg4[%c4, %c0_6, %c0_7] : memref<9x1x384xf32, #tpu.memory_space<vmem>>, vector<1x1x384xf32>
    %10 = vector.shape_cast %9 : vector<1x1x384xf32> to vector<1x384xf32>
    %11 = vector.broadcast %10 : vector<1x384xf32> to vector<2x384xf32>
    %12 = arith.mulf %8, %11 : vector<2x384xf32>
    %c0_8 = arith.constant 0 : index
    %c0_9 = arith.constant 0 : index
    %13 = vector.load %arg5[%c0_8, %c0_9] : memref<1x384xf32, #tpu.memory_space<vmem>>, vector<1x384xf32>
    %14 = vector.broadcast %13 : vector<1x384xf32> to vector<2x384xf32>
    %15 = arith.addf %12, %14 : vector<2x384xf32>
    %cst_10 = arith.constant 0.000000e+00 : f32
    %16 = vector.broadcast %cst_10 : f32 to vector<2x384xf32>
    %17 = arith.maximumf %15, %16 : vector<2x384xf32>
    %18 = arith.truncf %17 : vector<2x384xf32> to vector<2x384xbf16>
    %c0_11 = arith.constant 0 : index
    %c0_12 = arith.constant 0 : index
    %19 = vector.load %arg6[%c0_11, %c0_12] : memref<384x64xbf16, #tpu.memory_space<vmem>>, vector<384x64xbf16>
    %cst_13 = arith.constant dense<0.000000e+00> : vector<2x64xf32>
    %20 = tpu.matmul %18, %19, %cst_13 {dimension_numbers = #tpu.dot_dimension_numbers<[1], [0], [0], [1], [0, 0, 1, 1], [], []>} : vector<2x384xbf16>, vector<384x64xbf16>, vector<2x64xf32> -> vector<2x64xf32>
    %c0_14 = arith.constant 0 : index
    %c0_15 = arith.constant 0 : index
    %21 = vector.load %arg7[%c0_14, %c0_15] : memref<1x64xf32, #tpu.memory_space<vmem>>, vector<1x64xf32>
    %22 = vector.broadcast %21 : vector<1x64xf32> to vector<2x64xf32>
    %23 = arith.addf %20, %22 : vector<2x64xf32>
    %24 = arith.addf %23, %0 : vector<2x64xf32>
    %c0_16 = arith.constant 0 : index
    %c0_17 = arith.constant 0 : index
    %25 = vector.load %arg8[%c0_16, %c0_17] : memref<2x64xf32, #tpu.memory_space<vmem>>, vector<2x64xf32>
    tpu.vector_store %arg8[%c0_16, %c0_17], %24 {strides = array<i32>} : memref<2x64xf32, #tpu.memory_space<vmem>>, vector<2x64xf32>,
    return
  }
  func.func @transform_0(%arg0: i32) -> (i32, i32) {
    %c0_i32 = arith.constant 0 : i32
    %c0_i32_0 = arith.constant 0 : i32
    %c0_i32_1 = arith.constant 0 : i32
    return %c0_i32, %c0_i32_0 : i32, i32
  }
  func.func @transform_1(%arg0: i32) -> (i32, i32) {
    %c0_i32 = arith.constant 0 : i32
    %c0_i32_0 = arith.constant 0 : i32
    %c0_i32_1 = arith.constant 0 : i32
    return %c0_i32, %c0_i32_0 : i32, i32
  }
  func.func @transform_2(%arg0: i32) -> (i32, i32) {
    %c0_i32 = arith.constant 0 : i32
    %c0_i32_0 = arith.constant 0 : i32
    %c0_i32_1 = arith.constant 0 : i32
    return %c0_i32, %c0_i32_0 : i32, i32
  }
  func.func @transform_3(%arg0: i32) -> (i32, i32, i32) {
    %c0_i32 = arith.constant 0 : i32
    %c0_i32_0 = arith.constant 0 : i32
    %c0_i32_1 = arith.constant 0 : i32
    %c0_i32_2 = arith.constant 0 : i32
    return %c0_i32, %c0_i32_0, %c0_i32_1 : i32, i32, i32
  }
  func.func @transform_4(%arg0: i32) -> (i32, i32) {
    %c0_i32 = arith.constant 0 : i32
    %c0_i32_0 = arith.constant 0 : i32
    %c0_i32_1 = arith.constant 0 : i32
    return %c0_i32, %c0_i32_0 : i32, i32
  }
  func.func @transform_5(%arg0: i32) -> (i32, i32) {
    %c0_i32 = arith.constant 0 : i32
    %c0_i32_0 = arith.constant 0 : i32
    %c0_i32_1 = arith.constant 0 : i32
    return %c0_i32, %c0_i32_0 : i32, i32
  }
  func.func @transform_6(%arg0: i32) -> (i32, i32) {
    %c0_i32 = arith.constant 0 : i32
    %c0_i32_0 = arith.constant 0 : i32
    %c0_i32_1 = arith.constant 0 : i32
    return %c0_i32, %c0_i32_0 : i32, i32
  }
  func.func @transform_7(%arg0: i32) -> (i32, i32) {
    %c0_i32 = arith.constant 0 : i32
    %c0_i32_0 = arith.constant 0 : i32
    %c0_i32_1 = arith.constant 0 : i32
    return %c0_i32, %c0_i32_0 : i32, i32
  }
}

module attributes {stable_mosaic.version = 11 : i64} {
  func.func @_ir_block_kernel(%arg0: i32, %arg1: memref<2x64xf32, #tpu.memory_space<vmem>>, %arg2: memref<64x384xbf16, #tpu.memory_space<vmem>>, %arg3: memref<1x384xf32, #tpu.memory_space<vmem>>, %arg4: memref<9x1x384xf32, #tpu.memory_space<vmem>>, %arg5: memref<1x384xf32, #tpu.memory_space<vmem>>, %arg6: memref<384x128xbf16, #tpu.memory_space<vmem>>, %arg7: memref<1x128xf32, #tpu.memory_space<vmem>>, %arg8: memref<2x128xf32, #tpu.memory_space<vmem>>) attributes {dimension_semantics = [#tpu.dimension_semantics<arbitrary>], iteration_bounds = array<i64: 1>, scalar_prefetch = 0 : i64, scratch_operands = 0 : i64, tpu.core_type = #tpu.core_type<tc>, window_params = [{pipeline_mode = #tpu.pipeline_mode<synchronous>, transform_indices = @transform_0, window_bounds = array<i64: 2, 64>}, {pipeline_mode = #tpu.pipeline_mode<synchronous>, transform_indices = @transform_1, window_bounds = array<i64: 64, 384>}, {pipeline_mode = #tpu.pipeline_mode<synchronous>, transform_indices = @transform_2, window_bounds = array<i64: 1, 384>}, {pipeline_mode = #tpu.pipeline_mode<synchronous>, transform_indices = @transform_3, window_bounds = array<i64: 9, 1, 384>}, {pipeline_mode = #tpu.pipeline_mode<synchronous>, transform_indices = @transform_4, window_bounds = array<i64: 1, 384>}, {pipeline_mode = #tpu.pipeline_mode<synchronous>, transform_indices = @transform_5, window_bounds = array<i64: 384, 128>}, {pipeline_mode = #tpu.pipeline_mode<synchronous>, transform_indices = @transform_6, window_bounds = array<i64: 1, 128>}, {pipeline_mode = #tpu.pipeline_mode<synchronous>, transform_indices = @transform_7, window_bounds = array<i64: 2, 128>}]} {
    %c0 = arith.constant 0 : index
    %c0_0 = arith.constant 0 : index
    %0 = vector.load %arg1[%c0, %c0_0] : memref<2x64xf32, #tpu.memory_space<vmem>>, vector<2x64xf32>
    %1 = arith.truncf %0 : vector<2x64xf32> to vector<2x64xbf16>
    %c0_1 = arith.constant 0 : index
    %c0_2 = arith.constant 0 : index
    %2 = vector.load %arg2[%c0_1, %c0_2] : memref<64x384xbf16, #tpu.memory_space<vmem>>, vector<64x384xbf16>
    %cst = arith.constant dense<0.000000e+00> : vector<2x384xf32>
    %3 = tpu.matmul %1, %2, %cst {dimension_numbers = #tpu.dot_dimension_numbers<[1], [0], [0], [1], [0, 0, 1, 1], [], []>} : vector<2x64xbf16>, vector<64x384xbf16>, vector<2x384xf32> -> vector<2x384xf32>
    %c0_3 = arith.constant 0 : index
    %c0_4 = arith.constant 0 : index
    %4 = vector.load %arg3[%c0_3, %c0_4] : memref<1x384xf32, #tpu.memory_space<vmem>>, vector<1x384xf32>
    %5 = vector.broadcast %4 : vector<1x384xf32> to vector<2x384xf32>
    %6 = arith.addf %3, %5 : vector<2x384xf32>
    %cst_5 = arith.constant 0.000000e+00 : f32
    %7 = vector.broadcast %cst_5 : f32 to vector<2x384xf32>
    %8 = arith.maximumf %6, %7 : vector<2x384xf32>
    %c4 = arith.constant 4 : index
    %c0_6 = arith.constant 0 : index
    %c0_7 = arith.constant 0 : index
    %9 = vector.load %arg4[%c4, %c0_6, %c0_7] : memref<9x1x384xf32, #tpu.memory_space<vmem>>, vector<1x1x384xf32>
    %10 = vector.shape_cast %9 : vector<1x1x384xf32> to vector<1x384xf32>
    %11 = vector.broadcast %10 : vector<1x384xf32> to vector<2x384xf32>
    %12 = arith.mulf %8, %11 : vector<2x384xf32>
    %c0_8 = arith.constant 0 : index
    %c0_9 = arith.constant 0 : index
    %13 = vector.load %arg5[%c0_8, %c0_9] : memref<1x384xf32, #tpu.memory_space<vmem>>, vector<1x384xf32>
    %14 = vector.broadcast %13 : vector<1x384xf32> to vector<2x384xf32>
    %15 = arith.addf %12, %14 : vector<2x384xf32>
    %cst_10 = arith.constant 0.000000e+00 : f32
    %16 = vector.broadcast %cst_10 : f32 to vector<2x384xf32>
    %17 = arith.maximumf %15, %16 : vector<2x384xf32>
    %18 = arith.truncf %17 : vector<2x384xf32> to vector<2x384xbf16>
    %c0_11 = arith.constant 0 : index
    %c0_12 = arith.constant 0 : index
    %19 = vector.load %arg6[%c0_11, %c0_12] : memref<384x128xbf16, #tpu.memory_space<vmem>>, vector<384x128xbf16>
    %cst_13 = arith.constant dense<0.000000e+00> : vector<2x128xf32>
    %20 = tpu.matmul %18, %19, %cst_13 {dimension_numbers = #tpu.dot_dimension_numbers<[1], [0], [0], [1], [0, 0, 1, 1], [], []>} : vector<2x384xbf16>, vector<384x128xbf16>, vector<2x128xf32> -> vector<2x128xf32>
    %c0_14 = arith.constant 0 : index
    %c0_15 = arith.constant 0 : index
    %21 = vector.load %arg7[%c0_14, %c0_15] : memref<1x128xf32, #tpu.memory_space<vmem>>, vector<1x128xf32>
    %22 = vector.broadcast %21 : vector<1x128xf32> to vector<2x128xf32>
    %23 = arith.addf %20, %22 : vector<2x128xf32>
    %c0_16 = arith.constant 0 : index
    %c0_17 = arith.constant 0 : index
    %24 = vector.load %arg8[%c0_16, %c0_17] : memref<2x128xf32, #tpu.memory_space<vmem>>, vector<2x128xf32>
    tpu.vector_store %arg8[%c0_16, %c0_17], %23 {strides = array<i32>} : memref<2x128xf32, #tpu.memory_space<vmem>>, vector<2x128xf32>,
    return
  }
  func.func @transform_0(%arg0: i32) -> (i32, i32) {
    %c0_i32 = arith.constant 0 : i32
    %c0_i32_0 = arith.constant 0 : i32
    %c0_i32_1 = arith.constant 0 : i32
    return %c0_i32, %c0_i32_0 : i32, i32
  }
  func.func @transform_1(%arg0: i32) -> (i32, i32) {
    %c0_i32 = arith.constant 0 : i32
    %c0_i32_0 = arith.constant 0 : i32
    %c0_i32_1 = arith.constant 0 : i32
    return %c0_i32, %c0_i32_0 : i32, i32
  }
  func.func @transform_2(%arg0: i32) -> (i32, i32) {
    %c0_i32 = arith.constant 0 : i32
    %c0_i32_0 = arith.constant 0 : i32
    %c0_i32_1 = arith.constant 0 : i32
    return %c0_i32, %c0_i32_0 : i32, i32
  }
  func.func @transform_3(%arg0: i32) -> (i32, i32, i32) {
    %c0_i32 = arith.constant 0 : i32
    %c0_i32_0 = arith.constant 0 : i32
    %c0_i32_1 = arith.constant 0 : i32
    %c0_i32_2 = arith.constant 0 : i32
    return %c0_i32, %c0_i32_0, %c0_i32_1 : i32, i32, i32
  }
  func.func @transform_4(%arg0: i32) -> (i32, i32) {
    %c0_i32 = arith.constant 0 : i32
    %c0_i32_0 = arith.constant 0 : i32
    %c0_i32_1 = arith.constant 0 : i32
    return %c0_i32, %c0_i32_0 : i32, i32
  }
  func.func @transform_5(%arg0: i32) -> (i32, i32) {
    %c0_i32 = arith.constant 0 : i32
    %c0_i32_0 = arith.constant 0 : i32
    %c0_i32_1 = arith.constant 0 : i32
    return %c0_i32, %c0_i32_0 : i32, i32
  }
  func.func @transform_6(%arg0: i32) -> (i32, i32) {
    %c0_i32 = arith.constant 0 : i32
    %c0_i32_0 = arith.constant 0 : i32
    %c0_i32_1 = arith.constant 0 : i32
    return %c0_i32, %c0_i32_0 : i32, i32
  }
  func.func @transform_7(%arg0: i32) -> (i32, i32) {
    %c0_i32 = arith.constant 0 : i32
    %c0_i32_0 = arith.constant 0 : i32
    %c0_i32_1 = arith.constant 0 : i32
    return %c0_i32, %c0_i32_0 : i32, i32
  }
}

module attributes {stable_mosaic.version = 11 : i64} {
  func.func @_tail_kernel(%arg0: i32, %arg1: memref<2x128xf32, #tpu.memory_space<vmem>>, %arg2: memref<128x256xbf16, #tpu.memory_space<vmem>>, %arg3: memref<1x256xf32, #tpu.memory_space<vmem>>, %arg4: memref<2x2xbf16, #tpu.memory_space<vmem>>, %arg5: memref<256x10xbf16, #tpu.memory_space<vmem>>, %arg6: memref<1x10xf32, #tpu.memory_space<vmem>>, %arg7: memref<2x10xf32, #tpu.memory_space<vmem>>) attributes {dimension_semantics = [#tpu.dimension_semantics<arbitrary>], iteration_bounds = array<i64: 1>, scalar_prefetch = 0 : i64, scratch_operands = 0 : i64, tpu.core_type = #tpu.core_type<tc>, window_params = [{pipeline_mode = #tpu.pipeline_mode<synchronous>, transform_indices = @transform_0, window_bounds = array<i64: 2, 128>}, {pipeline_mode = #tpu.pipeline_mode<synchronous>, transform_indices = @transform_1, window_bounds = array<i64: 128, 256>}, {pipeline_mode = #tpu.pipeline_mode<synchronous>, transform_indices = @transform_2, window_bounds = array<i64: 1, 256>}, {pipeline_mode = #tpu.pipeline_mode<synchronous>, transform_indices = @transform_3, window_bounds = array<i64: 2, 2>}, {pipeline_mode = #tpu.pipeline_mode<synchronous>, transform_indices = @transform_4, window_bounds = array<i64: 256, 10>}, {pipeline_mode = #tpu.pipeline_mode<synchronous>, transform_indices = @transform_5, window_bounds = array<i64: 1, 10>}, {pipeline_mode = #tpu.pipeline_mode<synchronous>, transform_indices = @transform_6, window_bounds = array<i64: 2, 10>}]} {
    %c0 = arith.constant 0 : index
    %c0_0 = arith.constant 0 : index
    %0 = vector.load %arg1[%c0, %c0_0] : memref<2x128xf32, #tpu.memory_space<vmem>>, vector<2x128xf32>
    %1 = arith.truncf %0 : vector<2x128xf32> to vector<2x128xbf16>
    %c0_1 = arith.constant 0 : index
    %c0_2 = arith.constant 0 : index
    %2 = vector.load %arg2[%c0_1, %c0_2] : memref<128x256xbf16, #tpu.memory_space<vmem>>, vector<128x256xbf16>
    %cst = arith.constant dense<0.000000e+00> : vector<2x256xf32>
    %3 = tpu.matmul %1, %2, %cst {dimension_numbers = #tpu.dot_dimension_numbers<[1], [0], [0], [1], [0, 0, 1, 1], [], []>} : vector<2x128xbf16>, vector<128x256xbf16>, vector<2x256xf32> -> vector<2x256xf32>
    %c0_3 = arith.constant 0 : index
    %c0_4 = arith.constant 0 : index
    %4 = vector.load %arg3[%c0_3, %c0_4] : memref<1x256xf32, #tpu.memory_space<vmem>>, vector<1x256xf32>
    %5 = vector.broadcast %4 : vector<1x256xf32> to vector<2x256xf32>
    %6 = arith.addf %3, %5 : vector<2x256xf32>
    %cst_5 = arith.constant 0.000000e+00 : f32
    %7 = vector.broadcast %cst_5 : f32 to vector<2x256xf32>
    %8 = arith.maximumf %6, %7 : vector<2x256xf32>
    %c0_6 = arith.constant 0 : index
    %c0_7 = arith.constant 0 : index
    %9 = vector.load %arg4[%c0_6, %c0_7] : memref<2x2xbf16, #tpu.memory_space<vmem>>, vector<2x2xbf16>
    %10 = arith.truncf %8 : vector<2x256xf32> to vector<2x256xbf16>
    %cst_8 = arith.constant dense<0.000000e+00> : vector<2x256xf32>
    %11 = tpu.matmul %9, %10, %cst_8 {dimension_numbers = #tpu.dot_dimension_numbers<[1], [0], [0], [1], [0, 0, 1, 1], [], []>} : vector<2x2xbf16>, vector<2x256xbf16>, vector<2x256xf32> -> vector<2x256xf32>
    %cst_9 = arith.constant 1.000000e+00 : f32
    %12 = vector.broadcast %cst_9 : f32 to vector<2x256xf32>
    %13 = arith.mulf %11, %12 : vector<2x256xf32>
    %14 = arith.truncf %13 : vector<2x256xf32> to vector<2x256xbf16>
    %c0_10 = arith.constant 0 : index
    %c0_11 = arith.constant 0 : index
    %15 = vector.load %arg5[%c0_10, %c0_11] : memref<256x10xbf16, #tpu.memory_space<vmem>>, vector<256x10xbf16>
    %cst_12 = arith.constant dense<0.000000e+00> : vector<2x10xf32>
    %16 = tpu.matmul %14, %15, %cst_12 {dimension_numbers = #tpu.dot_dimension_numbers<[1], [0], [0], [1], [0, 0, 1, 1], [], []>} : vector<2x256xbf16>, vector<256x10xbf16>, vector<2x10xf32> -> vector<2x10xf32>
    %c0_13 = arith.constant 0 : index
    %c0_14 = arith.constant 0 : index
    %17 = vector.load %arg6[%c0_13, %c0_14] : memref<1x10xf32, #tpu.memory_space<vmem>>, vector<1x10xf32>
    %18 = vector.broadcast %17 : vector<1x10xf32> to vector<2x10xf32>
    %19 = arith.addf %16, %18 : vector<2x10xf32>
    %c0_15 = arith.constant 0 : index
    %c0_16 = arith.constant 0 : index
    %20 = vector.load %arg7[%c0_15, %c0_16] : memref<2x10xf32, #tpu.memory_space<vmem>>, vector<2x10xf32>
    tpu.vector_store %arg7[%c0_15, %c0_16], %19 {strides = array<i32>} : memref<2x10xf32, #tpu.memory_space<vmem>>, vector<2x10xf32>,
    return
  }
  func.func @transform_0(%arg0: i32) -> (i32, i32) {
    %c0_i32 = arith.constant 0 : i32
    %c0_i32_0 = arith.constant 0 : i32
    %c0_i32_1 = arith.constant 0 : i32
    return %c0_i32, %c0_i32_0 : i32, i32
  }
  func.func @transform_1(%arg0: i32) -> (i32, i32) {
    %c0_i32 = arith.constant 0 : i32
    %c0_i32_0 = arith.constant 0 : i32
    %c0_i32_1 = arith.constant 0 : i32
    return %c0_i32, %c0_i32_0 : i32, i32
  }
  func.func @transform_2(%arg0: i32) -> (i32, i32) {
    %c0_i32 = arith.constant 0 : i32
    %c0_i32_0 = arith.constant 0 : i32
    %c0_i32_1 = arith.constant 0 : i32
    return %c0_i32, %c0_i32_0 : i32, i32
  }
  func.func @transform_3(%arg0: i32) -> (i32, i32) {
    %c0_i32 = arith.constant 0 : i32
    %c0_i32_0 = arith.constant 0 : i32
    %c0_i32_1 = arith.constant 0 : i32
    return %c0_i32, %c0_i32_0 : i32, i32
  }
  func.func @transform_4(%arg0: i32) -> (i32, i32) {
    %c0_i32 = arith.constant 0 : i32
    %c0_i32_0 = arith.constant 0 : i32
    %c0_i32_1 = arith.constant 0 : i32
    return %c0_i32, %c0_i32_0 : i32, i32
  }
  func.func @transform_5(%arg0: i32) -> (i32, i32) {
    %c0_i32 = arith.constant 0 : i32
    %c0_i32_0 = arith.constant 0 : i32
    %c0_i32_1 = arith.constant 0 : i32
    return %c0_i32, %c0_i32_0 : i32, i32
  }
  func.func @transform_6(%arg0: i32) -> (i32, i32) {
    %c0_i32 = arith.constant 0 : i32
    %c0_i32_0 = arith.constant 0 : i32
    %c0_i32_1 = arith.constant 0 : i32
    return %c0_i32, %c0_i32_0 : i32, i32
  }
}

</mosaic_0001>

<llo_original>
// kernel: _lambda_.19
$region0: #{_lambda_.19}
  #allocation0 [shape = 'u32[]', space=smem, size = 0x4, offset = 0x4, fixed_abs, tag = 'smem constant byte address 0x4 - core index']
  #allocation1 [shape = 'u32[72,128]{1,0:T(1,128)}', space=vmem, size = 0x9000, scoped, tag = 'internal scratch']
  %s0 = inlined_call_operand.vmem [shape: bf16[128,27], index: 0, kind: input, shape index: {}]
  %s1 = inlined_call_operand.vmem [shape: bf16[27,8], index: 1, kind: input, shape index: {}]
  %s2 = inlined_call_operand.vmem [shape: f32[1,8], index: 2, kind: input, shape index: {}]
  %s3 = inlined_call_operand.vmem [shape: f32[128,8], index: 3, kind: output, shape index: {}]
  %s4 = sld [smem:[#allocation0]]
  $region22: #{_lambda_.19} parent=0
    _
  %s6 = ssub.s32 1, %s4
  %s7 = scalar_select 0, %s6, %s4
  // Predicated region
  $region2: #{_lambda_.19} parent=0 // pred_check
    _
  $region3: #{_lambda_.19} parent=0 // pred_check_branch
    %9 = sbr.rel (0) target = $region5
  $region4: #{_lambda_.19} parent=0 // pred_region
    _
  $region5: #{_lambda_.19} parent=0 // pred_fallthru
    _
  // Predicated region
  $region6: #{_lambda_.19} parent=0 // pred_check
    _
  $region7: #{_lambda_.19} parent=0 // pred_check_branch
    %11 = sbr.rel (0) target = $region9
  $region8: #{_lambda_.19} parent=0 // pred_region
    _
  $region9: #{_lambda_.19} parent=0 // pred_fallthru
    _
  // Predicated region
  $region10: #{_lambda_.19} parent=0 // pred_check
    _
  $region11: #{_lambda_.19} parent=0 // pred_check_branch
    %13 = sbr.rel (0) target = $region13
  $region12: #{_lambda_.19} parent=0 // pred_region
    _
  $region13: #{_lambda_.19} parent=0 // pred_fallthru
    _
  %v15 = vld [vmem:[%s0] sm:$0xf]
  %v16 = vld [vmem:[%s0 + $0x4] sm:$0xf]
  %v17 = vld [vmem:[%s0 + $0x8] sm:$0xf]
  %v18 = vld [vmem:[%s0 + $0xc] sm:$0xf]
  %v19 = vld [vmem:[%s0 + $0x10] sm:$0xf]
  %v20 = vld [vmem:[%s0 + $0x14] sm:$0xf]
  %v21 = vld [vmem:[%s0 + $0x18] sm:$0xf]
  %v22 = vld [vmem:[%s0 + $0x1c] sm:$0xf]
  %v23 = vld [vmem:[%s0 + $0x20] sm:$0xf]
  %v24 = vld [vmem:[%s0 + $0x24] sm:$0xf]
  %v25 = vld [vmem:[%s0 + $0x28] sm:$0xf]
  %v26 = vld [vmem:[%s0 + $0x2c] sm:$0xf]
  %v27 = vld [vmem:[%s0 + $0x30] sm:$0xf]
  %v28 = vld [vmem:[%s0 + $0x34] sm:$0xf]
  %v29 = vld [vmem:[%s0 + $0x38] sm:$0xf]
  %v30 = vld [vmem:[%s0 + $0x3c] sm:$0xf]
  %v31 = vld [vmem:[%s1] sm:$0xf]
  %v32 = vld [vmem:[%s1 + $0x4] sm:$0xf]
  %v33 = vld [vmem:[%s1 + $0x8] sm:$0xf]
  %v34 = vld [vmem:[%s1 + $0xc] sm:$0x3]
  %v35 = vld [vmem:[%s2] sm:$0x1]
  %v37 = vperm.slane %v35, 0
  %v55 = vunpack.c.l.b16 %v15
  %v56 = vunpack.c.l.b16 %v16
  %v57 = vunpack.c.l.b16 %v17
  %v58 = vunpack.c.l.b16 %v18
  %v59 = vunpack.c.l.b16 %v19
  %v60 = vunpack.c.l.b16 %v20
  %v61 = vunpack.c.l.b16 %v21
  %v62 = vunpack.c.l.b16 %v22
  %v63 = vunpack.c.l.b16 %v23
  %v64 = vunpack.c.l.b16 %v24
  %v65 = vunpack.c.l.b16 %v25
  %v66 = vunpack.c.l.b16 %v26
  %v67 = vunpack.c.l.b16 %v27
  %v68 = vunpack.c.l.b16 %v28
  %v69 = vunpack.c.l.b16 %v29
  %v70 = vunpack.c.l.b16 %v30
  %v71 = vpack.c.b16 %v56, %v55
  %v72 = vpack.c.b16 %v58, %v57
  %v73 = vpack.c.b16 %v60, %v59
  %v74 = vpack.c.b16 %v62, %v61
  %v75 = vpack.c.b16 %v64, %v63
  %v76 = vpack.c.b16 %v66, %v65
  %v77 = vpack.c.b16 %v68, %v67
  %v78 = vpack.c.b16 %v70, %v69
  %v83 = vunpack.c.l.b16 %v31
  %v84 = vunpack.c.l.b16 %v32
  %v85 = vunpack.c.l.b16 %v33
  %v86 = vunpack.c.l.b16 %v34
  %v87 = vpack.c.b16 %v84, %v83
  %v88 = vpack.c.b16 %v86, %v85
  %vm90 = vcmask 220160
  %v92 = vsel %vm90, %v71, 0
  %v95 = vsel %vm90, %v72, 0
  %v98 = vsel %vm90, %v73, 0
  %v101 = vsel %vm90, %v74, 0
  %v104 = vsel %vm90, %v75, 0
  %v107 = vsel %vm90, %v76, 0
  %v110 = vsel %vm90, %v77, 0
  %v113 = vsel %vm90, %v78, 0
  %vm115 = vcmask 1044480
  %vm116 = vcmask 1045504
  %v117 = vsel %vm115, 4294967295, 65535
  %v118 = vsel %vm116, %v117, 0
  %v120 = vand.u32 %v88, %v118
  %122 = vmatpush.bf16.msra.mxu0 0
  %123 = vmatpush.bf16.msra.mxu0 0
  %124 = vmatpush.bf16.msra.mxu0 0
  %125 = vmatpush.bf16.msra.mxu0 0
  %126 = vmatpush.bf16.msra.mxu0 0
  %127 = vmatpush.bf16.msra.mxu0 0
  %128 = vmatpush.bf16.msra.mxu0 %v120
  %129 = vmatpush.bf16.msra.mxu0 %v87
  %130 = vmatmul.bf16.gmra.mxu0 %v92
  %v131 = vpop.f32.mrf.mxu0
  %v132 = vadd.f32 %v37, %v131
  %v133 = vpop.f32.mrf.mxu0
  %v134 = vadd.f32 %v37, %v133
  %135 = vmatmul.bf16.gmra.mxu0 %v95
  %v136 = vpop.f32.mrf.mxu0
  %v137 = vadd.f32 %v37, %v136
  %v138 = vpop.f32.mrf.mxu0
  %v139 = vadd.f32 %v37, %v138
  %140 = vmatmul.bf16.gmra.mxu0 %v98
  %v141 = vpop.f32.mrf.mxu0
  %v142 = vadd.f32 %v37, %v141
  %v143 = vpop.f32.mrf.mxu0
  %v144 = vadd.f32 %v37, %v143
  %145 = vmatmul.bf16.gmra.mxu0 %v101
  %v146 = vpop.f32.mrf.mxu0
  %v147 = vadd.f32 %v37, %v146
  %v148 = vpop.f32.mrf.mxu0
  %v149 = vadd.f32 %v37, %v148
  %150 = vmatmul.bf16.gmra.mxu0 %v104
  %v151 = vpop.f32.mrf.mxu0
  %v152 = vadd.f32 %v37, %v151
  %v153 = vpop.f32.mrf.mxu0
  %v154 = vadd.f32 %v37, %v153
  %155 = vmatmul.bf16.gmra.mxu0 %v107
  %v156 = vpop.f32.mrf.mxu0
  %v157 = vadd.f32 %v37, %v156
  %v158 = vpop.f32.mrf.mxu0
  %v159 = vadd.f32 %v37, %v158
  %160 = vmatmul.bf16.gmra.mxu0 %v110
  %v161 = vpop.f32.mrf.mxu0
  %v162 = vadd.f32 %v37, %v161
  %v163 = vpop.f32.mrf.mxu0
  %v164 = vadd.f32 %v37, %v163
  %165 = vmatmul.bf16.gmra.mxu0 %v113
  %v166 = vpop.f32.mrf.mxu0
  %v167 = vadd.f32 %v37, %v166
  %v168 = vpop.f32.mrf.mxu0
  %v169 = vadd.f32 %v37, %v168
  %170 = vdwg.mxu0
  %v171 = vmax.f32 %v132, 0.0
  %v172 = vmax.f32 %v134, 0.0
  %v173 = vmax.f32 %v137, 0.0
  %v174 = vmax.f32 %v139, 0.0
  %v175 = vmax.f32 %v142, 0.0
  %v176 = vmax.f32 %v144, 0.0
  %v177 = vmax.f32 %v147, 0.0
  %v178 = vmax.f32 %v149, 0.0
  %v179 = vmax.f32 %v152, 0.0
  %v180 = vmax.f32 %v154, 0.0
  %v181 = vmax.f32 %v157, 0.0
  %v182 = vmax.f32 %v159, 0.0
  %v183 = vmax.f32 %v162, 0.0
  %v184 = vmax.f32 %v164, 0.0
  %v185 = vmax.f32 %v167, 0.0
  %v186 = vmax.f32 %v169, 0.0
  %vm187 = vcmask 64512
  %188 = vst.msk [vmem:[%s3] sm:$0xff] %vm187, %v171
  %189 = vst.msk [vmem:[%s3 + $0x8] sm:$0xff] %vm187, %v172
  %190 = vst.msk [vmem:[%s3 + $0x10] sm:$0xff] %vm187, %v173
  %191 = vst.msk [vmem:[%s3 + $0x18] sm:$0xff] %vm187, %v174
  %192 = vst.msk [vmem:[%s3 + $0x20] sm:$0xff] %vm187, %v175
  %193 = vst.msk [vmem:[%s3 + $0x28] sm:$0xff] %vm187, %v176
  %194 = vst.msk [vmem:[%s3 + $0x30] sm:$0xff] %vm187, %v177
  %195 = vst.msk [vmem:[%s3 + $0x38] sm:$0xff] %vm187, %v178
  %196 = vst.msk [vmem:[%s3 + $0x40] sm:$0xff] %vm187, %v179
  %197 = vst.msk [vmem:[%s3 + $0x48] sm:$0xff] %vm187, %v180
  %198 = vst.msk [vmem:[%s3 + $0x50] sm:$0xff] %vm187, %v181
  %199 = vst.msk [vmem:[%s3 + $0x58] sm:$0xff] %vm187, %v182
  %200 = vst.msk [vmem:[%s3 + $0x60] sm:$0xff] %vm187, %v183
  %201 = vst.msk [vmem:[%s3 + $0x68] sm:$0xff] %vm187, %v184
  %202 = vst.msk [vmem:[%s3 + $0x70] sm:$0xff] %vm187, %v185
  %203 = vst.msk [vmem:[%s3 + $0x78] sm:$0xff] %vm187, %v186
  // Predicated region
  $region14: #{_lambda_.19} parent=0 // pred_check
    _
  $region15: #{_lambda_.19} parent=0 // pred_check_branch
    %205 = sbr.rel (0) target = $region17
  $region16: #{_lambda_.19} parent=0 // pred_region
    _
  $region17: #{_lambda_.19} parent=0 // pred_fallthru
    _
  // Predicated region
  $region18: #{_lambda_.19} parent=0 // pred_check
    _
  $region19: #{_lambda_.19} parent=0 // pred_check_branch
    %207 = sbr.rel (0) target = $region21
  $region20: #{_lambda_.19} parent=0 // pred_region
    _
  $region21: #{_lambda_.19} parent=0 // pred_fallthru
    _

// kernel: _lambda_.21
$region0: #{_lambda_.21}
  #allocation0 [shape = 'u32[]', space=smem, size = 0x4, offset = 0x4, fixed_abs, tag = 'smem constant byte address 0x4 - core index']
  #allocation1 [shape = 'u32[72,128]{1,0:T(1,128)}', space=vmem, size = 0x9000, scoped, tag = 'internal scratch']
  %s0 = inlined_call_operand.vmem [shape: f32[128,8], index: 0, kind: input, shape index: {}]
  %s1 = inlined_call_operand.hbm [shape: bf16[8,48], index: 1, kind: input, shape index: {}]
  %s2 = inlined_call_operand.vmem [shape: f32[1,48], index: 2, kind: input, shape index: {}, may-alias: {2,5}]
  %s3 = inlined_call_operand.vmem [shape: bf16[9,32,128], index: 3, kind: input, shape index: {}]
  %s4 = inlined_call_operand.hbm [shape: f32[9,1,48], index: 4, kind: input, shape index: {}]
  %s5 = inlined_call_operand.vmem [shape: f32[1,48], index: 5, kind: input, shape index: {}, may-alias: {2,5}]
  %s6 = inlined_call_operand.hbm [shape: bf16[48,16], index: 6, kind: input, shape index: {}]
  %s7 = inlined_call_operand.vmem [shape: f32[1,16], index: 7, kind: input, shape index: {}]
  %s8 = inlined_call_operand.vmem [shape: f32[32,16], index: 8, kind: output, shape index: {}]
  %s9 = sld [smem:[#allocation0]]
  $region54: #{_lambda_.21} parent=0
    _
  %s11 = ssub.s32 1, %s9
  %s12 = scalar_select 0, %s11, %s9
  $region1: #{_lambda_.21} parent=0
    #allocation2 [shape = 'u8[2048]{0}', space=vmem, size = 0x800, scoped, tag = 'input window, operand 1, single buffered']
    #allocation3 [shape = 's32[1]{0}', space=sflag, size = 0x4, scoped, tag = 'scoped memory for _lambda_.21']
    #allocation4 [shape = 'u8[4608]{0}', space=vmem, size = 0x1400, scoped, tag = 'input window, operand 4, single buffered']
    #allocation5 [shape = 's32[1]{0}', space=sflag, size = 0x4, scoped, tag = 'scoped memory for _lambda_.21']
    #allocation6 [shape = 'u8[12288]{0}', space=vmem, size = 0x3000, scoped, tag = 'input window, operand 6, single buffered']
    %13 = vsyncpa [#allocation3], 0
    %14 = vsyncpa [#allocation5], 0
    // Predicated region
    $region2: #{_lambda_.21} parent=1 // pred_check
      _
    $region3: #{_lambda_.21} parent=1 // pred_check_branch
      %16 = sbr.rel (0) target = $region5
    $region4: #{_lambda_.21} parent=1 // pred_region
      _
    $region5: #{_lambda_.21} parent=1 // pred_fallthru
      _
    // Predicated region
    $region6: #{_lambda_.21} parent=1 // pred_check
      _
    $region7: #{_lambda_.21} parent=1 // pred_check_branch
      %18 = sbr.rel (0) target = $region9
    $region8: #{_lambda_.21} parent=1 // pred_region
      %20 = vsyncadd [#allocation3], 0
      %s22 = sshll.u32 %s1, 4
      %s23 = int_to_ptr.hbm [resolvable:$true] %s22
      %s24 = sshll.u32 [#allocation2], 4
      %s25 = int_to_ptr.vmem [resolvable:$true] %s24
      %27 = dma.hbm_to_vmem [thread:$0]  %s23, 64, %s25, [#allocation3]
    $region9: #{_lambda_.21} parent=1 // pred_fallthru
      _
    // Predicated region
    $region10: #{_lambda_.21} parent=1 // pred_check
      _
    $region11: #{_lambda_.21} parent=1 // pred_check_branch
      %29 = sbr.rel (0) target = $region13
    $region12: #{_lambda_.21} parent=1 // pred_region
      _
    $region13: #{_lambda_.21} parent=1 // pred_fallthru
      _
    // Predicated region
    $region14: #{_lambda_.21} parent=1 // pred_check
      _
    $region15: #{_lambda_.21} parent=1 // pred_check_branch
      %31 = sbr.rel (0) target = $region17
    $region16: #{_lambda_.21} parent=1 // pred_region
      _
    $region17: #{_lambda_.21} parent=1 // pred_fallthru
      _
    // Predicated region
    $region18: #{_lambda_.21} parent=1 // pred_check
      _
    $region19: #{_lambda_.21} parent=1 // pred_check_branch
      %33 = sbr.rel (0) target = $region21
    $region20: #{_lambda_.21} parent=1 // pred_region
      %35 = vsyncadd [#allocation5], 0
      %s36 = sshll.u32 %s4, 4
      %s37 = int_to_ptr.hbm [resolvable:$true] %s36
      %s38 = sshll.u32 [#allocation4], 4
      %s39 = int_to_ptr.vmem [resolvable:$true] %s38
      %44 = dma.hbm_to_vmem [thread:$0]  %s37, 144, %s39, [#allocation5], 16, 16, 1
    $region21: #{_lambda_.21} parent=1 // pred_fallthru
      _
    // Predicated region
    $region22: #{_lambda_.21} parent=1 // pred_check
      _
    $region23: #{_lambda_.21} parent=1 // pred_check_branch
      %46 = sbr.rel (0) target = $region25
    $region24: #{_lambda_.21} parent=1 // pred_region
      _
    $region25: #{_lambda_.21} parent=1 // pred_fallthru
      _
    // Predicated region
    $region26: #{_lambda_.21} parent=1 // pred_check
      _
    $region27: #{_lambda_.21} parent=1 // pred_check_branch
      %48 = sbr.rel (0) target = $region29
    $region28: #{_lambda_.21} parent=1 // pred_region
      %50 = vsyncadd [#allocation5], 0
      %s51 = sshll.u32 %s6, 4
      %s52 = int_to_ptr.hbm [resolvable:$true] %s51
      %s53 = sshll.u32 [#allocation6], 4
      %s54 = int_to_ptr.vmem [resolvable:$true] %s53
      %59 = dma.hbm_to_vmem [thread:$0]  %s52, 384, %s54, [#allocation5], 64, 64, 4
    $region29: #{_lambda_.21} parent=1 // pred_fallthru
      _
    // Predicated region
    $region30: #{_lambda_.21} parent=1 // pred_check
      _
    $region31: #{_lambda_.21} parent=1 // pred_check_branch
      %61 = sbr.rel (0) target = $region33
    $region32: #{_lambda_.21} parent=1 // pred_region
      _
    $region33: #{_lambda_.21} parent=1 // pred_fallthru
      _
    // Predicated region
    $region34: #{_lambda_.21} parent=1 // pred_check
      _
    $region35: #{_lambda_.21} parent=1 // pred_check_branch
      %63 = sbr.rel (0) target = $region37
    $region36: #{_lambda_.21} parent=1 // pred_region
      %65 = dma.done [#allocation3], 64
    $region37: #{_lambda_.21} parent=1 // pred_fallthru
      _
    // Predicated region
    $region38: #{_lambda_.21} parent=1 // pred_check
      _
    $region39: #{_lambda_.21} parent=1 // pred_check_branch
      %67 = sbr.rel (0) target = $region41
    $region40: #{_lambda_.21} parent=1 // pred_region
      %69 = dma.done [#allocation5], 144
    $region41: #{_lambda_.21} parent=1 // pred_fallthru
      _
    // Predicated region
    $region42: #{_lambda_.21} parent=1 // pred_check
      _
    $region43: #{_lambda_.21} parent=1 // pred_check_branch
      %71 = sbr.rel (0) target = $region45
    $region44: #{_lambda_.21} parent=1 // pred_region
      %73 = dma.done [#allocation5], 384
    $region45: #{_lambda_.21} parent=1 // pred_fallthru
      _
    %v75 = vld [vmem:[%s0] sm:$0xff]
    %v76 = vld [vmem:[%s0 + $0x8] sm:$0xff]
    %v77 = vld [vmem:[%s0 + $0x10] sm:$0xff]
    %v78 = vld [vmem:[%s0 + $0x18] sm:$0xff]
    %v79 = vld [vmem:[%s0 + $0x20] sm:$0xff]
    %v80 = vld [vmem:[%s0 + $0x28] sm:$0xff]
    %v81 = vld [vmem:[%s0 + $0x30] sm:$0xff]
    %v82 = vld [vmem:[%s0 + $0x38] sm:$0xff]
    %v83 = vld [vmem:[%s0 + $0x40] sm:$0xff]
    %v84 = vld [vmem:[%s0 + $0x48] sm:$0xff]
    %v85 = vld [vmem:[%s0 + $0x50] sm:$0xff]
    %v86 = vld [vmem:[%s0 + $0x58] sm:$0xff]
    %v87 = vld [vmem:[%s0 + $0x60] sm:$0xff]
    %v88 = vld [vmem:[%s0 + $0x68] sm:$0xff]
    %v89 = vld [vmem:[%s0 + $0x70] sm:$0xff]
    %v90 = vld [vmem:[%s0 + $0x78] sm:$0xff]
    %v91 = vpack.c.bf16 %v76, %v75
    %v92 = vpack.c.bf16 %v78, %v77
    %v93 = vpack.c.bf16 %v80, %v79
    %v94 = vpack.c.bf16 %v82, %v81
    %v95 = vpack.c.bf16 %v84, %v83
    %v96 = vpack.c.bf16 %v86, %v85
    %v97 = vpack.c.bf16 %v88, %v87
    %v98 = vpack.c.bf16 %v90, %v89
    %v99 = vld [vmem:[#allocation2] sm:$0xf]
    %v100 = vld [vmem:[%s2] sm:$0x1]
    %v102 = vperm.slane %v100, 0
    %vm104 = vcmask 64512
    %v106 = vsel %vm104, %v91, 0
    %v109 = vsel %vm104, %v92, 0
    %v112 = vsel %vm104, %v93, 0
    %v115 = vsel %vm104, %v94, 0
    %v118 = vsel %vm104, %v95, 0
    %v121 = vsel %vm104, %v96, 0
    %v124 = vsel %vm104, %v97, 0
    %v127 = vsel %vm104, %v98, 0
    %vm129 = vcmask 1043456
    %v131 = vsel %vm129, %v99, 0
    %133 = vmatpush.bf16.msra.mxu0 0
    %134 = vmatpush.bf16.msra.mxu0 0
    %135 = vmatpush.bf16.msra.mxu0 0
    %136 = vmatpush.bf16.msra.mxu0 0
    %137 = vmatpush.bf16.msra.mxu0 0
    %138 = vmatpush.bf16.msra.mxu0 0
    %139 = vmatpush.bf16.msra.mxu0 0
    %140 = vmatpush.bf16.msra.mxu0 %v131
    %141 = vmatmul.bf16.gmra.mxu0 %v106
    %v142 = vpop.f32.mrf.mxu0
    %v143 = vadd.f32 %v102, %v142
    %v144 = vpop.f32.mrf.mxu0
    %v145 = vadd.f32 %v102, %v144
    %146 = vmatmul.bf16.gmra.mxu0 %v109
    %v147 = vpop.f32.mrf.mxu0
    %v148 = vadd.f32 %v102, %v147
    %v149 = vpop.f32.mrf.mxu0
    %v150 = vadd.f32 %v102, %v149
    %151 = vmatmul.bf16.gmra.mxu0 %v112
    %v152 = vpop.f32.mrf.mxu0
    %v153 = vadd.f32 %v102, %v152
    %v154 = vpop.f32.mrf.mxu0
    %v155 = vadd.f32 %v102, %v154
    %156 = vmatmul.bf16.gmra.mxu0 %v115
    %v157 = vpop.f32.mrf.mxu0
    %v158 = vadd.f32 %v102, %v157
    %v159 = vpop.f32.mrf.mxu0
    %v160 = vadd.f32 %v102, %v159
    %161 = vmatmul.bf16.gmra.mxu0 %v118
    %v162 = vpop.f32.mrf.mxu0
    %v163 = vadd.f32 %v102, %v162
    %v164 = vpop.f32.mrf.mxu0
    %v165 = vadd.f32 %v102, %v164
    %166 = vmatmul.bf16.gmra.mxu0 %v121
    %v167 = vpop.f32.mrf.mxu0
    %v168 = vadd.f32 %v102, %v167
    %v169 = vpop.f32.mrf.mxu0
    %v170 = vadd.f32 %v102, %v169
    %171 = vmatmul.bf16.gmra.mxu0 %v124
    %v172 = vpop.f32.mrf.mxu0
    %v173 = vadd.f32 %v102, %v172
    %v174 = vpop.f32.mrf.mxu0
    %v175 = vadd.f32 %v102, %v174
    %176 = vmatmul.bf16.gmra.mxu0 %v127
    %v177 = vpop.f32.mrf.mxu0
    %v178 = vadd.f32 %v102, %v177
    %v179 = vpop.f32.mrf.mxu0
    %v180 = vadd.f32 %v102, %v179
    %181 = vdwg.mxu0
    %v182 = vmax.f32 %v143, 0.0
    %v183 = vmax.f32 %v145, 0.0
    %v184 = vmax.f32 %v148, 0.0
    %v185 = vmax.f32 %v150, 0.0
    %v186 = vmax.f32 %v153, 0.0
    %v187 = vmax.f32 %v155, 0.0
    %v188 = vmax.f32 %v158, 0.0
    %v189 = vmax.f32 %v160, 0.0
    %v190 = vmax.f32 %v163, 0.0
    %v191 = vmax.f32 %v165, 0.0
    %v192 = vmax.f32 %v168, 0.0
    %v193 = vmax.f32 %v170, 0.0
    %v194 = vmax.f32 %v173, 0.0
    %v195 = vmax.f32 %v175, 0.0
    %v196 = vmax.f32 %v178, 0.0
    %v197 = vmax.f32 %v180, 0.0
    %v198 = vpack.c.bf16 %v183, %v182
    %v199 = vpack.c.bf16 %v185, %v184
    %v200 = vpack.c.bf16 %v187, %v186
    %v201 = vpack.c.bf16 %v189, %v188
    %v202 = vpack.c.bf16 %v191, %v190
    %v203 = vpack.c.bf16 %v193, %v192
    %v204 = vpack.c.bf16 %v195, %v194
    %v205 = vpack.c.bf16 %v197, %v196
    %v206 = vld [vmem:[%s3] sm:$0xf]
    %v207 = vld [vmem:[%s3 + $0x4] sm:$0xf]
    %v208 = vld [vmem:[%s3 + $0x8] sm:$0xf]
    %v209 = vld [vmem:[%s3 + $0xc] sm:$0xf]
    %v214 = vunpack.c.l.b16 %v206
    %v215 = vunpack.c.l.b16 %v207
    %v216 = vunpack.c.l.b16 %v208
    %v217 = vunpack.c.l.b16 %v209
    %v218 = vpack.c.b16 %v215, %v214
    %v219 = vpack.c.b16 %v217, %v216
    %222 = vmatpush.bf16.msra.mxu0 %v205
    %223 = vmatpush.bf16.msra.mxu0 %v204
    %224 = vmatpush.bf16.msra.mxu0 %v203
    %225 = vmatpush.bf16.msra.mxu0 %v202
    %226 = vmatpush.bf16.msra.mxu0 %v201
    %227 = vmatpush.bf16.msra.mxu0 %v200
    %228 = vmatpush.bf16.msra.mxu0 %v199
    %229 = vmatpush.bf16.msra.mxu0 %v198
    %230 = vmatmul.bf16.gmra.mxu0 %v218
    %v231 = vpop.f32.mrf.mxu0
    %v232 = vadd.f32 0.0, %v231
    %v233 = vpop.f32.mrf.mxu0
    %v234 = vadd.f32 0.0, %v233
    %235 = vmatmul.bf16.gmra.mxu0 %v219
    %v236 = vpop.f32.mrf.mxu0
    %v237 = vadd.f32 0.0, %v236
    %v238 = vpop.f32.mrf.mxu0
    %v239 = vadd.f32 0.0, %v238
    %240 = vdwg.mxu0
    %v241 = vld [vmem:[#allocation4] sm:$0x1]
    %v243 = vperm.slane %v241, 0
    %v245 = vmul.f32 %v232, %v243
    %v246 = vmul.f32 %v234, %v243
    %v247 = vmul.f32 %v237, %v243
    %v248 = vmul.f32 %v239, %v243
    %s249 = scalar_lea.vmem %s3, 16
    %v250 = vld [vmem:[%s249] sm:$0xf]
    %v251 = vld [vmem:[%s249 + $0x4] sm:$0xf]
    %v252 = vld [vmem:[%s249 + $0x8] sm:$0xf]
    %v253 = vld [vmem:[%s249 + $0xc] sm:$0xf]
    %v258 = vunpack.c.l.b16 %v250
    %v259 = vunpack.c.l.b16 %v251
    %v260 = vunpack.c.l.b16 %v252
    %v261 = vunpack.c.l.b16 %v253
    %v262 = vpack.c.b16 %v259, %v258
    %v263 = vpack.c.b16 %v261, %v260
    %266 = vmatpush.bf16.msra.mxu0 %v205
    %267 = vmatpush.bf16.msra.mxu0 %v204
    %268 = vmatpush.bf16.msra.mxu0 %v203
    %269 = vmatpush.bf16.msra.mxu0 %v202
    %270 = vmatpush.bf16.msra.mxu0 %v201
    %271 = vmatpush.bf16.msra.mxu0 %v200
    %272 = vmatpush.bf16.msra.mxu0 %v199
    %273 = vmatpush.bf16.msra.mxu0 %v198
    %274 = vmatmul.bf16.gmra.mxu0 %v262
    %v275 = vpop.f32.mrf.mxu0
    %v276 = vadd.f32 0.0, %v275
    %v277 = vpop.f32.mrf.mxu0
    %v278 = vadd.f32 0.0, %v277
    %279 = vmatmul.bf16.gmra.mxu0 %v263
    %v280 = vpop.f32.mrf.mxu0
    %v281 = vadd.f32 0.0, %v280
    %v282 = vpop.f32.mrf.mxu0
    %v283 = vadd.f32 0.0, %v282
    %284 = vdwg.mxu0
    %s285 = scalar_lea.vmem [#allocation4], 1
    %v286 = vld [vmem:[%s285] sm:$0x1]
    %v288 = vperm.slane %v286, 0
    %v290 = vmul.f32 %v276, %v288
    %v291 = vmul.f32 %v278, %v288
    %v292 = vmul.f32 %v281, %v288
    %v293 = vmul.f32 %v283, %v288
    %v294 = vadd.f32 %v245, %v290
    %v295 = vadd.f32 %v246, %v291
    %v296 = vadd.f32 %v247, %v292
    %v297 = vadd.f32 %v248, %v293
    %s298 = scalar_lea.vmem %s3, 32
    %v299 = vld [vmem:[%s298] sm:$0xf]
    %v300 = vld [vmem:[%s298 + $0x4] sm:$0xf]
    %v301 = vld [vmem:[%s298 + $0x8] sm:$0xf]
    %v302 = vld [vmem:[%s298 + $0xc] sm:$0xf]
    %v307 = vunpack.c.l.b16 %v299
    %v308 = vunpack.c.l.b16 %v300
    %v309 = vunpack.c.l.b16 %v301
    %v310 = vunpack.c.l.b16 %v302
    %v311 = vpack.c.b16 %v308, %v307
    %v312 = vpack.c.b16 %v310, %v309
    %315 = vmatpush.bf16.msra.mxu0 %v205
    %316 = vmatpush.bf16.msra.mxu0 %v204
    %317 = vmatpush.bf16.msra.mxu0 %v203
    %318 = vmatpush.bf16.msra.mxu0 %v202
    %319 = vmatpush.bf16.msra.mxu0 %v201
    %320 = vmatpush.bf16.msra.mxu0 %v200
    %321 = vmatpush.bf16.msra.mxu0 %v199
    %322 = vmatpush.bf16.msra.mxu0 %v198
    %323 = vmatmul.bf16.gmra.mxu0 %v311
    %v324 = vpop.f32.mrf.mxu0
    %v325 = vadd.f32 0.0, %v324
    %v326 = vpop.f32.mrf.mxu0
    %v327 = vadd.f32 0.0, %v326
    %328 = vmatmul.bf16.gmra.mxu0 %v312
    %v329 = vpop.f32.mrf.mxu0
    %v330 = vadd.f32 0.0, %v329
    %v331 = vpop.f32.mrf.mxu0
    %v332 = vadd.f32 0.0, %v331
    %333 = vdwg.mxu0
    %s334 = scalar_lea.vmem [#allocation4], 2
    %v335 = vld [vmem:[%s334] sm:$0x1]
    %v337 = vperm.slane %v335, 0
    %v339 = vmul.f32 %v325, %v337
    %v340 = vmul.f32 %v327, %v337
    %v341 = vmul.f32 %v330, %v337
    %v342 = vmul.f32 %v332, %v337
    %v343 = vadd.f32 %v294, %v339
    %v344 = vadd.f32 %v295, %v340
    %v345 = vadd.f32 %v296, %v341
    %v346 = vadd.f32 %v297, %v342
    %s347 = scalar_lea.vmem %s3, 48
    %v348 = vld [vmem:[%s347] sm:$0xf]
    %v349 = vld [vmem:[%s347 + $0x4] sm:$0xf]
    %v350 = vld [vmem:[%s347 + $0x8] sm:$0xf]
    %v351 = vld [vmem:[%s347 + $0xc] sm:$0xf]
    %v356 = vunpack.c.l.b16 %v348
    %v357 = vunpack.c.l.b16 %v349
    %v358 = vunpack.c.l.b16 %v350
    %v359 = vunpack.c.l.b16 %v351
    %v360 = vpack.c.b16 %v357, %v356
    %v361 = vpack.c.b16 %v359, %v358
    %364 = vmatpush.bf16.msra.mxu0 %v205
    %365 = vmatpush.bf16.msra.mxu0 %v204
    %366 = vmatpush.bf16.msra.mxu0 %v203
    %367 = vmatpush.bf16.msra.mxu0 %v202
    %368 = vmatpush.bf16.msra.mxu0 %v201
    %369 = vmatpush.bf16.msra.mxu0 %v200
    %370 = vmatpush.bf16.msra.mxu0 %v199
    %371 = vmatpush.bf16.msra.mxu0 %v198
    %372 = vmatmul.bf16.gmra.mxu0 %v360
    %v373 = vpop.f32.mrf.mxu0
    %v374 = vadd.f32 0.0, %v373
    %v375 = vpop.f32.mrf.mxu0
    %v376 = vadd.f32 0.0, %v375
    %377 = vmatmul.bf16.gmra.mxu0 %v361
    %v378 = vpop.f32.mrf.mxu0
    %v379 = vadd.f32 0.0, %v378
    %v380 = vpop.f32.mrf.mxu0
    %v381 = vadd.f32 0.0, %v380
    %382 = vdwg.mxu0
    %s383 = scalar_lea.vmem [#allocation4], 3
    %v384 = vld [vmem:[%s383] sm:$0x1]
    %v386 = vperm.slane %v384, 0
    %v388 = vmul.f32 %v374, %v386
    %v389 = vmul.f32 %v376, %v386
    %v390 = vmul.f32 %v379, %v386
    %v391 = vmul.f32 %v381, %v386
    %v392 = vadd.f32 %v343, %v388
    %v393 = vadd.f32 %v344, %v389
    %v394 = vadd.f32 %v345, %v390
    %v395 = vadd.f32 %v346, %v391
    %s396 = scalar_lea.vmem %s3, 64
    %v397 = vld [vmem:[%s396] sm:$0xf]
    %v398 = vld [vmem:[%s396 + $0x4] sm:$0xf]
    %v399 = vld [vmem:[%s396 + $0x8] sm:$0xf]
    %v400 = vld [vmem:[%s396 + $0xc] sm:$0xf]
    %v405 = vunpack.c.l.b16 %v397
    %v406 = vunpack.c.l.b16 %v398
    %v407 = vunpack.c.l.b16 %v399
    %v408 = vunpack.c.l.b16 %v400
    %v409 = vpack.c.b16 %v406, %v405
    %v410 = vpack.c.b16 %v408, %v407
    %413 = vmatpush.bf16.msra.mxu0 %v205
    %414 = vmatpush.bf16.msra.mxu0 %v204
    %415 = vmatpush.bf16.msra.mxu0 %v203
    %416 = vmatpush.bf16.msra.mxu0 %v202
    %417 = vmatpush.bf16.msra.mxu0 %v201
    %418 = vmatpush.bf16.msra.mxu0 %v200
    %419 = vmatpush.bf16.msra.mxu0 %v199
    %420 = vmatpush.bf16.msra.mxu0 %v198
    %421 = vmatmul.bf16.gmra.mxu0 %v409
    %v422 = vpop.f32.mrf.mxu0
    %v423 = vadd.f32 0.0, %v422
    %v424 = vpop.f32.mrf.mxu0
    %v425 = vadd.f32 0.0, %v424
    %426 = vmatmul.bf16.gmra.mxu0 %v410
    %v427 = vpop.f32.mrf.mxu0
    %v428 = vadd.f32 0.0, %v427
    %v429 = vpop.f32.mrf.mxu0
    %v430 = vadd.f32 0.0, %v429
    %431 = vdwg.mxu0
    %s432 = scalar_lea.vmem [#allocation4], 4
    %v433 = vld [vmem:[%s432] sm:$0x1]
    %v435 = vperm.slane %v433, 0
    %v437 = vmul.f32 %v423, %v435
    %v438 = vmul.f32 %v425, %v435
    %v439 = vmul.f32 %v428, %v435
    %v440 = vmul.f32 %v430, %v435
    %v441 = vadd.f32 %v392, %v437
    %v442 = vadd.f32 %v393, %v438
    %v443 = vadd.f32 %v394, %v439
    %v444 = vadd.f32 %v395, %v440
    %s445 = scalar_lea.vmem %s3, 80
    %v446 = vld [vmem:[%s445] sm:$0xf]
    %v447 = vld [vmem:[%s445 + $0x4] sm:$0xf]
    %v448 = vld [vmem:[%s445 + $0x8] sm:$0xf]
    %v449 = vld [vmem:[%s445 + $0xc] sm:$0xf]
    %v454 = vunpack.c.l.b16 %v446
    %v455 = vunpack.c.l.b16 %v447
    %v456 = vunpack.c.l.b16 %v448
    %v457 = vunpack.c.l.b16 %v449
    %v458 = vpack.c.b16 %v455, %v454
    %v459 = vpack.c.b16 %v457, %v456
    %462 = vmatpush.bf16.msra.mxu0 %v205
    %463 = vmatpush.bf16.msra.mxu0 %v204
    %464 = vmatpush.bf16.msra.mxu0 %v203
    %465 = vmatpush.bf16.msra.mxu0 %v202
    %466 = vmatpush.bf16.msra.mxu0 %v201
    %467 = vmatpush.bf16.msra.mxu0 %v200
    %468 = vmatpush.bf16.msra.mxu0 %v199
    %469 = vmatpush.bf16.msra.mxu0 %v198
    %470 = vmatmul.bf16.gmra.mxu0 %v458
    %v471 = vpop.f32.mrf.mxu0
    %v472 = vadd.f32 0.0, %v471
    %v473 = vpop.f32.mrf.mxu0
    %v474 = vadd.f32 0.0, %v473
    %475 = vmatmul.bf16.gmra.mxu0 %v459
    %v476 = vpop.f32.mrf.mxu0
    %v477 = vadd.f32 0.0, %v476
    %v478 = vpop.f32.mrf.mxu0
    %v479 = vadd.f32 0.0, %v478
    %480 = vdwg.mxu0
    %s481 = scalar_lea.vmem [#allocation4], 5
    %v482 = vld [vmem:[%s481] sm:$0x1]
    %v484 = vperm.slane %v482, 0
    %v486 = vmul.f32 %v472, %v484
    %v487 = vmul.f32 %v474, %v484
    %v488 = vmul.f32 %v477, %v484
    %v489 = vmul.f32 %v479, %v484
    %v490 = vadd.f32 %v441, %v486
    %v491 = vadd.f32 %v442, %v487
    %v492 = vadd.f32 %v443, %v488
    %v493 = vadd.f32 %v444, %v489
    %s494 = scalar_lea.vmem %s3, 96
    %v495 = vld [vmem:[%s494] sm:$0xf]
    %v496 = vld [vmem:[%s494 + $0x4] sm:$0xf]
    %v497 = vld [vmem:[%s494 + $0x8] sm:$0xf]
    %v498 = vld [vmem:[%s494 + $0xc] sm:$0xf]
    %v503 = vunpack.c.l.b16 %v495
    %v504 = vunpack.c.l.b16 %v496
    %v505 = vunpack.c.l.b16 %v497
    %v506 = vunpack.c.l.b16 %v498
    %v507 = vpack.c.b16 %v504, %v503
    %v508 = vpack.c.b16 %v506, %v505
    %511 = vmatpush.bf16.msra.mxu0 %v205
    %512 = vmatpush.bf16.msra.mxu0 %v204
    %513 = vmatpush.bf16.msra.mxu0 %v203
    %514 = vmatpush.bf16.msra.mxu0 %v202
    %515 = vmatpush.bf16.msra.mxu0 %v201
    %516 = vmatpush.bf16.msra.mxu0 %v200
    %517 = vmatpush.bf16.msra.mxu0 %v199
    %518 = vmatpush.bf16.msra.mxu0 %v198
    %519 = vmatmul.bf16.gmra.mxu0 %v507
    %v520 = vpop.f32.mrf.mxu0
    %v521 = vadd.f32 0.0, %v520
    %v522 = vpop.f32.mrf.mxu0
    %v523 = vadd.f32 0.0, %v522
    %524 = vmatmul.bf16.gmra.mxu0 %v508
    %v525 = vpop.f32.mrf.mxu0
    %v526 = vadd.f32 0.0, %v525
    %v527 = vpop.f32.mrf.mxu0
    %v528 = vadd.f32 0.0, %v527
    %529 = vdwg.mxu0
    %s530 = scalar_lea.vmem [#allocation4], 6
    %v531 = vld [vmem:[%s530] sm:$0x1]
    %v533 = vperm.slane %v531, 0
    %v535 = vmul.f32 %v521, %v533
    %v536 = vmul.f32 %v523, %v533
    %v537 = vmul.f32 %v526, %v533
    %v538 = vmul.f32 %v528, %v533
    %v539 = vadd.f32 %v490, %v535
    %v540 = vadd.f32 %v491, %v536
    %v541 = vadd.f32 %v492, %v537
    %v542 = vadd.f32 %v493, %v538
    %s543 = scalar_lea.vmem %s3, 112
    %v544 = vld [vmem:[%s543] sm:$0xf]
    %v545 = vld [vmem:[%s543 + $0x4] sm:$0xf]
    %v546 = vld [vmem:[%s543 + $0x8] sm:$0xf]
    %v547 = vld [vmem:[%s543 + $0xc] sm:$0xf]
    %v552 = vunpack.c.l.b16 %v544
    %v553 = vunpack.c.l.b16 %v545
    %v554 = vunpack.c.l.b16 %v546
    %v555 = vunpack.c.l.b16 %v547
    %v556 = vpack.c.b16 %v553, %v552
    %v557 = vpack.c.b16 %v555, %v554
    %560 = vmatpush.bf16.msra.mxu0 %v205
    %561 = vmatpush.bf16.msra.mxu0 %v204
    %562 = vmatpush.bf16.msra.mxu0 %v203
    %563 = vmatpush.bf16.msra.mxu0 %v202
    %564 = vmatpush.bf16.msra.mxu0 %v201
    %565 = vmatpush.bf16.msra.mxu0 %v200
    %566 = vmatpush.bf16.msra.mxu0 %v199
    %567 = vmatpush.bf16.msra.mxu0 %v198
    %568 = vmatmul.bf16.gmra.mxu0 %v556
    %v569 = vpop.f32.mrf.mxu0
    %v570 = vadd.f32 0.0, %v569
    %v571 = vpop.f32.mrf.mxu0
    %v572 = vadd.f32 0.0, %v571
    %573 = vmatmul.bf16.gmra.mxu0 %v557
    %v574 = vpop.f32.mrf.mxu0
    %v575 = vadd.f32 0.0, %v574
    %v576 = vpop.f32.mrf.mxu0
    %v577 = vadd.f32 0.0, %v576
    %578 = vdwg.mxu0
    %s579 = scalar_lea.vmem [#allocation4], 7
    %v580 = vld [vmem:[%s579] sm:$0x1]
    %v582 = vperm.slane %v580, 0
    %v584 = vmul.f32 %v570, %v582
    %v585 = vmul.f32 %v572, %v582
    %v586 = vmul.f32 %v575, %v582
    %v587 = vmul.f32 %v577, %v582
    %v588 = vadd.f32 %v539, %v584
    %v589 = vadd.f32 %v540, %v585
    %v590 = vadd.f32 %v541, %v586
    %v591 = vadd.f32 %v542, %v587
    %s592 = scalar_lea.vmem %s3, 128
    %v593 = vld [vmem:[%s592] sm:$0xf]
    %v594 = vld [vmem:[%s592 + $0x4] sm:$0xf]
    %v595 = vld [vmem:[%s592 + $0x8] sm:$0xf]
    %v596 = vld [vmem:[%s592 + $0xc] sm:$0xf]
    %v601 = vunpack.c.l.b16 %v593
    %v602 = vunpack.c.l.b16 %v594
    %v603 = vunpack.c.l.b16 %v595
    %v604 = vunpack.c.l.b16 %v596
    %v605 = vpack.c.b16 %v602, %v601
    %v606 = vpack.c.b16 %v604, %v603
    %609 = vmatpush.bf16.msra.mxu0 %v205
    %610 = vmatpush.bf16.msra.mxu0 %v204
    %611 = vmatpush.bf16.msra.mxu0 %v203
    %612 = vmatpush.bf16.msra.mxu0 %v202
    %613 = vmatpush.bf16.msra.mxu0 %v201
    %614 = vmatpush.bf16.msra.mxu0 %v200
    %615 = vmatpush.bf16.msra.mxu0 %v199
    %616 = vmatpush.bf16.msra.mxu0 %v198
    %617 = vmatmul.bf16.gmra.mxu0 %v605
    %v618 = vpop.f32.mrf.mxu0
    %v619 = vadd.f32 0.0, %v618
    %v620 = vpop.f32.mrf.mxu0
    %v621 = vadd.f32 0.0, %v620
    %622 = vmatmul.bf16.gmra.mxu0 %v606
    %v623 = vpop.f32.mrf.mxu0
    %v624 = vadd.f32 0.0, %v623
    %v625 = vpop.f32.mrf.mxu0
    %v626 = vadd.f32 0.0, %v625
    %627 = vdwg.mxu0
    %s628 = scalar_lea.vmem [#allocation4], 8
    %v629 = vld [vmem:[%s628] sm:$0x1]
    %v631 = vperm.slane %v629, 0
    %v633 = vmul.f32 %v619, %v631
    %v634 = vmul.f32 %v621, %v631
    %v635 = vmul.f32 %v624, %v631
    %v636 = vmul.f32 %v626, %v631
    %v637 = vadd.f32 %v588, %v633
    %v638 = vadd.f32 %v589, %v634
    %v639 = vadd.f32 %v590, %v635
    %v640 = vadd.f32 %v591, %v636
    %v641 = vld [vmem:[%s5] sm:$0x1]
    %v643 = vperm.slane %v641, 0
    %v645 = vadd.f32 %v637, %v643
    %v646 = vadd.f32 %v638, %v643
    %v647 = vadd.f32 %v639, %v643
    %v648 = vadd.f32 %v640, %v643
    %v649 = vmax.f32 %v645, 0.0
    %v650 = vmax.f32 %v646, 0.0
    %v651 = vmax.f32 %v647, 0.0
    %v652 = vmax.f32 %v648, 0.0
    %v653 = vpack.c.bf16 %v650, %v649
    %v654 = vpack.c.bf16 %v652, %v651
    %v655 = vld [vmem:[#allocation6] sm:$0xf]
    %v656 = vld [vmem:[#allocation6 + $0x4] sm:$0xf]
    %v657 = vld [vmem:[#allocation6 + $0x8] sm:$0xf]
    %v658 = vld [vmem:[#allocation6 + $0xc] sm:$0xf]
    %v659 = vld [vmem:[#allocation6 + $0x10] sm:$0xf]
    %v660 = vld [vmem:[#allocation6 + $0x14] sm:$0xf]
    %v661 = vld [vmem:[%s7] sm:$0x1]
    %v663 = vperm.slane %v661, 0
    %v671 = vunpack.c.l.b16 %v655
    %v672 = vunpack.c.l.b16 %v656
    %v673 = vunpack.c.l.b16 %v657
    %v674 = vunpack.c.l.b16 %v658
    %v675 = vunpack.c.l.b16 %v659
    %v676 = vunpack.c.l.b16 %v660
    %v677 = vpack.c.b16 %v672, %v671
    %v678 = vpack.c.b16 %v674, %v673
    %v679 = vpack.c.b16 %v676, %v675
    %vm683 = vcmask 392192
    %v685 = vsel %vm683, %v653, 0
    %v688 = vsel %vm683, %v654, 0
    %690 = vmatpush.bf16.msra.mxu0 0
    %691 = vmatpush.bf16.msra.mxu0 0
    %692 = vmatpush.bf16.msra.mxu0 0
    %693 = vmatpush.bf16.msra.mxu0 0
    %694 = vmatpush.bf16.msra.mxu0 0
    %695 = vmatpush.bf16.msra.mxu0 %v679
    %696 = vmatpush.bf16.msra.mxu0 %v678
    %697 = vmatpush.bf16.msra.mxu0 %v677
    %698 = vmatmul.bf16.gmra.mxu0 %v685
    %v699 = vpop.f32.mrf.mxu0
    %v700 = vadd.f32 %v663, %v699
    %v701 = vpop.f32.mrf.mxu0
    %v702 = vadd.f32 %v663, %v701
    %703 = vmatmul.bf16.gmra.mxu0 %v688
    %v704 = vpop.f32.mrf.mxu0
    %v705 = vadd.f32 %v663, %v704
    %v706 = vpop.f32.mrf.mxu0
    %v707 = vadd.f32 %v663, %v706
    %708 = vdwg.mxu0
    %vm709 = vcmask 130048
    %710 = vst.msk [vmem:[%s8] sm:$0xff] %vm709, %v700
    %711 = vst.msk [vmem:[%s8 + $0x8] sm:$0xff] %vm709, %v702
    %712 = vst.msk [vmem:[%s8 + $0x10] sm:$0xff] %vm709, %v705
    %713 = vst.msk [vmem:[%s8 + $0x18] sm:$0xff] %vm709, %v707
    // Predicated region
    $region46: #{_lambda_.21} parent=1 // pred_check
      _
    $region47: #{_lambda_.21} parent=1 // pred_check_branch
      %715 = sbr.rel (0) target = $region49
    $region48: #{_lambda_.21} parent=1 // pred_region
      _
    $region49: #{_lambda_.21} parent=1 // pred_fallthru
      _
    // Predicated region
    $region50: #{_lambda_.21} parent=1 // pred_check
      _
    $region51: #{_lambda_.21} parent=1 // pred_check_branch
      %717 = sbr.rel (0) target = $region53
    $region52: #{_lambda_.21} parent=1 // pred_region
      _
    $region53: #{_lambda_.21} parent=1 // pred_fallthru
      _
    %718 = vsyncpa [#allocation3], 1
    %719 = vsyncpa [#allocation5], 1

// kernel: _lambda_.22
$region0: #{_lambda_.22}
  #allocation0 [shape = 'u32[]', space=smem, size = 0x4, offset = 0x4, fixed_abs, tag = 'smem constant byte address 0x4 - core index']
  #allocation1 [shape = 'u32[72,128]{1,0:T(1,128)}', space=vmem, size = 0x9000, scoped, tag = 'internal scratch']
  %s0 = inlined_call_operand.vmem [shape: f32[32,16], index: 0, kind: input, shape index: {}]
  %s1 = inlined_call_operand.hbm [shape: bf16[16,96], index: 1, kind: input, shape index: {}]
  %s2 = inlined_call_operand.vmem [shape: f32[1,96], index: 2, kind: input, shape index: {}, may-alias: {2,5}]
  %s3 = inlined_call_operand.vmem [shape: bf16[9,32,32], index: 3, kind: input, shape index: {}]
  %s4 = inlined_call_operand.hbm [shape: f32[9,1,96], index: 4, kind: input, shape index: {}]
  %s5 = inlined_call_operand.vmem [shape: f32[1,96], index: 5, kind: input, shape index: {}, may-alias: {2,5}]
  %s6 = inlined_call_operand.hbm [shape: bf16[96,16], index: 6, kind: input, shape index: {}]
  %s7 = inlined_call_operand.vmem [shape: f32[1,16], index: 7, kind: input, shape index: {}]
  %s8 = inlined_call_operand.vmem [shape: f32[32,16], index: 8, kind: output, shape index: {}]
  %s9 = sld [smem:[#allocation0]]
  $region54: #{_lambda_.22} parent=0
    _
  %s11 = ssub.s32 1, %s9
  %s12 = scalar_select 0, %s11, %s9
  $region1: #{_lambda_.22} parent=0
    #allocation2 [shape = 'u8[4096]{0}', space=vmem, size = 0x1000, scoped, tag = 'input window, operand 1, single buffered']
    #allocation3 [shape = 's32[1]{0}', space=sflag, size = 0x4, scoped, tag = 'scoped memory for _lambda_.22']
    #allocation4 [shape = 'u8[4608]{0}', space=vmem, size = 0x1400, scoped, tag = 'input window, operand 4, single buffered']
    #allocation5 [shape = 's32[1]{0}', space=sflag, size = 0x4, scoped, tag = 'scoped memory for _lambda_.22']
    #allocation6 [shape = 'u8[24576]{0}', space=vmem, size = 0x6000, scoped, tag = 'input window, operand 6, single buffered']
    %13 = vsyncpa [#allocation3], 0
    %14 = vsyncpa [#allocation5], 0
    // Predicated region
    $region2: #{_lambda_.22} parent=1 // pred_check
      _
    $region3: #{_lambda_.22} parent=1 // pred_check_branch
      %16 = sbr.rel (0) target = $region5
    $region4: #{_lambda_.22} parent=1 // pred_region
      _
    $region5: #{_lambda_.22} parent=1 // pred_fallthru
      _
    // Predicated region
    $region6: #{_lambda_.22} parent=1 // pred_check
      _
    $region7: #{_lambda_.22} parent=1 // pred_check_branch
      %18 = sbr.rel (0) target = $region9
    $region8: #{_lambda_.22} parent=1 // pred_region
      %20 = vsyncadd [#allocation3], 0
      %s21 = sshll.u32 %s1, 4
      %s22 = int_to_ptr.hbm [resolvable:$true] %s21
      %s23 = sshll.u32 [#allocation2], 4
      %s24 = int_to_ptr.vmem [resolvable:$true] %s23
      %29 = dma.hbm_to_vmem [thread:$0]  %s22, 128, %s24, [#allocation3], 64, 64, 4
    $region9: #{_lambda_.22} parent=1 // pred_fallthru
      _
    // Predicated region
    $region10: #{_lambda_.22} parent=1 // pred_check
      _
    $region11: #{_lambda_.22} parent=1 // pred_check_branch
      %31 = sbr.rel (0) target = $region13
    $region12: #{_lambda_.22} parent=1 // pred_region
      _
    $region13: #{_lambda_.22} parent=1 // pred_fallthru
      _
    // Predicated region
    $region14: #{_lambda_.22} parent=1 // pred_check
      _
    $region15: #{_lambda_.22} parent=1 // pred_check_branch
      %33 = sbr.rel (0) target = $region17
    $region16: #{_lambda_.22} parent=1 // pred_region
      _
    $region17: #{_lambda_.22} parent=1 // pred_fallthru
      _
    // Predicated region
    $region18: #{_lambda_.22} parent=1 // pred_check
      _
    $region19: #{_lambda_.22} parent=1 // pred_check_branch
      %35 = sbr.rel (0) target = $region21
    $region20: #{_lambda_.22} parent=1 // pred_region
      %37 = vsyncadd [#allocation5], 0
      %s38 = sshll.u32 %s4, 4
      %s39 = int_to_ptr.hbm [resolvable:$true] %s38
      %s40 = sshll.u32 [#allocation4], 4
      %s41 = int_to_ptr.vmem [resolvable:$true] %s40
      %46 = dma.hbm_to_vmem [thread:$0]  %s39, 144, %s41, [#allocation5], 16, 16, 1
    $region21: #{_lambda_.22} parent=1 // pred_fallthru
      _
    // Predicated region
    $region22: #{_lambda_.22} parent=1 // pred_check
      _
    $region23: #{_lambda_.22} parent=1 // pred_check_branch
      %48 = sbr.rel (0) target = $region25
    $region24: #{_lambda_.22} parent=1 // pred_region
      _
    $region25: #{_lambda_.22} parent=1 // pred_fallthru
      _
    // Predicated region
    $region26: #{_lambda_.22} parent=1 // pred_check
      _
    $region27: #{_lambda_.22} parent=1 // pred_check_branch
      %50 = sbr.rel (0) target = $region29
    $region28: #{_lambda_.22} parent=1 // pred_region
      %52 = vsyncadd [#allocation5], 0
      %s53 = sshll.u32 %s6, 4
      %s54 = int_to_ptr.hbm [resolvable:$true] %s53
      %s55 = sshll.u32 [#allocation6], 4
      %s56 = int_to_ptr.vmem [resolvable:$true] %s55
      %61 = dma.hbm_to_vmem [thread:$0]  %s54, 768, %s56, [#allocation5], 64, 64, 4
    $region29: #{_lambda_.22} parent=1 // pred_fallthru
      _
    // Predicated region
    $region30: #{_lambda_.22} parent=1 // pred_check
      _
    $region31: #{_lambda_.22} parent=1 // pred_check_branch
      %63 = sbr.rel (0) target = $region33
    $region32: #{_lambda_.22} parent=1 // pred_region
      _
    $region33: #{_lambda_.22} parent=1 // pred_fallthru
      _
    // Predicated region
    $region34: #{_lambda_.22} parent=1 // pred_check
      _
    $region35: #{_lambda_.22} parent=1 // pred_check_branch
      %65 = sbr.rel (0) target = $region37
    $region36: #{_lambda_.22} parent=1 // pred_region
      %67 = dma.done [#allocation3], 128
    $region37: #{_lambda_.22} parent=1 // pred_fallthru
      _
    // Predicated region
    $region38: #{_lambda_.22} parent=1 // pred_check
      _
    $region39: #{_lambda_.22} parent=1 // pred_check_branch
      %69 = sbr.rel (0) target = $region41
    $region40: #{_lambda_.22} parent=1 // pred_region
      %71 = dma.done [#allocation5], 144
    $region41: #{_lambda_.22} parent=1 // pred_fallthru
      _
    // Predicated region
    $region42: #{_lambda_.22} parent=1 // pred_check
      _
    $region43: #{_lambda_.22} parent=1 // pred_check_branch
      %73 = sbr.rel (0) target = $region45
    $region44: #{_lambda_.22} parent=1 // pred_region
      %75 = dma.done [#allocation5], 768
    $region45: #{_lambda_.22} parent=1 // pred_fallthru
      _
    %v77 = vld [vmem:[%s0] sm:$0xff]
    %v78 = vld [vmem:[%s0 + $0x8] sm:$0xff]
    %v79 = vld [vmem:[%s0 + $0x10] sm:$0xff]
    %v80 = vld [vmem:[%s0 + $0x18] sm:$0xff]
    %v81 = vpack.c.bf16 %v78, %v77
    %v82 = vpack.c.bf16 %v80, %v79
    %v83 = vld [vmem:[#allocation2] sm:$0xf]
    %v84 = vld [vmem:[#allocation2 + $0x4] sm:$0xf]
    %v85 = vld [vmem:[%s2] sm:$0x1]
    %v87 = vperm.slane %v85, 0
    %v91 = vunpack.c.l.b16 %v83
    %v92 = vunpack.c.l.b16 %v84
    %v93 = vpack.c.b16 %v92, %v91
    %vm95 = vcmask 130048
    %v97 = vsel %vm95, %v81, 0
    %v100 = vsel %vm95, %v82, 0
    %102 = vmatpush.bf16.msra.mxu0 0
    %103 = vmatpush.bf16.msra.mxu0 0
    %104 = vmatpush.bf16.msra.mxu0 0
    %105 = vmatpush.bf16.msra.mxu0 0
    %106 = vmatpush.bf16.msra.mxu0 0
    %107 = vmatpush.bf16.msra.mxu0 0
    %108 = vmatpush.bf16.msra.mxu0 0
    %109 = vmatpush.bf16.msra.mxu0 %v93
    %110 = vmatmul.bf16.gmra.mxu0 %v97
    %v111 = vpop.f32.mrf.mxu0
    %v112 = vadd.f32 %v87, %v111
    %v113 = vpop.f32.mrf.mxu0
    %v114 = vadd.f32 %v87, %v113
    %115 = vmatmul.bf16.gmra.mxu0 %v100
    %v116 = vpop.f32.mrf.mxu0
    %v117 = vadd.f32 %v87, %v116
    %v118 = vpop.f32.mrf.mxu0
    %v119 = vadd.f32 %v87, %v118
    %120 = vdwg.mxu0
    %v121 = vmax.f32 %v112, 0.0
    %v122 = vmax.f32 %v114, 0.0
    %v123 = vmax.f32 %v117, 0.0
    %v124 = vmax.f32 %v119, 0.0
    %v125 = vpack.c.bf16 %v122, %v121
    %v126 = vpack.c.bf16 %v124, %v123
    %v127 = vld [vmem:[%s3] sm:$0xf]
    %v128 = vld [vmem:[%s3 + $0x4] sm:$0xf]
    %v129 = vld [vmem:[%s3 + $0x8] sm:$0xf]
    %v130 = vld [vmem:[%s3 + $0xc] sm:$0xf]
    %v135 = vunpack.c.l.b16 %v127
    %v136 = vunpack.c.l.b16 %v128
    %v137 = vunpack.c.l.b16 %v129
    %v138 = vunpack.c.l.b16 %v130
    %v139 = vpack.c.b16 %v136, %v135
    %v140 = vpack.c.b16 %v138, %v137
    %vm141 = vcmask 261120
    %v143 = vsel %vm141, %v139, 0
    %v146 = vsel %vm141, %v140, 0
    %148 = vmatpush.bf16.msra.mxu0 0
    %149 = vmatpush.bf16.msra.mxu0 0
    %150 = vmatpush.bf16.msra.mxu0 0
    %151 = vmatpush.bf16.msra.mxu0 0
    %152 = vmatpush.bf16.msra.mxu0 0
    %153 = vmatpush.bf16.msra.mxu0 0
    %154 = vmatpush.bf16.msra.mxu0 %v126
    %155 = vmatpush.bf16.msra.mxu0 %v125
    %156 = vmatmul.bf16.gmra.mxu0 %v143
    %v157 = vpop.f32.mrf.mxu0
    %v158 = vadd.f32 0.0, %v157
    %v159 = vpop.f32.mrf.mxu0
    %v160 = vadd.f32 0.0, %v159
    %161 = vmatmul.bf16.gmra.mxu0 %v146
    %v162 = vpop.f32.mrf.mxu0
    %v163 = vadd.f32 0.0, %v162
    %v164 = vpop.f32.mrf.mxu0
    %v165 = vadd.f32 0.0, %v164
    %166 = vdwg.mxu0
    %v167 = vld [vmem:[#allocation4] sm:$0x1]
    %v169 = vperm.slane %v167, 0
    %v171 = vmul.f32 %v158, %v169
    %v172 = vmul.f32 %v160, %v169
    %v173 = vmul.f32 %v163, %v169
    %v174 = vmul.f32 %v165, %v169
    %s175 = scalar_lea.vmem %s3, 16
    %v176 = vld [vmem:[%s175] sm:$0xf]
    %v177 = vld [vmem:[%s175 + $0x4] sm:$0xf]
    %v178 = vld [vmem:[%s175 + $0x8] sm:$0xf]
    %v179 = vld [vmem:[%s175 + $0xc] sm:$0xf]
    %v184 = vunpack.c.l.b16 %v176
    %v185 = vunpack.c.l.b16 %v177
    %v186 = vunpack.c.l.b16 %v178
    %v187 = vunpack.c.l.b16 %v179
    %v188 = vpack.c.b16 %v185, %v184
    %v189 = vpack.c.b16 %v187, %v186
    %v191 = vsel %vm141, %v188, 0
    %v194 = vsel %vm141, %v189, 0
    %196 = vmatpush.bf16.msra.mxu0 0
    %197 = vmatpush.bf16.msra.mxu0 0
    %198 = vmatpush.bf16.msra.mxu0 0
    %199 = vmatpush.bf16.msra.mxu0 0
    %200 = vmatpush.bf16.msra.mxu0 0
    %201 = vmatpush.bf16.msra.mxu0 0
    %202 = vmatpush.bf16.msra.mxu0 %v126
    %203 = vmatpush.bf16.msra.mxu0 %v125
    %204 = vmatmul.bf16.gmra.mxu0 %v191
    %v205 = vpop.f32.mrf.mxu0
    %v206 = vadd.f32 0.0, %v205
    %v207 = vpop.f32.mrf.mxu0
    %v208 = vadd.f32 0.0, %v207
    %209 = vmatmul.bf16.gmra.mxu0 %v194
    %v210 = vpop.f32.mrf.mxu0
    %v211 = vadd.f32 0.0, %v210
    %v212 = vpop.f32.mrf.mxu0
    %v213 = vadd.f32 0.0, %v212
    %214 = vdwg.mxu0
    %s215 = scalar_lea.vmem [#allocation4], 1
    %v216 = vld [vmem:[%s215] sm:$0x1]
    %v218 = vperm.slane %v216, 0
    %v220 = vmul.f32 %v206, %v218
    %v221 = vmul.f32 %v208, %v218
    %v222 = vmul.f32 %v211, %v218
    %v223 = vmul.f32 %v213, %v218
    %v224 = vadd.f32 %v171, %v220
    %v225 = vadd.f32 %v172, %v221
    %v226 = vadd.f32 %v173, %v222
    %v227 = vadd.f32 %v174, %v223
    %s228 = scalar_lea.vmem %s3, 32
    %v229 = vld [vmem:[%s228] sm:$0xf]
    %v230 = vld [vmem:[%s228 + $0x4] sm:$0xf]
    %v231 = vld [vmem:[%s228 + $0x8] sm:$0xf]
    %v232 = vld [vmem:[%s228 + $0xc] sm:$0xf]
    %v237 = vunpack.c.l.b16 %v229
    %v238 = vunpack.c.l.b16 %v230
    %v239 = vunpack.c.l.b16 %v231
    %v240 = vunpack.c.l.b16 %v232
    %v241 = vpack.c.b16 %v238, %v237
    %v242 = vpack.c.b16 %v240, %v239
    %v244 = vsel %vm141, %v241, 0
    %v247 = vsel %vm141, %v242, 0
    %249 = vmatpush.bf16.msra.mxu0 0
    %250 = vmatpush.bf16.msra.mxu0 0
    %251 = vmatpush.bf16.msra.mxu0 0
    %252 = vmatpush.bf16.msra.mxu0 0
    %253 = vmatpush.bf16.msra.mxu0 0
    %254 = vmatpush.bf16.msra.mxu0 0
    %255 = vmatpush.bf16.msra.mxu0 %v126
    %256 = vmatpush.bf16.msra.mxu0 %v125
    %257 = vmatmul.bf16.gmra.mxu0 %v244
    %v258 = vpop.f32.mrf.mxu0
    %v259 = vadd.f32 0.0, %v258
    %v260 = vpop.f32.mrf.mxu0
    %v261 = vadd.f32 0.0, %v260
    %262 = vmatmul.bf16.gmra.mxu0 %v247
    %v263 = vpop.f32.mrf.mxu0
    %v264 = vadd.f32 0.0, %v263
    %v265 = vpop.f32.mrf.mxu0
    %v266 = vadd.f32 0.0, %v265
    %267 = vdwg.mxu0
    %s268 = scalar_lea.vmem [#allocation4], 2
    %v269 = vld [vmem:[%s268] sm:$0x1]
    %v271 = vperm.slane %v269, 0
    %v273 = vmul.f32 %v259, %v271
    %v274 = vmul.f32 %v261, %v271
    %v275 = vmul.f32 %v264, %v271
    %v276 = vmul.f32 %v266, %v271
    %v277 = vadd.f32 %v224, %v273
    %v278 = vadd.f32 %v225, %v274
    %v279 = vadd.f32 %v226, %v275
    %v280 = vadd.f32 %v227, %v276
    %s281 = scalar_lea.vmem %s3, 48
    %v282 = vld [vmem:[%s281] sm:$0xf]
    %v283 = vld [vmem:[%s281 + $0x4] sm:$0xf]
    %v284 = vld [vmem:[%s281 + $0x8] sm:$0xf]
    %v285 = vld [vmem:[%s281 + $0xc] sm:$0xf]
    %v290 = vunpack.c.l.b16 %v282
    %v291 = vunpack.c.l.b16 %v283
    %v292 = vunpack.c.l.b16 %v284
    %v293 = vunpack.c.l.b16 %v285
    %v294 = vpack.c.b16 %v291, %v290
    %v295 = vpack.c.b16 %v293, %v292
    %v297 = vsel %vm141, %v294, 0
    %v300 = vsel %vm141, %v295, 0
    %302 = vmatpush.bf16.msra.mxu0 0
    %303 = vmatpush.bf16.msra.mxu0 0
    %304 = vmatpush.bf16.msra.mxu0 0
    %305 = vmatpush.bf16.msra.mxu0 0
    %306 = vmatpush.bf16.msra.mxu0 0
    %307 = vmatpush.bf16.msra.mxu0 0
    %308 = vmatpush.bf16.msra.mxu0 %v126
    %309 = vmatpush.bf16.msra.mxu0 %v125
    %310 = vmatmul.bf16.gmra.mxu0 %v297
    %v311 = vpop.f32.mrf.mxu0
    %v312 = vadd.f32 0.0, %v311
    %v313 = vpop.f32.mrf.mxu0
    %v314 = vadd.f32 0.0, %v313
    %315 = vmatmul.bf16.gmra.mxu0 %v300
    %v316 = vpop.f32.mrf.mxu0
    %v317 = vadd.f32 0.0, %v316
    %v318 = vpop.f32.mrf.mxu0
    %v319 = vadd.f32 0.0, %v318
    %320 = vdwg.mxu0
    %s321 = scalar_lea.vmem [#allocation4], 3
    %v322 = vld [vmem:[%s321] sm:$0x1]
    %v324 = vperm.slane %v322, 0
    %v326 = vmul.f32 %v312, %v324
    %v327 = vmul.f32 %v314, %v324
    %v328 = vmul.f32 %v317, %v324
    %v329 = vmul.f32 %v319, %v324
    %v330 = vadd.f32 %v277, %v326
    %v331 = vadd.f32 %v278, %v327
    %v332 = vadd.f32 %v279, %v328
    %v333 = vadd.f32 %v280, %v329
    %s334 = scalar_lea.vmem %s3, 64
    %v335 = vld [vmem:[%s334] sm:$0xf]
    %v336 = vld [vmem:[%s334 + $0x4] sm:$0xf]
    %v337 = vld [vmem:[%s334 + $0x8] sm:$0xf]
    %v338 = vld [vmem:[%s334 + $0xc] sm:$0xf]
    %v343 = vunpack.c.l.b16 %v335
    %v344 = vunpack.c.l.b16 %v336
    %v345 = vunpack.c.l.b16 %v337
    %v346 = vunpack.c.l.b16 %v338
    %v347 = vpack.c.b16 %v344, %v343
    %v348 = vpack.c.b16 %v346, %v345
    %v350 = vsel %vm141, %v347, 0
    %v353 = vsel %vm141, %v348, 0
    %355 = vmatpush.bf16.msra.mxu0 0
    %356 = vmatpush.bf16.msra.mxu0 0
    %357 = vmatpush.bf16.msra.mxu0 0
    %358 = vmatpush.bf16.msra.mxu0 0
    %359 = vmatpush.bf16.msra.mxu0 0
    %360 = vmatpush.bf16.msra.mxu0 0
    %361 = vmatpush.bf16.msra.mxu0 %v126
    %362 = vmatpush.bf16.msra.mxu0 %v125
    %363 = vmatmul.bf16.gmra.mxu0 %v350
    %v364 = vpop.f32.mrf.mxu0
    %v365 = vadd.f32 0.0, %v364
    %v366 = vpop.f32.mrf.mxu0
    %v367 = vadd.f32 0.0, %v366
    %368 = vmatmul.bf16.gmra.mxu0 %v353
    %v369 = vpop.f32.mrf.mxu0
    %v370 = vadd.f32 0.0, %v369
    %v371 = vpop.f32.mrf.mxu0
    %v372 = vadd.f32 0.0, %v371
    %373 = vdwg.mxu0
    %s374 = scalar_lea.vmem [#allocation4], 4
    %v375 = vld [vmem:[%s374] sm:$0x1]
    %v377 = vperm.slane %v375, 0
    %v379 = vmul.f32 %v365, %v377
    %v380 = vmul.f32 %v367, %v377
    %v381 = vmul.f32 %v370, %v377
    %v382 = vmul.f32 %v372, %v377
    %v383 = vadd.f32 %v330, %v379
    %v384 = vadd.f32 %v331, %v380
    %v385 = vadd.f32 %v332, %v381
    %v386 = vadd.f32 %v333, %v382
    %s387 = scalar_lea.vmem %s3, 80
    %v388 = vld [vmem:[%s387] sm:$0xf]
    %v389 = vld [vmem:[%s387 + $0x4] sm:$0xf]
    %v390 = vld [vmem:[%s387 + $0x8] sm:$0xf]
    %v391 = vld [vmem:[%s387 + $0xc] sm:$0xf]
    %v396 = vunpack.c.l.b16 %v388
    %v397 = vunpack.c.l.b16 %v389
    %v398 = vunpack.c.l.b16 %v390
    %v399 = vunpack.c.l.b16 %v391
    %v400 = vpack.c.b16 %v397, %v396
    %v401 = vpack.c.b16 %v399, %v398
    %v403 = vsel %vm141, %v400, 0
    %v406 = vsel %vm141, %v401, 0
    %408 = vmatpush.bf16.msra.mxu0 0
    %409 = vmatpush.bf16.msra.mxu0 0
    %410 = vmatpush.bf16.msra.mxu0 0
    %411 = vmatpush.bf16.msra.mxu0 0
    %412 = vmatpush.bf16.msra.mxu0 0
    %413 = vmatpush.bf16.msra.mxu0 0
    %414 = vmatpush.bf16.msra.mxu0 %v126
    %415 = vmatpush.bf16.msra.mxu0 %v125
    %416 = vmatmul.bf16.gmra.mxu0 %v403
    %v417 = vpop.f32.mrf.mxu0
    %v418 = vadd.f32 0.0, %v417
    %v419 = vpop.f32.mrf.mxu0
    %v420 = vadd.f32 0.0, %v419
    %421 = vmatmul.bf16.gmra.mxu0 %v406
    %v422 = vpop.f32.mrf.mxu0
    %v423 = vadd.f32 0.0, %v422
    %v424 = vpop.f32.mrf.mxu0
    %v425 = vadd.f32 0.0, %v424
    %426 = vdwg.mxu0
    %s427 = scalar_lea.vmem [#allocation4], 5
    %v428 = vld [vmem:[%s427] sm:$0x1]
    %v430 = vperm.slane %v428, 0
    %v432 = vmul.f32 %v418, %v430
    %v433 = vmul.f32 %v420, %v430
    %v434 = vmul.f32 %v423, %v430
    %v435 = vmul.f32 %v425, %v430
    %v436 = vadd.f32 %v383, %v432
    %v437 = vadd.f32 %v384, %v433
    %v438 = vadd.f32 %v385, %v434
    %v439 = vadd.f32 %v386, %v435
    %s440 = scalar_lea.vmem %s3, 96
    %v441 = vld [vmem:[%s440] sm:$0xf]
    %v442 = vld [vmem:[%s440 + $0x4] sm:$0xf]
    %v443 = vld [vmem:[%s440 + $0x8] sm:$0xf]
    %v444 = vld [vmem:[%s440 + $0xc] sm:$0xf]
    %v449 = vunpack.c.l.b16 %v441
    %v450 = vunpack.c.l.b16 %v442
    %v451 = vunpack.c.l.b16 %v443
    %v452 = vunpack.c.l.b16 %v444
    %v453 = vpack.c.b16 %v450, %v449
    %v454 = vpack.c.b16 %v452, %v451
    %v456 = vsel %vm141, %v453, 0
    %v459 = vsel %vm141, %v454, 0
    %461 = vmatpush.bf16.msra.mxu0 0
    %462 = vmatpush.bf16.msra.mxu0 0
    %463 = vmatpush.bf16.msra.mxu0 0
    %464 = vmatpush.bf16.msra.mxu0 0
    %465 = vmatpush.bf16.msra.mxu0 0
    %466 = vmatpush.bf16.msra.mxu0 0
    %467 = vmatpush.bf16.msra.mxu0 %v126
    %468 = vmatpush.bf16.msra.mxu0 %v125
    %469 = vmatmul.bf16.gmra.mxu0 %v456
    %v470 = vpop.f32.mrf.mxu0
    %v471 = vadd.f32 0.0, %v470
    %v472 = vpop.f32.mrf.mxu0
    %v473 = vadd.f32 0.0, %v472
    %474 = vmatmul.bf16.gmra.mxu0 %v459
    %v475 = vpop.f32.mrf.mxu0
    %v476 = vadd.f32 0.0, %v475
    %v477 = vpop.f32.mrf.mxu0
    %v478 = vadd.f32 0.0, %v477
    %479 = vdwg.mxu0
    %s480 = scalar_lea.vmem [#allocation4], 6
    %v481 = vld [vmem:[%s480] sm:$0x1]
    %v483 = vperm.slane %v481, 0
    %v485 = vmul.f32 %v471, %v483
    %v486 = vmul.f32 %v473, %v483
    %v487 = vmul.f32 %v476, %v483
    %v488 = vmul.f32 %v478, %v483
    %v489 = vadd.f32 %v436, %v485
    %v490 = vadd.f32 %v437, %v486
    %v491 = vadd.f32 %v438, %v487
    %v492 = vadd.f32 %v439, %v488
    %s493 = scalar_lea.vmem %s3, 112
    %v494 = vld [vmem:[%s493] sm:$0xf]
    %v495 = vld [vmem:[%s493 + $0x4] sm:$0xf]
    %v496 = vld [vmem:[%s493 + $0x8] sm:$0xf]
    %v497 = vld [vmem:[%s493 + $0xc] sm:$0xf]
    %v502 = vunpack.c.l.b16 %v494
    %v503 = vunpack.c.l.b16 %v495
    %v504 = vunpack.c.l.b16 %v496
    %v505 = vunpack.c.l.b16 %v497
    %v506 = vpack.c.b16 %v503, %v502
    %v507 = vpack.c.b16 %v505, %v504
    %v509 = vsel %vm141, %v506, 0
    %v512 = vsel %vm141, %v507, 0
    %514 = vmatpush.bf16.msra.mxu0 0
    %515 = vmatpush.bf16.msra.mxu0 0
    %516 = vmatpush.bf16.msra.mxu0 0
    %517 = vmatpush.bf16.msra.mxu0 0
    %518 = vmatpush.bf16.msra.mxu0 0
    %519 = vmatpush.bf16.msra.mxu0 0
    %520 = vmatpush.bf16.msra.mxu0 %v126
    %521 = vmatpush.bf16.msra.mxu0 %v125
    %522 = vmatmul.bf16.gmra.mxu0 %v509
    %v523 = vpop.f32.mrf.mxu0
    %v524 = vadd.f32 0.0, %v523
    %v525 = vpop.f32.mrf.mxu0
    %v526 = vadd.f32 0.0, %v525
    %527 = vmatmul.bf16.gmra.mxu0 %v512
    %v528 = vpop.f32.mrf.mxu0
    %v529 = vadd.f32 0.0, %v528
    %v530 = vpop.f32.mrf.mxu0
    %v531 = vadd.f32 0.0, %v530
    %532 = vdwg.mxu0
    %s533 = scalar_lea.vmem [#allocation4], 7
    %v534 = vld [vmem:[%s533] sm:$0x1]
    %v536 = vperm.slane %v534, 0
    %v538 = vmul.f32 %v524, %v536
    %v539 = vmul.f32 %v526, %v536
    %v540 = vmul.f32 %v529, %v536
    %v541 = vmul.f32 %v531, %v536
    %v542 = vadd.f32 %v489, %v538
    %v543 = vadd.f32 %v490, %v539
    %v544 = vadd.f32 %v491, %v540
    %v545 = vadd.f32 %v492, %v541
    %s546 = scalar_lea.vmem %s3, 128
    %v547 = vld [vmem:[%s546] sm:$0xf]
    %v548 = vld [vmem:[%s546 + $0x4] sm:$0xf]
    %v549 = vld [vmem:[%s546 + $0x8] sm:$0xf]
    %v550 = vld [vmem:[%s546 + $0xc] sm:$0xf]
    %v555 = vunpack.c.l.b16 %v547
    %v556 = vunpack.c.l.b16 %v548
    %v557 = vunpack.c.l.b16 %v549
    %v558 = vunpack.c.l.b16 %v550
    %v559 = vpack.c.b16 %v556, %v555
    %v560 = vpack.c.b16 %v558, %v557
    %v562 = vsel %vm141, %v559, 0
    %v565 = vsel %vm141, %v560, 0
    %567 = vmatpush.bf16.msra.mxu0 0
    %568 = vmatpush.bf16.msra.mxu0 0
    %569 = vmatpush.bf16.msra.mxu0 0
    %570 = vmatpush.bf16.msra.mxu0 0
    %571 = vmatpush.bf16.msra.mxu0 0
    %572 = vmatpush.bf16.msra.mxu0 0
    %573 = vmatpush.bf16.msra.mxu0 %v126
    %574 = vmatpush.bf16.msra.mxu0 %v125
    %575 = vmatmul.bf16.gmra.mxu0 %v562
    %v576 = vpop.f32.mrf.mxu0
    %v577 = vadd.f32 0.0, %v576
    %v578 = vpop.f32.mrf.mxu0
    %v579 = vadd.f32 0.0, %v578
    %580 = vmatmul.bf16.gmra.mxu0 %v565
    %v581 = vpop.f32.mrf.mxu0
    %v582 = vadd.f32 0.0, %v581
    %v583 = vpop.f32.mrf.mxu0
    %v584 = vadd.f32 0.0, %v583
    %585 = vdwg.mxu0
    %s586 = scalar_lea.vmem [#allocation4], 8
    %v587 = vld [vmem:[%s586] sm:$0x1]
    %v589 = vperm.slane %v587, 0
    %v591 = vmul.f32 %v577, %v589
    %v592 = vmul.f32 %v579, %v589
    %v593 = vmul.f32 %v582, %v589
    %v594 = vmul.f32 %v584, %v589
    %v595 = vadd.f32 %v542, %v591
    %v596 = vadd.f32 %v543, %v592
    %v597 = vadd.f32 %v544, %v593
    %v598 = vadd.f32 %v545, %v594
    %v599 = vld [vmem:[%s5] sm:$0x1]
    %v601 = vperm.slane %v599, 0
    %v603 = vadd.f32 %v595, %v601
    %v604 = vadd.f32 %v596, %v601
    %v605 = vadd.f32 %v597, %v601
    %v606 = vadd.f32 %v598, %v601
    %v607 = vmax.f32 %v603, 0.0
    %v608 = vmax.f32 %v604, 0.0
    %v609 = vmax.f32 %v605, 0.0
    %v610 = vmax.f32 %v606, 0.0
    %v611 = vpack.c.bf16 %v608, %v607
    %v612 = vpack.c.bf16 %v610, %v609
    %v613 = vld [vmem:[#allocation6] sm:$0xf]
    %v614 = vld [vmem:[#allocation6 + $0x4] sm:$0xf]
    %v615 = vld [vmem:[#allocation6 + $0x8] sm:$0xf]
    %v616 = vld [vmem:[#allocation6 + $0xc] sm:$0xf]
    %v617 = vld [vmem:[#allocation6 + $0x10] sm:$0xf]
    %v618 = vld [vmem:[#allocation6 + $0x14] sm:$0xf]
    %v619 = vld [vmem:[#allocation6 + $0x18] sm:$0xf]
    %v620 = vld [vmem:[#allocation6 + $0x1c] sm:$0xf]
    %v621 = vld [vmem:[#allocation6 + $0x20] sm:$0xf]
    %v622 = vld [vmem:[#allocation6 + $0x24] sm:$0xf]
    %v623 = vld [vmem:[#allocation6 + $0x28] sm:$0xf]
    %v624 = vld [vmem:[#allocation6 + $0x2c] sm:$0xf]
    %v625 = vld [vmem:[%s7] sm:$0x1]
    %v627 = vperm.slane %v625, 0
    %v641 = vunpack.c.l.b16 %v613
    %v642 = vunpack.c.l.b16 %v614
    %v643 = vunpack.c.l.b16 %v615
    %v644 = vunpack.c.l.b16 %v616
    %v645 = vunpack.c.l.b16 %v617
    %v646 = vunpack.c.l.b16 %v618
    %v647 = vunpack.c.l.b16 %v619
    %v648 = vunpack.c.l.b16 %v620
    %v649 = vunpack.c.l.b16 %v621
    %v650 = vunpack.c.l.b16 %v622
    %v651 = vunpack.c.l.b16 %v623
    %v652 = vunpack.c.l.b16 %v624
    %v653 = vpack.c.b16 %v642, %v641
    %v654 = vpack.c.b16 %v644, %v643
    %v655 = vpack.c.b16 %v646, %v645
    %v656 = vpack.c.b16 %v648, %v647
    %v657 = vpack.c.b16 %v650, %v649
    %v658 = vpack.c.b16 %v652, %v651
    %vm665 = vcmask 785408
    %v667 = vsel %vm665, %v611, 0
    %v670 = vsel %vm665, %v612, 0
    %672 = vmatpush.bf16.msra.mxu0 0
    %673 = vmatpush.bf16.msra.mxu0 0
    %674 = vmatpush.bf16.msra.mxu0 %v658
    %675 = vmatpush.bf16.msra.mxu0 %v657
    %676 = vmatpush.bf16.msra.mxu0 %v656
    %677 = vmatpush.bf16.msra.mxu0 %v655
    %678 = vmatpush.bf16.msra.mxu0 %v654
    %679 = vmatpush.bf16.msra.mxu0 %v653
    %680 = vmatmul.bf16.gmra.mxu0 %v667
    %v681 = vpop.f32.mrf.mxu0
    %v682 = vadd.f32 %v627, %v681
    %v683 = vpop.f32.mrf.mxu0
    %v684 = vadd.f32 %v627, %v683
    %685 = vmatmul.bf16.gmra.mxu0 %v670
    %v686 = vpop.f32.mrf.mxu0
    %v687 = vadd.f32 %v627, %v686
    %v688 = vpop.f32.mrf.mxu0
    %v689 = vadd.f32 %v627, %v688
    %690 = vdwg.mxu0
    %v691 = vadd.f32 %v682, %v77
    %v692 = vadd.f32 %v684, %v78
    %v693 = vadd.f32 %v687, %v79
    %v694 = vadd.f32 %v689, %v80
    %695 = vst.msk [vmem:[%s8] sm:$0xff] %vm95, %v691
    %696 = vst.msk [vmem:[%s8 + $0x8] sm:$0xff] %vm95, %v692
    %697 = vst.msk [vmem:[%s8 + $0x10] sm:$0xff] %vm95, %v693
    %698 = vst.msk [vmem:[%s8 + $0x18] sm:$0xff] %vm95, %v694
    // Predicated region
    $region46: #{_lambda_.22} parent=1 // pred_check
      _
    $region47: #{_lambda_.22} parent=1 // pred_check_branch
      %700 = sbr.rel (0) target = $region49
    $region48: #{_lambda_.22} parent=1 // pred_region
      _
    $region49: #{_lambda_.22} parent=1 // pred_fallthru
      _
    // Predicated region
    $region50: #{_lambda_.22} parent=1 // pred_check
      _
    $region51: #{_lambda_.22} parent=1 // pred_check_branch
      %702 = sbr.rel (0) target = $region53
    $region52: #{_lambda_.22} parent=1 // pred_region
      _
    $region53: #{_lambda_.22} parent=1 // pred_fallthru
      _
    %703 = vsyncpa [#allocation3], 1
    %704 = vsyncpa [#allocation5], 1

// kernel: _lambda_.20
$region0: #{_lambda_.20}
  #allocation0 [shape = 'u32[]', space=smem, size = 0x4, offset = 0x4, fixed_abs, tag = 'smem constant byte address 0x4 - core index']
  #allocation1 [shape = 'u32[72,128]{1,0:T(1,128)}', space=vmem, size = 0x9000, scoped, tag = 'internal scratch']
  %s0 = inlined_call_operand.vmem [shape: f32[128,8], index: 0, kind: input, shape index: {}]
  %s1 = inlined_call_operand.vmem [shape: bf16[9,128,128], index: 1, kind: input, shape index: {}]
  %s2 = inlined_call_operand.hbm [shape: f32[9,1,8], index: 2, kind: input, shape index: {}]
  %s3 = inlined_call_operand.vmem [shape: f32[1,8], index: 3, kind: input, shape index: {}, may-alias: {3,5}]
  %s4 = inlined_call_operand.hbm [shape: bf16[8,8], index: 4, kind: input, shape index: {}]
  %s5 = inlined_call_operand.vmem [shape: f32[1,8], index: 5, kind: input, shape index: {}, may-alias: {3,5}]
  %s6 = inlined_call_operand.vmem [shape: f32[128,8], index: 6, kind: output, shape index: {}]
  %s7 = sld [smem:[#allocation0]]
  $region42: #{_lambda_.20} parent=0
    _
  %s9 = ssub.s32 1, %s7
  %s10 = scalar_select 0, %s9, %s7
  $region1: #{_lambda_.20} parent=0
    #allocation2 [shape = 'u8[4608]{0}', space=vmem, size = 0x1400, scoped, tag = 'input window, operand 2, single buffered']
    #allocation3 [shape = 's32[1]{0}', space=sflag, size = 0x4, scoped, tag = 'scoped memory for _lambda_.20']
    #allocation4 [shape = 'u8[2048]{0}', space=vmem, size = 0x800, scoped, tag = 'input window, operand 4, single buffered']
    #allocation5 [shape = 's32[1]{0}', space=sflag, size = 0x4, scoped, tag = 'scoped memory for _lambda_.20']
    %11 = vsyncpa [#allocation3], 0
    %12 = vsyncpa [#allocation5], 0
    // Predicated region
    $region2: #{_lambda_.20} parent=1 // pred_check
      _
    $region3: #{_lambda_.20} parent=1 // pred_check_branch
      %14 = sbr.rel (0) target = $region5
    $region4: #{_lambda_.20} parent=1 // pred_region
      _
    $region5: #{_lambda_.20} parent=1 // pred_fallthru
      _
    // Predicated region
    $region6: #{_lambda_.20} parent=1 // pred_check
      _
    $region7: #{_lambda_.20} parent=1 // pred_check_branch
      %16 = sbr.rel (0) target = $region9
    $region8: #{_lambda_.20} parent=1 // pred_region
      _
    $region9: #{_lambda_.20} parent=1 // pred_fallthru
      _
    // Predicated region
    $region10: #{_lambda_.20} parent=1 // pred_check
      _
    $region11: #{_lambda_.20} parent=1 // pred_check_branch
      %18 = sbr.rel (0) target = $region13
    $region12: #{_lambda_.20} parent=1 // pred_region
      %20 = vsyncadd [#allocation3], 0
      %s21 = sshll.u32 %s2, 4
      %s22 = int_to_ptr.hbm [resolvable:$true] %s21
      %s23 = sshll.u32 [#allocation2], 4
      %s24 = int_to_ptr.vmem [resolvable:$true] %s23
      %29 = dma.hbm_to_vmem [thread:$0]  %s22, 144, %s24, [#allocation3], 16, 16, 1
    $region13: #{_lambda_.20} parent=1 // pred_fallthru
      _
    // Predicated region
    $region14: #{_lambda_.20} parent=1 // pred_check
      _
    $region15: #{_lambda_.20} parent=1 // pred_check_branch
      %31 = sbr.rel (0) target = $region17
    $region16: #{_lambda_.20} parent=1 // pred_region
      _
    $region17: #{_lambda_.20} parent=1 // pred_fallthru
      _
    // Predicated region
    $region18: #{_lambda_.20} parent=1 // pred_check
      _
    $region19: #{_lambda_.20} parent=1 // pred_check_branch
      %33 = sbr.rel (0) target = $region21
    $region20: #{_lambda_.20} parent=1 // pred_region
      %35 = vsyncadd [#allocation5], 0
      %s37 = sshll.u32 %s4, 4
      %s38 = int_to_ptr.hbm [resolvable:$true] %s37
      %s39 = sshll.u32 [#allocation4], 4
      %s40 = int_to_ptr.vmem [resolvable:$true] %s39
      %42 = dma.hbm_to_vmem [thread:$0]  %s38, 64, %s40, [#allocation5]
    $region21: #{_lambda_.20} parent=1 // pred_fallthru
      _
    // Predicated region
    $region22: #{_lambda_.20} parent=1 // pred_check
      _
    $region23: #{_lambda_.20} parent=1 // pred_check_branch
      %44 = sbr.rel (0) target = $region25
    $region24: #{_lambda_.20} parent=1 // pred_region
      _
    $region25: #{_lambda_.20} parent=1 // pred_fallthru
      _
    // Predicated region
    $region26: #{_lambda_.20} parent=1 // pred_check
      _
    $region27: #{_lambda_.20} parent=1 // pred_check_branch
      %46 = sbr.rel (0) target = $region29
    $region28: #{_lambda_.20} parent=1 // pred_region
      %48 = dma.done [#allocation3], 144
    $region29: #{_lambda_.20} parent=1 // pred_fallthru
      _
    // Predicated region
    $region30: #{_lambda_.20} parent=1 // pred_check
      _
    $region31: #{_lambda_.20} parent=1 // pred_check_branch
      %50 = sbr.rel (0) target = $region33
    $region32: #{_lambda_.20} parent=1 // pred_region
      %52 = dma.done [#allocation5], 64
    $region33: #{_lambda_.20} parent=1 // pred_fallthru
      _
    %v54 = vld [vmem:[%s0] sm:$0xff]
    %v55 = vld [vmem:[%s0 + $0x8] sm:$0xff]
    %v56 = vld [vmem:[%s0 + $0x10] sm:$0xff]
    %v57 = vld [vmem:[%s0 + $0x18] sm:$0xff]
    %v58 = vld [vmem:[%s0 + $0x20] sm:$0xff]
    %v59 = vld [vmem:[%s0 + $0x28] sm:$0xff]
    %v60 = vld [vmem:[%s0 + $0x30] sm:$0xff]
    %v61 = vld [vmem:[%s0 + $0x38] sm:$0xff]
    %v62 = vld [vmem:[%s0 + $0x40] sm:$0xff]
    %v63 = vld [vmem:[%s0 + $0x48] sm:$0xff]
    %v64 = vld [vmem:[%s0 + $0x50] sm:$0xff]
    %v65 = vld [vmem:[%s0 + $0x58] sm:$0xff]
    %v66 = vld [vmem:[%s0 + $0x60] sm:$0xff]
    %v67 = vld [vmem:[%s0 + $0x68] sm:$0xff]
    %v68 = vld [vmem:[%s0 + $0x70] sm:$0xff]
    %v69 = vld [vmem:[%s0 + $0x78] sm:$0xff]
    %v70 = vpack.c.bf16 %v55, %v54
    %v71 = vpack.c.bf16 %v57, %v56
    %v72 = vpack.c.bf16 %v59, %v58
    %v73 = vpack.c.bf16 %v61, %v60
    %v74 = vpack.c.bf16 %v63, %v62
    %v75 = vpack.c.bf16 %v65, %v64
    %v76 = vpack.c.bf16 %v67, %v66
    %v77 = vpack.c.bf16 %v69, %v68
    %v78 = vld [vmem:[%s1] sm:$0xf]
    %v79 = vld [vmem:[%s1 + $0x4] sm:$0xf]
    %v80 = vld [vmem:[%s1 + $0x8] sm:$0xf]
    %v81 = vld [vmem:[%s1 + $0xc] sm:$0xf]
    %v82 = vld [vmem:[%s1 + $0x10] sm:$0xf]
    %v83 = vld [vmem:[%s1 + $0x14] sm:$0xf]
    %v84 = vld [vmem:[%s1 + $0x18] sm:$0xf]
    %v85 = vld [vmem:[%s1 + $0x1c] sm:$0xf]
    %v86 = vld [vmem:[%s1 + $0x20] sm:$0xf]
    %v87 = vld [vmem:[%s1 + $0x24] sm:$0xf]
    %v88 = vld [vmem:[%s1 + $0x28] sm:$0xf]
    %v89 = vld [vmem:[%s1 + $0x2c] sm:$0xf]
    %v90 = vld [vmem:[%s1 + $0x30] sm:$0xf]
    %v91 = vld [vmem:[%s1 + $0x34] sm:$0xf]
    %v92 = vld [vmem:[%s1 + $0x38] sm:$0xf]
    %v93 = vld [vmem:[%s1 + $0x3c] sm:$0xf]
    %v110 = vunpack.c.l.b16 %v78
    %v111 = vunpack.c.l.b16 %v79
    %v112 = vunpack.c.l.b16 %v80
    %v113 = vunpack.c.l.b16 %v81
    %v114 = vunpack.c.l.b16 %v82
    %v115 = vunpack.c.l.b16 %v83
    %v116 = vunpack.c.l.b16 %v84
    %v117 = vunpack.c.l.b16 %v85
    %v118 = vunpack.c.l.b16 %v86
    %v119 = vunpack.c.l.b16 %v87
    %v120 = vunpack.c.l.b16 %v88
    %v121 = vunpack.c.l.b16 %v89
    %v122 = vunpack.c.l.b16 %v90
    %v123 = vunpack.c.l.b16 %v91
    %v124 = vunpack.c.l.b16 %v92
    %v125 = vunpack.c.l.b16 %v93
    %v126 = vpack.c.b16 %v111, %v110
    %v127 = vpack.c.b16 %v113, %v112
    %v128 = vpack.c.b16 %v115, %v114
    %v129 = vpack.c.b16 %v117, %v116
    %v130 = vpack.c.b16 %v119, %v118
    %v131 = vpack.c.b16 %v121, %v120
    %v132 = vpack.c.b16 %v123, %v122
    %v133 = vpack.c.b16 %v125, %v124
    %142 = vmatpush.bf16.msra.mxu0 %v77
    %143 = vmatpush.bf16.msra.mxu0 %v76
    %144 = vmatpush.bf16.msra.mxu0 %v75
    %145 = vmatpush.bf16.msra.mxu0 %v74
    %146 = vmatpush.bf16.msra.mxu0 %v73
    %147 = vmatpush.bf16.msra.mxu0 %v72
    %148 = vmatpush.bf16.msra.mxu0 %v71
    %149 = vmatpush.bf16.msra.mxu0 %v70
    %150 = vmatmul.bf16.gmra.mxu0 %v126
    %v151 = vpop.f32.mrf.mxu0
    %v152 = vadd.f32 0.0, %v151
    %v153 = vpop.f32.mrf.mxu0
    %v154 = vadd.f32 0.0, %v153
    %155 = vmatmul.bf16.gmra.mxu0 %v127
    %v156 = vpop.f32.mrf.mxu0
    %v157 = vadd.f32 0.0, %v156
    %v158 = vpop.f32.mrf.mxu0
    %v159 = vadd.f32 0.0, %v158
    %160 = vmatmul.bf16.gmra.mxu0 %v128
    %v161 = vpop.f32.mrf.mxu0
    %v162 = vadd.f32 0.0, %v161
    %v163 = vpop.f32.mrf.mxu0
    %v164 = vadd.f32 0.0, %v163
    %165 = vmatmul.bf16.gmra.mxu0 %v129
    %v166 = vpop.f32.mrf.mxu0
    %v167 = vadd.f32 0.0, %v166
    %v168 = vpop.f32.mrf.mxu0
    %v169 = vadd.f32 0.0, %v168
    %170 = vmatmul.bf16.gmra.mxu0 %v130
    %v171 = vpop.f32.mrf.mxu0
    %v172 = vadd.f32 0.0, %v171
    %v173 = vpop.f32.mrf.mxu0
    %v174 = vadd.f32 0.0, %v173
    %175 = vmatmul.bf16.gmra.mxu0 %v131
    %v176 = vpop.f32.mrf.mxu0
    %v177 = vadd.f32 0.0, %v176
    %v178 = vpop.f32.mrf.mxu0
    %v179 = vadd.f32 0.0, %v178
    %180 = vmatmul.bf16.gmra.mxu0 %v132
    %v181 = vpop.f32.mrf.mxu0
    %v182 = vadd.f32 0.0, %v181
    %v183 = vpop.f32.mrf.mxu0
    %v184 = vadd.f32 0.0, %v183
    %185 = vmatmul.bf16.gmra.mxu0 %v133
    %v186 = vpop.f32.mrf.mxu0
    %v187 = vadd.f32 0.0, %v186
    %v188 = vpop.f32.mrf.mxu0
    %v189 = vadd.f32 0.0, %v188
    %190 = vdwg.mxu0
    %v191 = vld [vmem:[#allocation2] sm:$0x1]
    %v193 = vperm.slane %v191, 0
    %v195 = vmul.f32 %v152, %v193
    %v196 = vmul.f32 %v154, %v193
    %v197 = vmul.f32 %v157, %v193
    %v198 = vmul.f32 %v159, %v193
    %v199 = vmul.f32 %v162, %v193
    %v200 = vmul.f32 %v164, %v193
    %v201 = vmul.f32 %v167, %v193
    %v202 = vmul.f32 %v169, %v193
    %v203 = vmul.f32 %v172, %v193
    %v204 = vmul.f32 %v174, %v193
    %v205 = vmul.f32 %v177, %v193
    %v206 = vmul.f32 %v179, %v193
    %v207 = vmul.f32 %v182, %v193
    %v208 = vmul.f32 %v184, %v193
    %v209 = vmul.f32 %v187, %v193
    %v210 = vmul.f32 %v189, %v193
    %s211 = scalar_lea.vmem %s1, 64
    %v212 = vld [vmem:[%s211] sm:$0xf]
    %v213 = vld [vmem:[%s211 + $0x4] sm:$0xf]
    %v214 = vld [vmem:[%s211 + $0x8] sm:$0xf]
    %v215 = vld [vmem:[%s211 + $0xc] sm:$0xf]
    %v216 = vld [vmem:[%s211 + $0x10] sm:$0xf]
    %v217 = vld [vmem:[%s211 + $0x14] sm:$0xf]
    %v218 = vld [vmem:[%s211 + $0x18] sm:$0xf]
    %v219 = vld [vmem:[%s211 + $0x1c] sm:$0xf]
    %v220 = vld [vmem:[%s211 + $0x20] sm:$0xf]
    %v221 = vld [vmem:[%s211 + $0x24] sm:$0xf]
    %v222 = vld [vmem:[%s211 + $0x28] sm:$0xf]
    %v223 = vld [vmem:[%s211 + $0x2c] sm:$0xf]
    %v224 = vld [vmem:[%s211 + $0x30] sm:$0xf]
    %v225 = vld [vmem:[%s211 + $0x34] sm:$0xf]
    %v226 = vld [vmem:[%s211 + $0x38] sm:$0xf]
    %v227 = vld [vmem:[%s211 + $0x3c] sm:$0xf]
    %v244 = vunpack.c.l.b16 %v212
    %v245 = vunpack.c.l.b16 %v213
    %v246 = vunpack.c.l.b16 %v214
    %v247 = vunpack.c.l.b16 %v215
    %v248 = vunpack.c.l.b16 %v216
    %v249 = vunpack.c.l.b16 %v217
    %v250 = vunpack.c.l.b16 %v218
    %v251 = vunpack.c.l.b16 %v219
    %v252 = vunpack.c.l.b16 %v220
    %v253 = vunpack.c.l.b16 %v221
    %v254 = vunpack.c.l.b16 %v222
    %v255 = vunpack.c.l.b16 %v223
    %v256 = vunpack.c.l.b16 %v224
    %v257 = vunpack.c.l.b16 %v225
    %v258 = vunpack.c.l.b16 %v226
    %v259 = vunpack.c.l.b16 %v227
    %v260 = vpack.c.b16 %v245, %v244
    %v261 = vpack.c.b16 %v247, %v246
    %v262 = vpack.c.b16 %v249, %v248
    %v263 = vpack.c.b16 %v251, %v250
    %v264 = vpack.c.b16 %v253, %v252
    %v265 = vpack.c.b16 %v255, %v254
    %v266 = vpack.c.b16 %v257, %v256
    %v267 = vpack.c.b16 %v259, %v258
    %276 = vmatpush.bf16.msra.mxu0 %v77
    %277 = vmatpush.bf16.msra.mxu0 %v76
    %278 = vmatpush.bf16.msra.mxu0 %v75
    %279 = vmatpush.bf16.msra.mxu0 %v74
    %280 = vmatpush.bf16.msra.mxu0 %v73
    %281 = vmatpush.bf16.msra.mxu0 %v72
    %282 = vmatpush.bf16.msra.mxu0 %v71
    %283 = vmatpush.bf16.msra.mxu0 %v70
    %284 = vmatmul.bf16.gmra.mxu0 %v260
    %v285 = vpop.f32.mrf.mxu0
    %v286 = vadd.f32 0.0, %v285
    %v287 = vpop.f32.mrf.mxu0
    %v288 = vadd.f32 0.0, %v287
    %289 = vmatmul.bf16.gmra.mxu0 %v261
    %v290 = vpop.f32.mrf.mxu0
    %v291 = vadd.f32 0.0, %v290
    %v292 = vpop.f32.mrf.mxu0
    %v293 = vadd.f32 0.0, %v292
    %294 = vmatmul.bf16.gmra.mxu0 %v262
    %v295 = vpop.f32.mrf.mxu0
    %v296 = vadd.f32 0.0, %v295
    %v297 = vpop.f32.mrf.mxu0
    %v298 = vadd.f32 0.0, %v297
    %299 = vmatmul.bf16.gmra.mxu0 %v263
    %v300 = vpop.f32.mrf.mxu0
    %v301 = vadd.f32 0.0, %v300
    %v302 = vpop.f32.mrf.mxu0
    %v303 = vadd.f32 0.0, %v302
    %304 = vmatmul.bf16.gmra.mxu0 %v264
    %v305 = vpop.f32.mrf.mxu0
    %v306 = vadd.f32 0.0, %v305
    %v307 = vpop.f32.mrf.mxu0
    %v308 = vadd.f32 0.0, %v307
    %309 = vmatmul.bf16.gmra.mxu0 %v265
    %v310 = vpop.f32.mrf.mxu0
    %v311 = vadd.f32 0.0, %v310
    %v312 = vpop.f32.mrf.mxu0
    %v313 = vadd.f32 0.0, %v312
    %314 = vmatmul.bf16.gmra.mxu0 %v266
    %v315 = vpop.f32.mrf.mxu0
    %v316 = vadd.f32 0.0, %v315
    %v317 = vpop.f32.mrf.mxu0
    %v318 = vadd.f32 0.0, %v317
    %319 = vmatmul.bf16.gmra.mxu0 %v267
    %v320 = vpop.f32.mrf.mxu0
    %v321 = vadd.f32 0.0, %v320
    %v322 = vpop.f32.mrf.mxu0
    %v323 = vadd.f32 0.0, %v322
    %324 = vdwg.mxu0
    %s325 = scalar_lea.vmem [#allocation2], 1
    %v326 = vld [vmem:[%s325] sm:$0x1]
    %v328 = vperm.slane %v326, 0
    %v330 = vmul.f32 %v286, %v328
    %v331 = vmul.f32 %v288, %v328
    %v332 = vmul.f32 %v291, %v328
    %v333 = vmul.f32 %v293, %v328
    %v334 = vmul.f32 %v296, %v328
    %v335 = vmul.f32 %v298, %v328
    %v336 = vmul.f32 %v301, %v328
    %v337 = vmul.f32 %v303, %v328
    %v338 = vmul.f32 %v306, %v328
    %v339 = vmul.f32 %v308, %v328
    %v340 = vmul.f32 %v311, %v328
    %v341 = vmul.f32 %v313, %v328
    %v342 = vmul.f32 %v316, %v328
    %v343 = vmul.f32 %v318, %v328
    %v344 = vmul.f32 %v321, %v328
    %v345 = vmul.f32 %v323, %v328
    %v346 = vadd.f32 %v195, %v330
    %v347 = vadd.f32 %v196, %v331
    %v348 = vadd.f32 %v197, %v332
    %v349 = vadd.f32 %v198, %v333
    %v350 = vadd.f32 %v199, %v334
    %v351 = vadd.f32 %v200, %v335
    %v352 = vadd.f32 %v201, %v336
    %v353 = vadd.f32 %v202, %v337
    %v354 = vadd.f32 %v203, %v338
    %v355 = vadd.f32 %v204, %v339
    %v356 = vadd.f32 %v205, %v340
    %v357 = vadd.f32 %v206, %v341
    %v358 = vadd.f32 %v207, %v342
    %v359 = vadd.f32 %v208, %v343
    %v360 = vadd.f32 %v209, %v344
    %v361 = vadd.f32 %v210, %v345
    %s362 = scalar_lea.vmem %s1, 128
    %v363 = vld [vmem:[%s362] sm:$0xf]
    %v364 = vld [vmem:[%s362 + $0x4] sm:$0xf]
    %v365 = vld [vmem:[%s362 + $0x8] sm:$0xf]
    %v366 = vld [vmem:[%s362 + $0xc] sm:$0xf]
    %v367 = vld [vmem:[%s362 + $0x10] sm:$0xf]
    %v368 = vld [vmem:[%s362 + $0x14] sm:$0xf]
    %v369 = vld [vmem:[%s362 + $0x18] sm:$0xf]
    %v370 = vld [vmem:[%s362 + $0x1c] sm:$0xf]
    %v371 = vld [vmem:[%s362 + $0x20] sm:$0xf]
    %v372 = vld [vmem:[%s362 + $0x24] sm:$0xf]
    %v373 = vld [vmem:[%s362 + $0x28] sm:$0xf]
    %v374 = vld [vmem:[%s362 + $0x2c] sm:$0xf]
    %v375 = vld [vmem:[%s362 + $0x30] sm:$0xf]
    %v376 = vld [vmem:[%s362 + $0x34] sm:$0xf]
    %v377 = vld [vmem:[%s362 + $0x38] sm:$0xf]
    %v378 = vld [vmem:[%s362 + $0x3c] sm:$0xf]
    %v395 = vunpack.c.l.b16 %v363
    %v396 = vunpack.c.l.b16 %v364
    %v397 = vunpack.c.l.b16 %v365
    %v398 = vunpack.c.l.b16 %v366
    %v399 = vunpack.c.l.b16 %v367
    %v400 = vunpack.c.l.b16 %v368
    %v401 = vunpack.c.l.b16 %v369
    %v402 = vunpack.c.l.b16 %v370
    %v403 = vunpack.c.l.b16 %v371
    %v404 = vunpack.c.l.b16 %v372
    %v405 = vunpack.c.l.b16 %v373
    %v406 = vunpack.c.l.b16 %v374
    %v407 = vunpack.c.l.b16 %v375
    %v408 = vunpack.c.l.b16 %v376
    %v409 = vunpack.c.l.b16 %v377
    %v410 = vunpack.c.l.b16 %v378
    %v411 = vpack.c.b16 %v396, %v395
    %v412 = vpack.c.b16 %v398, %v397
    %v413 = vpack.c.b16 %v400, %v399
    %v414 = vpack.c.b16 %v402, %v401
    %v415 = vpack.c.b16 %v404, %v403
    %v416 = vpack.c.b16 %v406, %v405
    %v417 = vpack.c.b16 %v408, %v407
    %v418 = vpack.c.b16 %v410, %v409
    %427 = vmatpush.bf16.msra.mxu0 %v77
    %428 = vmatpush.bf16.msra.mxu0 %v76
    %429 = vmatpush.bf16.msra.mxu0 %v75
    %430 = vmatpush.bf16.msra.mxu0 %v74
    %431 = vmatpush.bf16.msra.mxu0 %v73
    %432 = vmatpush.bf16.msra.mxu0 %v72
    %433 = vmatpush.bf16.msra.mxu0 %v71
    %434 = vmatpush.bf16.msra.mxu0 %v70
    %435 = vmatmul.bf16.gmra.mxu0 %v411
    %v436 = vpop.f32.mrf.mxu0
    %v437 = vadd.f32 0.0, %v436
    %v438 = vpop.f32.mrf.mxu0
    %v439 = vadd.f32 0.0, %v438
    %440 = vmatmul.bf16.gmra.mxu0 %v412
    %v441 = vpop.f32.mrf.mxu0
    %v442 = vadd.f32 0.0, %v441
    %v443 = vpop.f32.mrf.mxu0
    %v444 = vadd.f32 0.0, %v443
    %445 = vmatmul.bf16.gmra.mxu0 %v413
    %v446 = vpop.f32.mrf.mxu0
    %v447 = vadd.f32 0.0, %v446
    %v448 = vpop.f32.mrf.mxu0
    %v449 = vadd.f32 0.0, %v448
    %450 = vmatmul.bf16.gmra.mxu0 %v414
    %v451 = vpop.f32.mrf.mxu0
    %v452 = vadd.f32 0.0, %v451
    %v453 = vpop.f32.mrf.mxu0
    %v454 = vadd.f32 0.0, %v453
    %455 = vmatmul.bf16.gmra.mxu0 %v415
    %v456 = vpop.f32.mrf.mxu0
    %v457 = vadd.f32 0.0, %v456
    %v458 = vpop.f32.mrf.mxu0
    %v459 = vadd.f32 0.0, %v458
    %460 = vmatmul.bf16.gmra.mxu0 %v416
    %v461 = vpop.f32.mrf.mxu0
    %v462 = vadd.f32 0.0, %v461
    %v463 = vpop.f32.mrf.mxu0
    %v464 = vadd.f32 0.0, %v463
    %465 = vmatmul.bf16.gmra.mxu0 %v417
    %v466 = vpop.f32.mrf.mxu0
    %v467 = vadd.f32 0.0, %v466
    %v468 = vpop.f32.mrf.mxu0
    %v469 = vadd.f32 0.0, %v468
    %470 = vmatmul.bf16.gmra.mxu0 %v418
    %v471 = vpop.f32.mrf.mxu0
    %v472 = vadd.f32 0.0, %v471
    %v473 = vpop.f32.mrf.mxu0
    %v474 = vadd.f32 0.0, %v473
    %475 = vdwg.mxu0
    %s476 = scalar_lea.vmem [#allocation2], 2
    %v477 = vld [vmem:[%s476] sm:$0x1]
    %v479 = vperm.slane %v477, 0
    %v481 = vmul.f32 %v437, %v479
    %v482 = vmul.f32 %v439, %v479
    %v483 = vmul.f32 %v442, %v479
    %v484 = vmul.f32 %v444, %v479
    %v485 = vmul.f32 %v447, %v479
    %v486 = vmul.f32 %v449, %v479
    %v487 = vmul.f32 %v452, %v479
    %v488 = vmul.f32 %v454, %v479
    %v489 = vmul.f32 %v457, %v479
    %v490 = vmul.f32 %v459, %v479
    %v491 = vmul.f32 %v462, %v479
    %v492 = vmul.f32 %v464, %v479
    %v493 = vmul.f32 %v467, %v479
    %v494 = vmul.f32 %v469, %v479
    %v495 = vmul.f32 %v472, %v479
    %v496 = vmul.f32 %v474, %v479
    %v497 = vadd.f32 %v346, %v481
    %v498 = vadd.f32 %v347, %v482
    %v499 = vadd.f32 %v348, %v483
    %v500 = vadd.f32 %v349, %v484
    %v501 = vadd.f32 %v350, %v485
    %v502 = vadd.f32 %v351, %v486
    %v503 = vadd.f32 %v352, %v487
    %v504 = vadd.f32 %v353, %v488
    %v505 = vadd.f32 %v354, %v489
    %v506 = vadd.f32 %v355, %v490
    %v507 = vadd.f32 %v356, %v491
    %v508 = vadd.f32 %v357, %v492
    %v509 = vadd.f32 %v358, %v493
    %v510 = vadd.f32 %v359, %v494
    %v511 = vadd.f32 %v360, %v495
    %v512 = vadd.f32 %v361, %v496
    %s513 = scalar_lea.vmem %s1, 192
    %v514 = vld [vmem:[%s513] sm:$0xf]
    %v515 = vld [vmem:[%s513 + $0x4] sm:$0xf]
    %v516 = vld [vmem:[%s513 + $0x8] sm:$0xf]
    %v517 = vld [vmem:[%s513 + $0xc] sm:$0xf]
    %v518 = vld [vmem:[%s513 + $0x10] sm:$0xf]
    %v519 = vld [vmem:[%s513 + $0x14] sm:$0xf]
    %v520 = vld [vmem:[%s513 + $0x18] sm:$0xf]
    %v521 = vld [vmem:[%s513 + $0x1c] sm:$0xf]
    %v522 = vld [vmem:[%s513 + $0x20] sm:$0xf]
    %v523 = vld [vmem:[%s513 + $0x24] sm:$0xf]
    %v524 = vld [vmem:[%s513 + $0x28] sm:$0xf]
    %v525 = vld [vmem:[%s513 + $0x2c] sm:$0xf]
    %v526 = vld [vmem:[%s513 + $0x30] sm:$0xf]
    %v527 = vld [vmem:[%s513 + $0x34] sm:$0xf]
    %v528 = vld [vmem:[%s513 + $0x38] sm:$0xf]
    %v529 = vld [vmem:[%s513 + $0x3c] sm:$0xf]
    %v546 = vunpack.c.l.b16 %v514
    %v547 = vunpack.c.l.b16 %v515
    %v548 = vunpack.c.l.b16 %v516
    %v549 = vunpack.c.l.b16 %v517
    %v550 = vunpack.c.l.b16 %v518
    %v551 = vunpack.c.l.b16 %v519
    %v552 = vunpack.c.l.b16 %v520
    %v553 = vunpack.c.l.b16 %v521
    %v554 = vunpack.c.l.b16 %v522
    %v555 = vunpack.c.l.b16 %v523
    %v556 = vunpack.c.l.b16 %v524
    %v557 = vunpack.c.l.b16 %v525
    %v558 = vunpack.c.l.b16 %v526
    %v559 = vunpack.c.l.b16 %v527
    %v560 = vunpack.c.l.b16 %v528
    %v561 = vunpack.c.l.b16 %v529
    %v562 = vpack.c.b16 %v547, %v546
    %v563 = vpack.c.b16 %v549, %v548
    %v564 = vpack.c.b16 %v551, %v550
    %v565 = vpack.c.b16 %v553, %v552
    %v566 = vpack.c.b16 %v555, %v554
    %v567 = vpack.c.b16 %v557, %v556
    %v568 = vpack.c.b16 %v559, %v558
    %v569 = vpack.c.b16 %v561, %v560
    %578 = vmatpush.bf16.msra.mxu0 %v77
    %579 = vmatpush.bf16.msra.mxu0 %v76
    %580 = vmatpush.bf16.msra.mxu0 %v75
    %581 = vmatpush.bf16.msra.mxu0 %v74
    %582 = vmatpush.bf16.msra.mxu0 %v73
    %583 = vmatpush.bf16.msra.mxu0 %v72
    %584 = vmatpush.bf16.msra.mxu0 %v71
    %585 = vmatpush.bf16.msra.mxu0 %v70
    %586 = vmatmul.bf16.gmra.mxu0 %v562
    %v587 = vpop.f32.mrf.mxu0
    %v588 = vadd.f32 0.0, %v587
    %v589 = vpop.f32.mrf.mxu0
    %v590 = vadd.f32 0.0, %v589
    %591 = vmatmul.bf16.gmra.mxu0 %v563
    %v592 = vpop.f32.mrf.mxu0
    %v593 = vadd.f32 0.0, %v592
    %v594 = vpop.f32.mrf.mxu0
    %v595 = vadd.f32 0.0, %v594
    %596 = vmatmul.bf16.gmra.mxu0 %v564
    %v597 = vpop.f32.mrf.mxu0
    %v598 = vadd.f32 0.0, %v597
    %v599 = vpop.f32.mrf.mxu0
    %v600 = vadd.f32 0.0, %v599
    %601 = vmatmul.bf16.gmra.mxu0 %v565
    %v602 = vpop.f32.mrf.mxu0
    %v603 = vadd.f32 0.0, %v602
    %v604 = vpop.f32.mrf.mxu0
    %v605 = vadd.f32 0.0, %v604
    %606 = vmatmul.bf16.gmra.mxu0 %v566
    %v607 = vpop.f32.mrf.mxu0
    %v608 = vadd.f32 0.0, %v607
    %v609 = vpop.f32.mrf.mxu0
    %v610 = vadd.f32 0.0, %v609
    %611 = vmatmul.bf16.gmra.mxu0 %v567
    %v612 = vpop.f32.mrf.mxu0
    %v613 = vadd.f32 0.0, %v612
    %v614 = vpop.f32.mrf.mxu0
    %v615 = vadd.f32 0.0, %v614
    %616 = vmatmul.bf16.gmra.mxu0 %v568
    %v617 = vpop.f32.mrf.mxu0
    %v618 = vadd.f32 0.0, %v617
    %v619 = vpop.f32.mrf.mxu0
    %v620 = vadd.f32 0.0, %v619
    %621 = vmatmul.bf16.gmra.mxu0 %v569
    %v622 = vpop.f32.mrf.mxu0
    %v623 = vadd.f32 0.0, %v622
    %v624 = vpop.f32.mrf.mxu0
    %v625 = vadd.f32 0.0, %v624
    %626 = vdwg.mxu0
    %s627 = scalar_lea.vmem [#allocation2], 3
    %v628 = vld [vmem:[%s627] sm:$0x1]
    %v630 = vperm.slane %v628, 0
    %v632 = vmul.f32 %v588, %v630
    %v633 = vmul.f32 %v590, %v630
    %v634 = vmul.f32 %v593, %v630
    %v635 = vmul.f32 %v595, %v630
    %v636 = vmul.f32 %v598, %v630
    %v637 = vmul.f32 %v600, %v630
    %v638 = vmul.f32 %v603, %v630
    %v639 = vmul.f32 %v605, %v630
    %v640 = vmul.f32 %v608, %v630
    %v641 = vmul.f32 %v610, %v630
    %v642 = vmul.f32 %v613, %v630
    %v643 = vmul.f32 %v615, %v630
    %v644 = vmul.f32 %v618, %v630
    %v645 = vmul.f32 %v620, %v630
    %v646 = vmul.f32 %v623, %v630
    %v647 = vmul.f32 %v625, %v630
    %v648 = vadd.f32 %v497, %v632
    %v649 = vadd.f32 %v498, %v633
    %v650 = vadd.f32 %v499, %v634
    %v651 = vadd.f32 %v500, %v635
    %v652 = vadd.f32 %v501, %v636
    %v653 = vadd.f32 %v502, %v637
    %v654 = vadd.f32 %v503, %v638
    %v655 = vadd.f32 %v504, %v639
    %v656 = vadd.f32 %v505, %v640
    %v657 = vadd.f32 %v506, %v641
    %v658 = vadd.f32 %v507, %v642
    %v659 = vadd.f32 %v508, %v643
    %v660 = vadd.f32 %v509, %v644
    %v661 = vadd.f32 %v510, %v645
    %v662 = vadd.f32 %v511, %v646
    %v663 = vadd.f32 %v512, %v647
    %s664 = scalar_lea.vmem %s1, 256
    %v665 = vld [vmem:[%s664] sm:$0xf]
    %v666 = vld [vmem:[%s664 + $0x4] sm:$0xf]
    %v667 = vld [vmem:[%s664 + $0x8] sm:$0xf]
    %v668 = vld [vmem:[%s664 + $0xc] sm:$0xf]
    %v669 = vld [vmem:[%s664 + $0x10] sm:$0xf]
    %v670 = vld [vmem:[%s664 + $0x14] sm:$0xf]
    %v671 = vld [vmem:[%s664 + $0x18] sm:$0xf]
    %v672 = vld [vmem:[%s664 + $0x1c] sm:$0xf]
    %v673 = vld [vmem:[%s664 + $0x20] sm:$0xf]
    %v674 = vld [vmem:[%s664 + $0x24] sm:$0xf]
    %v675 = vld [vmem:[%s664 + $0x28] sm:$0xf]
    %v676 = vld [vmem:[%s664 + $0x2c] sm:$0xf]
    %v677 = vld [vmem:[%s664 + $0x30] sm:$0xf]
    %v678 = vld [vmem:[%s664 + $0x34] sm:$0xf]
    %v679 = vld [vmem:[%s664 + $0x38] sm:$0xf]
    %v680 = vld [vmem:[%s664 + $0x3c] sm:$0xf]
    %v697 = vunpack.c.l.b16 %v665
    %v698 = vunpack.c.l.b16 %v666
    %v699 = vunpack.c.l.b16 %v667
    %v700 = vunpack.c.l.b16 %v668
    %v701 = vunpack.c.l.b16 %v669
    %v702 = vunpack.c.l.b16 %v670
    %v703 = vunpack.c.l.b16 %v671
    %v704 = vunpack.c.l.b16 %v672
    %v705 = vunpack.c.l.b16 %v673
    %v706 = vunpack.c.l.b16 %v674
    %v707 = vunpack.c.l.b16 %v675
    %v708 = vunpack.c.l.b16 %v676
    %v709 = vunpack.c.l.b16 %v677
    %v710 = vunpack.c.l.b16 %v678
    %v711 = vunpack.c.l.b16 %v679
    %v712 = vunpack.c.l.b16 %v680
    %v713 = vpack.c.b16 %v698, %v697
    %v714 = vpack.c.b16 %v700, %v699
    %v715 = vpack.c.b16 %v702, %v701
    %v716 = vpack.c.b16 %v704, %v703
    %v717 = vpack.c.b16 %v706, %v705
    %v718 = vpack.c.b16 %v708, %v707
    %v719 = vpack.c.b16 %v710, %v709
    %v720 = vpack.c.b16 %v712, %v711
    %729 = vmatpush.bf16.msra.mxu0 %v77
    %730 = vmatpush.bf16.msra.mxu0 %v76
    %731 = vmatpush.bf16.msra.mxu0 %v75
    %732 = vmatpush.bf16.msra.mxu0 %v74
    %733 = vmatpush.bf16.msra.mxu0 %v73
    %734 = vmatpush.bf16.msra.mxu0 %v72
    %735 = vmatpush.bf16.msra.mxu0 %v71
    %736 = vmatpush.bf16.msra.mxu0 %v70
    %737 = vmatmul.bf16.gmra.mxu0 %v713
    %v738 = vpop.f32.mrf.mxu0
    %v739 = vadd.f32 0.0, %v738
    %v740 = vpop.f32.mrf.mxu0
    %v741 = vadd.f32 0.0, %v740
    %742 = vmatmul.bf16.gmra.mxu0 %v714
    %v743 = vpop.f32.mrf.mxu0
    %v744 = vadd.f32 0.0, %v743
    %v745 = vpop.f32.mrf.mxu0
    %v746 = vadd.f32 0.0, %v745
    %747 = vmatmul.bf16.gmra.mxu0 %v715
    %v748 = vpop.f32.mrf.mxu0
    %v749 = vadd.f32 0.0, %v748
    %v750 = vpop.f32.mrf.mxu0
    %v751 = vadd.f32 0.0, %v750
    %752 = vmatmul.bf16.gmra.mxu0 %v716
    %v753 = vpop.f32.mrf.mxu0
    %v754 = vadd.f32 0.0, %v753
    %v755 = vpop.f32.mrf.mxu0
    %v756 = vadd.f32 0.0, %v755
    %757 = vmatmul.bf16.gmra.mxu0 %v717
    %v758 = vpop.f32.mrf.mxu0
    %v759 = vadd.f32 0.0, %v758
    %v760 = vpop.f32.mrf.mxu0
    %v761 = vadd.f32 0.0, %v760
    %762 = vmatmul.bf16.gmra.mxu0 %v718
    %v763 = vpop.f32.mrf.mxu0
    %v764 = vadd.f32 0.0, %v763
    %v765 = vpop.f32.mrf.mxu0
    %v766 = vadd.f32 0.0, %v765
    %767 = vmatmul.bf16.gmra.mxu0 %v719
    %v768 = vpop.f32.mrf.mxu0
    %v769 = vadd.f32 0.0, %v768
    %v770 = vpop.f32.mrf.mxu0
    %v771 = vadd.f32 0.0, %v770
    %772 = vmatmul.bf16.gmra.mxu0 %v720
    %v773 = vpop.f32.mrf.mxu0
    %v774 = vadd.f32 0.0, %v773
    %v775 = vpop.f32.mrf.mxu0
    %v776 = vadd.f32 0.0, %v775
    %777 = vdwg.mxu0
    %s778 = scalar_lea.vmem [#allocation2], 4
    %v779 = vld [vmem:[%s778] sm:$0x1]
    %v781 = vperm.slane %v779, 0
    %v783 = vmul.f32 %v739, %v781
    %v784 = vmul.f32 %v741, %v781
    %v785 = vmul.f32 %v744, %v781
    %v786 = vmul.f32 %v746, %v781
    %v787 = vmul.f32 %v749, %v781
    %v788 = vmul.f32 %v751, %v781
    %v789 = vmul.f32 %v754, %v781
    %v790 = vmul.f32 %v756, %v781
    %v791 = vmul.f32 %v759, %v781
    %v792 = vmul.f32 %v761, %v781
    %v793 = vmul.f32 %v764, %v781
    %v794 = vmul.f32 %v766, %v781
    %v795 = vmul.f32 %v769, %v781
    %v796 = vmul.f32 %v771, %v781
    %v797 = vmul.f32 %v774, %v781
    %v798 = vmul.f32 %v776, %v781
    %v799 = vadd.f32 %v648, %v783
    %v800 = vadd.f32 %v649, %v784
    %v801 = vadd.f32 %v650, %v785
    %v802 = vadd.f32 %v651, %v786
    %v803 = vadd.f32 %v652, %v787
    %v804 = vadd.f32 %v653, %v788
    %v805 = vadd.f32 %v654, %v789
    %v806 = vadd.f32 %v655, %v790
    %v807 = vadd.f32 %v656, %v791
    %v808 = vadd.f32 %v657, %v792
    %v809 = vadd.f32 %v658, %v793
    %v810 = vadd.f32 %v659, %v794
    %v811 = vadd.f32 %v660, %v795
    %v812 = vadd.f32 %v661, %v796
    %v813 = vadd.f32 %v662, %v797
    %v814 = vadd.f32 %v663, %v798
    %s815 = scalar_lea.vmem %s1, 320
    %v816 = vld [vmem:[%s815] sm:$0xf]
    %v817 = vld [vmem:[%s815 + $0x4] sm:$0xf]
    %v818 = vld [vmem:[%s815 + $0x8] sm:$0xf]
    %v819 = vld [vmem:[%s815 + $0xc] sm:$0xf]
    %v820 = vld [vmem:[%s815 + $0x10] sm:$0xf]
    %v821 = vld [vmem:[%s815 + $0x14] sm:$0xf]
    %v822 = vld [vmem:[%s815 + $0x18] sm:$0xf]
    %v823 = vld [vmem:[%s815 + $0x1c] sm:$0xf]
    %v824 = vld [vmem:[%s815 + $0x20] sm:$0xf]
    %v825 = vld [vmem:[%s815 + $0x24] sm:$0xf]
    %v826 = vld [vmem:[%s815 + $0x28] sm:$0xf]
    %v827 = vld [vmem:[%s815 + $0x2c] sm:$0xf]
    %v828 = vld [vmem:[%s815 + $0x30] sm:$0xf]
    %v829 = vld [vmem:[%s815 + $0x34] sm:$0xf]
    %v830 = vld [vmem:[%s815 + $0x38] sm:$0xf]
    %v831 = vld [vmem:[%s815 + $0x3c] sm:$0xf]
    %v848 = vunpack.c.l.b16 %v816
    %v849 = vunpack.c.l.b16 %v817
    %v850 = vunpack.c.l.b16 %v818
    %v851 = vunpack.c.l.b16 %v819
    %v852 = vunpack.c.l.b16 %v820
    %v853 = vunpack.c.l.b16 %v821
    %v854 = vunpack.c.l.b16 %v822
    %v855 = vunpack.c.l.b16 %v823
    %v856 = vunpack.c.l.b16 %v824
    %v857 = vunpack.c.l.b16 %v825
    %v858 = vunpack.c.l.b16 %v826
    %v859 = vunpack.c.l.b16 %v827
    %v860 = vunpack.c.l.b16 %v828
    %v861 = vunpack.c.l.b16 %v829
    %v862 = vunpack.c.l.b16 %v830
    %v863 = vunpack.c.l.b16 %v831
    %v864 = vpack.c.b16 %v849, %v848
    %v865 = vpack.c.b16 %v851, %v850
    %v866 = vpack.c.b16 %v853, %v852
    %v867 = vpack.c.b16 %v855, %v854
    %v868 = vpack.c.b16 %v857, %v856
    %v869 = vpack.c.b16 %v859, %v858
    %v870 = vpack.c.b16 %v861, %v860
    %v871 = vpack.c.b16 %v863, %v862
    %880 = vmatpush.bf16.msra.mxu0 %v77
    %881 = vmatpush.bf16.msra.mxu0 %v76
    %882 = vmatpush.bf16.msra.mxu0 %v75
    %883 = vmatpush.bf16.msra.mxu0 %v74
    %884 = vmatpush.bf16.msra.mxu0 %v73
    %885 = vmatpush.bf16.msra.mxu0 %v72
    %886 = vmatpush.bf16.msra.mxu0 %v71
    %887 = vmatpush.bf16.msra.mxu0 %v70
    %888 = vmatmul.bf16.gmra.mxu0 %v864
    %v889 = vpop.f32.mrf.mxu0
    %v890 = vadd.f32 0.0, %v889
    %v891 = vpop.f32.mrf.mxu0
    %v892 = vadd.f32 0.0, %v891
    %893 = vmatmul.bf16.gmra.mxu0 %v865
    %v894 = vpop.f32.mrf.mxu0
    %v895 = vadd.f32 0.0, %v894
    %v896 = vpop.f32.mrf.mxu0
    %v897 = vadd.f32 0.0, %v896
    %898 = vmatmul.bf16.gmra.mxu0 %v866
    %v899 = vpop.f32.mrf.mxu0
    %v900 = vadd.f32 0.0, %v899
    %v901 = vpop.f32.mrf.mxu0
    %v902 = vadd.f32 0.0, %v901
    %903 = vmatmul.bf16.gmra.mxu0 %v867
    %v904 = vpop.f32.mrf.mxu0
    %v905 = vadd.f32 0.0, %v904
    %v906 = vpop.f32.mrf.mxu0
    %v907 = vadd.f32 0.0, %v906
    %908 = vmatmul.bf16.gmra.mxu0 %v868
    %v909 = vpop.f32.mrf.mxu0
    %v910 = vadd.f32 0.0, %v909
    %v911 = vpop.f32.mrf.mxu0
    %v912 = vadd.f32 0.0, %v911
    %913 = vmatmul.bf16.gmra.mxu0 %v869
    %v914 = vpop.f32.mrf.mxu0
    %v915 = vadd.f32 0.0, %v914
    %v916 = vpop.f32.mrf.mxu0
    %v917 = vadd.f32 0.0, %v916
    %918 = vmatmul.bf16.gmra.mxu0 %v870
    %v919 = vpop.f32.mrf.mxu0
    %v920 = vadd.f32 0.0, %v919
    %v921 = vpop.f32.mrf.mxu0
    %v922 = vadd.f32 0.0, %v921
    %923 = vmatmul.bf16.gmra.mxu0 %v871
    %v924 = vpop.f32.mrf.mxu0
    %v925 = vadd.f32 0.0, %v924
    %v926 = vpop.f32.mrf.mxu0
    %v927 = vadd.f32 0.0, %v926
    %928 = vdwg.mxu0
    %s929 = scalar_lea.vmem [#allocation2], 5
    %v930 = vld [vmem:[%s929] sm:$0x1]
    %v932 = vperm.slane %v930, 0
    %v934 = vmul.f32 %v890, %v932
    %v935 = vmul.f32 %v892, %v932
    %v936 = vmul.f32 %v895, %v932
    %v937 = vmul.f32 %v897, %v932
    %v938 = vmul.f32 %v900, %v932
    %v939 = vmul.f32 %v902, %v932
    %v940 = vmul.f32 %v905, %v932
    %v941 = vmul.f32 %v907, %v932
    %v942 = vmul.f32 %v910, %v932
    %v943 = vmul.f32 %v912, %v932
    %v944 = vmul.f32 %v915, %v932
    %v945 = vmul.f32 %v917, %v932
    %v946 = vmul.f32 %v920, %v932
    %v947 = vmul.f32 %v922, %v932
    %v948 = vmul.f32 %v925, %v932
    %v949 = vmul.f32 %v927, %v932
    %v950 = vadd.f32 %v799, %v934
    %v951 = vadd.f32 %v800, %v935
    %v952 = vadd.f32 %v801, %v936
    %v953 = vadd.f32 %v802, %v937
    %v954 = vadd.f32 %v803, %v938
    %v955 = vadd.f32 %v804, %v939
    %v956 = vadd.f32 %v805, %v940
    %v957 = vadd.f32 %v806, %v941
    %v958 = vadd.f32 %v807, %v942
    %v959 = vadd.f32 %v808, %v943
    %v960 = vadd.f32 %v809, %v944
    %v961 = vadd.f32 %v810, %v945
    %v962 = vadd.f32 %v811, %v946
    %v963 = vadd.f32 %v812, %v947
    %v964 = vadd.f32 %v813, %v948
    %v965 = vadd.f32 %v814, %v949
    %s966 = scalar_lea.vmem %s1, 384
    %v967 = vld [vmem:[%s966] sm:$0xf]
    %v968 = vld [vmem:[%s966 + $0x4] sm:$0xf]
    %v969 = vld [vmem:[%s966 + $0x8] sm:$0xf]
    %v970 = vld [vmem:[%s966 + $0xc] sm:$0xf]
    %v971 = vld [vmem:[%s966 + $0x10] sm:$0xf]
    %v972 = vld [vmem:[%s966 + $0x14] sm:$0xf]
    %v973 = vld [vmem:[%s966 + $0x18] sm:$0xf]
    %v974 = vld [vmem:[%s966 + $0x1c] sm:$0xf]
    %v975 = vld [vmem:[%s966 + $0x20] sm:$0xf]
    %v976 = vld [vmem:[%s966 + $0x24] sm:$0xf]
    %v977 = vld [vmem:[%s966 + $0x28] sm:$0xf]
    %v978 = vld [vmem:[%s966 + $0x2c] sm:$0xf]
    %v979 = vld [vmem:[%s966 + $0x30] sm:$0xf]
    %v980 = vld [vmem:[%s966 + $0x34] sm:$0xf]
    %v981 = vld [vmem:[%s966 + $0x38] sm:$0xf]
    %v982 = vld [vmem:[%s966 + $0x3c] sm:$0xf]
    %v999 = vunpack.c.l.b16 %v967
    %v1000 = vunpack.c.l.b16 %v968
    %v1001 = vunpack.c.l.b16 %v969
    %v1002 = vunpack.c.l.b16 %v970
    %v1003 = vunpack.c.l.b16 %v971
    %v1004 = vunpack.c.l.b16 %v972
    %v1005 = vunpack.c.l.b16 %v973
    %v1006 = vunpack.c.l.b16 %v974
    %v1007 = vunpack.c.l.b16 %v975
    %v1008 = vunpack.c.l.b16 %v976
    %v1009 = vunpack.c.l.b16 %v977
    %v1010 = vunpack.c.l.b16 %v978
    %v1011 = vunpack.c.l.b16 %v979
    %v1012 = vunpack.c.l.b16 %v980
    %v1013 = vunpack.c.l.b16 %v981
    %v1014 = vunpack.c.l.b16 %v982
    %v1015 = vpack.c.b16 %v1000, %v999
    %v1016 = vpack.c.b16 %v1002, %v1001
    %v1017 = vpack.c.b16 %v1004, %v1003
    %v1018 = vpack.c.b16 %v1006, %v1005
    %v1019 = vpack.c.b16 %v1008, %v1007
    %v1020 = vpack.c.b16 %v1010, %v1009
    %v1021 = vpack.c.b16 %v1012, %v1011
    %v1022 = vpack.c.b16 %v1014, %v1013
    %1031 = vmatpush.bf16.msra.mxu0 %v77
    %1032 = vmatpush.bf16.msra.mxu0 %v76
    %1033 = vmatpush.bf16.msra.mxu0 %v75
    %1034 = vmatpush.bf16.msra.mxu0 %v74
    %1035 = vmatpush.bf16.msra.mxu0 %v73
    %1036 = vmatpush.bf16.msra.mxu0 %v72
    %1037 = vmatpush.bf16.msra.mxu0 %v71
    %1038 = vmatpush.bf16.msra.mxu0 %v70
    %1039 = vmatmul.bf16.gmra.mxu0 %v1015
    %v1040 = vpop.f32.mrf.mxu0
    %v1041 = vadd.f32 0.0, %v1040
    %v1042 = vpop.f32.mrf.mxu0
    %v1043 = vadd.f32 0.0, %v1042
    %1044 = vmatmul.bf16.gmra.mxu0 %v1016
    %v1045 = vpop.f32.mrf.mxu0
    %v1046 = vadd.f32 0.0, %v1045
    %v1047 = vpop.f32.mrf.mxu0
    %v1048 = vadd.f32 0.0, %v1047
    %1049 = vmatmul.bf16.gmra.mxu0 %v1017
    %v1050 = vpop.f32.mrf.mxu0
    %v1051 = vadd.f32 0.0, %v1050
    %v1052 = vpop.f32.mrf.mxu0
    %v1053 = vadd.f32 0.0, %v1052
    %1054 = vmatmul.bf16.gmra.mxu0 %v1018
    %v1055 = vpop.f32.mrf.mxu0
    %v1056 = vadd.f32 0.0, %v1055
    %v1057 = vpop.f32.mrf.mxu0
    %v1058 = vadd.f32 0.0, %v1057
    %1059 = vmatmul.bf16.gmra.mxu0 %v1019
    %v1060 = vpop.f32.mrf.mxu0
    %v1061 = vadd.f32 0.0, %v1060
    %v1062 = vpop.f32.mrf.mxu0
    %v1063 = vadd.f32 0.0, %v1062
    %1064 = vmatmul.bf16.gmra.mxu0 %v1020
    %v1065 = vpop.f32.mrf.mxu0
    %v1066 = vadd.f32 0.0, %v1065
    %v1067 = vpop.f32.mrf.mxu0
    %v1068 = vadd.f32 0.0, %v1067
    %1069 = vmatmul.bf16.gmra.mxu0 %v1021
    %v1070 = vpop.f32.mrf.mxu0
    %v1071 = vadd.f32 0.0, %v1070
    %v1072 = vpop.f32.mrf.mxu0
    %v1073 = vadd.f32 0.0, %v1072
    %1074 = vmatmul.bf16.gmra.mxu0 %v1022
    %v1075 = vpop.f32.mrf.mxu0
    %v1076 = vadd.f32 0.0, %v1075
    %v1077 = vpop.f32.mrf.mxu0
    %v1078 = vadd.f32 0.0, %v1077
    %1079 = vdwg.mxu0
    %s1080 = scalar_lea.vmem [#allocation2], 6
    %v1081 = vld [vmem:[%s1080] sm:$0x1]
    %v1083 = vperm.slane %v1081, 0
    %v1085 = vmul.f32 %v1041, %v1083
    %v1086 = vmul.f32 %v1043, %v1083
    %v1087 = vmul.f32 %v1046, %v1083
    %v1088 = vmul.f32 %v1048, %v1083
    %v1089 = vmul.f32 %v1051, %v1083
    %v1090 = vmul.f32 %v1053, %v1083
    %v1091 = vmul.f32 %v1056, %v1083
    %v1092 = vmul.f32 %v1058, %v1083
    %v1093 = vmul.f32 %v1061, %v1083
    %v1094 = vmul.f32 %v1063, %v1083
    %v1095 = vmul.f32 %v1066, %v1083
    %v1096 = vmul.f32 %v1068, %v1083
    %v1097 = vmul.f32 %v1071, %v1083
    %v1098 = vmul.f32 %v1073, %v1083
    %v1099 = vmul.f32 %v1076, %v1083
    %v1100 = vmul.f32 %v1078, %v1083
    %v1101 = vadd.f32 %v950, %v1085
    %v1102 = vadd.f32 %v951, %v1086
    %v1103 = vadd.f32 %v952, %v1087
    %v1104 = vadd.f32 %v953, %v1088
    %v1105 = vadd.f32 %v954, %v1089
    %v1106 = vadd.f32 %v955, %v1090
    %v1107 = vadd.f32 %v956, %v1091
    %v1108 = vadd.f32 %v957, %v1092
    %v1109 = vadd.f32 %v958, %v1093
    %v1110 = vadd.f32 %v959, %v1094
    %v1111 = vadd.f32 %v960, %v1095
    %v1112 = vadd.f32 %v961, %v1096
    %v1113 = vadd.f32 %v962, %v1097
    %v1114 = vadd.f32 %v963, %v1098
    %v1115 = vadd.f32 %v964, %v1099
    %v1116 = vadd.f32 %v965, %v1100
    %s1117 = scalar_lea.vmem %s1, 448
    %v1118 = vld [vmem:[%s1117] sm:$0xf]
    %v1119 = vld [vmem:[%s1117 + $0x4] sm:$0xf]
    %v1120 = vld [vmem:[%s1117 + $0x8] sm:$0xf]
    %v1121 = vld [vmem:[%s1117 + $0xc] sm:$0xf]
    %v1122 = vld [vmem:[%s1117 + $0x10] sm:$0xf]
    %v1123 = vld [vmem:[%s1117 + $0x14] sm:$0xf]
    %v1124 = vld [vmem:[%s1117 + $0x18] sm:$0xf]
    %v1125 = vld [vmem:[%s1117 + $0x1c] sm:$0xf]
    %v1126 = vld [vmem:[%s1117 + $0x20] sm:$0xf]
    %v1127 = vld [vmem:[%s1117 + $0x24] sm:$0xf]
    %v1128 = vld [vmem:[%s1117 + $0x28] sm:$0xf]
    %v1129 = vld [vmem:[%s1117 + $0x2c] sm:$0xf]
    %v1130 = vld [vmem:[%s1117 + $0x30] sm:$0xf]
    %v1131 = vld [vmem:[%s1117 + $0x34] sm:$0xf]
    %v1132 = vld [vmem:[%s1117 + $0x38] sm:$0xf]
    %v1133 = vld [vmem:[%s1117 + $0x3c] sm:$0xf]
    %v1150 = vunpack.c.l.b16 %v1118
    %v1151 = vunpack.c.l.b16 %v1119
    %v1152 = vunpack.c.l.b16 %v1120
    %v1153 = vunpack.c.l.b16 %v1121
    %v1154 = vunpack.c.l.b16 %v1122
    %v1155 = vunpack.c.l.b16 %v1123
    %v1156 = vunpack.c.l.b16 %v1124
    %v1157 = vunpack.c.l.b16 %v1125
    %v1158 = vunpack.c.l.b16 %v1126
    %v1159 = vunpack.c.l.b16 %v1127
    %v1160 = vunpack.c.l.b16 %v1128
    %v1161 = vunpack.c.l.b16 %v1129
    %v1162 = vunpack.c.l.b16 %v1130
    %v1163 = vunpack.c.l.b16 %v1131
    %v1164 = vunpack.c.l.b16 %v1132
    %v1165 = vunpack.c.l.b16 %v1133
    %v1166 = vpack.c.b16 %v1151, %v1150
    %v1167 = vpack.c.b16 %v1153, %v1152
    %v1168 = vpack.c.b16 %v1155, %v1154
    %v1169 = vpack.c.b16 %v1157, %v1156
    %v1170 = vpack.c.b16 %v1159, %v1158
    %v1171 = vpack.c.b16 %v1161, %v1160
    %v1172 = vpack.c.b16 %v1163, %v1162
    %v1173 = vpack.c.b16 %v1165, %v1164
    %1182 = vmatpush.bf16.msra.mxu0 %v77
    %1183 = vmatpush.bf16.msra.mxu0 %v76
    %1184 = vmatpush.bf16.msra.mxu0 %v75
    %1185 = vmatpush.bf16.msra.mxu0 %v74
    %1186 = vmatpush.bf16.msra.mxu0 %v73
    %1187 = vmatpush.bf16.msra.mxu0 %v72
    %1188 = vmatpush.bf16.msra.mxu0 %v71
    %1189 = vmatpush.bf16.msra.mxu0 %v70
    %1190 = vmatmul.bf16.gmra.mxu0 %v1166
    %v1191 = vpop.f32.mrf.mxu0
    %v1192 = vadd.f32 0.0, %v1191
    %v1193 = vpop.f32.mrf.mxu0
    %v1194 = vadd.f32 0.0, %v1193
    %1195 = vmatmul.bf16.gmra.mxu0 %v1167
    %v1196 = vpop.f32.mrf.mxu0
    %v1197 = vadd.f32 0.0, %v1196
    %v1198 = vpop.f32.mrf.mxu0
    %v1199 = vadd.f32 0.0, %v1198
    %1200 = vmatmul.bf16.gmra.mxu0 %v1168
    %v1201 = vpop.f32.mrf.mxu0
    %v1202 = vadd.f32 0.0, %v1201
    %v1203 = vpop.f32.mrf.mxu0
    %v1204 = vadd.f32 0.0, %v1203
    %1205 = vmatmul.bf16.gmra.mxu0 %v1169
    %v1206 = vpop.f32.mrf.mxu0
    %v1207 = vadd.f32 0.0, %v1206
    %v1208 = vpop.f32.mrf.mxu0
    %v1209 = vadd.f32 0.0, %v1208
    %1210 = vmatmul.bf16.gmra.mxu0 %v1170
    %v1211 = vpop.f32.mrf.mxu0
    %v1212 = vadd.f32 0.0, %v1211
    %v1213 = vpop.f32.mrf.mxu0
    %v1214 = vadd.f32 0.0, %v1213
    %1215 = vmatmul.bf16.gmra.mxu0 %v1171
    %v1216 = vpop.f32.mrf.mxu0
    %v1217 = vadd.f32 0.0, %v1216
    %v1218 = vpop.f32.mrf.mxu0
    %v1219 = vadd.f32 0.0, %v1218
    %1220 = vmatmul.bf16.gmra.mxu0 %v1172
    %v1221 = vpop.f32.mrf.mxu0
    %v1222 = vadd.f32 0.0, %v1221
    %v1223 = vpop.f32.mrf.mxu0
    %v1224 = vadd.f32 0.0, %v1223
    %1225 = vmatmul.bf16.gmra.mxu0 %v1173
    %v1226 = vpop.f32.mrf.mxu0
    %v1227 = vadd.f32 0.0, %v1226
    %v1228 = vpop.f32.mrf.mxu0
    %v1229 = vadd.f32 0.0, %v1228
    %1230 = vdwg.mxu0
    %s1231 = scalar_lea.vmem [#allocation2], 7
    %v1232 = vld [vmem:[%s1231] sm:$0x1]
    %v1234 = vperm.slane %v1232, 0
    %v1236 = vmul.f32 %v1192, %v1234
    %v1237 = vmul.f32 %v1194, %v1234
    %v1238 = vmul.f32 %v1197, %v1234
    %v1239 = vmul.f32 %v1199, %v1234
    %v1240 = vmul.f32 %v1202, %v1234
    %v1241 = vmul.f32 %v1204, %v1234
    %v1242 = vmul.f32 %v1207, %v1234
    %v1243 = vmul.f32 %v1209, %v1234
    %v1244 = vmul.f32 %v1212, %v1234
    %v1245 = vmul.f32 %v1214, %v1234
    %v1246 = vmul.f32 %v1217, %v1234
    %v1247 = vmul.f32 %v1219, %v1234
    %v1248 = vmul.f32 %v1222, %v1234
    %v1249 = vmul.f32 %v1224, %v1234
    %v1250 = vmul.f32 %v1227, %v1234
    %v1251 = vmul.f32 %v1229, %v1234
    %v1252 = vadd.f32 %v1101, %v1236
    %v1253 = vadd.f32 %v1102, %v1237
    %v1254 = vadd.f32 %v1103, %v1238
    %v1255 = vadd.f32 %v1104, %v1239
    %v1256 = vadd.f32 %v1105, %v1240
    %v1257 = vadd.f32 %v1106, %v1241
    %v1258 = vadd.f32 %v1107, %v1242
    %v1259 = vadd.f32 %v1108, %v1243
    %v1260 = vadd.f32 %v1109, %v1244
    %v1261 = vadd.f32 %v1110, %v1245
    %v1262 = vadd.f32 %v1111, %v1246
    %v1263 = vadd.f32 %v1112, %v1247
    %v1264 = vadd.f32 %v1113, %v1248
    %v1265 = vadd.f32 %v1114, %v1249
    %v1266 = vadd.f32 %v1115, %v1250
    %v1267 = vadd.f32 %v1116, %v1251
    %s1268 = scalar_lea.vmem %s1, 512
    %v1269 = vld [vmem:[%s1268] sm:$0xf]
    %v1270 = vld [vmem:[%s1268 + $0x4] sm:$0xf]
    %v1271 = vld [vmem:[%s1268 + $0x8] sm:$0xf]
    %v1272 = vld [vmem:[%s1268 + $0xc] sm:$0xf]
    %v1273 = vld [vmem:[%s1268 + $0x10] sm:$0xf]
    %v1274 = vld [vmem:[%s1268 + $0x14] sm:$0xf]
    %v1275 = vld [vmem:[%s1268 + $0x18] sm:$0xf]
    %v1276 = vld [vmem:[%s1268 + $0x1c] sm:$0xf]
    %v1277 = vld [vmem:[%s1268 + $0x20] sm:$0xf]
    %v1278 = vld [vmem:[%s1268 + $0x24] sm:$0xf]
    %v1279 = vld [vmem:[%s1268 + $0x28] sm:$0xf]
    %v1280 = vld [vmem:[%s1268 + $0x2c] sm:$0xf]
    %v1281 = vld [vmem:[%s1268 + $0x30] sm:$0xf]
    %v1282 = vld [vmem:[%s1268 + $0x34] sm:$0xf]
    %v1283 = vld [vmem:[%s1268 + $0x38] sm:$0xf]
    %v1284 = vld [vmem:[%s1268 + $0x3c] sm:$0xf]
    %v1301 = vunpack.c.l.b16 %v1269
    %v1302 = vunpack.c.l.b16 %v1270
    %v1303 = vunpack.c.l.b16 %v1271
    %v1304 = vunpack.c.l.b16 %v1272
    %v1305 = vunpack.c.l.b16 %v1273
    %v1306 = vunpack.c.l.b16 %v1274
    %v1307 = vunpack.c.l.b16 %v1275
    %v1308 = vunpack.c.l.b16 %v1276
    %v1309 = vunpack.c.l.b16 %v1277
    %v1310 = vunpack.c.l.b16 %v1278
    %v1311 = vunpack.c.l.b16 %v1279
    %v1312 = vunpack.c.l.b16 %v1280
    %v1313 = vunpack.c.l.b16 %v1281
    %v1314 = vunpack.c.l.b16 %v1282
    %v1315 = vunpack.c.l.b16 %v1283
    %v1316 = vunpack.c.l.b16 %v1284
    %v1317 = vpack.c.b16 %v1302, %v1301
    %v1318 = vpack.c.b16 %v1304, %v1303
    %v1319 = vpack.c.b16 %v1306, %v1305
    %v1320 = vpack.c.b16 %v1308, %v1307
    %v1321 = vpack.c.b16 %v1310, %v1309
    %v1322 = vpack.c.b16 %v1312, %v1311
    %v1323 = vpack.c.b16 %v1314, %v1313
    %v1324 = vpack.c.b16 %v1316, %v1315
    %1333 = vmatpush.bf16.msra.mxu0 %v77
    %1334 = vmatpush.bf16.msra.mxu0 %v76
    %1335 = vmatpush.bf16.msra.mxu0 %v75
    %1336 = vmatpush.bf16.msra.mxu0 %v74
    %1337 = vmatpush.bf16.msra.mxu0 %v73
    %1338 = vmatpush.bf16.msra.mxu0 %v72
    %1339 = vmatpush.bf16.msra.mxu0 %v71
    %1340 = vmatpush.bf16.msra.mxu0 %v70
    %1341 = vmatmul.bf16.gmra.mxu0 %v1317
    %v1342 = vpop.f32.mrf.mxu0
    %v1343 = vadd.f32 0.0, %v1342
    %v1344 = vpop.f32.mrf.mxu0
    %v1345 = vadd.f32 0.0, %v1344
    %1346 = vmatmul.bf16.gmra.mxu0 %v1318
    %v1347 = vpop.f32.mrf.mxu0
    %v1348 = vadd.f32 0.0, %v1347
    %v1349 = vpop.f32.mrf.mxu0
    %v1350 = vadd.f32 0.0, %v1349
    %1351 = vmatmul.bf16.gmra.mxu0 %v1319
    %v1352 = vpop.f32.mrf.mxu0
    %v1353 = vadd.f32 0.0, %v1352
    %v1354 = vpop.f32.mrf.mxu0
    %v1355 = vadd.f32 0.0, %v1354
    %1356 = vmatmul.bf16.gmra.mxu0 %v1320
    %v1357 = vpop.f32.mrf.mxu0
    %v1358 = vadd.f32 0.0, %v1357
    %v1359 = vpop.f32.mrf.mxu0
    %v1360 = vadd.f32 0.0, %v1359
    %1361 = vmatmul.bf16.gmra.mxu0 %v1321
    %v1362 = vpop.f32.mrf.mxu0
    %v1363 = vadd.f32 0.0, %v1362
    %v1364 = vpop.f32.mrf.mxu0
    %v1365 = vadd.f32 0.0, %v1364
    %1366 = vmatmul.bf16.gmra.mxu0 %v1322
    %v1367 = vpop.f32.mrf.mxu0
    %v1368 = vadd.f32 0.0, %v1367
    %v1369 = vpop.f32.mrf.mxu0
    %v1370 = vadd.f32 0.0, %v1369
    %1371 = vmatmul.bf16.gmra.mxu0 %v1323
    %v1372 = vpop.f32.mrf.mxu0
    %v1373 = vadd.f32 0.0, %v1372
    %v1374 = vpop.f32.mrf.mxu0
    %v1375 = vadd.f32 0.0, %v1374
    %1376 = vmatmul.bf16.gmra.mxu0 %v1324
    %v1377 = vpop.f32.mrf.mxu0
    %v1378 = vadd.f32 0.0, %v1377
    %v1379 = vpop.f32.mrf.mxu0
    %v1380 = vadd.f32 0.0, %v1379
    %1381 = vdwg.mxu0
    %s1382 = scalar_lea.vmem [#allocation2], 8
    %v1383 = vld [vmem:[%s1382] sm:$0x1]
    %v1385 = vperm.slane %v1383, 0
    %v1387 = vmul.f32 %v1343, %v1385
    %v1388 = vmul.f32 %v1345, %v1385
    %v1389 = vmul.f32 %v1348, %v1385
    %v1390 = vmul.f32 %v1350, %v1385
    %v1391 = vmul.f32 %v1353, %v1385
    %v1392 = vmul.f32 %v1355, %v1385
    %v1393 = vmul.f32 %v1358, %v1385
    %v1394 = vmul.f32 %v1360, %v1385
    %v1395 = vmul.f32 %v1363, %v1385
    %v1396 = vmul.f32 %v1365, %v1385
    %v1397 = vmul.f32 %v1368, %v1385
    %v1398 = vmul.f32 %v1370, %v1385
    %v1399 = vmul.f32 %v1373, %v1385
    %v1400 = vmul.f32 %v1375, %v1385
    %v1401 = vmul.f32 %v1378, %v1385
    %v1402 = vmul.f32 %v1380, %v1385
    %v1403 = vadd.f32 %v1252, %v1387
    %v1404 = vadd.f32 %v1253, %v1388
    %v1405 = vadd.f32 %v1254, %v1389
    %v1406 = vadd.f32 %v1255, %v1390
    %v1407 = vadd.f32 %v1256, %v1391
    %v1408 = vadd.f32 %v1257, %v1392
    %v1409 = vadd.f32 %v1258, %v1393
    %v1410 = vadd.f32 %v1259, %v1394
    %v1411 = vadd.f32 %v1260, %v1395
    %v1412 = vadd.f32 %v1261, %v1396
    %v1413 = vadd.f32 %v1262, %v1397
    %v1414 = vadd.f32 %v1263, %v1398
    %v1415 = vadd.f32 %v1264, %v1399
    %v1416 = vadd.f32 %v1265, %v1400
    %v1417 = vadd.f32 %v1266, %v1401
    %v1418 = vadd.f32 %v1267, %v1402
    %v1419 = vld [vmem:[%s3] sm:$0x1]
    %v1421 = vperm.slane %v1419, 0
    %v1423 = vadd.f32 %v1403, %v1421
    %v1424 = vadd.f32 %v1404, %v1421
    %v1425 = vadd.f32 %v1405, %v1421
    %v1426 = vadd.f32 %v1406, %v1421
    %v1427 = vadd.f32 %v1407, %v1421
    %v1428 = vadd.f32 %v1408, %v1421
    %v1429 = vadd.f32 %v1409, %v1421
    %v1430 = vadd.f32 %v1410, %v1421
    %v1431 = vadd.f32 %v1411, %v1421
    %v1432 = vadd.f32 %v1412, %v1421
    %v1433 = vadd.f32 %v1413, %v1421
    %v1434 = vadd.f32 %v1414, %v1421
    %v1435 = vadd.f32 %v1415, %v1421
    %v1436 = vadd.f32 %v1416, %v1421
    %v1437 = vadd.f32 %v1417, %v1421
    %v1438 = vadd.f32 %v1418, %v1421
    %v1439 = vmax.f32 %v1423, 0.0
    %v1440 = vmax.f32 %v1424, 0.0
    %v1441 = vmax.f32 %v1425, 0.0
    %v1442 = vmax.f32 %v1426, 0.0
    %v1443 = vmax.f32 %v1427, 0.0
    %v1444 = vmax.f32 %v1428, 0.0
    %v1445 = vmax.f32 %v1429, 0.0
    %v1446 = vmax.f32 %v1430, 0.0
    %v1447 = vmax.f32 %v1431, 0.0
    %v1448 = vmax.f32 %v1432, 0.0
    %v1449 = vmax.f32 %v1433, 0.0
    %v1450 = vmax.f32 %v1434, 0.0
    %v1451 = vmax.f32 %v1435, 0.0
    %v1452 = vmax.f32 %v1436, 0.0
    %v1453 = vmax.f32 %v1437, 0.0
    %v1454 = vmax.f32 %v1438, 0.0
    %v1455 = vpack.c.bf16 %v1440, %v1439
    %v1456 = vpack.c.bf16 %v1442, %v1441
    %v1457 = vpack.c.bf16 %v1444, %v1443
    %v1458 = vpack.c.bf16 %v1446, %v1445
    %v1459 = vpack.c.bf16 %v1448, %v1447
    %v1460 = vpack.c.bf16 %v1450, %v1449
    %v1461 = vpack.c.bf16 %v1452, %v1451
    %v1462 = vpack.c.bf16 %v1454, %v1453
    %v1463 = vld [vmem:[#allocation4] sm:$0xf]
    %v1464 = vld [vmem:[%s5] sm:$0x1]
    %v1466 = vperm.slane %v1464, 0
    %vm1468 = vcmask 64512
    %v1470 = vsel %vm1468, %v1455, 0
    %v1473 = vsel %vm1468, %v1456, 0
    %v1476 = vsel %vm1468, %v1457, 0
    %v1479 = vsel %vm1468, %v1458, 0
    %v1482 = vsel %vm1468, %v1459, 0
    %v1485 = vsel %vm1468, %v1460, 0
    %v1488 = vsel %vm1468, %v1461, 0
    %v1491 = vsel %vm1468, %v1462, 0
    %vm1493 = vcmask 1043456
    %v1495 = vsel %vm1493, %v1463, 0
    %1497 = vmatpush.bf16.msra.mxu0 0
    %1498 = vmatpush.bf16.msra.mxu0 0
    %1499 = vmatpush.bf16.msra.mxu0 0
    %1500 = vmatpush.bf16.msra.mxu0 0
    %1501 = vmatpush.bf16.msra.mxu0 0
    %1502 = vmatpush.bf16.msra.mxu0 0
    %1503 = vmatpush.bf16.msra.mxu0 0
    %1504 = vmatpush.bf16.msra.mxu0 %v1495
    %1505 = vmatmul.bf16.gmra.mxu0 %v1470
    %v1506 = vpop.f32.mrf.mxu0
    %v1507 = vadd.f32 %v1466, %v1506
    %v1508 = vpop.f32.mrf.mxu0
    %v1509 = vadd.f32 %v1466, %v1508
    %1510 = vmatmul.bf16.gmra.mxu0 %v1473
    %v1511 = vpop.f32.mrf.mxu0
    %v1512 = vadd.f32 %v1466, %v1511
    %v1513 = vpop.f32.mrf.mxu0
    %v1514 = vadd.f32 %v1466, %v1513
    %1515 = vmatmul.bf16.gmra.mxu0 %v1476
    %v1516 = vpop.f32.mrf.mxu0
    %v1517 = vadd.f32 %v1466, %v1516
    %v1518 = vpop.f32.mrf.mxu0
    %v1519 = vadd.f32 %v1466, %v1518
    %1520 = vmatmul.bf16.gmra.mxu0 %v1479
    %v1521 = vpop.f32.mrf.mxu0
    %v1522 = vadd.f32 %v1466, %v1521
    %v1523 = vpop.f32.mrf.mxu0
    %v1524 = vadd.f32 %v1466, %v1523
    %1525 = vmatmul.bf16.gmra.mxu0 %v1482
    %v1526 = vpop.f32.mrf.mxu0
    %v1527 = vadd.f32 %v1466, %v1526
    %v1528 = vpop.f32.mrf.mxu0
    %v1529 = vadd.f32 %v1466, %v1528
    %1530 = vmatmul.bf16.gmra.mxu0 %v1485
    %v1531 = vpop.f32.mrf.mxu0
    %v1532 = vadd.f32 %v1466, %v1531
    %v1533 = vpop.f32.mrf.mxu0
    %v1534 = vadd.f32 %v1466, %v1533
    %1535 = vmatmul.bf16.gmra.mxu0 %v1488
    %v1536 = vpop.f32.mrf.mxu0
    %v1537 = vadd.f32 %v1466, %v1536
    %v1538 = vpop.f32.mrf.mxu0
    %v1539 = vadd.f32 %v1466, %v1538
    %1540 = vmatmul.bf16.gmra.mxu0 %v1491
    %v1541 = vpop.f32.mrf.mxu0
    %v1542 = vadd.f32 %v1466, %v1541
    %v1543 = vpop.f32.mrf.mxu0
    %v1544 = vadd.f32 %v1466, %v1543
    %1545 = vdwg.mxu0
    %v1546 = vadd.f32 %v1507, %v54
    %v1547 = vadd.f32 %v1509, %v55
    %v1548 = vadd.f32 %v1512, %v56
    %v1549 = vadd.f32 %v1514, %v57
    %v1550 = vadd.f32 %v1517, %v58
    %v1551 = vadd.f32 %v1519, %v59
    %v1552 = vadd.f32 %v1522, %v60
    %v1553 = vadd.f32 %v1524, %v61
    %v1554 = vadd.f32 %v1527, %v62
    %v1555 = vadd.f32 %v1529, %v63
    %v1556 = vadd.f32 %v1532, %v64
    %v1557 = vadd.f32 %v1534, %v65
    %v1558 = vadd.f32 %v1537, %v66
    %v1559 = vadd.f32 %v1539, %v67
    %v1560 = vadd.f32 %v1542, %v68
    %v1561 = vadd.f32 %v1544, %v69
    %1562 = vst.msk [vmem:[%s6] sm:$0xff] %vm1468, %v1546
    %1563 = vst.msk [vmem:[%s6 + $0x8] sm:$0xff] %vm1468, %v1547
    %1564 = vst.msk [vmem:[%s6 + $0x10] sm:$0xff] %vm1468, %v1548
    %1565 = vst.msk [vmem:[%s6 + $0x18] sm:$0xff] %vm1468, %v1549
    %1566 = vst.msk [vmem:[%s6 + $0x20] sm:$0xff] %vm1468, %v1550
    %1567 = vst.msk [vmem:[%s6 + $0x28] sm:$0xff] %vm1468, %v1551
    %1568 = vst.msk [vmem:[%s6 + $0x30] sm:$0xff] %vm1468, %v1552
    %1569 = vst.msk [vmem:[%s6 + $0x38] sm:$0xff] %vm1468, %v1553
    %1570 = vst.msk [vmem:[%s6 + $0x40] sm:$0xff] %vm1468, %v1554
    %1571 = vst.msk [vmem:[%s6 + $0x48] sm:$0xff] %vm1468, %v1555
    %1572 = vst.msk [vmem:[%s6 + $0x50] sm:$0xff] %vm1468, %v1556
    %1573 = vst.msk [vmem:[%s6 + $0x58] sm:$0xff] %vm1468, %v1557
    %1574 = vst.msk [vmem:[%s6 + $0x60] sm:$0xff] %vm1468, %v1558
    %1575 = vst.msk [vmem:[%s6 + $0x68] sm:$0xff] %vm1468, %v1559
    %1576 = vst.msk [vmem:[%s6 + $0x70] sm:$0xff] %vm1468, %v1560
    %1577 = vst.msk [vmem:[%s6 + $0x78] sm:$0xff] %vm1468, %v1561
    // Predicated region
    $region34: #{_lambda_.20} parent=1 // pred_check
      _
    $region35: #{_lambda_.20} parent=1 // pred_check_branch
      %1579 = sbr.rel (0) target = $region37
    $region36: #{_lambda_.20} parent=1 // pred_region
      _
    $region37: #{_lambda_.20} parent=1 // pred_fallthru
      _
    // Predicated region
    $region38: #{_lambda_.20} parent=1 // pred_check
      _
    $region39: #{_lambda_.20} parent=1 // pred_check_branch
      %1581 = sbr.rel (0) target = $region41
    $region40: #{_lambda_.20} parent=1 // pred_region
      _
    $region41: #{_lambda_.20} parent=1 // pred_fallthru
      _
    %1582 = vsyncpa [#allocation3], 1
    %1583 = vsyncpa [#allocation5], 1

// kernel: _lambda_.24
$region0: #{_lambda_.24}
  #allocation0 [shape = 'u32[]', space=smem, size = 0x4, offset = 0x4, fixed_abs, tag = 'smem constant byte address 0x4 - core index']
  #allocation1 [shape = 'u32[72,128]{1,0:T(1,128)}', space=vmem, size = 0x9000, scoped, tag = 'internal scratch']
  %s0 = inlined_call_operand.vmem [shape: f32[8,16], index: 0, kind: input, shape index: {}]
  %s1 = inlined_call_operand.hbm [shape: bf16[16,96], index: 1, kind: input, shape index: {}]
  %s2 = inlined_call_operand.vmem [shape: f32[1,96], index: 2, kind: input, shape index: {}, may-alias: {2,5}]
  %s3 = inlined_call_operand.hbm [shape: bf16[9,8,8], index: 3, kind: input, shape index: {}]
  %s4 = inlined_call_operand.hbm [shape: f32[9,1,96], index: 4, kind: input, shape index: {}]
  %s5 = inlined_call_operand.vmem [shape: f32[1,96], index: 5, kind: input, shape index: {}, may-alias: {2,5}]
  %s6 = inlined_call_operand.hbm [shape: bf16[96,16], index: 6, kind: input, shape index: {}]
  %s7 = inlined_call_operand.vmem [shape: f32[1,16], index: 7, kind: input, shape index: {}]
  %s8 = inlined_call_operand.vmem [shape: f32[8,16], index: 8, kind: output, shape index: {}]
  %s9 = sld [smem:[#allocation0]]
  $region58: #{_lambda_.24} parent=0
    _
  %s11 = ssub.s32 1, %s9
  %s12 = scalar_select 0, %s11, %s9
  $region1: #{_lambda_.24} parent=0
    #allocation2 [shape = 'u8[4096]{0}', space=vmem, size = 0x1000, scoped, tag = 'input window, operand 1, single buffered']
    #allocation3 [shape = 's32[1]{0}', space=sflag, size = 0x4, scoped, tag = 'scoped memory for _lambda_.24']
    #allocation4 [shape = 'u8[18432]{0}', space=vmem, size = 0x4800, scoped, tag = 'input window, operand 3, single buffered']
    #allocation5 [shape = 's32[1]{0}', space=sflag, size = 0x4, scoped, tag = 'scoped memory for _lambda_.24']
    #allocation6 [shape = 'u8[4608]{0}', space=vmem, size = 0x1400, scoped, tag = 'input window, operand 4, single buffered']
    #allocation7 [shape = 'u8[24576]{0}', space=vmem, size = 0x6000, scoped, tag = 'input window, operand 6, single buffered']
    #allocation8 [shape = 's32[1]{0}', space=sflag, size = 0x4, scoped, tag = 'scoped memory for _lambda_.24']
    %13 = vsyncpa [#allocation3], 0
    %14 = vsyncpa [#allocation5], 0
    %15 = vsyncpa [#allocation8], 0
    // Predicated region
    $region2: #{_lambda_.24} parent=1 // pred_check
      _
    $region3: #{_lambda_.24} parent=1 // pred_check_branch
      %17 = sbr.rel (0) target = $region5
    $region4: #{_lambda_.24} parent=1 // pred_region
      _
    $region5: #{_lambda_.24} parent=1 // pred_fallthru
      _
    // Predicated region
    $region6: #{_lambda_.24} parent=1 // pred_check
      _
    $region7: #{_lambda_.24} parent=1 // pred_check_branch
      %19 = sbr.rel (0) target = $region9
    $region8: #{_lambda_.24} parent=1 // pred_region
      %21 = vsyncadd [#allocation3], 0
      %s22 = sshll.u32 %s1, 4
      %s23 = int_to_ptr.hbm [resolvable:$true] %s22
      %s24 = sshll.u32 [#allocation2], 4
      %s25 = int_to_ptr.vmem [resolvable:$true] %s24
      %30 = dma.hbm_to_vmem [thread:$0]  %s23, 128, %s25, [#allocation3], 64, 64, 4
    $region9: #{_lambda_.24} parent=1 // pred_fallthru
      _
    // Predicated region
    $region10: #{_lambda_.24} parent=1 // pred_check
      _
    $region11: #{_lambda_.24} parent=1 // pred_check_branch
      %32 = sbr.rel (0) target = $region13
    $region12: #{_lambda_.24} parent=1 // pred_region
      _
    $region13: #{_lambda_.24} parent=1 // pred_fallthru
      _
    // Predicated region
    $region14: #{_lambda_.24} parent=1 // pred_check
      _
    $region15: #{_lambda_.24} parent=1 // pred_check_branch
      %34 = sbr.rel (0) target = $region17
    $region16: #{_lambda_.24} parent=1 // pred_region
      %36 = vsyncadd [#allocation5], 0
      %s37 = sshll.u32 %s3, 4
      %s38 = int_to_ptr.hbm [resolvable:$true] %s37
      %s39 = sshll.u32 [#allocation4], 4
      %s40 = int_to_ptr.vmem [resolvable:$true] %s39
      %45 = dma.hbm_to_vmem [thread:$0]  %s38, 576, %s40, [#allocation5], 64, 64, 4
    $region17: #{_lambda_.24} parent=1 // pred_fallthru
      _
    // Predicated region
    $region18: #{_lambda_.24} parent=1 // pred_check
      _
    $region19: #{_lambda_.24} parent=1 // pred_check_branch
      %47 = sbr.rel (0) target = $region21
    $region20: #{_lambda_.24} parent=1 // pred_region
      %49 = vsyncadd [#allocation5], 0
      %s50 = sshll.u32 %s4, 4
      %s51 = int_to_ptr.hbm [resolvable:$true] %s50
      %s52 = sshll.u32 [#allocation6], 4
      %s53 = int_to_ptr.vmem [resolvable:$true] %s52
      %58 = dma.hbm_to_vmem [thread:$0]  %s51, 144, %s53, [#allocation5], 16, 16, 1
    $region21: #{_lambda_.24} parent=1 // pred_fallthru
      _
    // Predicated region
    $region22: #{_lambda_.24} parent=1 // pred_check
      _
    $region23: #{_lambda_.24} parent=1 // pred_check_branch
      %60 = sbr.rel (0) target = $region25
    $region24: #{_lambda_.24} parent=1 // pred_region
      _
    $region25: #{_lambda_.24} parent=1 // pred_fallthru
      _
    // Predicated region
    $region26: #{_lambda_.24} parent=1 // pred_check
      _
    $region27: #{_lambda_.24} parent=1 // pred_check_branch
      %62 = sbr.rel (0) target = $region29
    $region28: #{_lambda_.24} parent=1 // pred_region
      %64 = vsyncadd [#allocation8], 0
      %s65 = sshll.u32 %s6, 4
      %s66 = int_to_ptr.hbm [resolvable:$true] %s65
      %s67 = sshll.u32 [#allocation7], 4
      %s68 = int_to_ptr.vmem [resolvable:$true] %s67
      %73 = dma.hbm_to_vmem [thread:$0]  %s66, 768, %s68, [#allocation8], 64, 64, 4
    $region29: #{_lambda_.24} parent=1 // pred_fallthru
      _
    // Predicated region
    $region30: #{_lambda_.24} parent=1 // pred_check
      _
    $region31: #{_lambda_.24} parent=1 // pred_check_branch
      %75 = sbr.rel (0) target = $region33
    $region32: #{_lambda_.24} parent=1 // pred_region
      _
    $region33: #{_lambda_.24} parent=1 // pred_fallthru
      _
    // Predicated region
    $region34: #{_lambda_.24} parent=1 // pred_check
      _
    $region35: #{_lambda_.24} parent=1 // pred_check_branch
      %77 = sbr.rel (0) target = $region37
    $region36: #{_lambda_.24} parent=1 // pred_region
      %79 = dma.done [#allocation3], 128
    $region37: #{_lambda_.24} parent=1 // pred_fallthru
      _
    // Predicated region
    $region38: #{_lambda_.24} parent=1 // pred_check
      _
    $region39: #{_lambda_.24} parent=1 // pred_check_branch
      %81 = sbr.rel (0) target = $region41
    $region40: #{_lambda_.24} parent=1 // pred_region
      %83 = dma.done [#allocation5], 576
    $region41: #{_lambda_.24} parent=1 // pred_fallthru
      _
    // Predicated region
    $region42: #{_lambda_.24} parent=1 // pred_check
      _
    $region43: #{_lambda_.24} parent=1 // pred_check_branch
      %85 = sbr.rel (0) target = $region45
    $region44: #{_lambda_.24} parent=1 // pred_region
      %87 = dma.done [#allocation5], 144
    $region45: #{_lambda_.24} parent=1 // pred_fallthru
      _
    // Predicated region
    $region46: #{_lambda_.24} parent=1 // pred_check
      _
    $region47: #{_lambda_.24} parent=1 // pred_check_branch
      %89 = sbr.rel (0) target = $region49
    $region48: #{_lambda_.24} parent=1 // pred_region
      %91 = dma.done [#allocation8], 768
    $region49: #{_lambda_.24} parent=1 // pred_fallthru
      _
    %v93 = vld [vmem:[%s0] sm:$0xff]
    %v94 = vpack.c.bf16 %v93, %v93
    %v95 = vld [vmem:[#allocation2] sm:$0xf]
    %v96 = vld [vmem:[#allocation2 + $0x4] sm:$0xf]
    %v97 = vld [vmem:[%s2] sm:$0x1]
    %v99 = vperm.slane %v97, 0
    %v103 = vunpack.c.l.b16 %v95
    %v104 = vunpack.c.l.b16 %v96
    %v105 = vpack.c.b16 %v104, %v103
    %vm107 = vcmask 130048
    %v109 = vsel %vm107, %v94, 0
    %111 = vmatpush.bf16.msra.mxu0 0
    %112 = vmatpush.bf16.msra.mxu0 0
    %113 = vmatpush.bf16.msra.mxu0 0
    %114 = vmatpush.bf16.msra.mxu0 0
    %115 = vmatpush.bf16.msra.mxu0 0
    %116 = vmatpush.bf16.msra.mxu0 0
    %117 = vmatpush.bf16.msra.mxu0 0
    %118 = vmatpush.bf16.msra.mxu0 %v105
    %119 = vmatmul.bf16.gmra.mxu0 %v109
    %v120 = vpop.f32.mrf.mxu0
    %v121 = vadd.f32 %v99, %v120
    %v122 = vpop.f32.mrf.mxu0
    %123 = vdwg.mxu0
    %v124 = vmax.f32 %v121, 0.0
    %v125 = vpack.c.bf16 %v124, %v124
    %v126 = vld [vmem:[#allocation4] sm:$0xf]
    %vm127 = vcmask 64512
    %v129 = vsel %vm127, %v126, 0
    %vm131 = vcmask 1043456
    %v133 = vsel %vm131, %v125, 0
    %135 = vmatpush.bf16.msra.mxu0 0
    %136 = vmatpush.bf16.msra.mxu0 0
    %137 = vmatpush.bf16.msra.mxu0 0
    %138 = vmatpush.bf16.msra.mxu0 0
    %139 = vmatpush.bf16.msra.mxu0 0
    %140 = vmatpush.bf16.msra.mxu0 0
    %141 = vmatpush.bf16.msra.mxu0 0
    %142 = vmatpush.bf16.msra.mxu0 %v133
    %143 = vmatmul.bf16.gmra.mxu0 %v129
    %v144 = vpop.f32.mrf.mxu0
    %v145 = vadd.f32 0.0, %v144
    %v146 = vpop.f32.mrf.mxu0
    %147 = vdwg.mxu0
    %v148 = vld [vmem:[#allocation6] sm:$0x1]
    %v150 = vperm.slane %v148, 0
    %v152 = vmul.f32 %v145, %v150
    %s153 = scalar_lea.vmem [#allocation4], 4
    %v154 = vld [vmem:[%s153] sm:$0xf]
    %v156 = vsel %vm127, %v154, 0
    %158 = vmatpush.bf16.msra.mxu0 0
    %159 = vmatpush.bf16.msra.mxu0 0
    %160 = vmatpush.bf16.msra.mxu0 0
    %161 = vmatpush.bf16.msra.mxu0 0
    %162 = vmatpush.bf16.msra.mxu0 0
    %163 = vmatpush.bf16.msra.mxu0 0
    %164 = vmatpush.bf16.msra.mxu0 0
    %165 = vmatpush.bf16.msra.mxu0 %v133
    %166 = vmatmul.bf16.gmra.mxu0 %v156
    %v167 = vpop.f32.mrf.mxu0
    %v168 = vadd.f32 0.0, %v167
    %v169 = vpop.f32.mrf.mxu0
    %170 = vdwg.mxu0
    %s171 = scalar_lea.vmem [#allocation6], 1
    %v172 = vld [vmem:[%s171] sm:$0x1]
    %v174 = vperm.slane %v172, 0
    %v176 = vmul.f32 %v168, %v174
    %v177 = vadd.f32 %v152, %v176
    %s178 = scalar_lea.vmem [#allocation4], 8
    %v179 = vld [vmem:[%s178] sm:$0xf]
    %v181 = vsel %vm127, %v179, 0
    %183 = vmatpush.bf16.msra.mxu0 0
    %184 = vmatpush.bf16.msra.mxu0 0
    %185 = vmatpush.bf16.msra.mxu0 0
    %186 = vmatpush.bf16.msra.mxu0 0
    %187 = vmatpush.bf16.msra.mxu0 0
    %188 = vmatpush.bf16.msra.mxu0 0
    %189 = vmatpush.bf16.msra.mxu0 0
    %190 = vmatpush.bf16.msra.mxu0 %v133
    %191 = vmatmul.bf16.gmra.mxu0 %v181
    %v192 = vpop.f32.mrf.mxu0
    %v193 = vadd.f32 0.0, %v192
    %v194 = vpop.f32.mrf.mxu0
    %195 = vdwg.mxu0
    %s196 = scalar_lea.vmem [#allocation6], 2
    %v197 = vld [vmem:[%s196] sm:$0x1]
    %v199 = vperm.slane %v197, 0
    %v201 = vmul.f32 %v193, %v199
    %v202 = vadd.f32 %v177, %v201
    %s203 = scalar_lea.vmem [#allocation4], 12
    %v204 = vld [vmem:[%s203] sm:$0xf]
    %v206 = vsel %vm127, %v204, 0
    %208 = vmatpush.bf16.msra.mxu0 0
    %209 = vmatpush.bf16.msra.mxu0 0
    %210 = vmatpush.bf16.msra.mxu0 0
    %211 = vmatpush.bf16.msra.mxu0 0
    %212 = vmatpush.bf16.msra.mxu0 0
    %213 = vmatpush.bf16.msra.mxu0 0
    %214 = vmatpush.bf16.msra.mxu0 0
    %215 = vmatpush.bf16.msra.mxu0 %v133
    %216 = vmatmul.bf16.gmra.mxu0 %v206
    %v217 = vpop.f32.mrf.mxu0
    %v218 = vadd.f32 0.0, %v217
    %v219 = vpop.f32.mrf.mxu0
    %220 = vdwg.mxu0
    %s221 = scalar_lea.vmem [#allocation6], 3
    %v222 = vld [vmem:[%s221] sm:$0x1]
    %v224 = vperm.slane %v222, 0
    %v226 = vmul.f32 %v218, %v224
    %v227 = vadd.f32 %v202, %v226
    %s228 = scalar_lea.vmem [#allocation4], 16
    %v229 = vld [vmem:[%s228] sm:$0xf]
    %v231 = vsel %vm127, %v229, 0
    %233 = vmatpush.bf16.msra.mxu0 0
    %234 = vmatpush.bf16.msra.mxu0 0
    %235 = vmatpush.bf16.msra.mxu0 0
    %236 = vmatpush.bf16.msra.mxu0 0
    %237 = vmatpush.bf16.msra.mxu0 0
    %238 = vmatpush.bf16.msra.mxu0 0
    %239 = vmatpush.bf16.msra.mxu0 0
    %240 = vmatpush.bf16.msra.mxu0 %v133
    %241 = vmatmul.bf16.gmra.mxu0 %v231
    %v242 = vpop.f32.mrf.mxu0
    %v243 = vadd.f32 0.0, %v242
    %v244 = vpop.f32.mrf.mxu0
    %245 = vdwg.mxu0
    %s246 = scalar_lea.vmem [#allocation6], 4
    %v247 = vld [vmem:[%s246] sm:$0x1]
    %v249 = vperm.slane %v247, 0
    %v251 = vmul.f32 %v243, %v249
    %v252 = vadd.f32 %v227, %v251
    %s253 = scalar_lea.vmem [#allocation4], 20
    %v254 = vld [vmem:[%s253] sm:$0xf]
    %v256 = vsel %vm127, %v254, 0
    %258 = vmatpush.bf16.msra.mxu0 0
    %259 = vmatpush.bf16.msra.mxu0 0
    %260 = vmatpush.bf16.msra.mxu0 0
    %261 = vmatpush.bf16.msra.mxu0 0
    %262 = vmatpush.bf16.msra.mxu0 0
    %263 = vmatpush.bf16.msra.mxu0 0
    %264 = vmatpush.bf16.msra.mxu0 0
    %265 = vmatpush.bf16.msra.mxu0 %v133
    %266 = vmatmul.bf16.gmra.mxu0 %v256
    %v267 = vpop.f32.mrf.mxu0
    %v268 = vadd.f32 0.0, %v267
    %v269 = vpop.f32.mrf.mxu0
    %270 = vdwg.mxu0
    %s271 = scalar_lea.vmem [#allocation6], 5
    %v272 = vld [vmem:[%s271] sm:$0x1]
    %v274 = vperm.slane %v272, 0
    %v276 = vmul.f32 %v268, %v274
    %v277 = vadd.f32 %v252, %v276
    %s278 = scalar_lea.vmem [#allocation4], 24
    %v279 = vld [vmem:[%s278] sm:$0xf]
    %v281 = vsel %vm127, %v279, 0
    %283 = vmatpush.bf16.msra.mxu0 0
    %284 = vmatpush.bf16.msra.mxu0 0
    %285 = vmatpush.bf16.msra.mxu0 0
    %286 = vmatpush.bf16.msra.mxu0 0
    %287 = vmatpush.bf16.msra.mxu0 0
    %288 = vmatpush.bf16.msra.mxu0 0
    %289 = vmatpush.bf16.msra.mxu0 0
    %290 = vmatpush.bf16.msra.mxu0 %v133
    %291 = vmatmul.bf16.gmra.mxu0 %v281
    %v292 = vpop.f32.mrf.mxu0
    %v293 = vadd.f32 0.0, %v292
    %v294 = vpop.f32.mrf.mxu0
    %295 = vdwg.mxu0
    %s296 = scalar_lea.vmem [#allocation6], 6
    %v297 = vld [vmem:[%s296] sm:$0x1]
    %v299 = vperm.slane %v297, 0
    %v301 = vmul.f32 %v293, %v299
    %v302 = vadd.f32 %v277, %v301
    %s303 = scalar_lea.vmem [#allocation4], 28
    %v304 = vld [vmem:[%s303] sm:$0xf]
    %v306 = vsel %vm127, %v304, 0
    %308 = vmatpush.bf16.msra.mxu0 0
    %309 = vmatpush.bf16.msra.mxu0 0
    %310 = vmatpush.bf16.msra.mxu0 0
    %311 = vmatpush.bf16.msra.mxu0 0
    %312 = vmatpush.bf16.msra.mxu0 0
    %313 = vmatpush.bf16.msra.mxu0 0
    %314 = vmatpush.bf16.msra.mxu0 0
    %315 = vmatpush.bf16.msra.mxu0 %v133
    %316 = vmatmul.bf16.gmra.mxu0 %v306
    %v317 = vpop.f32.mrf.mxu0
    %v318 = vadd.f32 0.0, %v317
    %v319 = vpop.f32.mrf.mxu0
    %320 = vdwg.mxu0
    %s321 = scalar_lea.vmem [#allocation6], 7
    %v322 = vld [vmem:[%s321] sm:$0x1]
    %v324 = vperm.slane %v322, 0
    %v326 = vmul.f32 %v318, %v324
    %v327 = vadd.f32 %v302, %v326
    %s328 = scalar_lea.vmem [#allocation4], 32
    %v329 = vld [vmem:[%s328] sm:$0xf]
    %v331 = vsel %vm127, %v329, 0
    %333 = vmatpush.bf16.msra.mxu0 0
    %334 = vmatpush.bf16.msra.mxu0 0
    %335 = vmatpush.bf16.msra.mxu0 0
    %336 = vmatpush.bf16.msra.mxu0 0
    %337 = vmatpush.bf16.msra.mxu0 0
    %338 = vmatpush.bf16.msra.mxu0 0
    %339 = vmatpush.bf16.msra.mxu0 0
    %340 = vmatpush.bf16.msra.mxu0 %v133
    %341 = vmatmul.bf16.gmra.mxu0 %v331
    %v342 = vpop.f32.mrf.mxu0
    %v343 = vadd.f32 0.0, %v342
    %v344 = vpop.f32.mrf.mxu0
    %345 = vdwg.mxu0
    %s346 = scalar_lea.vmem [#allocation6], 8
    %v347 = vld [vmem:[%s346] sm:$0x1]
    %v349 = vperm.slane %v347, 0
    %v351 = vmul.f32 %v343, %v349
    %v352 = vadd.f32 %v327, %v351
    %v353 = vld [vmem:[%s5] sm:$0x1]
    %v355 = vperm.slane %v353, 0
    %v357 = vadd.f32 %v352, %v355
    %v358 = vmax.f32 %v357, 0.0
    %v359 = vpack.c.bf16 %v358, %v358
    %v360 = vld [vmem:[#allocation7] sm:$0xf]
    %v361 = vld [vmem:[#allocation7 + $0x4] sm:$0xf]
    %v362 = vld [vmem:[#allocation7 + $0x8] sm:$0xf]
    %v363 = vld [vmem:[#allocation7 + $0xc] sm:$0xf]
    %v364 = vld [vmem:[#allocation7 + $0x10] sm:$0xf]
    %v365 = vld [vmem:[#allocation7 + $0x14] sm:$0xf]
    %v366 = vld [vmem:[#allocation7 + $0x18] sm:$0xf]
    %v367 = vld [vmem:[#allocation7 + $0x1c] sm:$0xf]
    %v368 = vld [vmem:[#allocation7 + $0x20] sm:$0xf]
    %v369 = vld [vmem:[#allocation7 + $0x24] sm:$0xf]
    %v370 = vld [vmem:[#allocation7 + $0x28] sm:$0xf]
    %v371 = vld [vmem:[#allocation7 + $0x2c] sm:$0xf]
    %v372 = vld [vmem:[%s7] sm:$0x1]
    %v374 = vperm.slane %v372, 0
    %v388 = vunpack.c.l.b16 %v360
    %v389 = vunpack.c.l.b16 %v361
    %v390 = vunpack.c.l.b16 %v362
    %v391 = vunpack.c.l.b16 %v363
    %v392 = vunpack.c.l.b16 %v364
    %v393 = vunpack.c.l.b16 %v365
    %v394 = vunpack.c.l.b16 %v366
    %v395 = vunpack.c.l.b16 %v367
    %v396 = vunpack.c.l.b16 %v368
    %v397 = vunpack.c.l.b16 %v369
    %v398 = vunpack.c.l.b16 %v370
    %v399 = vunpack.c.l.b16 %v371
    %v400 = vpack.c.b16 %v389, %v388
    %v401 = vpack.c.b16 %v391, %v390
    %v402 = vpack.c.b16 %v393, %v392
    %v403 = vpack.c.b16 %v395, %v394
    %v404 = vpack.c.b16 %v397, %v396
    %v405 = vpack.c.b16 %v399, %v398
    %vm412 = vcmask 785408
    %v414 = vsel %vm412, %v359, 0
    %416 = vmatpush.bf16.msra.mxu0 0
    %417 = vmatpush.bf16.msra.mxu0 0
    %418 = vmatpush.bf16.msra.mxu0 %v405
    %419 = vmatpush.bf16.msra.mxu0 %v404
    %420 = vmatpush.bf16.msra.mxu0 %v403
    %421 = vmatpush.bf16.msra.mxu0 %v402
    %422 = vmatpush.bf16.msra.mxu0 %v401
    %423 = vmatpush.bf16.msra.mxu0 %v400
    %424 = vmatmul.bf16.gmra.mxu0 %v414
    %v425 = vpop.f32.mrf.mxu0
    %v426 = vadd.f32 %v374, %v425
    %v427 = vpop.f32.mrf.mxu0
    %428 = vdwg.mxu0
    %v429 = vadd.f32 %v426, %v93
    %430 = vst.msk [vmem:[%s8] sm:$0xff] %vm107, %v429
    // Predicated region
    $region50: #{_lambda_.24} parent=1 // pred_check
      _
    $region51: #{_lambda_.24} parent=1 // pred_check_branch
      %432 = sbr.rel (0) target = $region53
    $region52: #{_lambda_.24} parent=1 // pred_region
      _
    $region53: #{_lambda_.24} parent=1 // pred_fallthru
      _
    // Predicated region
    $region54: #{_lambda_.24} parent=1 // pred_check
      _
    $region55: #{_lambda_.24} parent=1 // pred_check_branch
      %434 = sbr.rel (0) target = $region57
    $region56: #{_lambda_.24} parent=1 // pred_region
      _
    $region57: #{_lambda_.24} parent=1 // pred_fallthru
      _
    %435 = vsyncpa [#allocation3], 1
    %436 = vsyncpa [#allocation5], 1
    %437 = vsyncpa [#allocation8], 1

// kernel: _lambda_.23
$region0: #{_lambda_.23}
  #allocation0 [shape = 'u32[]', space=smem, size = 0x4, offset = 0x4, fixed_abs, tag = 'smem constant byte address 0x4 - core index']
  #allocation1 [shape = 'u32[72,128]{1,0:T(1,128)}', space=vmem, size = 0x9000, scoped, tag = 'internal scratch']
  %s0 = inlined_call_operand.vmem [shape: f32[32,16], index: 0, kind: input, shape index: {}]
  %s1 = inlined_call_operand.hbm [shape: bf16[16,96], index: 1, kind: input, shape index: {}]
  %s2 = inlined_call_operand.vmem [shape: f32[1,96], index: 2, kind: input, shape index: {}, may-alias: {2,5}]
  %s3 = inlined_call_operand.hbm [shape: bf16[9,8,32], index: 3, kind: input, shape index: {}]
  %s4 = inlined_call_operand.hbm [shape: f32[9,1,96], index: 4, kind: input, shape index: {}]
  %s5 = inlined_call_operand.vmem [shape: f32[1,96], index: 5, kind: input, shape index: {}, may-alias: {2,5}]
  %s6 = inlined_call_operand.hbm [shape: bf16[96,16], index: 6, kind: input, shape index: {}]
  %s7 = inlined_call_operand.vmem [shape: f32[1,16], index: 7, kind: input, shape index: {}]
  %s8 = inlined_call_operand.vmem [shape: f32[8,16], index: 8, kind: output, shape index: {}]
  %s9 = sld [smem:[#allocation0]]
  $region58: #{_lambda_.23} parent=0
    _
  %s11 = ssub.s32 1, %s9
  %s12 = scalar_select 0, %s11, %s9
  $region1: #{_lambda_.23} parent=0
    #allocation2 [shape = 'u8[4096]{0}', space=vmem, size = 0x1000, scoped, tag = 'input window, operand 1, single buffered']
    #allocation3 [shape = 's32[1]{0}', space=sflag, size = 0x4, scoped, tag = 'scoped memory for _lambda_.23']
    #allocation4 [shape = 'u8[18432]{0}', space=vmem, size = 0x4800, scoped, tag = 'input window, operand 3, single buffered']
    #allocation5 [shape = 's32[1]{0}', space=sflag, size = 0x4, scoped, tag = 'scoped memory for _lambda_.23']
    #allocation6 [shape = 'u8[4608]{0}', space=vmem, size = 0x1400, scoped, tag = 'input window, operand 4, single buffered']
    #allocation7 [shape = 'u8[24576]{0}', space=vmem, size = 0x6000, scoped, tag = 'input window, operand 6, single buffered']
    #allocation8 [shape = 's32[1]{0}', space=sflag, size = 0x4, scoped, tag = 'scoped memory for _lambda_.23']
    %13 = vsyncpa [#allocation3], 0
    %14 = vsyncpa [#allocation5], 0
    %15 = vsyncpa [#allocation8], 0
    // Predicated region
    $region2: #{_lambda_.23} parent=1 // pred_check
      _
    $region3: #{_lambda_.23} parent=1 // pred_check_branch
      %17 = sbr.rel (0) target = $region5
    $region4: #{_lambda_.23} parent=1 // pred_region
      _
    $region5: #{_lambda_.23} parent=1 // pred_fallthru
      _
    // Predicated region
    $region6: #{_lambda_.23} parent=1 // pred_check
      _
    $region7: #{_lambda_.23} parent=1 // pred_check_branch
      %19 = sbr.rel (0) target = $region9
    $region8: #{_lambda_.23} parent=1 // pred_region
      %21 = vsyncadd [#allocation3], 0
      %s22 = sshll.u32 %s1, 4
      %s23 = int_to_ptr.hbm [resolvable:$true] %s22
      %s24 = sshll.u32 [#allocation2], 4
      %s25 = int_to_ptr.vmem [resolvable:$true] %s24
      %30 = dma.hbm_to_vmem [thread:$0]  %s23, 128, %s25, [#allocation3], 64, 64, 4
    $region9: #{_lambda_.23} parent=1 // pred_fallthru
      _
    // Predicated region
    $region10: #{_lambda_.23} parent=1 // pred_check
      _
    $region11: #{_lambda_.23} parent=1 // pred_check_branch
      %32 = sbr.rel (0) target = $region13
    $region12: #{_lambda_.23} parent=1 // pred_region
      _
    $region13: #{_lambda_.23} parent=1 // pred_fallthru
      _
    // Predicated region
    $region14: #{_lambda_.23} parent=1 // pred_check
      _
    $region15: #{_lambda_.23} parent=1 // pred_check_branch
      %34 = sbr.rel (0) target = $region17
    $region16: #{_lambda_.23} parent=1 // pred_region
      %36 = vsyncadd [#allocation5], 0
      %s37 = sshll.u32 %s3, 4
      %s38 = int_to_ptr.hbm [resolvable:$true] %s37
      %s39 = sshll.u32 [#allocation4], 4
      %s40 = int_to_ptr.vmem [resolvable:$true] %s39
      %45 = dma.hbm_to_vmem [thread:$0]  %s38, 576, %s40, [#allocation5], 64, 64, 4
    $region17: #{_lambda_.23} parent=1 // pred_fallthru
      _
    // Predicated region
    $region18: #{_lambda_.23} parent=1 // pred_check
      _
    $region19: #{_lambda_.23} parent=1 // pred_check_branch
      %47 = sbr.rel (0) target = $region21
    $region20: #{_lambda_.23} parent=1 // pred_region
      %49 = vsyncadd [#allocation5], 0
      %s50 = sshll.u32 %s4, 4
      %s51 = int_to_ptr.hbm [resolvable:$true] %s50
      %s52 = sshll.u32 [#allocation6], 4
      %s53 = int_to_ptr.vmem [resolvable:$true] %s52
      %58 = dma.hbm_to_vmem [thread:$0]  %s51, 144, %s53, [#allocation5], 16, 16, 1
    $region21: #{_lambda_.23} parent=1 // pred_fallthru
      _
    // Predicated region
    $region22: #{_lambda_.23} parent=1 // pred_check
      _
    $region23: #{_lambda_.23} parent=1 // pred_check_branch
      %60 = sbr.rel (0) target = $region25
    $region24: #{_lambda_.23} parent=1 // pred_region
      _
    $region25: #{_lambda_.23} parent=1 // pred_fallthru
      _
    // Predicated region
    $region26: #{_lambda_.23} parent=1 // pred_check
      _
    $region27: #{_lambda_.23} parent=1 // pred_check_branch
      %62 = sbr.rel (0) target = $region29
    $region28: #{_lambda_.23} parent=1 // pred_region
      %64 = vsyncadd [#allocation8], 0
      %s65 = sshll.u32 %s6, 4
      %s66 = int_to_ptr.hbm [resolvable:$true] %s65
      %s67 = sshll.u32 [#allocation7], 4
      %s68 = int_to_ptr.vmem [resolvable:$true] %s67
      %73 = dma.hbm_to_vmem [thread:$0]  %s66, 768, %s68, [#allocation8], 64, 64, 4
    $region29: #{_lambda_.23} parent=1 // pred_fallthru
      _
    // Predicated region
    $region30: #{_lambda_.23} parent=1 // pred_check
      _
    $region31: #{_lambda_.23} parent=1 // pred_check_branch
      %75 = sbr.rel (0) target = $region33
    $region32: #{_lambda_.23} parent=1 // pred_region
      _
    $region33: #{_lambda_.23} parent=1 // pred_fallthru
      _
    // Predicated region
    $region34: #{_lambda_.23} parent=1 // pred_check
      _
    $region35: #{_lambda_.23} parent=1 // pred_check_branch
      %77 = sbr.rel (0) target = $region37
    $region36: #{_lambda_.23} parent=1 // pred_region
      %79 = dma.done [#allocation3], 128
    $region37: #{_lambda_.23} parent=1 // pred_fallthru
      _
    // Predicated region
    $region38: #{_lambda_.23} parent=1 // pred_check
      _
    $region39: #{_lambda_.23} parent=1 // pred_check_branch
      %81 = sbr.rel (0) target = $region41
    $region40: #{_lambda_.23} parent=1 // pred_region
      %83 = dma.done [#allocation5], 576
    $region41: #{_lambda_.23} parent=1 // pred_fallthru
      _
    // Predicated region
    $region42: #{_lambda_.23} parent=1 // pred_check
      _
    $region43: #{_lambda_.23} parent=1 // pred_check_branch
      %85 = sbr.rel (0) target = $region45
    $region44: #{_lambda_.23} parent=1 // pred_region
      %87 = dma.done [#allocation5], 144
    $region45: #{_lambda_.23} parent=1 // pred_fallthru
      _
    // Predicated region
    $region46: #{_lambda_.23} parent=1 // pred_check
      _
    $region47: #{_lambda_.23} parent=1 // pred_check_branch
      %89 = sbr.rel (0) target = $region49
    $region48: #{_lambda_.23} parent=1 // pred_region
      %91 = dma.done [#allocation8], 768
    $region49: #{_lambda_.23} parent=1 // pred_fallthru
      _
    %v93 = vld [vmem:[%s0] sm:$0xff]
    %v94 = vld [vmem:[%s0 + $0x8] sm:$0xff]
    %v95 = vld [vmem:[%s0 + $0x10] sm:$0xff]
    %v96 = vld [vmem:[%s0 + $0x18] sm:$0xff]
    %v97 = vpack.c.bf16 %v94, %v93
    %v98 = vpack.c.bf16 %v96, %v95
    %v99 = vld [vmem:[#allocation2] sm:$0xf]
    %v100 = vld [vmem:[#allocation2 + $0x4] sm:$0xf]
    %v101 = vld [vmem:[%s2] sm:$0x1]
    %v103 = vperm.slane %v101, 0
    %v107 = vunpack.c.l.b16 %v99
    %v108 = vunpack.c.l.b16 %v100
    %v109 = vpack.c.b16 %v108, %v107
    %vm111 = vcmask 130048
    %v113 = vsel %vm111, %v97, 0
    %v116 = vsel %vm111, %v98, 0
    %118 = vmatpush.bf16.msra.mxu0 0
    %119 = vmatpush.bf16.msra.mxu0 0
    %120 = vmatpush.bf16.msra.mxu0 0
    %121 = vmatpush.bf16.msra.mxu0 0
    %122 = vmatpush.bf16.msra.mxu0 0
    %123 = vmatpush.bf16.msra.mxu0 0
    %124 = vmatpush.bf16.msra.mxu0 0
    %125 = vmatpush.bf16.msra.mxu0 %v109
    %126 = vmatmul.bf16.gmra.mxu0 %v113
    %v127 = vpop.f32.mrf.mxu0
    %v128 = vadd.f32 %v103, %v127
    %v129 = vpop.f32.mrf.mxu0
    %v130 = vadd.f32 %v103, %v129
    %131 = vmatmul.bf16.gmra.mxu0 %v116
    %v132 = vpop.f32.mrf.mxu0
    %v133 = vadd.f32 %v103, %v132
    %v134 = vpop.f32.mrf.mxu0
    %v135 = vadd.f32 %v103, %v134
    %136 = vdwg.mxu0
    %v137 = vmax.f32 %v128, 0.0
    %v138 = vmax.f32 %v130, 0.0
    %v139 = vmax.f32 %v133, 0.0
    %v140 = vmax.f32 %v135, 0.0
    %v141 = vpack.c.bf16 %v138, %v137
    %v142 = vpack.c.bf16 %v140, %v139
    %v143 = vld [vmem:[#allocation4] sm:$0xf]
    %vm144 = vcmask 261120
    %v146 = vsel %vm144, %v143, 0
    %148 = vmatpush.bf16.msra.mxu0 0
    %149 = vmatpush.bf16.msra.mxu0 0
    %150 = vmatpush.bf16.msra.mxu0 0
    %151 = vmatpush.bf16.msra.mxu0 0
    %152 = vmatpush.bf16.msra.mxu0 0
    %153 = vmatpush.bf16.msra.mxu0 0
    %154 = vmatpush.bf16.msra.mxu0 %v142
    %155 = vmatpush.bf16.msra.mxu0 %v141
    %156 = vmatmul.bf16.gmra.mxu0 %v146
    %v157 = vpop.f32.mrf.mxu0
    %v158 = vadd.f32 0.0, %v157
    %v159 = vpop.f32.mrf.mxu0
    %160 = vdwg.mxu0
    %v161 = vld [vmem:[#allocation6] sm:$0x1]
    %v163 = vperm.slane %v161, 0
    %v165 = vmul.f32 %v158, %v163
    %s166 = scalar_lea.vmem [#allocation4], 4
    %v167 = vld [vmem:[%s166] sm:$0xf]
    %v169 = vsel %vm144, %v167, 0
    %171 = vmatpush.bf16.msra.mxu0 0
    %172 = vmatpush.bf16.msra.mxu0 0
    %173 = vmatpush.bf16.msra.mxu0 0
    %174 = vmatpush.bf16.msra.mxu0 0
    %175 = vmatpush.bf16.msra.mxu0 0
    %176 = vmatpush.bf16.msra.mxu0 0
    %177 = vmatpush.bf16.msra.mxu0 %v142
    %178 = vmatpush.bf16.msra.mxu0 %v141
    %179 = vmatmul.bf16.gmra.mxu0 %v169
    %v180 = vpop.f32.mrf.mxu0
    %v181 = vadd.f32 0.0, %v180
    %v182 = vpop.f32.mrf.mxu0
    %183 = vdwg.mxu0
    %s184 = scalar_lea.vmem [#allocation6], 1
    %v185 = vld [vmem:[%s184] sm:$0x1]
    %v187 = vperm.slane %v185, 0
    %v189 = vmul.f32 %v181, %v187
    %v190 = vadd.f32 %v165, %v189
    %s191 = scalar_lea.vmem [#allocation4], 8
    %v192 = vld [vmem:[%s191] sm:$0xf]
    %v194 = vsel %vm144, %v192, 0
    %196 = vmatpush.bf16.msra.mxu0 0
    %197 = vmatpush.bf16.msra.mxu0 0
    %198 = vmatpush.bf16.msra.mxu0 0
    %199 = vmatpush.bf16.msra.mxu0 0
    %200 = vmatpush.bf16.msra.mxu0 0
    %201 = vmatpush.bf16.msra.mxu0 0
    %202 = vmatpush.bf16.msra.mxu0 %v142
    %203 = vmatpush.bf16.msra.mxu0 %v141
    %204 = vmatmul.bf16.gmra.mxu0 %v194
    %v205 = vpop.f32.mrf.mxu0
    %v206 = vadd.f32 0.0, %v205
    %v207 = vpop.f32.mrf.mxu0
    %208 = vdwg.mxu0
    %s209 = scalar_lea.vmem [#allocation6], 2
    %v210 = vld [vmem:[%s209] sm:$0x1]
    %v212 = vperm.slane %v210, 0
    %v214 = vmul.f32 %v206, %v212
    %v215 = vadd.f32 %v190, %v214
    %s216 = scalar_lea.vmem [#allocation4], 12
    %v217 = vld [vmem:[%s216] sm:$0xf]
    %v219 = vsel %vm144, %v217, 0
    %221 = vmatpush.bf16.msra.mxu0 0
    %222 = vmatpush.bf16.msra.mxu0 0
    %223 = vmatpush.bf16.msra.mxu0 0
    %224 = vmatpush.bf16.msra.mxu0 0
    %225 = vmatpush.bf16.msra.mxu0 0
    %226 = vmatpush.bf16.msra.mxu0 0
    %227 = vmatpush.bf16.msra.mxu0 %v142
    %228 = vmatpush.bf16.msra.mxu0 %v141
    %229 = vmatmul.bf16.gmra.mxu0 %v219
    %v230 = vpop.f32.mrf.mxu0
    %v231 = vadd.f32 0.0, %v230
    %v232 = vpop.f32.mrf.mxu0
    %233 = vdwg.mxu0
    %s234 = scalar_lea.vmem [#allocation6], 3
    %v235 = vld [vmem:[%s234] sm:$0x1]
    %v237 = vperm.slane %v235, 0
    %v239 = vmul.f32 %v231, %v237
    %v240 = vadd.f32 %v215, %v239
    %s241 = scalar_lea.vmem [#allocation4], 16
    %v242 = vld [vmem:[%s241] sm:$0xf]
    %v244 = vsel %vm144, %v242, 0
    %246 = vmatpush.bf16.msra.mxu0 0
    %247 = vmatpush.bf16.msra.mxu0 0
    %248 = vmatpush.bf16.msra.mxu0 0
    %249 = vmatpush.bf16.msra.mxu0 0
    %250 = vmatpush.bf16.msra.mxu0 0
    %251 = vmatpush.bf16.msra.mxu0 0
    %252 = vmatpush.bf16.msra.mxu0 %v142
    %253 = vmatpush.bf16.msra.mxu0 %v141
    %254 = vmatmul.bf16.gmra.mxu0 %v244
    %v255 = vpop.f32.mrf.mxu0
    %v256 = vadd.f32 0.0, %v255
    %v257 = vpop.f32.mrf.mxu0
    %258 = vdwg.mxu0
    %s259 = scalar_lea.vmem [#allocation6], 4
    %v260 = vld [vmem:[%s259] sm:$0x1]
    %v262 = vperm.slane %v260, 0
    %v264 = vmul.f32 %v256, %v262
    %v265 = vadd.f32 %v240, %v264
    %s266 = scalar_lea.vmem [#allocation4], 20
    %v267 = vld [vmem:[%s266] sm:$0xf]
    %v269 = vsel %vm144, %v267, 0
    %271 = vmatpush.bf16.msra.mxu0 0
    %272 = vmatpush.bf16.msra.mxu0 0
    %273 = vmatpush.bf16.msra.mxu0 0
    %274 = vmatpush.bf16.msra.mxu0 0
    %275 = vmatpush.bf16.msra.mxu0 0
    %276 = vmatpush.bf16.msra.mxu0 0
    %277 = vmatpush.bf16.msra.mxu0 %v142
    %278 = vmatpush.bf16.msra.mxu0 %v141
    %279 = vmatmul.bf16.gmra.mxu0 %v269
    %v280 = vpop.f32.mrf.mxu0
    %v281 = vadd.f32 0.0, %v280
    %v282 = vpop.f32.mrf.mxu0
    %283 = vdwg.mxu0
    %s284 = scalar_lea.vmem [#allocation6], 5
    %v285 = vld [vmem:[%s284] sm:$0x1]
    %v287 = vperm.slane %v285, 0
    %v289 = vmul.f32 %v281, %v287
    %v290 = vadd.f32 %v265, %v289
    %s291 = scalar_lea.vmem [#allocation4], 24
    %v292 = vld [vmem:[%s291] sm:$0xf]
    %v294 = vsel %vm144, %v292, 0
    %296 = vmatpush.bf16.msra.mxu0 0
    %297 = vmatpush.bf16.msra.mxu0 0
    %298 = vmatpush.bf16.msra.mxu0 0
    %299 = vmatpush.bf16.msra.mxu0 0
    %300 = vmatpush.bf16.msra.mxu0 0
    %301 = vmatpush.bf16.msra.mxu0 0
    %302 = vmatpush.bf16.msra.mxu0 %v142
    %303 = vmatpush.bf16.msra.mxu0 %v141
    %304 = vmatmul.bf16.gmra.mxu0 %v294
    %v305 = vpop.f32.mrf.mxu0
    %v306 = vadd.f32 0.0, %v305
    %v307 = vpop.f32.mrf.mxu0
    %308 = vdwg.mxu0
    %s309 = scalar_lea.vmem [#allocation6], 6
    %v310 = vld [vmem:[%s309] sm:$0x1]
    %v312 = vperm.slane %v310, 0
    %v314 = vmul.f32 %v306, %v312
    %v315 = vadd.f32 %v290, %v314
    %s316 = scalar_lea.vmem [#allocation4], 28
    %v317 = vld [vmem:[%s316] sm:$0xf]
    %v319 = vsel %vm144, %v317, 0
    %321 = vmatpush.bf16.msra.mxu0 0
    %322 = vmatpush.bf16.msra.mxu0 0
    %323 = vmatpush.bf16.msra.mxu0 0
    %324 = vmatpush.bf16.msra.mxu0 0
    %325 = vmatpush.bf16.msra.mxu0 0
    %326 = vmatpush.bf16.msra.mxu0 0
    %327 = vmatpush.bf16.msra.mxu0 %v142
    %328 = vmatpush.bf16.msra.mxu0 %v141
    %329 = vmatmul.bf16.gmra.mxu0 %v319
    %v330 = vpop.f32.mrf.mxu0
    %v331 = vadd.f32 0.0, %v330
    %v332 = vpop.f32.mrf.mxu0
    %333 = vdwg.mxu0
    %s334 = scalar_lea.vmem [#allocation6], 7
    %v335 = vld [vmem:[%s334] sm:$0x1]
    %v337 = vperm.slane %v335, 0
    %v339 = vmul.f32 %v331, %v337
    %v340 = vadd.f32 %v315, %v339
    %s341 = scalar_lea.vmem [#allocation4], 32
    %v342 = vld [vmem:[%s341] sm:$0xf]
    %v344 = vsel %vm144, %v342, 0
    %346 = vmatpush.bf16.msra.mxu0 0
    %347 = vmatpush.bf16.msra.mxu0 0
    %348 = vmatpush.bf16.msra.mxu0 0
    %349 = vmatpush.bf16.msra.mxu0 0
    %350 = vmatpush.bf16.msra.mxu0 0
    %351 = vmatpush.bf16.msra.mxu0 0
    %352 = vmatpush.bf16.msra.mxu0 %v142
    %353 = vmatpush.bf16.msra.mxu0 %v141
    %354 = vmatmul.bf16.gmra.mxu0 %v344
    %v355 = vpop.f32.mrf.mxu0
    %v356 = vadd.f32 0.0, %v355
    %v357 = vpop.f32.mrf.mxu0
    %358 = vdwg.mxu0
    %s359 = scalar_lea.vmem [#allocation6], 8
    %v360 = vld [vmem:[%s359] sm:$0x1]
    %v362 = vperm.slane %v360, 0
    %v364 = vmul.f32 %v356, %v362
    %v365 = vadd.f32 %v340, %v364
    %v366 = vld [vmem:[%s5] sm:$0x1]
    %v368 = vperm.slane %v366, 0
    %v370 = vadd.f32 %v365, %v368
    %v371 = vmax.f32 %v370, 0.0
    %v372 = vpack.c.bf16 %v371, %v371
    %v373 = vld [vmem:[#allocation7] sm:$0xf]
    %v374 = vld [vmem:[#allocation7 + $0x4] sm:$0xf]
    %v375 = vld [vmem:[#allocation7 + $0x8] sm:$0xf]
    %v376 = vld [vmem:[#allocation7 + $0xc] sm:$0xf]
    %v377 = vld [vmem:[#allocation7 + $0x10] sm:$0xf]
    %v378 = vld [vmem:[#allocation7 + $0x14] sm:$0xf]
    %v379 = vld [vmem:[#allocation7 + $0x18] sm:$0xf]
    %v380 = vld [vmem:[#allocation7 + $0x1c] sm:$0xf]
    %v381 = vld [vmem:[#allocation7 + $0x20] sm:$0xf]
    %v382 = vld [vmem:[#allocation7 + $0x24] sm:$0xf]
    %v383 = vld [vmem:[#allocation7 + $0x28] sm:$0xf]
    %v384 = vld [vmem:[#allocation7 + $0x2c] sm:$0xf]
    %v385 = vld [vmem:[%s7] sm:$0x1]
    %v387 = vperm.slane %v385, 0
    %v401 = vunpack.c.l.b16 %v373
    %v402 = vunpack.c.l.b16 %v374
    %v403 = vunpack.c.l.b16 %v375
    %v404 = vunpack.c.l.b16 %v376
    %v405 = vunpack.c.l.b16 %v377
    %v406 = vunpack.c.l.b16 %v378
    %v407 = vunpack.c.l.b16 %v379
    %v408 = vunpack.c.l.b16 %v380
    %v409 = vunpack.c.l.b16 %v381
    %v410 = vunpack.c.l.b16 %v382
    %v411 = vunpack.c.l.b16 %v383
    %v412 = vunpack.c.l.b16 %v384
    %v413 = vpack.c.b16 %v402, %v401
    %v414 = vpack.c.b16 %v404, %v403
    %v415 = vpack.c.b16 %v406, %v405
    %v416 = vpack.c.b16 %v408, %v407
    %v417 = vpack.c.b16 %v410, %v409
    %v418 = vpack.c.b16 %v412, %v411
    %vm425 = vcmask 785408
    %v427 = vsel %vm425, %v372, 0
    %429 = vmatpush.bf16.msra.mxu0 0
    %430 = vmatpush.bf16.msra.mxu0 0
    %431 = vmatpush.bf16.msra.mxu0 %v418
    %432 = vmatpush.bf16.msra.mxu0 %v417
    %433 = vmatpush.bf16.msra.mxu0 %v416
    %434 = vmatpush.bf16.msra.mxu0 %v415
    %435 = vmatpush.bf16.msra.mxu0 %v414
    %436 = vmatpush.bf16.msra.mxu0 %v413
    %437 = vmatmul.bf16.gmra.mxu0 %v427
    %v438 = vpop.f32.mrf.mxu0
    %v439 = vadd.f32 %v387, %v438
    %v440 = vpop.f32.mrf.mxu0
    %441 = vdwg.mxu0
    %442 = vst.msk [vmem:[%s8] sm:$0xff] %vm111, %v439
    // Predicated region
    $region50: #{_lambda_.23} parent=1 // pred_check
      _
    $region51: #{_lambda_.23} parent=1 // pred_check_branch
      %444 = sbr.rel (0) target = $region53
    $region52: #{_lambda_.23} parent=1 // pred_region
      _
    $region53: #{_lambda_.23} parent=1 // pred_fallthru
      _
    // Predicated region
    $region54: #{_lambda_.23} parent=1 // pred_check
      _
    $region55: #{_lambda_.23} parent=1 // pred_check_branch
      %446 = sbr.rel (0) target = $region57
    $region56: #{_lambda_.23} parent=1 // pred_region
      _
    $region57: #{_lambda_.23} parent=1 // pred_fallthru
      _
    %447 = vsyncpa [#allocation3], 1
    %448 = vsyncpa [#allocation5], 1
    %449 = vsyncpa [#allocation8], 1

// kernel: _lambda_.25
$region0: #{_lambda_.25}
  #allocation0 [shape = 'u32[]', space=smem, size = 0x4, offset = 0x4, fixed_abs, tag = 'smem constant byte address 0x4 - core index']
  #allocation1 [shape = 'u32[72,128]{1,0:T(1,128)}', space=vmem, size = 0x9000, scoped, tag = 'internal scratch']
  %s0 = inlined_call_operand.vmem [shape: f32[8,16], index: 0, kind: input, shape index: {}]
  %s1 = inlined_call_operand.hbm [shape: bf16[16,96], index: 1, kind: input, shape index: {}]
  %s2 = inlined_call_operand.vmem [shape: f32[1,96], index: 2, kind: input, shape index: {}, may-alias: {2,5}]
  %s3 = inlined_call_operand.hbm [shape: bf16[9,8,8], index: 3, kind: input, shape index: {}]
  %s4 = inlined_call_operand.hbm [shape: f32[9,1,96], index: 4, kind: input, shape index: {}]
  %s5 = inlined_call_operand.vmem [shape: f32[1,96], index: 5, kind: input, shape index: {}, may-alias: {2,5}]
  %s6 = inlined_call_operand.vmem [shape: bf16[96,16], index: 6, kind: input, shape index: {}]
  %s7 = inlined_call_operand.vmem [shape: f32[1,16], index: 7, kind: input, shape index: {}]
  %s8 = inlined_call_operand.vmem [shape: f32[8,16], index: 8, kind: output, shape index: {}]
  %s9 = sld [smem:[#allocation0]]
  $region54: #{_lambda_.25} parent=0
    _
  %s11 = ssub.s32 1, %s9
  %s12 = scalar_select 0, %s11, %s9
  $region1: #{_lambda_.25} parent=0
    #allocation2 [shape = 'u8[4096]{0}', space=vmem, size = 0x1000, scoped, tag = 'input window, operand 1, single buffered']
    #allocation3 [shape = 's32[1]{0}', space=sflag, size = 0x4, scoped, tag = 'scoped memory for _lambda_.25']
    #allocation4 [shape = 'u8[18432]{0}', space=vmem, size = 0x4800, scoped, tag = 'input window, operand 3, single buffered']
    #allocation5 [shape = 's32[1]{0}', space=sflag, size = 0x4, scoped, tag = 'scoped memory for _lambda_.25']
    #allocation6 [shape = 'u8[4608]{0}', space=vmem, size = 0x1400, scoped, tag = 'input window, operand 4, single buffered']
    %13 = vsyncpa [#allocation3], 0
    %14 = vsyncpa [#allocation5], 0
    // Predicated region
    $region2: #{_lambda_.25} parent=1 // pred_check
      _
    $region3: #{_lambda_.25} parent=1 // pred_check_branch
      %16 = sbr.rel (0) target = $region5
    $region4: #{_lambda_.25} parent=1 // pred_region
      _
    $region5: #{_lambda_.25} parent=1 // pred_fallthru
      _
    // Predicated region
    $region6: #{_lambda_.25} parent=1 // pred_check
      _
    $region7: #{_lambda_.25} parent=1 // pred_check_branch
      %18 = sbr.rel (0) target = $region9
    $region8: #{_lambda_.25} parent=1 // pred_region
      %20 = vsyncadd [#allocation3], 0
      %s21 = sshll.u32 %s1, 4
      %s22 = int_to_ptr.hbm [resolvable:$true] %s21
      %s23 = sshll.u32 [#allocation2], 4
      %s24 = int_to_ptr.vmem [resolvable:$true] %s23
      %29 = dma.hbm_to_vmem [thread:$0]  %s22, 128, %s24, [#allocation3], 64, 64, 4
    $region9: #{_lambda_.25} parent=1 // pred_fallthru
      _
    // Predicated region
    $region10: #{_lambda_.25} parent=1 // pred_check
      _
    $region11: #{_lambda_.25} parent=1 // pred_check_branch
      %31 = sbr.rel (0) target = $region13
    $region12: #{_lambda_.25} parent=1 // pred_region
      _
    $region13: #{_lambda_.25} parent=1 // pred_fallthru
      _
    // Predicated region
    $region14: #{_lambda_.25} parent=1 // pred_check
      _
    $region15: #{_lambda_.25} parent=1 // pred_check_branch
      %33 = sbr.rel (0) target = $region17
    $region16: #{_lambda_.25} parent=1 // pred_region
      %35 = vsyncadd [#allocation5], 0
      %s36 = sshll.u32 %s3, 4
      %s37 = int_to_ptr.hbm [resolvable:$true] %s36
      %s38 = sshll.u32 [#allocation4], 4
      %s39 = int_to_ptr.vmem [resolvable:$true] %s38
      %44 = dma.hbm_to_vmem [thread:$0]  %s37, 576, %s39, [#allocation5], 64, 64, 4
    $region17: #{_lambda_.25} parent=1 // pred_fallthru
      _
    // Predicated region
    $region18: #{_lambda_.25} parent=1 // pred_check
      _
    $region19: #{_lambda_.25} parent=1 // pred_check_branch
      %46 = sbr.rel (0) target = $region21
    $region20: #{_lambda_.25} parent=1 // pred_region
      %48 = vsyncadd [#allocation5], 0
      %s49 = sshll.u32 %s4, 4
      %s50 = int_to_ptr.hbm [resolvable:$true] %s49
      %s51 = sshll.u32 [#allocation6], 4
      %s52 = int_to_ptr.vmem [resolvable:$true] %s51
      %57 = dma.hbm_to_vmem [thread:$0]  %s50, 144, %s52, [#allocation5], 16, 16, 1
    $region21: #{_lambda_.25} parent=1 // pred_fallthru
      _
    // Predicated region
    $region22: #{_lambda_.25} parent=1 // pred_check
      _
    $region23: #{_lambda_.25} parent=1 // pred_check_branch
      %59 = sbr.rel (0) target = $region25
    $region24: #{_lambda_.25} parent=1 // pred_region
      _
    $region25: #{_lambda_.25} parent=1 // pred_fallthru
      _
    // Predicated region
    $region26: #{_lambda_.25} parent=1 // pred_check
      _
    $region27: #{_lambda_.25} parent=1 // pred_check_branch
      %61 = sbr.rel (0) target = $region29
    $region28: #{_lambda_.25} parent=1 // pred_region
      _
    $region29: #{_lambda_.25} parent=1 // pred_fallthru
      _
    // Predicated region
    $region30: #{_lambda_.25} parent=1 // pred_check
      _
    $region31: #{_lambda_.25} parent=1 // pred_check_branch
      %63 = sbr.rel (0) target = $region33
    $region32: #{_lambda_.25} parent=1 // pred_region
      _
    $region33: #{_lambda_.25} parent=1 // pred_fallthru
      _
    // Predicated region
    $region34: #{_lambda_.25} parent=1 // pred_check
      _
    $region35: #{_lambda_.25} parent=1 // pred_check_branch
      %65 = sbr.rel (0) target = $region37
    $region36: #{_lambda_.25} parent=1 // pred_region
      %67 = dma.done [#allocation3], 128
    $region37: #{_lambda_.25} parent=1 // pred_fallthru
      _
    // Predicated region
    $region38: #{_lambda_.25} parent=1 // pred_check
      _
    $region39: #{_lambda_.25} parent=1 // pred_check_branch
      %69 = sbr.rel (0) target = $region41
    $region40: #{_lambda_.25} parent=1 // pred_region
      %71 = dma.done [#allocation5], 576
    $region41: #{_lambda_.25} parent=1 // pred_fallthru
      _
    // Predicated region
    $region42: #{_lambda_.25} parent=1 // pred_check
      _
    $region43: #{_lambda_.25} parent=1 // pred_check_branch
      %73 = sbr.rel (0) target = $region45
    $region44: #{_lambda_.25} parent=1 // pred_region
      %75 = dma.done [#allocation5], 144
    $region45: #{_lambda_.25} parent=1 // pred_fallthru
      _
    %v77 = vld [vmem:[%s0] sm:$0xff]
    %v78 = vpack.c.bf16 %v77, %v77
    %v79 = vld [vmem:[#allocation2] sm:$0xf]
    %v80 = vld [vmem:[#allocation2 + $0x4] sm:$0xf]
    %v81 = vld [vmem:[%s2] sm:$0x1]
    %v83 = vperm.slane %v81, 0
    %v87 = vunpack.c.l.b16 %v79
    %v88 = vunpack.c.l.b16 %v80
    %v89 = vpack.c.b16 %v88, %v87
    %vm91 = vcmask 130048
    %v93 = vsel %vm91, %v78, 0
    %95 = vmatpush.bf16.msra.mxu0 0
    %96 = vmatpush.bf16.msra.mxu0 0
    %97 = vmatpush.bf16.msra.mxu0 0
    %98 = vmatpush.bf16.msra.mxu0 0
    %99 = vmatpush.bf16.msra.mxu0 0
    %100 = vmatpush.bf16.msra.mxu0 0
    %101 = vmatpush.bf16.msra.mxu0 0
    %102 = vmatpush.bf16.msra.mxu0 %v89
    %103 = vmatmul.bf16.gmra.mxu0 %v93
    %v104 = vpop.f32.mrf.mxu0
    %v105 = vadd.f32 %v83, %v104
    %v106 = vpop.f32.mrf.mxu0
    %107 = vdwg.mxu0
    %v108 = vmax.f32 %v105, 0.0
    %v109 = vpack.c.bf16 %v108, %v108
    %v110 = vld [vmem:[#allocation4] sm:$0xf]
    %vm111 = vcmask 64512
    %v113 = vsel %vm111, %v110, 0
    %vm115 = vcmask 1043456
    %v117 = vsel %vm115, %v109, 0
    %119 = vmatpush.bf16.msra.mxu0 0
    %120 = vmatpush.bf16.msra.mxu0 0
    %121 = vmatpush.bf16.msra.mxu0 0
    %122 = vmatpush.bf16.msra.mxu0 0
    %123 = vmatpush.bf16.msra.mxu0 0
    %124 = vmatpush.bf16.msra.mxu0 0
    %125 = vmatpush.bf16.msra.mxu0 0
    %126 = vmatpush.bf16.msra.mxu0 %v117
    %127 = vmatmul.bf16.gmra.mxu0 %v113
    %v128 = vpop.f32.mrf.mxu0
    %v129 = vadd.f32 0.0, %v128
    %v130 = vpop.f32.mrf.mxu0
    %131 = vdwg.mxu0
    %v132 = vld [vmem:[#allocation6] sm:$0x1]
    %v134 = vperm.slane %v132, 0
    %v136 = vmul.f32 %v129, %v134
    %s137 = scalar_lea.vmem [#allocation4], 4
    %v138 = vld [vmem:[%s137] sm:$0xf]
    %v140 = vsel %vm111, %v138, 0
    %142 = vmatpush.bf16.msra.mxu0 0
    %143 = vmatpush.bf16.msra.mxu0 0
    %144 = vmatpush.bf16.msra.mxu0 0
    %145 = vmatpush.bf16.msra.mxu0 0
    %146 = vmatpush.bf16.msra.mxu0 0
    %147 = vmatpush.bf16.msra.mxu0 0
    %148 = vmatpush.bf16.msra.mxu0 0
    %149 = vmatpush.bf16.msra.mxu0 %v117
    %150 = vmatmul.bf16.gmra.mxu0 %v140
    %v151 = vpop.f32.mrf.mxu0
    %v152 = vadd.f32 0.0, %v151
    %v153 = vpop.f32.mrf.mxu0
    %154 = vdwg.mxu0
    %s155 = scalar_lea.vmem [#allocation6], 1
    %v156 = vld [vmem:[%s155] sm:$0x1]
    %v158 = vperm.slane %v156, 0
    %v160 = vmul.f32 %v152, %v158
    %v161 = vadd.f32 %v136, %v160
    %s162 = scalar_lea.vmem [#allocation4], 8
    %v163 = vld [vmem:[%s162] sm:$0xf]
    %v165 = vsel %vm111, %v163, 0
    %167 = vmatpush.bf16.msra.mxu0 0
    %168 = vmatpush.bf16.msra.mxu0 0
    %169 = vmatpush.bf16.msra.mxu0 0
    %170 = vmatpush.bf16.msra.mxu0 0
    %171 = vmatpush.bf16.msra.mxu0 0
    %172 = vmatpush.bf16.msra.mxu0 0
    %173 = vmatpush.bf16.msra.mxu0 0
    %174 = vmatpush.bf16.msra.mxu0 %v117
    %175 = vmatmul.bf16.gmra.mxu0 %v165
    %v176 = vpop.f32.mrf.mxu0
    %v177 = vadd.f32 0.0, %v176
    %v178 = vpop.f32.mrf.mxu0
    %179 = vdwg.mxu0
    %s180 = scalar_lea.vmem [#allocation6], 2
    %v181 = vld [vmem:[%s180] sm:$0x1]
    %v183 = vperm.slane %v181, 0
    %v185 = vmul.f32 %v177, %v183
    %v186 = vadd.f32 %v161, %v185
    %s187 = scalar_lea.vmem [#allocation4], 12
    %v188 = vld [vmem:[%s187] sm:$0xf]
    %v190 = vsel %vm111, %v188, 0
    %192 = vmatpush.bf16.msra.mxu0 0
    %193 = vmatpush.bf16.msra.mxu0 0
    %194 = vmatpush.bf16.msra.mxu0 0
    %195 = vmatpush.bf16.msra.mxu0 0
    %196 = vmatpush.bf16.msra.mxu0 0
    %197 = vmatpush.bf16.msra.mxu0 0
    %198 = vmatpush.bf16.msra.mxu0 0
    %199 = vmatpush.bf16.msra.mxu0 %v117
    %200 = vmatmul.bf16.gmra.mxu0 %v190
    %v201 = vpop.f32.mrf.mxu0
    %v202 = vadd.f32 0.0, %v201
    %v203 = vpop.f32.mrf.mxu0
    %204 = vdwg.mxu0
    %s205 = scalar_lea.vmem [#allocation6], 3
    %v206 = vld [vmem:[%s205] sm:$0x1]
    %v208 = vperm.slane %v206, 0
    %v210 = vmul.f32 %v202, %v208
    %v211 = vadd.f32 %v186, %v210
    %s212 = scalar_lea.vmem [#allocation4], 16
    %v213 = vld [vmem:[%s212] sm:$0xf]
    %v215 = vsel %vm111, %v213, 0
    %217 = vmatpush.bf16.msra.mxu0 0
    %218 = vmatpush.bf16.msra.mxu0 0
    %219 = vmatpush.bf16.msra.mxu0 0
    %220 = vmatpush.bf16.msra.mxu0 0
    %221 = vmatpush.bf16.msra.mxu0 0
    %222 = vmatpush.bf16.msra.mxu0 0
    %223 = vmatpush.bf16.msra.mxu0 0
    %224 = vmatpush.bf16.msra.mxu0 %v117
    %225 = vmatmul.bf16.gmra.mxu0 %v215
    %v226 = vpop.f32.mrf.mxu0
    %v227 = vadd.f32 0.0, %v226
    %v228 = vpop.f32.mrf.mxu0
    %229 = vdwg.mxu0
    %s230 = scalar_lea.vmem [#allocation6], 4
    %v231 = vld [vmem:[%s230] sm:$0x1]
    %v233 = vperm.slane %v231, 0
    %v235 = vmul.f32 %v227, %v233
    %v236 = vadd.f32 %v211, %v235
    %s237 = scalar_lea.vmem [#allocation4], 20
    %v238 = vld [vmem:[%s237] sm:$0xf]
    %v240 = vsel %vm111, %v238, 0
    %242 = vmatpush.bf16.msra.mxu0 0
    %243 = vmatpush.bf16.msra.mxu0 0
    %244 = vmatpush.bf16.msra.mxu0 0
    %245 = vmatpush.bf16.msra.mxu0 0
    %246 = vmatpush.bf16.msra.mxu0 0
    %247 = vmatpush.bf16.msra.mxu0 0
    %248 = vmatpush.bf16.msra.mxu0 0
    %249 = vmatpush.bf16.msra.mxu0 %v117
    %250 = vmatmul.bf16.gmra.mxu0 %v240
    %v251 = vpop.f32.mrf.mxu0
    %v252 = vadd.f32 0.0, %v251
    %v253 = vpop.f32.mrf.mxu0
    %254 = vdwg.mxu0
    %s255 = scalar_lea.vmem [#allocation6], 5
    %v256 = vld [vmem:[%s255] sm:$0x1]
    %v258 = vperm.slane %v256, 0
    %v260 = vmul.f32 %v252, %v258
    %v261 = vadd.f32 %v236, %v260
    %s262 = scalar_lea.vmem [#allocation4], 24
    %v263 = vld [vmem:[%s262] sm:$0xf]
    %v265 = vsel %vm111, %v263, 0
    %267 = vmatpush.bf16.msra.mxu0 0
    %268 = vmatpush.bf16.msra.mxu0 0
    %269 = vmatpush.bf16.msra.mxu0 0
    %270 = vmatpush.bf16.msra.mxu0 0
    %271 = vmatpush.bf16.msra.mxu0 0
    %272 = vmatpush.bf16.msra.mxu0 0
    %273 = vmatpush.bf16.msra.mxu0 0
    %274 = vmatpush.bf16.msra.mxu0 %v117
    %275 = vmatmul.bf16.gmra.mxu0 %v265
    %v276 = vpop.f32.mrf.mxu0
    %v277 = vadd.f32 0.0, %v276
    %v278 = vpop.f32.mrf.mxu0
    %279 = vdwg.mxu0
    %s280 = scalar_lea.vmem [#allocation6], 6
    %v281 = vld [vmem:[%s280] sm:$0x1]
    %v283 = vperm.slane %v281, 0
    %v285 = vmul.f32 %v277, %v283
    %v286 = vadd.f32 %v261, %v285
    %s287 = scalar_lea.vmem [#allocation4], 28
    %v288 = vld [vmem:[%s287] sm:$0xf]
    %v290 = vsel %vm111, %v288, 0
    %292 = vmatpush.bf16.msra.mxu0 0
    %293 = vmatpush.bf16.msra.mxu0 0
    %294 = vmatpush.bf16.msra.mxu0 0
    %295 = vmatpush.bf16.msra.mxu0 0
    %296 = vmatpush.bf16.msra.mxu0 0
    %297 = vmatpush.bf16.msra.mxu0 0
    %298 = vmatpush.bf16.msra.mxu0 0
    %299 = vmatpush.bf16.msra.mxu0 %v117
    %300 = vmatmul.bf16.gmra.mxu0 %v290
    %v301 = vpop.f32.mrf.mxu0
    %v302 = vadd.f32 0.0, %v301
    %v303 = vpop.f32.mrf.mxu0
    %304 = vdwg.mxu0
    %s305 = scalar_lea.vmem [#allocation6], 7
    %v306 = vld [vmem:[%s305] sm:$0x1]
    %v308 = vperm.slane %v306, 0
    %v310 = vmul.f32 %v302, %v308
    %v311 = vadd.f32 %v286, %v310
    %s312 = scalar_lea.vmem [#allocation4], 32
    %v313 = vld [vmem:[%s312] sm:$0xf]
    %v315 = vsel %vm111, %v313, 0
    %317 = vmatpush.bf16.msra.mxu0 0
    %318 = vmatpush.bf16.msra.mxu0 0
    %319 = vmatpush.bf16.msra.mxu0 0
    %320 = vmatpush.bf16.msra.mxu0 0
    %321 = vmatpush.bf16.msra.mxu0 0
    %322 = vmatpush.bf16.msra.mxu0 0
    %323 = vmatpush.bf16.msra.mxu0 0
    %324 = vmatpush.bf16.msra.mxu0 %v117
    %325 = vmatmul.bf16.gmra.mxu0 %v315
    %v326 = vpop.f32.mrf.mxu0
    %v327 = vadd.f32 0.0, %v326
    %v328 = vpop.f32.mrf.mxu0
    %329 = vdwg.mxu0
    %s330 = scalar_lea.vmem [#allocation6], 8
    %v331 = vld [vmem:[%s330] sm:$0x1]
    %v333 = vperm.slane %v331, 0
    %v335 = vmul.f32 %v327, %v333
    %v336 = vadd.f32 %v311, %v335
    %v337 = vld [vmem:[%s5] sm:$0x1]
    %v339 = vperm.slane %v337, 0
    %v341 = vadd.f32 %v336, %v339
    %v342 = vmax.f32 %v341, 0.0
    %v343 = vpack.c.bf16 %v342, %v342
    %v344 = vld [vmem:[%s6] sm:$0xf]
    %v345 = vld [vmem:[%s6 + $0x4] sm:$0xf]
    %v346 = vld [vmem:[%s6 + $0x8] sm:$0xf]
    %v347 = vld [vmem:[%s6 + $0xc] sm:$0xf]
    %v348 = vld [vmem:[%s6 + $0x10] sm:$0xf]
    %v349 = vld [vmem:[%s6 + $0x14] sm:$0xf]
    %v350 = vld [vmem:[%s6 + $0x18] sm:$0xf]
    %v351 = vld [vmem:[%s6 + $0x1c] sm:$0xf]
    %v352 = vld [vmem:[%s6 + $0x20] sm:$0xf]
    %v353 = vld [vmem:[%s6 + $0x24] sm:$0xf]
    %v354 = vld [vmem:[%s6 + $0x28] sm:$0xf]
    %v355 = vld [vmem:[%s6 + $0x2c] sm:$0xf]
    %v356 = vld [vmem:[%s7] sm:$0x1]
    %v358 = vperm.slane %v356, 0
    %v372 = vunpack.c.l.b16 %v344
    %v373 = vunpack.c.l.b16 %v345
    %v374 = vunpack.c.l.b16 %v346
    %v375 = vunpack.c.l.b16 %v347
    %v376 = vunpack.c.l.b16 %v348
    %v377 = vunpack.c.l.b16 %v349
    %v378 = vunpack.c.l.b16 %v350
    %v379 = vunpack.c.l.b16 %v351
    %v380 = vunpack.c.l.b16 %v352
    %v381 = vunpack.c.l.b16 %v353
    %v382 = vunpack.c.l.b16 %v354
    %v383 = vunpack.c.l.b16 %v355
    %v384 = vpack.c.b16 %v373, %v372
    %v385 = vpack.c.b16 %v375, %v374
    %v386 = vpack.c.b16 %v377, %v376
    %v387 = vpack.c.b16 %v379, %v378
    %v388 = vpack.c.b16 %v381, %v380
    %v389 = vpack.c.b16 %v383, %v382
    %vm396 = vcmask 785408
    %v398 = vsel %vm396, %v343, 0
    %400 = vmatpush.bf16.msra.mxu0 0
    %401 = vmatpush.bf16.msra.mxu0 0
    %402 = vmatpush.bf16.msra.mxu0 %v389
    %403 = vmatpush.bf16.msra.mxu0 %v388
    %404 = vmatpush.bf16.msra.mxu0 %v387
    %405 = vmatpush.bf16.msra.mxu0 %v386
    %406 = vmatpush.bf16.msra.mxu0 %v385
    %407 = vmatpush.bf16.msra.mxu0 %v384
    %408 = vmatmul.bf16.gmra.mxu0 %v398
    %v409 = vpop.f32.mrf.mxu0
    %v410 = vadd.f32 %v358, %v409
    %v411 = vpop.f32.mrf.mxu0
    %412 = vdwg.mxu0
    %v413 = vadd.f32 %v410, %v77
    %414 = vst.msk [vmem:[%s8] sm:$0xff] %vm91, %v413
    // Predicated region
    $region46: #{_lambda_.25} parent=1 // pred_check
      _
    $region47: #{_lambda_.25} parent=1 // pred_check_branch
      %416 = sbr.rel (0) target = $region49
    $region48: #{_lambda_.25} parent=1 // pred_region
      _
    $region49: #{_lambda_.25} parent=1 // pred_fallthru
      _
    // Predicated region
    $region50: #{_lambda_.25} parent=1 // pred_check
      _
    $region51: #{_lambda_.25} parent=1 // pred_check_branch
      %418 = sbr.rel (0) target = $region53
    $region52: #{_lambda_.25} parent=1 // pred_region
      _
    $region53: #{_lambda_.25} parent=1 // pred_fallthru
      _
    %419 = vsyncpa [#allocation3], 1
    %420 = vsyncpa [#allocation5], 1

// kernel: _lambda_.27
$region0: #{_lambda_.27}
  #allocation0 [shape = 'u32[]', space=smem, size = 0x4, offset = 0x4, fixed_abs, tag = 'smem constant byte address 0x4 - core index']
  #allocation1 [shape = 'u32[72,128]{1,0:T(1,128)}', space=vmem, size = 0x9000, scoped, tag = 'internal scratch']
  %s0 = inlined_call_operand.vmem [shape: f32[2,24], index: 0, kind: input, shape index: {}]
  %s1 = inlined_call_operand.hbm [shape: bf16[24,144], index: 1, kind: input, shape index: {}]
  %s2 = inlined_call_operand.vmem [shape: f32[1,144], index: 2, kind: input, shape index: {}, may-alias: {2,4}]
  %s3 = inlined_call_operand.hbm [shape: f32[9,1,144], index: 3, kind: input, shape index: {}]
  %s4 = inlined_call_operand.vmem [shape: f32[1,144], index: 4, kind: input, shape index: {}, may-alias: {2,4}]
  %s5 = inlined_call_operand.hbm [shape: bf16[144,24], index: 5, kind: input, shape index: {}]
  %s6 = inlined_call_operand.vmem [shape: f32[1,24], index: 6, kind: input, shape index: {}]
  %s7 = inlined_call_operand.vmem [shape: f32[2,24], index: 7, kind: output, shape index: {}]
  %s8 = sld [smem:[#allocation0]]
  $region50: #{_lambda_.27} parent=0
    _
  %s10 = ssub.s32 1, %s8
  %s11 = scalar_select 0, %s10, %s8
  $region1: #{_lambda_.27} parent=0
    #allocation2 [shape = 'u8[12288]{0}', space=vmem, size = 0x3000, scoped, tag = 'input window, operand 1, single buffered']
    #allocation3 [shape = 's32[1]{0}', space=sflag, size = 0x4, scoped, tag = 'scoped memory for _lambda_.27']
    #allocation4 [shape = 'u8[9216]{0}', space=vmem, size = 0x2400, scoped, tag = 'input window, operand 3, single buffered']
    #allocation5 [shape = 's32[1]{0}', space=sflag, size = 0x4, scoped, tag = 'scoped memory for _lambda_.27']
    #allocation6 [shape = 'u8[36864]{0}', space=vmem, size = 0x9000, scoped, tag = 'input window, operand 5, single buffered']
    %12 = vsyncpa [#allocation3], 0
    %13 = vsyncpa [#allocation5], 0
    // Predicated region
    $region2: #{_lambda_.27} parent=1 // pred_check
      _
    $region3: #{_lambda_.27} parent=1 // pred_check_branch
      %15 = sbr.rel (0) target = $region5
    $region4: #{_lambda_.27} parent=1 // pred_region
      _
    $region5: #{_lambda_.27} parent=1 // pred_fallthru
      _
    // Predicated region
    $region6: #{_lambda_.27} parent=1 // pred_check
      _
    $region7: #{_lambda_.27} parent=1 // pred_check_branch
      %17 = sbr.rel (0) target = $region9
    $region8: #{_lambda_.27} parent=1 // pred_region
      %19 = vsyncadd [#allocation3], 0
      %s20 = sshll.u32 %s1, 4
      %s21 = int_to_ptr.hbm [resolvable:$true] %s20
      %s22 = sshll.u32 [#allocation2], 4
      %s23 = int_to_ptr.vmem [resolvable:$true] %s22
      %28 = dma.hbm_to_vmem [thread:$0]  %s21, 384, %s23, [#allocation3], 128, 128, 8
    $region9: #{_lambda_.27} parent=1 // pred_fallthru
      _
    // Predicated region
    $region10: #{_lambda_.27} parent=1 // pred_check
      _
    $region11: #{_lambda_.27} parent=1 // pred_check_branch
      %30 = sbr.rel (0) target = $region13
    $region12: #{_lambda_.27} parent=1 // pred_region
      _
    $region13: #{_lambda_.27} parent=1 // pred_fallthru
      _
    // Predicated region
    $region14: #{_lambda_.27} parent=1 // pred_check
      _
    $region15: #{_lambda_.27} parent=1 // pred_check_branch
      %32 = sbr.rel (0) target = $region17
    $region16: #{_lambda_.27} parent=1 // pred_region
      %34 = vsyncadd [#allocation5], 0
      %s35 = sshll.u32 %s3, 4
      %s36 = int_to_ptr.hbm [resolvable:$true] %s35
      %s37 = sshll.u32 [#allocation4], 4
      %s38 = int_to_ptr.vmem [resolvable:$true] %s37
      %43 = dma.hbm_to_vmem [thread:$0]  %s36, 288, %s38, [#allocation5], 32, 32, 2
    $region17: #{_lambda_.27} parent=1 // pred_fallthru
      _
    // Predicated region
    $region18: #{_lambda_.27} parent=1 // pred_check
      _
    $region19: #{_lambda_.27} parent=1 // pred_check_branch
      %45 = sbr.rel (0) target = $region21
    $region20: #{_lambda_.27} parent=1 // pred_region
      _
    $region21: #{_lambda_.27} parent=1 // pred_fallthru
      _
    // Predicated region
    $region22: #{_lambda_.27} parent=1 // pred_check
      _
    $region23: #{_lambda_.27} parent=1 // pred_check_branch
      %47 = sbr.rel (0) target = $region25
    $region24: #{_lambda_.27} parent=1 // pred_region
      %49 = vsyncadd [#allocation5], 0
      %s50 = sshll.u32 %s5, 4
      %s51 = int_to_ptr.hbm [resolvable:$true] %s50
      %s52 = sshll.u32 [#allocation6], 4
      %s53 = int_to_ptr.vmem [resolvable:$true] %s52
      %58 = dma.hbm_to_vmem [thread:$0]  %s51, 1152, %s53, [#allocation5], 64, 64, 4
    $region25: #{_lambda_.27} parent=1 // pred_fallthru
      _
    // Predicated region
    $region26: #{_lambda_.27} parent=1 // pred_check
      _
    $region27: #{_lambda_.27} parent=1 // pred_check_branch
      %60 = sbr.rel (0) target = $region29
    $region28: #{_lambda_.27} parent=1 // pred_region
      _
    $region29: #{_lambda_.27} parent=1 // pred_fallthru
      _
    // Predicated region
    $region30: #{_lambda_.27} parent=1 // pred_check
      _
    $region31: #{_lambda_.27} parent=1 // pred_check_branch
      %62 = sbr.rel (0) target = $region33
    $region32: #{_lambda_.27} parent=1 // pred_region
      %64 = dma.done [#allocation3], 384
    $region33: #{_lambda_.27} parent=1 // pred_fallthru
      _
    // Predicated region
    $region34: #{_lambda_.27} parent=1 // pred_check
      _
    $region35: #{_lambda_.27} parent=1 // pred_check_branch
      %66 = sbr.rel (0) target = $region37
    $region36: #{_lambda_.27} parent=1 // pred_region
      %68 = dma.done [#allocation5], 288
    $region37: #{_lambda_.27} parent=1 // pred_fallthru
      _
    // Predicated region
    $region38: #{_lambda_.27} parent=1 // pred_check
      _
    $region39: #{_lambda_.27} parent=1 // pred_check_branch
      %70 = sbr.rel (0) target = $region41
    $region40: #{_lambda_.27} parent=1 // pred_region
      %72 = dma.done [#allocation5], 1152
    $region41: #{_lambda_.27} parent=1 // pred_fallthru
      _
    %v74 = vld [vmem:[%s0] sm:$0x3]
    %v75 = vpack.c.bf16 %v74, %v74
    %v76 = vld [vmem:[#allocation2] sm:$0xff]
    %v77 = vld [vmem:[#allocation2 + $0x8] sm:$0xff]
    %v78 = vld [vmem:[#allocation2 + $0x10] sm:$0xff]
    %v79 = vld [vmem:[%s2] sm:$0x3]
    %v81 = vperm.slane %v79, 0
    %v82 = vperm.slane %v79, 1
    %v88 = vunpack.c.l.b16 %v76
    %v89 = vunpack.c.h.b16 %v76
    %v90 = vunpack.c.l.b16 %v77
    %v91 = vunpack.c.h.b16 %v77
    %v92 = vunpack.c.l.b16 %v78
    %v93 = vunpack.c.h.b16 %v78
    %v94 = vpack.c.b16 %v90, %v88
    %v95 = vpack.c.b16 %v91, %v89
    %v96 = vpack.c.b16 %v92, %v92
    %v97 = vpack.c.b16 %v93, %v93
    %vm100 = vcmask 195584
    %v102 = vsel %vm100, %v75, 0
    %vm104 = vcmask 1043456
    %v106 = vsel %vm104, %v96, 0
    %v109 = vsel %vm104, %v97, 0
    %111 = vmatpush.bf16.msra.mxu0 0
    %112 = vmatpush.bf16.msra.mxu0 0
    %113 = vmatpush.bf16.msra.mxu0 0
    %114 = vmatpush.bf16.msra.mxu0 0
    %115 = vmatpush.bf16.msra.mxu0 0
    %116 = vmatpush.bf16.msra.mxu0 0
    %117 = vmatpush.bf16.msra.mxu0 %v106
    %118 = vmatpush.bf16.msra.mxu0 %v94
    %119 = vmatmul.bf16.gmra.mxu0 %v102
    %v120 = vpop.f32.mrf.mxu0
    %v121 = vadd.f32 %v81, %v120
    %v122 = vpop.f32.mrf.mxu0
    %123 = vdwg.mxu0
    %124 = vmatpush.bf16.msra.mxu0 0
    %125 = vmatpush.bf16.msra.mxu0 0
    %126 = vmatpush.bf16.msra.mxu0 0
    %127 = vmatpush.bf16.msra.mxu0 0
    %128 = vmatpush.bf16.msra.mxu0 0
    %129 = vmatpush.bf16.msra.mxu0 0
    %130 = vmatpush.bf16.msra.mxu0 %v109
    %131 = vmatpush.bf16.msra.mxu0 %v95
    %132 = vmatmul.bf16.gmra.mxu0 %v102
    %v133 = vpop.f32.mrf.mxu0
    %v134 = vadd.f32 %v82, %v133
    %v135 = vpop.f32.mrf.mxu0
    %136 = vdwg.mxu0
    %v137 = vmax.f32 %v121, 0.0
    %v138 = vmax.f32 %v134, 0.0
    %s139 = scalar_lea.vmem [#allocation4], 8
    %v140 = vld [vmem:[%s139] sm:$0x3]
    %v142 = vperm.slane %v140, 0
    %v143 = vperm.slane %v140, 1
    %v146 = vmul.f32 %v137, %v142
    %v147 = vmul.f32 %v138, %v143
    %v148 = vld [vmem:[%s4] sm:$0x3]
    %v150 = vperm.slane %v148, 0
    %v151 = vperm.slane %v148, 1
    %v154 = vadd.f32 %v146, %v150
    %v155 = vadd.f32 %v147, %v151
    %v156 = vmax.f32 %v154, 0.0
    %v157 = vmax.f32 %v155, 0.0
    %v158 = vpack.c.bf16 %v156, %v156
    %v159 = vpack.c.bf16 %v157, %v157
    %v160 = vld [vmem:[#allocation6] sm:$0xf]
    %v161 = vld [vmem:[#allocation6 + $0x4] sm:$0xf]
    %v162 = vld [vmem:[#allocation6 + $0x8] sm:$0xf]
    %v163 = vld [vmem:[#allocation6 + $0xc] sm:$0xf]
    %v164 = vld [vmem:[#allocation6 + $0x10] sm:$0xf]
    %v165 = vld [vmem:[#allocation6 + $0x14] sm:$0xf]
    %v166 = vld [vmem:[#allocation6 + $0x18] sm:$0xf]
    %v167 = vld [vmem:[#allocation6 + $0x1c] sm:$0xf]
    %v168 = vld [vmem:[#allocation6 + $0x20] sm:$0xf]
    %v169 = vld [vmem:[#allocation6 + $0x24] sm:$0xf]
    %v170 = vld [vmem:[#allocation6 + $0x28] sm:$0xf]
    %v171 = vld [vmem:[#allocation6 + $0x2c] sm:$0xf]
    %v172 = vld [vmem:[#allocation6 + $0x30] sm:$0xf]
    %v173 = vld [vmem:[#allocation6 + $0x34] sm:$0xf]
    %v174 = vld [vmem:[#allocation6 + $0x38] sm:$0xf]
    %v175 = vld [vmem:[#allocation6 + $0x3c] sm:$0xf]
    %v176 = vld [vmem:[#allocation6 + $0x40] sm:$0xf]
    %v177 = vld [vmem:[#allocation6 + $0x44] sm:$0xf]
    %v178 = vld [vmem:[%s6] sm:$0x1]
    %v180 = vperm.slane %v178, 0
    %v200 = vunpack.c.l.b16 %v160
    %v201 = vunpack.c.l.b16 %v161
    %v202 = vunpack.c.l.b16 %v162
    %v203 = vunpack.c.l.b16 %v163
    %v204 = vunpack.c.l.b16 %v164
    %v205 = vunpack.c.l.b16 %v165
    %v206 = vunpack.c.l.b16 %v166
    %v207 = vunpack.c.l.b16 %v167
    %v208 = vunpack.c.l.b16 %v168
    %v209 = vunpack.c.l.b16 %v169
    %v210 = vunpack.c.l.b16 %v170
    %v211 = vunpack.c.l.b16 %v171
    %v212 = vunpack.c.l.b16 %v172
    %v213 = vunpack.c.l.b16 %v173
    %v214 = vunpack.c.l.b16 %v174
    %v215 = vunpack.c.l.b16 %v175
    %v216 = vunpack.c.l.b16 %v176
    %v217 = vunpack.c.l.b16 %v177
    %v218 = vpack.c.b16 %v201, %v200
    %v219 = vpack.c.b16 %v203, %v202
    %v220 = vpack.c.b16 %v205, %v204
    %v221 = vpack.c.b16 %v207, %v206
    %v222 = vpack.c.b16 %v209, %v208
    %v223 = vpack.c.b16 %v211, %v210
    %v224 = vpack.c.b16 %v213, %v212
    %v225 = vpack.c.b16 %v215, %v214
    %v226 = vpack.c.b16 %v217, %v216
    %vm236 = vcmask 130048
    %v238 = vsel %vm236, %v159, 0
    %240 = vmatpush.bf16.msra.mxu0 %v225
    %241 = vmatpush.bf16.msra.mxu0 %v224
    %242 = vmatpush.bf16.msra.mxu0 %v223
    %243 = vmatpush.bf16.msra.mxu0 %v222
    %244 = vmatpush.bf16.msra.mxu0 %v221
    %245 = vmatpush.bf16.msra.mxu0 %v220
    %246 = vmatpush.bf16.msra.mxu0 %v219
    %247 = vmatpush.bf16.msra.mxu0 %v218
    %248 = vmatmul.bf16.gmra.mxu0 %v158
    %v249 = vpop.f32.mrf.mxu0
    %v250 = vadd.f32 %v180, %v249
    %v251 = vpop.f32.mrf.mxu0
    %252 = vdwg.mxu0
    %253 = vmatpush.bf16.msra.mxu0 0
    %254 = vmatpush.bf16.msra.mxu0 0
    %255 = vmatpush.bf16.msra.mxu0 0
    %256 = vmatpush.bf16.msra.mxu0 0
    %257 = vmatpush.bf16.msra.mxu0 0
    %258 = vmatpush.bf16.msra.mxu0 0
    %259 = vmatpush.bf16.msra.mxu0 0
    %260 = vmatpush.bf16.msra.mxu0 %v226
    %261 = vmatmul.bf16.gmra.mxu0 %v238
    %v262 = vpop.f32.mrf.mxu0
    %v263 = vadd.f32 %v250, %v262
    %v264 = vpop.f32.mrf.mxu0
    %265 = vdwg.mxu0
    %v266 = vadd.f32 %v263, %v74
    %vm267 = vcmask 189440
    %268 = vst.msk [vmem:[%s7] sm:$0x3] %vm267, %v266
    // Predicated region
    $region42: #{_lambda_.27} parent=1 // pred_check
      _
    $region43: #{_lambda_.27} parent=1 // pred_check_branch
      %270 = sbr.rel (0) target = $region45
    $region44: #{_lambda_.27} parent=1 // pred_region
      _
    $region45: #{_lambda_.27} parent=1 // pred_fallthru
      _
    // Predicated region
    $region46: #{_lambda_.27} parent=1 // pred_check
      _
    $region47: #{_lambda_.27} parent=1 // pred_check_branch
      %272 = sbr.rel (0) target = $region49
    $region48: #{_lambda_.27} parent=1 // pred_region
      _
    $region49: #{_lambda_.27} parent=1 // pred_fallthru
      _
    %273 = vsyncpa [#allocation3], 1
    %274 = vsyncpa [#allocation5], 1

// kernel: _lambda_.30
$region0: #{_lambda_.30}
  #allocation0 [shape = 'u32[]', space=smem, size = 0x4, offset = 0x4, fixed_abs, tag = 'smem constant byte address 0x4 - core index']
  #allocation1 [shape = 'u32[72,128]{1,0:T(1,128)}', space=vmem, size = 0x9000, scoped, tag = 'internal scratch']
  %s0 = inlined_call_operand.vmem [shape: f32[2,24], index: 0, kind: input, shape index: {}]
  %s1 = inlined_call_operand.hbm [shape: bf16[24,144], index: 1, kind: input, shape index: {}]
  %s2 = inlined_call_operand.vmem [shape: f32[1,144], index: 2, kind: input, shape index: {}, may-alias: {2,4}]
  %s3 = inlined_call_operand.hbm [shape: f32[9,1,144], index: 3, kind: input, shape index: {}]
  %s4 = inlined_call_operand.vmem [shape: f32[1,144], index: 4, kind: input, shape index: {}, may-alias: {2,4}]
  %s5 = inlined_call_operand.hbm [shape: bf16[144,32], index: 5, kind: input, shape index: {}]
  %s6 = inlined_call_operand.vmem [shape: f32[1,32], index: 6, kind: input, shape index: {}]
  %s7 = inlined_call_operand.vmem [shape: f32[2,32], index: 7, kind: output, shape index: {}]
  %s8 = sld [smem:[#allocation0]]
  $region50: #{_lambda_.30} parent=0
    _
  %s10 = ssub.s32 1, %s8
  %s11 = scalar_select 0, %s10, %s8
  $region1: #{_lambda_.30} parent=0
    #allocation2 [shape = 'u8[12288]{0}', space=vmem, size = 0x3000, scoped, tag = 'input window, operand 1, single buffered']
    #allocation3 [shape = 's32[1]{0}', space=sflag, size = 0x4, scoped, tag = 'scoped memory for _lambda_.30']
    #allocation4 [shape = 'u8[9216]{0}', space=vmem, size = 0x2400, scoped, tag = 'input window, operand 3, single buffered']
    #allocation5 [shape = 's32[1]{0}', space=sflag, size = 0x4, scoped, tag = 'scoped memory for _lambda_.30']
    #allocation6 [shape = 'u8[36864]{0}', space=vmem, size = 0x9000, scoped, tag = 'input window, operand 5, single buffered']
    %12 = vsyncpa [#allocation3], 0
    %13 = vsyncpa [#allocation5], 0
    // Predicated region
    $region2: #{_lambda_.30} parent=1 // pred_check
      _
    $region3: #{_lambda_.30} parent=1 // pred_check_branch
      %15 = sbr.rel (0) target = $region5
    $region4: #{_lambda_.30} parent=1 // pred_region
      _
    $region5: #{_lambda_.30} parent=1 // pred_fallthru
      _
    // Predicated region
    $region6: #{_lambda_.30} parent=1 // pred_check
      _
    $region7: #{_lambda_.30} parent=1 // pred_check_branch
      %17 = sbr.rel (0) target = $region9
    $region8: #{_lambda_.30} parent=1 // pred_region
      %19 = vsyncadd [#allocation3], 0
      %s20 = sshll.u32 %s1, 4
      %s21 = int_to_ptr.hbm [resolvable:$true] %s20
      %s22 = sshll.u32 [#allocation2], 4
      %s23 = int_to_ptr.vmem [resolvable:$true] %s22
      %28 = dma.hbm_to_vmem [thread:$0]  %s21, 384, %s23, [#allocation3], 128, 128, 8
    $region9: #{_lambda_.30} parent=1 // pred_fallthru
      _
    // Predicated region
    $region10: #{_lambda_.30} parent=1 // pred_check
      _
    $region11: #{_lambda_.30} parent=1 // pred_check_branch
      %30 = sbr.rel (0) target = $region13
    $region12: #{_lambda_.30} parent=1 // pred_region
      _
    $region13: #{_lambda_.30} parent=1 // pred_fallthru
      _
    // Predicated region
    $region14: #{_lambda_.30} parent=1 // pred_check
      _
    $region15: #{_lambda_.30} parent=1 // pred_check_branch
      %32 = sbr.rel (0) target = $region17
    $region16: #{_lambda_.30} parent=1 // pred_region
      %34 = vsyncadd [#allocation5], 0
      %s35 = sshll.u32 %s3, 4
      %s36 = int_to_ptr.hbm [resolvable:$true] %s35
      %s37 = sshll.u32 [#allocation4], 4
      %s38 = int_to_ptr.vmem [resolvable:$true] %s37
      %43 = dma.hbm_to_vmem [thread:$0]  %s36, 288, %s38, [#allocation5], 32, 32, 2
    $region17: #{_lambda_.30} parent=1 // pred_fallthru
      _
    // Predicated region
    $region18: #{_lambda_.30} parent=1 // pred_check
      _
    $region19: #{_lambda_.30} parent=1 // pred_check_branch
      %45 = sbr.rel (0) target = $region21
    $region20: #{_lambda_.30} parent=1 // pred_region
      _
    $region21: #{_lambda_.30} parent=1 // pred_fallthru
      _
    // Predicated region
    $region22: #{_lambda_.30} parent=1 // pred_check
      _
    $region23: #{_lambda_.30} parent=1 // pred_check_branch
      %47 = sbr.rel (0) target = $region25
    $region24: #{_lambda_.30} parent=1 // pred_region
      %49 = vsyncadd [#allocation5], 0
      %s50 = sshll.u32 %s5, 4
      %s51 = int_to_ptr.hbm [resolvable:$true] %s50
      %s52 = sshll.u32 [#allocation6], 4
      %s53 = int_to_ptr.vmem [resolvable:$true] %s52
      %58 = dma.hbm_to_vmem [thread:$0]  %s51, 1152, %s53, [#allocation5], 64, 64, 4
    $region25: #{_lambda_.30} parent=1 // pred_fallthru
      _
    // Predicated region
    $region26: #{_lambda_.30} parent=1 // pred_check
      _
    $region27: #{_lambda_.30} parent=1 // pred_check_branch
      %60 = sbr.rel (0) target = $region29
    $region28: #{_lambda_.30} parent=1 // pred_region
      _
    $region29: #{_lambda_.30} parent=1 // pred_fallthru
      _
    // Predicated region
    $region30: #{_lambda_.30} parent=1 // pred_check
      _
    $region31: #{_lambda_.30} parent=1 // pred_check_branch
      %62 = sbr.rel (0) target = $region33
    $region32: #{_lambda_.30} parent=1 // pred_region
      %64 = dma.done [#allocation3], 384
    $region33: #{_lambda_.30} parent=1 // pred_fallthru
      _
    // Predicated region
    $region34: #{_lambda_.30} parent=1 // pred_check
      _
    $region35: #{_lambda_.30} parent=1 // pred_check_branch
      %66 = sbr.rel (0) target = $region37
    $region36: #{_lambda_.30} parent=1 // pred_region
      %68 = dma.done [#allocation5], 288
    $region37: #{_lambda_.30} parent=1 // pred_fallthru
      _
    // Predicated region
    $region38: #{_lambda_.30} parent=1 // pred_check
      _
    $region39: #{_lambda_.30} parent=1 // pred_check_branch
      %70 = sbr.rel (0) target = $region41
    $region40: #{_lambda_.30} parent=1 // pred_region
      %72 = dma.done [#allocation5], 1152
    $region41: #{_lambda_.30} parent=1 // pred_fallthru
      _
    %v74 = vld [vmem:[%s0] sm:$0x3]
    %v75 = vpack.c.bf16 %v74, %v74
    %v76 = vld [vmem:[#allocation2] sm:$0xff]
    %v77 = vld [vmem:[#allocation2 + $0x8] sm:$0xff]
    %v78 = vld [vmem:[#allocation2 + $0x10] sm:$0xff]
    %v79 = vld [vmem:[%s2] sm:$0x3]
    %v81 = vperm.slane %v79, 0
    %v82 = vperm.slane %v79, 1
    %v88 = vunpack.c.l.b16 %v76
    %v89 = vunpack.c.h.b16 %v76
    %v90 = vunpack.c.l.b16 %v77
    %v91 = vunpack.c.h.b16 %v77
    %v92 = vunpack.c.l.b16 %v78
    %v93 = vunpack.c.h.b16 %v78
    %v94 = vpack.c.b16 %v90, %v88
    %v95 = vpack.c.b16 %v91, %v89
    %v96 = vpack.c.b16 %v92, %v92
    %v97 = vpack.c.b16 %v93, %v93
    %vm100 = vcmask 195584
    %v102 = vsel %vm100, %v75, 0
    %vm104 = vcmask 1043456
    %v106 = vsel %vm104, %v96, 0
    %v109 = vsel %vm104, %v97, 0
    %111 = vmatpush.bf16.msra.mxu0 0
    %112 = vmatpush.bf16.msra.mxu0 0
    %113 = vmatpush.bf16.msra.mxu0 0
    %114 = vmatpush.bf16.msra.mxu0 0
    %115 = vmatpush.bf16.msra.mxu0 0
    %116 = vmatpush.bf16.msra.mxu0 0
    %117 = vmatpush.bf16.msra.mxu0 %v106
    %118 = vmatpush.bf16.msra.mxu0 %v94
    %119 = vmatmul.bf16.gmra.mxu0 %v102
    %v120 = vpop.f32.mrf.mxu0
    %v121 = vadd.f32 %v81, %v120
    %v122 = vpop.f32.mrf.mxu0
    %123 = vdwg.mxu0
    %124 = vmatpush.bf16.msra.mxu0 0
    %125 = vmatpush.bf16.msra.mxu0 0
    %126 = vmatpush.bf16.msra.mxu0 0
    %127 = vmatpush.bf16.msra.mxu0 0
    %128 = vmatpush.bf16.msra.mxu0 0
    %129 = vmatpush.bf16.msra.mxu0 0
    %130 = vmatpush.bf16.msra.mxu0 %v109
    %131 = vmatpush.bf16.msra.mxu0 %v95
    %132 = vmatmul.bf16.gmra.mxu0 %v102
    %v133 = vpop.f32.mrf.mxu0
    %v134 = vadd.f32 %v82, %v133
    %v135 = vpop.f32.mrf.mxu0
    %136 = vdwg.mxu0
    %v137 = vmax.f32 %v121, 0.0
    %v138 = vmax.f32 %v134, 0.0
    %s139 = scalar_lea.vmem [#allocation4], 8
    %v140 = vld [vmem:[%s139] sm:$0x3]
    %v142 = vperm.slane %v140, 0
    %v143 = vperm.slane %v140, 1
    %v146 = vmul.f32 %v137, %v142
    %v147 = vmul.f32 %v138, %v143
    %v148 = vld [vmem:[%s4] sm:$0x3]
    %v150 = vperm.slane %v148, 0
    %v151 = vperm.slane %v148, 1
    %v154 = vadd.f32 %v146, %v150
    %v155 = vadd.f32 %v147, %v151
    %v156 = vmax.f32 %v154, 0.0
    %v157 = vmax.f32 %v155, 0.0
    %v158 = vpack.c.bf16 %v156, %v156
    %v159 = vpack.c.bf16 %v157, %v157
    %v160 = vld [vmem:[#allocation6] sm:$0xf]
    %v161 = vld [vmem:[#allocation6 + $0x4] sm:$0xf]
    %v162 = vld [vmem:[#allocation6 + $0x8] sm:$0xf]
    %v163 = vld [vmem:[#allocation6 + $0xc] sm:$0xf]
    %v164 = vld [vmem:[#allocation6 + $0x10] sm:$0xf]
    %v165 = vld [vmem:[#allocation6 + $0x14] sm:$0xf]
    %v166 = vld [vmem:[#allocation6 + $0x18] sm:$0xf]
    %v167 = vld [vmem:[#allocation6 + $0x1c] sm:$0xf]
    %v168 = vld [vmem:[#allocation6 + $0x20] sm:$0xf]
    %v169 = vld [vmem:[#allocation6 + $0x24] sm:$0xf]
    %v170 = vld [vmem:[#allocation6 + $0x28] sm:$0xf]
    %v171 = vld [vmem:[#allocation6 + $0x2c] sm:$0xf]
    %v172 = vld [vmem:[#allocation6 + $0x30] sm:$0xf]
    %v173 = vld [vmem:[#allocation6 + $0x34] sm:$0xf]
    %v174 = vld [vmem:[#allocation6 + $0x38] sm:$0xf]
    %v175 = vld [vmem:[#allocation6 + $0x3c] sm:$0xf]
    %v176 = vld [vmem:[#allocation6 + $0x40] sm:$0xf]
    %v177 = vld [vmem:[#allocation6 + $0x44] sm:$0xf]
    %v178 = vld [vmem:[%s6] sm:$0x1]
    %v180 = vperm.slane %v178, 0
    %v200 = vunpack.c.l.b16 %v160
    %v201 = vunpack.c.l.b16 %v161
    %v202 = vunpack.c.l.b16 %v162
    %v203 = vunpack.c.l.b16 %v163
    %v204 = vunpack.c.l.b16 %v164
    %v205 = vunpack.c.l.b16 %v165
    %v206 = vunpack.c.l.b16 %v166
    %v207 = vunpack.c.l.b16 %v167
    %v208 = vunpack.c.l.b16 %v168
    %v209 = vunpack.c.l.b16 %v169
    %v210 = vunpack.c.l.b16 %v170
    %v211 = vunpack.c.l.b16 %v171
    %v212 = vunpack.c.l.b16 %v172
    %v213 = vunpack.c.l.b16 %v173
    %v214 = vunpack.c.l.b16 %v174
    %v215 = vunpack.c.l.b16 %v175
    %v216 = vunpack.c.l.b16 %v176
    %v217 = vunpack.c.l.b16 %v177
    %v218 = vpack.c.b16 %v201, %v200
    %v219 = vpack.c.b16 %v203, %v202
    %v220 = vpack.c.b16 %v205, %v204
    %v221 = vpack.c.b16 %v207, %v206
    %v222 = vpack.c.b16 %v209, %v208
    %v223 = vpack.c.b16 %v211, %v210
    %v224 = vpack.c.b16 %v213, %v212
    %v225 = vpack.c.b16 %v215, %v214
    %v226 = vpack.c.b16 %v217, %v216
    %vm236 = vcmask 130048
    %v238 = vsel %vm236, %v159, 0
    %240 = vmatpush.bf16.msra.mxu0 %v225
    %241 = vmatpush.bf16.msra.mxu0 %v224
    %242 = vmatpush.bf16.msra.mxu0 %v223
    %243 = vmatpush.bf16.msra.mxu0 %v222
    %244 = vmatpush.bf16.msra.mxu0 %v221
    %245 = vmatpush.bf16.msra.mxu0 %v220
    %246 = vmatpush.bf16.msra.mxu0 %v219
    %247 = vmatpush.bf16.msra.mxu0 %v218
    %248 = vmatmul.bf16.gmra.mxu0 %v158
    %v249 = vpop.f32.mrf.mxu0
    %v250 = vadd.f32 %v180, %v249
    %v251 = vpop.f32.mrf.mxu0
    %252 = vdwg.mxu0
    %253 = vmatpush.bf16.msra.mxu0 0
    %254 = vmatpush.bf16.msra.mxu0 0
    %255 = vmatpush.bf16.msra.mxu0 0
    %256 = vmatpush.bf16.msra.mxu0 0
    %257 = vmatpush.bf16.msra.mxu0 0
    %258 = vmatpush.bf16.msra.mxu0 0
    %259 = vmatpush.bf16.msra.mxu0 0
    %260 = vmatpush.bf16.msra.mxu0 %v226
    %261 = vmatmul.bf16.gmra.mxu0 %v238
    %v262 = vpop.f32.mrf.mxu0
    %v263 = vadd.f32 %v250, %v262
    %v264 = vpop.f32.mrf.mxu0
    %265 = vdwg.mxu0
    %vm266 = vcmask 254976
    %267 = vst.msk [vmem:[%s7] sm:$0x3] %vm266, %v263
    // Predicated region
    $region42: #{_lambda_.30} parent=1 // pred_check
      _
    $region43: #{_lambda_.30} parent=1 // pred_check_branch
      %269 = sbr.rel (0) target = $region45
    $region44: #{_lambda_.30} parent=1 // pred_region
      _
    $region45: #{_lambda_.30} parent=1 // pred_fallthru
      _
    // Predicated region
    $region46: #{_lambda_.30} parent=1 // pred_check
      _
    $region47: #{_lambda_.30} parent=1 // pred_check_branch
      %271 = sbr.rel (0) target = $region49
    $region48: #{_lambda_.30} parent=1 // pred_region
      _
    $region49: #{_lambda_.30} parent=1 // pred_fallthru
      _
    %272 = vsyncpa [#allocation3], 1
    %273 = vsyncpa [#allocation5], 1

// kernel: _lambda_.31
$region0: #{_lambda_.31}
  #allocation0 [shape = 'u32[]', space=smem, size = 0x4, offset = 0x4, fixed_abs, tag = 'smem constant byte address 0x4 - core index']
  #allocation1 [shape = 'u32[72,128]{1,0:T(1,128)}', space=vmem, size = 0x9000, scoped, tag = 'internal scratch']
  %s0 = inlined_call_operand.vmem [shape: f32[2,32], index: 0, kind: input, shape index: {}]
  %s1 = inlined_call_operand.hbm [shape: bf16[32,192], index: 1, kind: input, shape index: {}]
  %s2 = inlined_call_operand.vmem [shape: f32[1,192], index: 2, kind: input, shape index: {}, may-alias: {2,4}]
  %s3 = inlined_call_operand.hbm [shape: f32[9,1,192], index: 3, kind: input, shape index: {}]
  %s4 = inlined_call_operand.vmem [shape: f32[1,192], index: 4, kind: input, shape index: {}, may-alias: {2,4}]
  %s5 = inlined_call_operand.hbm [shape: bf16[192,32], index: 5, kind: input, shape index: {}]
  %s6 = inlined_call_operand.vmem [shape: f32[1,32], index: 6, kind: input, shape index: {}]
  %s7 = inlined_call_operand.vmem [shape: f32[2,32], index: 7, kind: output, shape index: {}]
  %s8 = sld [smem:[#allocation0]]
  $region50: #{_lambda_.31} parent=0
    _
  %s10 = ssub.s32 1, %s8
  %s11 = scalar_select 0, %s10, %s8
  $region1: #{_lambda_.31} parent=0
    #allocation2 [shape = 'u8[16384]{0}', space=vmem, size = 0x4000, scoped, tag = 'input window, operand 1, single buffered']
    #allocation3 [shape = 's32[1]{0}', space=sflag, size = 0x4, scoped, tag = 'scoped memory for _lambda_.31']
    #allocation4 [shape = 'u8[9216]{0}', space=vmem, size = 0x2400, scoped, tag = 'input window, operand 3, single buffered']
    #allocation5 [shape = 's32[1]{0}', space=sflag, size = 0x4, scoped, tag = 'scoped memory for _lambda_.31']
    #allocation6 [shape = 'u8[49152]{0}', space=vmem, size = 0xc000, scoped, tag = 'input window, operand 5, single buffered']
    %12 = vsyncpa [#allocation3], 0
    %13 = vsyncpa [#allocation5], 0
    // Predicated region
    $region2: #{_lambda_.31} parent=1 // pred_check
      _
    $region3: #{_lambda_.31} parent=1 // pred_check_branch
      %15 = sbr.rel (0) target = $region5
    $region4: #{_lambda_.31} parent=1 // pred_region
      _
    $region5: #{_lambda_.31} parent=1 // pred_fallthru
      _
    // Predicated region
    $region6: #{_lambda_.31} parent=1 // pred_check
      _
    $region7: #{_lambda_.31} parent=1 // pred_check_branch
      %17 = sbr.rel (0) target = $region9
    $region8: #{_lambda_.31} parent=1 // pred_region
      %19 = vsyncadd [#allocation3], 0
      %s20 = sshll.u32 %s1, 4
      %s21 = int_to_ptr.hbm [resolvable:$true] %s20
      %s22 = sshll.u32 [#allocation2], 4
      %s23 = int_to_ptr.vmem [resolvable:$true] %s22
      %28 = dma.hbm_to_vmem [thread:$0]  %s21, 512, %s23, [#allocation3], 128, 128, 8
    $region9: #{_lambda_.31} parent=1 // pred_fallthru
      _
    // Predicated region
    $region10: #{_lambda_.31} parent=1 // pred_check
      _
    $region11: #{_lambda_.31} parent=1 // pred_check_branch
      %30 = sbr.rel (0) target = $region13
    $region12: #{_lambda_.31} parent=1 // pred_region
      _
    $region13: #{_lambda_.31} parent=1 // pred_fallthru
      _
    // Predicated region
    $region14: #{_lambda_.31} parent=1 // pred_check
      _
    $region15: #{_lambda_.31} parent=1 // pred_check_branch
      %32 = sbr.rel (0) target = $region17
    $region16: #{_lambda_.31} parent=1 // pred_region
      %34 = vsyncadd [#allocation5], 0
      %s35 = sshll.u32 %s3, 4
      %s36 = int_to_ptr.hbm [resolvable:$true] %s35
      %s37 = sshll.u32 [#allocation4], 4
      %s38 = int_to_ptr.vmem [resolvable:$true] %s37
      %43 = dma.hbm_to_vmem [thread:$0]  %s36, 288, %s38, [#allocation5], 32, 32, 2
    $region17: #{_lambda_.31} parent=1 // pred_fallthru
      _
    // Predicated region
    $region18: #{_lambda_.31} parent=1 // pred_check
      _
    $region19: #{_lambda_.31} parent=1 // pred_check_branch
      %45 = sbr.rel (0) target = $region21
    $region20: #{_lambda_.31} parent=1 // pred_region
      _
    $region21: #{_lambda_.31} parent=1 // pred_fallthru
      _
    // Predicated region
    $region22: #{_lambda_.31} parent=1 // pred_check
      _
    $region23: #{_lambda_.31} parent=1 // pred_check_branch
      %47 = sbr.rel (0) target = $region25
    $region24: #{_lambda_.31} parent=1 // pred_region
      %49 = vsyncadd [#allocation5], 0
      %s50 = sshll.u32 %s5, 4
      %s51 = int_to_ptr.hbm [resolvable:$true] %s50
      %s52 = sshll.u32 [#allocation6], 4
      %s53 = int_to_ptr.vmem [resolvable:$true] %s52
      %58 = dma.hbm_to_vmem [thread:$0]  %s51, 1536, %s53, [#allocation5], 64, 64, 4
    $region25: #{_lambda_.31} parent=1 // pred_fallthru
      _
    // Predicated region
    $region26: #{_lambda_.31} parent=1 // pred_check
      _
    $region27: #{_lambda_.31} parent=1 // pred_check_branch
      %60 = sbr.rel (0) target = $region29
    $region28: #{_lambda_.31} parent=1 // pred_region
      _
    $region29: #{_lambda_.31} parent=1 // pred_fallthru
      _
    // Predicated region
    $region30: #{_lambda_.31} parent=1 // pred_check
      _
    $region31: #{_lambda_.31} parent=1 // pred_check_branch
      %62 = sbr.rel (0) target = $region33
    $region32: #{_lambda_.31} parent=1 // pred_region
      %64 = dma.done [#allocation3], 512
    $region33: #{_lambda_.31} parent=1 // pred_fallthru
      _
    // Predicated region
    $region34: #{_lambda_.31} parent=1 // pred_check
      _
    $region35: #{_lambda_.31} parent=1 // pred_check_branch
      %66 = sbr.rel (0) target = $region37
    $region36: #{_lambda_.31} parent=1 // pred_region
      %68 = dma.done [#allocation5], 288
    $region37: #{_lambda_.31} parent=1 // pred_fallthru
      _
    // Predicated region
    $region38: #{_lambda_.31} parent=1 // pred_check
      _
    $region39: #{_lambda_.31} parent=1 // pred_check_branch
      %70 = sbr.rel (0) target = $region41
    $region40: #{_lambda_.31} parent=1 // pred_region
      %72 = dma.done [#allocation5], 1536
    $region41: #{_lambda_.31} parent=1 // pred_fallthru
      _
    %v74 = vld [vmem:[%s0] sm:$0x3]
    %v75 = vpack.c.bf16 %v74, %v74
    %v76 = vld [vmem:[#allocation2] sm:$0xff]
    %v77 = vld [vmem:[#allocation2 + $0x8] sm:$0xff]
    %v78 = vld [vmem:[#allocation2 + $0x10] sm:$0xff]
    %v79 = vld [vmem:[#allocation2 + $0x18] sm:$0xff]
    %v80 = vld [vmem:[%s2] sm:$0x3]
    %v82 = vperm.slane %v80, 0
    %v83 = vperm.slane %v80, 1
    %v90 = vunpack.c.l.b16 %v76
    %v91 = vunpack.c.h.b16 %v76
    %v92 = vunpack.c.l.b16 %v77
    %v93 = vunpack.c.h.b16 %v77
    %v94 = vunpack.c.l.b16 %v78
    %v95 = vunpack.c.h.b16 %v78
    %v96 = vunpack.c.l.b16 %v79
    %v97 = vunpack.c.h.b16 %v79
    %v98 = vpack.c.b16 %v92, %v90
    %v99 = vpack.c.b16 %v93, %v91
    %v100 = vpack.c.b16 %v96, %v94
    %v101 = vpack.c.b16 %v97, %v95
    %vm106 = vcmask 261120
    %v108 = vsel %vm106, %v75, 0
    %110 = vmatpush.bf16.msra.mxu0 0
    %111 = vmatpush.bf16.msra.mxu0 0
    %112 = vmatpush.bf16.msra.mxu0 0
    %113 = vmatpush.bf16.msra.mxu0 0
    %114 = vmatpush.bf16.msra.mxu0 0
    %115 = vmatpush.bf16.msra.mxu0 0
    %116 = vmatpush.bf16.msra.mxu0 %v100
    %117 = vmatpush.bf16.msra.mxu0 %v98
    %118 = vmatmul.bf16.gmra.mxu0 %v108
    %v119 = vpop.f32.mrf.mxu0
    %v120 = vadd.f32 %v82, %v119
    %v121 = vpop.f32.mrf.mxu0
    %122 = vdwg.mxu0
    %123 = vmatpush.bf16.msra.mxu0 0
    %124 = vmatpush.bf16.msra.mxu0 0
    %125 = vmatpush.bf16.msra.mxu0 0
    %126 = vmatpush.bf16.msra.mxu0 0
    %127 = vmatpush.bf16.msra.mxu0 0
    %128 = vmatpush.bf16.msra.mxu0 0
    %129 = vmatpush.bf16.msra.mxu0 %v101
    %130 = vmatpush.bf16.msra.mxu0 %v99
    %131 = vmatmul.bf16.gmra.mxu0 %v108
    %v132 = vpop.f32.mrf.mxu0
    %v133 = vadd.f32 %v83, %v132
    %v134 = vpop.f32.mrf.mxu0
    %135 = vdwg.mxu0
    %v136 = vmax.f32 %v120, 0.0
    %v137 = vmax.f32 %v133, 0.0
    %s138 = scalar_lea.vmem [#allocation4], 8
    %v139 = vld [vmem:[%s138] sm:$0x3]
    %v141 = vperm.slane %v139, 0
    %v142 = vperm.slane %v139, 1
    %v145 = vmul.f32 %v136, %v141
    %v146 = vmul.f32 %v137, %v142
    %v147 = vld [vmem:[%s4] sm:$0x3]
    %v149 = vperm.slane %v147, 0
    %v150 = vperm.slane %v147, 1
    %v153 = vadd.f32 %v145, %v149
    %v154 = vadd.f32 %v146, %v150
    %v155 = vmax.f32 %v153, 0.0
    %v156 = vmax.f32 %v154, 0.0
    %v157 = vpack.c.bf16 %v155, %v155
    %v158 = vpack.c.bf16 %v156, %v156
    %v159 = vld [vmem:[#allocation6] sm:$0xf]
    %v160 = vld [vmem:[#allocation6 + $0x4] sm:$0xf]
    %v161 = vld [vmem:[#allocation6 + $0x8] sm:$0xf]
    %v162 = vld [vmem:[#allocation6 + $0xc] sm:$0xf]
    %v163 = vld [vmem:[#allocation6 + $0x10] sm:$0xf]
    %v164 = vld [vmem:[#allocation6 + $0x14] sm:$0xf]
    %v165 = vld [vmem:[#allocation6 + $0x18] sm:$0xf]
    %v166 = vld [vmem:[#allocation6 + $0x1c] sm:$0xf]
    %v167 = vld [vmem:[#allocation6 + $0x20] sm:$0xf]
    %v168 = vld [vmem:[#allocation6 + $0x24] sm:$0xf]
    %v169 = vld [vmem:[#allocation6 + $0x28] sm:$0xf]
    %v170 = vld [vmem:[#allocation6 + $0x2c] sm:$0xf]
    %v171 = vld [vmem:[#allocation6 + $0x30] sm:$0xf]
    %v172 = vld [vmem:[#allocation6 + $0x34] sm:$0xf]
    %v173 = vld [vmem:[#allocation6 + $0x38] sm:$0xf]
    %v174 = vld [vmem:[#allocation6 + $0x3c] sm:$0xf]
    %v175 = vld [vmem:[#allocation6 + $0x40] sm:$0xf]
    %v176 = vld [vmem:[#allocation6 + $0x44] sm:$0xf]
    %v177 = vld [vmem:[#allocation6 + $0x48] sm:$0xf]
    %v178 = vld [vmem:[#allocation6 + $0x4c] sm:$0xf]
    %v179 = vld [vmem:[#allocation6 + $0x50] sm:$0xf]
    %v180 = vld [vmem:[#allocation6 + $0x54] sm:$0xf]
    %v181 = vld [vmem:[#allocation6 + $0x58] sm:$0xf]
    %v182 = vld [vmem:[#allocation6 + $0x5c] sm:$0xf]
    %v183 = vld [vmem:[%s6] sm:$0x1]
    %v185 = vperm.slane %v183, 0
    %v211 = vunpack.c.l.b16 %v159
    %v212 = vunpack.c.l.b16 %v160
    %v213 = vunpack.c.l.b16 %v161
    %v214 = vunpack.c.l.b16 %v162
    %v215 = vunpack.c.l.b16 %v163
    %v216 = vunpack.c.l.b16 %v164
    %v217 = vunpack.c.l.b16 %v165
    %v218 = vunpack.c.l.b16 %v166
    %v219 = vunpack.c.l.b16 %v167
    %v220 = vunpack.c.l.b16 %v168
    %v221 = vunpack.c.l.b16 %v169
    %v222 = vunpack.c.l.b16 %v170
    %v223 = vunpack.c.l.b16 %v171
    %v224 = vunpack.c.l.b16 %v172
    %v225 = vunpack.c.l.b16 %v173
    %v226 = vunpack.c.l.b16 %v174
    %v227 = vunpack.c.l.b16 %v175
    %v228 = vunpack.c.l.b16 %v176
    %v229 = vunpack.c.l.b16 %v177
    %v230 = vunpack.c.l.b16 %v178
    %v231 = vunpack.c.l.b16 %v179
    %v232 = vunpack.c.l.b16 %v180
    %v233 = vunpack.c.l.b16 %v181
    %v234 = vunpack.c.l.b16 %v182
    %v235 = vpack.c.b16 %v212, %v211
    %v236 = vpack.c.b16 %v214, %v213
    %v237 = vpack.c.b16 %v216, %v215
    %v238 = vpack.c.b16 %v218, %v217
    %v239 = vpack.c.b16 %v220, %v219
    %v240 = vpack.c.b16 %v222, %v221
    %v241 = vpack.c.b16 %v224, %v223
    %v242 = vpack.c.b16 %v226, %v225
    %v243 = vpack.c.b16 %v228, %v227
    %v244 = vpack.c.b16 %v230, %v229
    %v245 = vpack.c.b16 %v232, %v231
    %v246 = vpack.c.b16 %v234, %v233
    %vm259 = vcmask 523264
    %v261 = vsel %vm259, %v158, 0
    %263 = vmatpush.bf16.msra.mxu0 %v242
    %264 = vmatpush.bf16.msra.mxu0 %v241
    %265 = vmatpush.bf16.msra.mxu0 %v240
    %266 = vmatpush.bf16.msra.mxu0 %v239
    %267 = vmatpush.bf16.msra.mxu0 %v238
    %268 = vmatpush.bf16.msra.mxu0 %v237
    %269 = vmatpush.bf16.msra.mxu0 %v236
    %270 = vmatpush.bf16.msra.mxu0 %v235
    %271 = vmatmul.bf16.gmra.mxu0 %v157
    %v272 = vpop.f32.mrf.mxu0
    %v273 = vadd.f32 %v185, %v272
    %v274 = vpop.f32.mrf.mxu0
    %275 = vdwg.mxu0
    %276 = vmatpush.bf16.msra.mxu0 0
    %277 = vmatpush.bf16.msra.mxu0 0
    %278 = vmatpush.bf16.msra.mxu0 0
    %279 = vmatpush.bf16.msra.mxu0 0
    %280 = vmatpush.bf16.msra.mxu0 %v246
    %281 = vmatpush.bf16.msra.mxu0 %v245
    %282 = vmatpush.bf16.msra.mxu0 %v244
    %283 = vmatpush.bf16.msra.mxu0 %v243
    %284 = vmatmul.bf16.gmra.mxu0 %v261
    %v285 = vpop.f32.mrf.mxu0
    %v286 = vadd.f32 %v273, %v285
    %v287 = vpop.f32.mrf.mxu0
    %288 = vdwg.mxu0
    %v289 = vadd.f32 %v286, %v74
    %vm290 = vcmask 254976
    %291 = vst.msk [vmem:[%s7] sm:$0x3] %vm290, %v289
    // Predicated region
    $region42: #{_lambda_.31} parent=1 // pred_check
      _
    $region43: #{_lambda_.31} parent=1 // pred_check_branch
      %293 = sbr.rel (0) target = $region45
    $region44: #{_lambda_.31} parent=1 // pred_region
      _
    $region45: #{_lambda_.31} parent=1 // pred_fallthru
      _
    // Predicated region
    $region46: #{_lambda_.31} parent=1 // pred_check
      _
    $region47: #{_lambda_.31} parent=1 // pred_check_branch
      %295 = sbr.rel (0) target = $region49
    $region48: #{_lambda_.31} parent=1 // pred_region
      _
    $region49: #{_lambda_.31} parent=1 // pred_fallthru
      _
    %296 = vsyncpa [#allocation3], 1
    %297 = vsyncpa [#allocation5], 1

// kernel: _lambda_.26
$region0: #{_lambda_.26}
  #allocation0 [shape = 'u32[]', space=smem, size = 0x4, offset = 0x4, fixed_abs, tag = 'smem constant byte address 0x4 - core index']
  #allocation1 [shape = 'u32[72,128]{1,0:T(1,128)}', space=vmem, size = 0x9000, scoped, tag = 'internal scratch']
  %s0 = inlined_call_operand.vmem [shape: f32[8,16], index: 0, kind: input, shape index: {}]
  %s1 = inlined_call_operand.hbm [shape: bf16[16,96], index: 1, kind: input, shape index: {}]
  %s2 = inlined_call_operand.vmem [shape: f32[1,96], index: 2, kind: input, shape index: {}, may-alias: {2,5}]
  %s3 = inlined_call_operand.hbm [shape: bf16[4,2,8], index: 3, kind: input, shape index: {}]
  %s4 = inlined_call_operand.hbm [shape: f32[9,1,96], index: 4, kind: input, shape index: {}]
  %s5 = inlined_call_operand.vmem [shape: f32[1,96], index: 5, kind: input, shape index: {}, may-alias: {2,5}]
  %s6 = inlined_call_operand.hbm [shape: bf16[96,24], index: 6, kind: input, shape index: {}]
  %s7 = inlined_call_operand.vmem [shape: f32[1,24], index: 7, kind: input, shape index: {}]
  %s8 = inlined_call_operand.vmem [shape: f32[2,24], index: 8, kind: output, shape index: {}]
  %s9 = sld [smem:[#allocation0]]
  $region58: #{_lambda_.26} parent=0
    _
  %s11 = ssub.s32 1, %s9
  %s12 = scalar_select 0, %s11, %s9
  $region1: #{_lambda_.26} parent=0
    #allocation2 [shape = 'u8[4096]{0}', space=vmem, size = 0x1000, scoped, tag = 'input window, operand 1, single buffered']
    #allocation3 [shape = 's32[1]{0}', space=sflag, size = 0x4, scoped, tag = 'scoped memory for _lambda_.26']
    #allocation4 [shape = 'u8[2048]{0}', space=vmem, size = 0x800, scoped, tag = 'input window, operand 3, single buffered']
    #allocation5 [shape = 's32[1]{0}', space=sflag, size = 0x4, scoped, tag = 'scoped memory for _lambda_.26']
    #allocation6 [shape = 'u8[4608]{0}', space=vmem, size = 0x1400, scoped, tag = 'input window, operand 4, single buffered']
    #allocation7 [shape = 'u8[24576]{0}', space=vmem, size = 0x6000, scoped, tag = 'input window, operand 6, single buffered']
    #allocation8 [shape = 's32[1]{0}', space=sflag, size = 0x4, scoped, tag = 'scoped memory for _lambda_.26']
    %13 = vsyncpa [#allocation3], 0
    %14 = vsyncpa [#allocation5], 0
    %15 = vsyncpa [#allocation8], 0
    // Predicated region
    $region2: #{_lambda_.26} parent=1 // pred_check
      _
    $region3: #{_lambda_.26} parent=1 // pred_check_branch
      %17 = sbr.rel (0) target = $region5
    $region4: #{_lambda_.26} parent=1 // pred_region
      _
    $region5: #{_lambda_.26} parent=1 // pred_fallthru
      _
    // Predicated region
    $region6: #{_lambda_.26} parent=1 // pred_check
      _
    $region7: #{_lambda_.26} parent=1 // pred_check_branch
      %19 = sbr.rel (0) target = $region9
    $region8: #{_lambda_.26} parent=1 // pred_region
      %21 = vsyncadd [#allocation3], 0
      %s22 = sshll.u32 %s1, 4
      %s23 = int_to_ptr.hbm [resolvable:$true] %s22
      %s24 = sshll.u32 [#allocation2], 4
      %s25 = int_to_ptr.vmem [resolvable:$true] %s24
      %30 = dma.hbm_to_vmem [thread:$0]  %s23, 128, %s25, [#allocation3], 64, 64, 4
    $region9: #{_lambda_.26} parent=1 // pred_fallthru
      _
    // Predicated region
    $region10: #{_lambda_.26} parent=1 // pred_check
      _
    $region11: #{_lambda_.26} parent=1 // pred_check_branch
      %32 = sbr.rel (0) target = $region13
    $region12: #{_lambda_.26} parent=1 // pred_region
      _
    $region13: #{_lambda_.26} parent=1 // pred_fallthru
      _
    // Predicated region
    $region14: #{_lambda_.26} parent=1 // pred_check
      _
    $region15: #{_lambda_.26} parent=1 // pred_check_branch
      %34 = sbr.rel (0) target = $region17
    $region16: #{_lambda_.26} parent=1 // pred_region
      %36 = vsyncadd [#allocation5], 0
      %s37 = sshll.u32 %s3, 4
      %s38 = int_to_ptr.hbm [resolvable:$true] %s37
      %s39 = sshll.u32 [#allocation4], 4
      %s40 = int_to_ptr.vmem [resolvable:$true] %s39
      %45 = dma.hbm_to_vmem [thread:$0]  %s38, 64, %s40, [#allocation5], 16, 16, 1
    $region17: #{_lambda_.26} parent=1 // pred_fallthru
      _
    // Predicated region
    $region18: #{_lambda_.26} parent=1 // pred_check
      _
    $region19: #{_lambda_.26} parent=1 // pred_check_branch
      %47 = sbr.rel (0) target = $region21
    $region20: #{_lambda_.26} parent=1 // pred_region
      %49 = vsyncadd [#allocation5], 0
      %s50 = sshll.u32 %s4, 4
      %s51 = int_to_ptr.hbm [resolvable:$true] %s50
      %s52 = sshll.u32 [#allocation6], 4
      %s53 = int_to_ptr.vmem [resolvable:$true] %s52
      %58 = dma.hbm_to_vmem [thread:$0]  %s51, 144, %s53, [#allocation5], 16, 16, 1
    $region21: #{_lambda_.26} parent=1 // pred_fallthru
      _
    // Predicated region
    $region22: #{_lambda_.26} parent=1 // pred_check
      _
    $region23: #{_lambda_.26} parent=1 // pred_check_branch
      %60 = sbr.rel (0) target = $region25
    $region24: #{_lambda_.26} parent=1 // pred_region
      _
    $region25: #{_lambda_.26} parent=1 // pred_fallthru
      _
    // Predicated region
    $region26: #{_lambda_.26} parent=1 // pred_check
      _
    $region27: #{_lambda_.26} parent=1 // pred_check_branch
      %62 = sbr.rel (0) target = $region29
    $region28: #{_lambda_.26} parent=1 // pred_region
      %64 = vsyncadd [#allocation8], 0
      %s65 = sshll.u32 %s6, 4
      %s66 = int_to_ptr.hbm [resolvable:$true] %s65
      %s67 = sshll.u32 [#allocation7], 4
      %s68 = int_to_ptr.vmem [resolvable:$true] %s67
      %73 = dma.hbm_to_vmem [thread:$0]  %s66, 768, %s68, [#allocation8], 64, 64, 4
    $region29: #{_lambda_.26} parent=1 // pred_fallthru
      _
    // Predicated region
    $region30: #{_lambda_.26} parent=1 // pred_check
      _
    $region31: #{_lambda_.26} parent=1 // pred_check_branch
      %75 = sbr.rel (0) target = $region33
    $region32: #{_lambda_.26} parent=1 // pred_region
      _
    $region33: #{_lambda_.26} parent=1 // pred_fallthru
      _
    // Predicated region
    $region34: #{_lambda_.26} parent=1 // pred_check
      _
    $region35: #{_lambda_.26} parent=1 // pred_check_branch
      %77 = sbr.rel (0) target = $region37
    $region36: #{_lambda_.26} parent=1 // pred_region
      %79 = dma.done [#allocation3], 128
    $region37: #{_lambda_.26} parent=1 // pred_fallthru
      _
    // Predicated region
    $region38: #{_lambda_.26} parent=1 // pred_check
      _
    $region39: #{_lambda_.26} parent=1 // pred_check_branch
      %81 = sbr.rel (0) target = $region41
    $region40: #{_lambda_.26} parent=1 // pred_region
      %83 = dma.done [#allocation5], 64
    $region41: #{_lambda_.26} parent=1 // pred_fallthru
      _
    // Predicated region
    $region42: #{_lambda_.26} parent=1 // pred_check
      _
    $region43: #{_lambda_.26} parent=1 // pred_check_branch
      %85 = sbr.rel (0) target = $region45
    $region44: #{_lambda_.26} parent=1 // pred_region
      %87 = dma.done [#allocation5], 144
    $region45: #{_lambda_.26} parent=1 // pred_fallthru
      _
    // Predicated region
    $region46: #{_lambda_.26} parent=1 // pred_check
      _
    $region47: #{_lambda_.26} parent=1 // pred_check_branch
      %89 = sbr.rel (0) target = $region49
    $region48: #{_lambda_.26} parent=1 // pred_region
      %91 = dma.done [#allocation8], 768
    $region49: #{_lambda_.26} parent=1 // pred_fallthru
      _
    %v93 = vld [vmem:[%s0] sm:$0xff]
    %v94 = vpack.c.bf16 %v93, %v93
    %v95 = vld [vmem:[#allocation2] sm:$0xf]
    %v96 = vld [vmem:[#allocation2 + $0x4] sm:$0xf]
    %v97 = vld [vmem:[%s2] sm:$0x1]
    %v99 = vperm.slane %v97, 0
    %v103 = vunpack.c.l.b16 %v95
    %v104 = vunpack.c.l.b16 %v96
    %v105 = vpack.c.b16 %v104, %v103
    %vm107 = vcmask 130048
    %v109 = vsel %vm107, %v94, 0
    %111 = vmatpush.bf16.msra.mxu0 0
    %112 = vmatpush.bf16.msra.mxu0 0
    %113 = vmatpush.bf16.msra.mxu0 0
    %114 = vmatpush.bf16.msra.mxu0 0
    %115 = vmatpush.bf16.msra.mxu0 0
    %116 = vmatpush.bf16.msra.mxu0 0
    %117 = vmatpush.bf16.msra.mxu0 0
    %118 = vmatpush.bf16.msra.mxu0 %v105
    %119 = vmatmul.bf16.gmra.mxu0 %v109
    %v120 = vpop.f32.mrf.mxu0
    %v121 = vadd.f32 %v99, %v120
    %v122 = vpop.f32.mrf.mxu0
    %123 = vdwg.mxu0
    %v124 = vmax.f32 %v121, 0.0
    %v125 = vpack.c.bf16 %v124, %v124
    %v126 = vld [vmem:[#allocation4] sm:$0x1]
    %vm127 = vcmask 64512
    %v129 = vsel %vm127, %v126, 0
    %vm131 = vcmask 1043456
    %v133 = vsel %vm131, %v125, 0
    %135 = vmatpush.bf16.msra.mxu0 0
    %136 = vmatpush.bf16.msra.mxu0 0
    %137 = vmatpush.bf16.msra.mxu0 0
    %138 = vmatpush.bf16.msra.mxu0 0
    %139 = vmatpush.bf16.msra.mxu0 0
    %140 = vmatpush.bf16.msra.mxu0 0
    %141 = vmatpush.bf16.msra.mxu0 0
    %142 = vmatpush.bf16.msra.mxu0 %v133
    %143 = vmatmul.bf16.gmra.mxu0 %v129
    %v144 = vpop.f32.mrf.mxu0
    %v145 = vadd.f32 0.0, %v144
    %v146 = vpop.f32.mrf.mxu0
    %147 = vdwg.mxu0
    %s148 = scalar_lea.vmem [#allocation6], 4
    %v149 = vld [vmem:[%s148] sm:$0x1]
    %v151 = vperm.slane %v149, 0
    %v153 = vmul.f32 %v145, %v151
    %s154 = scalar_lea.vmem [#allocation4], 1
    %v155 = vld [vmem:[%s154] sm:$0x1]
    %v157 = vsel %vm127, %v155, 0
    %159 = vmatpush.bf16.msra.mxu0 0
    %160 = vmatpush.bf16.msra.mxu0 0
    %161 = vmatpush.bf16.msra.mxu0 0
    %162 = vmatpush.bf16.msra.mxu0 0
    %163 = vmatpush.bf16.msra.mxu0 0
    %164 = vmatpush.bf16.msra.mxu0 0
    %165 = vmatpush.bf16.msra.mxu0 0
    %166 = vmatpush.bf16.msra.mxu0 %v133
    %167 = vmatmul.bf16.gmra.mxu0 %v157
    %v168 = vpop.f32.mrf.mxu0
    %v169 = vadd.f32 0.0, %v168
    %v170 = vpop.f32.mrf.mxu0
    %171 = vdwg.mxu0
    %s172 = scalar_lea.vmem [#allocation6], 5
    %v173 = vld [vmem:[%s172] sm:$0x1]
    %v175 = vperm.slane %v173, 0
    %v177 = vmul.f32 %v169, %v175
    %v178 = vadd.f32 %v153, %v177
    %s179 = scalar_lea.vmem [#allocation4], 2
    %v180 = vld [vmem:[%s179] sm:$0x1]
    %v182 = vsel %vm127, %v180, 0
    %184 = vmatpush.bf16.msra.mxu0 0
    %185 = vmatpush.bf16.msra.mxu0 0
    %186 = vmatpush.bf16.msra.mxu0 0
    %187 = vmatpush.bf16.msra.mxu0 0
    %188 = vmatpush.bf16.msra.mxu0 0
    %189 = vmatpush.bf16.msra.mxu0 0
    %190 = vmatpush.bf16.msra.mxu0 0
    %191 = vmatpush.bf16.msra.mxu0 %v133
    %192 = vmatmul.bf16.gmra.mxu0 %v182
    %v193 = vpop.f32.mrf.mxu0
    %v194 = vadd.f32 0.0, %v193
    %v195 = vpop.f32.mrf.mxu0
    %196 = vdwg.mxu0
    %s197 = scalar_lea.vmem [#allocation6], 7
    %v198 = vld [vmem:[%s197] sm:$0x1]
    %v200 = vperm.slane %v198, 0
    %v202 = vmul.f32 %v194, %v200
    %v203 = vadd.f32 %v178, %v202
    %s204 = scalar_lea.vmem [#allocation4], 3
    %v205 = vld [vmem:[%s204] sm:$0x1]
    %v207 = vsel %vm127, %v205, 0
    %209 = vmatpush.bf16.msra.mxu0 0
    %210 = vmatpush.bf16.msra.mxu0 0
    %211 = vmatpush.bf16.msra.mxu0 0
    %212 = vmatpush.bf16.msra.mxu0 0
    %213 = vmatpush.bf16.msra.mxu0 0
    %214 = vmatpush.bf16.msra.mxu0 0
    %215 = vmatpush.bf16.msra.mxu0 0
    %216 = vmatpush.bf16.msra.mxu0 %v133
    %217 = vmatmul.bf16.gmra.mxu0 %v207
    %v218 = vpop.f32.mrf.mxu0
    %v219 = vadd.f32 0.0, %v218
    %v220 = vpop.f32.mrf.mxu0
    %221 = vdwg.mxu0
    %s222 = scalar_lea.vmem [#allocation6], 8
    %v223 = vld [vmem:[%s222] sm:$0x1]
    %v225 = vperm.slane %v223, 0
    %v227 = vmul.f32 %v219, %v225
    %v228 = vadd.f32 %v203, %v227
    %v229 = vld [vmem:[%s5] sm:$0x1]
    %v231 = vperm.slane %v229, 0
    %v233 = vadd.f32 %v228, %v231
    %v234 = vmax.f32 %v233, 0.0
    %v235 = vpack.c.bf16 %v234, %v234
    %v236 = vld [vmem:[#allocation7] sm:$0xf]
    %v237 = vld [vmem:[#allocation7 + $0x4] sm:$0xf]
    %v238 = vld [vmem:[#allocation7 + $0x8] sm:$0xf]
    %v239 = vld [vmem:[#allocation7 + $0xc] sm:$0xf]
    %v240 = vld [vmem:[#allocation7 + $0x10] sm:$0xf]
    %v241 = vld [vmem:[#allocation7 + $0x14] sm:$0xf]
    %v242 = vld [vmem:[#allocation7 + $0x18] sm:$0xf]
    %v243 = vld [vmem:[#allocation7 + $0x1c] sm:$0xf]
    %v244 = vld [vmem:[#allocation7 + $0x20] sm:$0xf]
    %v245 = vld [vmem:[#allocation7 + $0x24] sm:$0xf]
    %v246 = vld [vmem:[#allocation7 + $0x28] sm:$0xf]
    %v247 = vld [vmem:[#allocation7 + $0x2c] sm:$0xf]
    %v248 = vld [vmem:[%s7] sm:$0x1]
    %v250 = vperm.slane %v248, 0
    %v264 = vunpack.c.l.b16 %v236
    %v265 = vunpack.c.l.b16 %v237
    %v266 = vunpack.c.l.b16 %v238
    %v267 = vunpack.c.l.b16 %v239
    %v268 = vunpack.c.l.b16 %v240
    %v269 = vunpack.c.l.b16 %v241
    %v270 = vunpack.c.l.b16 %v242
    %v271 = vunpack.c.l.b16 %v243
    %v272 = vunpack.c.l.b16 %v244
    %v273 = vunpack.c.l.b16 %v245
    %v274 = vunpack.c.l.b16 %v246
    %v275 = vunpack.c.l.b16 %v247
    %v276 = vpack.c.b16 %v265, %v264
    %v277 = vpack.c.b16 %v267, %v266
    %v278 = vpack.c.b16 %v269, %v268
    %v279 = vpack.c.b16 %v271, %v270
    %v280 = vpack.c.b16 %v273, %v272
    %v281 = vpack.c.b16 %v275, %v274
    %vm288 = vcmask 785408
    %v290 = vsel %vm288, %v235, 0
    %292 = vmatpush.bf16.msra.mxu0 0
    %293 = vmatpush.bf16.msra.mxu0 0
    %294 = vmatpush.bf16.msra.mxu0 %v281
    %295 = vmatpush.bf16.msra.mxu0 %v280
    %296 = vmatpush.bf16.msra.mxu0 %v279
    %297 = vmatpush.bf16.msra.mxu0 %v278
    %298 = vmatpush.bf16.msra.mxu0 %v277
    %299 = vmatpush.bf16.msra.mxu0 %v276
    %300 = vmatmul.bf16.gmra.mxu0 %v290
    %v301 = vpop.f32.mrf.mxu0
    %v302 = vadd.f32 %v250, %v301
    %v303 = vpop.f32.mrf.mxu0
    %304 = vdwg.mxu0
    %vm305 = vcmask 189440
    %306 = vst.msk [vmem:[%s8] sm:$0x3] %vm305, %v302
    // Predicated region
    $region50: #{_lambda_.26} parent=1 // pred_check
      _
    $region51: #{_lambda_.26} parent=1 // pred_check_branch
      %308 = sbr.rel (0) target = $region53
    $region52: #{_lambda_.26} parent=1 // pred_region
      _
    $region53: #{_lambda_.26} parent=1 // pred_fallthru
      _
    // Predicated region
    $region54: #{_lambda_.26} parent=1 // pred_check
      _
    $region55: #{_lambda_.26} parent=1 // pred_check_branch
      %310 = sbr.rel (0) target = $region57
    $region56: #{_lambda_.26} parent=1 // pred_region
      _
    $region57: #{_lambda_.26} parent=1 // pred_fallthru
      _
    %311 = vsyncpa [#allocation3], 1
    %312 = vsyncpa [#allocation5], 1
    %313 = vsyncpa [#allocation8], 1

// kernel: _lambda_.33
$region0: #{_lambda_.33}
  #allocation0 [shape = 'u32[]', space=smem, size = 0x4, offset = 0x4, fixed_abs, tag = 'smem constant byte address 0x4 - core index']
  #allocation1 [shape = 'u32[72,128]{1,0:T(1,128)}', space=vmem, size = 0x9000, scoped, tag = 'internal scratch']
  %s0 = inlined_call_operand.vmem [shape: f32[2,32], index: 0, kind: input, shape index: {}]
  %s1 = inlined_call_operand.hbm [shape: bf16[32,192], index: 1, kind: input, shape index: {}]
  %s2 = inlined_call_operand.vmem [shape: f32[1,192], index: 2, kind: input, shape index: {}, may-alias: {2,4}]
  %s3 = inlined_call_operand.hbm [shape: f32[9,1,192], index: 3, kind: input, shape index: {}]
  %s4 = inlined_call_operand.vmem [shape: f32[1,192], index: 4, kind: input, shape index: {}, may-alias: {2,4}]
  %s5 = inlined_call_operand.hbm [shape: bf16[192,64], index: 5, kind: input, shape index: {}]
  %s6 = inlined_call_operand.vmem [shape: f32[1,64], index: 6, kind: input, shape index: {}]
  %s7 = inlined_call_operand.vmem [shape: f32[2,64], index: 7, kind: output, shape index: {}]
  %s8 = sld [smem:[#allocation0]]
  $region50: #{_lambda_.33} parent=0
    _
  %s10 = ssub.s32 1, %s8
  %s11 = scalar_select 0, %s10, %s8
  $region1: #{_lambda_.33} parent=0
    #allocation2 [shape = 'u8[16384]{0}', space=vmem, size = 0x4000, scoped, tag = 'input window, operand 1, single buffered']
    #allocation3 [shape = 's32[1]{0}', space=sflag, size = 0x4, scoped, tag = 'scoped memory for _lambda_.33']
    #allocation4 [shape = 'u8[9216]{0}', space=vmem, size = 0x2400, scoped, tag = 'input window, operand 3, single buffered']
    #allocation5 [shape = 's32[1]{0}', space=sflag, size = 0x4, scoped, tag = 'scoped memory for _lambda_.33']
    #allocation6 [shape = 'u8[49152]{0}', space=vmem, size = 0xc000, scoped, tag = 'input window, operand 5, single buffered']
    %12 = vsyncpa [#allocation3], 0
    %13 = vsyncpa [#allocation5], 0
    // Predicated region
    $region2: #{_lambda_.33} parent=1 // pred_check
      _
    $region3: #{_lambda_.33} parent=1 // pred_check_branch
      %15 = sbr.rel (0) target = $region5
    $region4: #{_lambda_.33} parent=1 // pred_region
      _
    $region5: #{_lambda_.33} parent=1 // pred_fallthru
      _
    // Predicated region
    $region6: #{_lambda_.33} parent=1 // pred_check
      _
    $region7: #{_lambda_.33} parent=1 // pred_check_branch
      %17 = sbr.rel (0) target = $region9
    $region8: #{_lambda_.33} parent=1 // pred_region
      %19 = vsyncadd [#allocation3], 0
      %s20 = sshll.u32 %s1, 4
      %s21 = int_to_ptr.hbm [resolvable:$true] %s20
      %s22 = sshll.u32 [#allocation2], 4
      %s23 = int_to_ptr.vmem [resolvable:$true] %s22
      %28 = dma.hbm_to_vmem [thread:$0]  %s21, 512, %s23, [#allocation3], 128, 128, 8
    $region9: #{_lambda_.33} parent=1 // pred_fallthru
      _
    // Predicated region
    $region10: #{_lambda_.33} parent=1 // pred_check
      _
    $region11: #{_lambda_.33} parent=1 // pred_check_branch
      %30 = sbr.rel (0) target = $region13
    $region12: #{_lambda_.33} parent=1 // pred_region
      _
    $region13: #{_lambda_.33} parent=1 // pred_fallthru
      _
    // Predicated region
    $region14: #{_lambda_.33} parent=1 // pred_check
      _
    $region15: #{_lambda_.33} parent=1 // pred_check_branch
      %32 = sbr.rel (0) target = $region17
    $region16: #{_lambda_.33} parent=1 // pred_region
      %34 = vsyncadd [#allocation5], 0
      %s35 = sshll.u32 %s3, 4
      %s36 = int_to_ptr.hbm [resolvable:$true] %s35
      %s37 = sshll.u32 [#allocation4], 4
      %s38 = int_to_ptr.vmem [resolvable:$true] %s37
      %43 = dma.hbm_to_vmem [thread:$0]  %s36, 288, %s38, [#allocation5], 32, 32, 2
    $region17: #{_lambda_.33} parent=1 // pred_fallthru
      _
    // Predicated region
    $region18: #{_lambda_.33} parent=1 // pred_check
      _
    $region19: #{_lambda_.33} parent=1 // pred_check_branch
      %45 = sbr.rel (0) target = $region21
    $region20: #{_lambda_.33} parent=1 // pred_region
      _
    $region21: #{_lambda_.33} parent=1 // pred_fallthru
      _
    // Predicated region
    $region22: #{_lambda_.33} parent=1 // pred_check
      _
    $region23: #{_lambda_.33} parent=1 // pred_check_branch
      %47 = sbr.rel (0) target = $region25
    $region24: #{_lambda_.33} parent=1 // pred_region
      %49 = vsyncadd [#allocation5], 0
      %s50 = sshll.u32 %s5, 4
      %s51 = int_to_ptr.hbm [resolvable:$true] %s50
      %s52 = sshll.u32 [#allocation6], 4
      %s53 = int_to_ptr.vmem [resolvable:$true] %s52
      %58 = dma.hbm_to_vmem [thread:$0]  %s51, 1536, %s53, [#allocation5], 64, 64, 4
    $region25: #{_lambda_.33} parent=1 // pred_fallthru
      _
    // Predicated region
    $region26: #{_lambda_.33} parent=1 // pred_check
      _
    $region27: #{_lambda_.33} parent=1 // pred_check_branch
      %60 = sbr.rel (0) target = $region29
    $region28: #{_lambda_.33} parent=1 // pred_region
      _
    $region29: #{_lambda_.33} parent=1 // pred_fallthru
      _
    // Predicated region
    $region30: #{_lambda_.33} parent=1 // pred_check
      _
    $region31: #{_lambda_.33} parent=1 // pred_check_branch
      %62 = sbr.rel (0) target = $region33
    $region32: #{_lambda_.33} parent=1 // pred_region
      %64 = dma.done [#allocation3], 512
    $region33: #{_lambda_.33} parent=1 // pred_fallthru
      _
    // Predicated region
    $region34: #{_lambda_.33} parent=1 // pred_check
      _
    $region35: #{_lambda_.33} parent=1 // pred_check_branch
      %66 = sbr.rel (0) target = $region37
    $region36: #{_lambda_.33} parent=1 // pred_region
      %68 = dma.done [#allocation5], 288
    $region37: #{_lambda_.33} parent=1 // pred_fallthru
      _
    // Predicated region
    $region38: #{_lambda_.33} parent=1 // pred_check
      _
    $region39: #{_lambda_.33} parent=1 // pred_check_branch
      %70 = sbr.rel (0) target = $region41
    $region40: #{_lambda_.33} parent=1 // pred_region
      %72 = dma.done [#allocation5], 1536
    $region41: #{_lambda_.33} parent=1 // pred_fallthru
      _
    %v74 = vld [vmem:[%s0] sm:$0x3]
    %v75 = vpack.c.bf16 %v74, %v74
    %v76 = vld [vmem:[#allocation2] sm:$0xff]
    %v77 = vld [vmem:[#allocation2 + $0x8] sm:$0xff]
    %v78 = vld [vmem:[#allocation2 + $0x10] sm:$0xff]
    %v79 = vld [vmem:[#allocation2 + $0x18] sm:$0xff]
    %v80 = vld [vmem:[%s2] sm:$0x3]
    %v82 = vperm.slane %v80, 0
    %v83 = vperm.slane %v80, 1
    %v90 = vunpack.c.l.b16 %v76
    %v91 = vunpack.c.h.b16 %v76
    %v92 = vunpack.c.l.b16 %v77
    %v93 = vunpack.c.h.b16 %v77
    %v94 = vunpack.c.l.b16 %v78
    %v95 = vunpack.c.h.b16 %v78
    %v96 = vunpack.c.l.b16 %v79
    %v97 = vunpack.c.h.b16 %v79
    %v98 = vpack.c.b16 %v92, %v90
    %v99 = vpack.c.b16 %v93, %v91
    %v100 = vpack.c.b16 %v96, %v94
    %v101 = vpack.c.b16 %v97, %v95
    %vm106 = vcmask 261120
    %v108 = vsel %vm106, %v75, 0
    %110 = vmatpush.bf16.msra.mxu0 0
    %111 = vmatpush.bf16.msra.mxu0 0
    %112 = vmatpush.bf16.msra.mxu0 0
    %113 = vmatpush.bf16.msra.mxu0 0
    %114 = vmatpush.bf16.msra.mxu0 0
    %115 = vmatpush.bf16.msra.mxu0 0
    %116 = vmatpush.bf16.msra.mxu0 %v100
    %117 = vmatpush.bf16.msra.mxu0 %v98
    %118 = vmatmul.bf16.gmra.mxu0 %v108
    %v119 = vpop.f32.mrf.mxu0
    %v120 = vadd.f32 %v82, %v119
    %v121 = vpop.f32.mrf.mxu0
    %122 = vdwg.mxu0
    %123 = vmatpush.bf16.msra.mxu0 0
    %124 = vmatpush.bf16.msra.mxu0 0
    %125 = vmatpush.bf16.msra.mxu0 0
    %126 = vmatpush.bf16.msra.mxu0 0
    %127 = vmatpush.bf16.msra.mxu0 0
    %128 = vmatpush.bf16.msra.mxu0 0
    %129 = vmatpush.bf16.msra.mxu0 %v101
    %130 = vmatpush.bf16.msra.mxu0 %v99
    %131 = vmatmul.bf16.gmra.mxu0 %v108
    %v132 = vpop.f32.mrf.mxu0
    %v133 = vadd.f32 %v83, %v132
    %v134 = vpop.f32.mrf.mxu0
    %135 = vdwg.mxu0
    %v136 = vmax.f32 %v120, 0.0
    %v137 = vmax.f32 %v133, 0.0
    %s138 = scalar_lea.vmem [#allocation4], 8
    %v139 = vld [vmem:[%s138] sm:$0x3]
    %v141 = vperm.slane %v139, 0
    %v142 = vperm.slane %v139, 1
    %v145 = vmul.f32 %v136, %v141
    %v146 = vmul.f32 %v137, %v142
    %v147 = vld [vmem:[%s4] sm:$0x3]
    %v149 = vperm.slane %v147, 0
    %v150 = vperm.slane %v147, 1
    %v153 = vadd.f32 %v145, %v149
    %v154 = vadd.f32 %v146, %v150
    %v155 = vmax.f32 %v153, 0.0
    %v156 = vmax.f32 %v154, 0.0
    %v157 = vpack.c.bf16 %v155, %v155
    %v158 = vpack.c.bf16 %v156, %v156
    %v159 = vld [vmem:[#allocation6] sm:$0xf]
    %v160 = vld [vmem:[#allocation6 + $0x4] sm:$0xf]
    %v161 = vld [vmem:[#allocation6 + $0x8] sm:$0xf]
    %v162 = vld [vmem:[#allocation6 + $0xc] sm:$0xf]
    %v163 = vld [vmem:[#allocation6 + $0x10] sm:$0xf]
    %v164 = vld [vmem:[#allocation6 + $0x14] sm:$0xf]
    %v165 = vld [vmem:[#allocation6 + $0x18] sm:$0xf]
    %v166 = vld [vmem:[#allocation6 + $0x1c] sm:$0xf]
    %v167 = vld [vmem:[#allocation6 + $0x20] sm:$0xf]
    %v168 = vld [vmem:[#allocation6 + $0x24] sm:$0xf]
    %v169 = vld [vmem:[#allocation6 + $0x28] sm:$0xf]
    %v170 = vld [vmem:[#allocation6 + $0x2c] sm:$0xf]
    %v171 = vld [vmem:[#allocation6 + $0x30] sm:$0xf]
    %v172 = vld [vmem:[#allocation6 + $0x34] sm:$0xf]
    %v173 = vld [vmem:[#allocation6 + $0x38] sm:$0xf]
    %v174 = vld [vmem:[#allocation6 + $0x3c] sm:$0xf]
    %v175 = vld [vmem:[#allocation6 + $0x40] sm:$0xf]
    %v176 = vld [vmem:[#allocation6 + $0x44] sm:$0xf]
    %v177 = vld [vmem:[#allocation6 + $0x48] sm:$0xf]
    %v178 = vld [vmem:[#allocation6 + $0x4c] sm:$0xf]
    %v179 = vld [vmem:[#allocation6 + $0x50] sm:$0xf]
    %v180 = vld [vmem:[#allocation6 + $0x54] sm:$0xf]
    %v181 = vld [vmem:[#allocation6 + $0x58] sm:$0xf]
    %v182 = vld [vmem:[#allocation6 + $0x5c] sm:$0xf]
    %v183 = vld [vmem:[%s6] sm:$0x1]
    %v185 = vperm.slane %v183, 0
    %v211 = vunpack.c.l.b16 %v159
    %v212 = vunpack.c.l.b16 %v160
    %v213 = vunpack.c.l.b16 %v161
    %v214 = vunpack.c.l.b16 %v162
    %v215 = vunpack.c.l.b16 %v163
    %v216 = vunpack.c.l.b16 %v164
    %v217 = vunpack.c.l.b16 %v165
    %v218 = vunpack.c.l.b16 %v166
    %v219 = vunpack.c.l.b16 %v167
    %v220 = vunpack.c.l.b16 %v168
    %v221 = vunpack.c.l.b16 %v169
    %v222 = vunpack.c.l.b16 %v170
    %v223 = vunpack.c.l.b16 %v171
    %v224 = vunpack.c.l.b16 %v172
    %v225 = vunpack.c.l.b16 %v173
    %v226 = vunpack.c.l.b16 %v174
    %v227 = vunpack.c.l.b16 %v175
    %v228 = vunpack.c.l.b16 %v176
    %v229 = vunpack.c.l.b16 %v177
    %v230 = vunpack.c.l.b16 %v178
    %v231 = vunpack.c.l.b16 %v179
    %v232 = vunpack.c.l.b16 %v180
    %v233 = vunpack.c.l.b16 %v181
    %v234 = vunpack.c.l.b16 %v182
    %v235 = vpack.c.b16 %v212, %v211
    %v236 = vpack.c.b16 %v214, %v213
    %v237 = vpack.c.b16 %v216, %v215
    %v238 = vpack.c.b16 %v218, %v217
    %v239 = vpack.c.b16 %v220, %v219
    %v240 = vpack.c.b16 %v222, %v221
    %v241 = vpack.c.b16 %v224, %v223
    %v242 = vpack.c.b16 %v226, %v225
    %v243 = vpack.c.b16 %v228, %v227
    %v244 = vpack.c.b16 %v230, %v229
    %v245 = vpack.c.b16 %v232, %v231
    %v246 = vpack.c.b16 %v234, %v233
    %vm259 = vcmask 523264
    %v261 = vsel %vm259, %v158, 0
    %263 = vmatpush.bf16.msra.mxu0 %v242
    %264 = vmatpush.bf16.msra.mxu0 %v241
    %265 = vmatpush.bf16.msra.mxu0 %v240
    %266 = vmatpush.bf16.msra.mxu0 %v239
    %267 = vmatpush.bf16.msra.mxu0 %v238
    %268 = vmatpush.bf16.msra.mxu0 %v237
    %269 = vmatpush.bf16.msra.mxu0 %v236
    %270 = vmatpush.bf16.msra.mxu0 %v235
    %271 = vmatmul.bf16.gmra.mxu0 %v157
    %v272 = vpop.f32.mrf.mxu0
    %v273 = vadd.f32 %v185, %v272
    %v274 = vpop.f32.mrf.mxu0
    %275 = vdwg.mxu0
    %276 = vmatpush.bf16.msra.mxu0 0
    %277 = vmatpush.bf16.msra.mxu0 0
    %278 = vmatpush.bf16.msra.mxu0 0
    %279 = vmatpush.bf16.msra.mxu0 0
    %280 = vmatpush.bf16.msra.mxu0 %v246
    %281 = vmatpush.bf16.msra.mxu0 %v245
    %282 = vmatpush.bf16.msra.mxu0 %v244
    %283 = vmatpush.bf16.msra.mxu0 %v243
    %284 = vmatmul.bf16.gmra.mxu0 %v261
    %v285 = vpop.f32.mrf.mxu0
    %v286 = vadd.f32 %v273, %v285
    %v287 = vpop.f32.mrf.mxu0
    %288 = vdwg.mxu0
    %vm289 = vcmask 517120
    %290 = vst.msk [vmem:[%s7] sm:$0x3] %vm289, %v286
    // Predicated region
    $region42: #{_lambda_.33} parent=1 // pred_check
      _
    $region43: #{_lambda_.33} parent=1 // pred_check_branch
      %292 = sbr.rel (0) target = $region45
    $region44: #{_lambda_.33} parent=1 // pred_region
      _
    $region45: #{_lambda_.33} parent=1 // pred_fallthru
      _
    // Predicated region
    $region46: #{_lambda_.33} parent=1 // pred_check
      _
    $region47: #{_lambda_.33} parent=1 // pred_check_branch
      %294 = sbr.rel (0) target = $region49
    $region48: #{_lambda_.33} parent=1 // pred_region
      _
    $region49: #{_lambda_.33} parent=1 // pred_fallthru
      _
    %295 = vsyncpa [#allocation3], 1
    %296 = vsyncpa [#allocation5], 1

// kernel: _lambda_.34
$region0: #{_lambda_.34}
  #allocation0 [shape = 'u32[]', space=smem, size = 0x4, offset = 0x4, fixed_abs, tag = 'smem constant byte address 0x4 - core index']
  #allocation1 [shape = 'u32[72,128]{1,0:T(1,128)}', space=vmem, size = 0x9000, scoped, tag = 'internal scratch']
  %s0 = inlined_call_operand.vmem [shape: f32[2,64], index: 0, kind: input, shape index: {}]
  %s1 = inlined_call_operand.hbm [shape: bf16[64,384], index: 1, kind: input, shape index: {}]
  %s2 = inlined_call_operand.vmem [shape: f32[1,384], index: 2, kind: input, shape index: {}, may-alias: {2,4}]
  %s3 = inlined_call_operand.hbm [shape: f32[9,1,384], index: 3, kind: input, shape index: {}]
  %s4 = inlined_call_operand.vmem [shape: f32[1,384], index: 4, kind: input, shape index: {}, may-alias: {2,4}]
  %s5 = inlined_call_operand.vmem [shape: bf16[384,64], index: 5, kind: input, shape index: {}]
  %s6 = inlined_call_operand.vmem [shape: f32[1,64], index: 6, kind: input, shape index: {}]
  %s7 = inlined_call_operand.vmem [shape: f32[2,64], index: 7, kind: output, shape index: {}]
  %s8 = sld [smem:[#allocation0]]
  $region46: #{_lambda_.34} parent=0
    _
  %s10 = ssub.s32 1, %s8
  %s11 = scalar_select 0, %s10, %s8
  $region1: #{_lambda_.34} parent=0
    #allocation2 [shape = 'u8[49152]{0}', space=vmem, size = 0xc000, scoped, tag = 'input window, operand 1, single buffered']
    #allocation3 [shape = 's32[1]{0}', space=sflag, size = 0x4, scoped, tag = 'scoped memory for _lambda_.34']
    #allocation4 [shape = 'u8[13824]{0}', space=vmem, size = 0x3800, scoped, tag = 'input window, operand 3, single buffered']
    #allocation5 [shape = 's32[1]{0}', space=sflag, size = 0x4, scoped, tag = 'scoped memory for _lambda_.34']
    %12 = vsyncpa [#allocation3], 0
    %13 = vsyncpa [#allocation5], 0
    // Predicated region
    $region2: #{_lambda_.34} parent=1 // pred_check
      _
    $region3: #{_lambda_.34} parent=1 // pred_check_branch
      %15 = sbr.rel (0) target = $region5
    $region4: #{_lambda_.34} parent=1 // pred_region
      _
    $region5: #{_lambda_.34} parent=1 // pred_fallthru
      _
    // Predicated region
    $region6: #{_lambda_.34} parent=1 // pred_check
      _
    $region7: #{_lambda_.34} parent=1 // pred_check_branch
      %17 = sbr.rel (0) target = $region9
    $region8: #{_lambda_.34} parent=1 // pred_region
      %19 = vsyncadd [#allocation3], 0
      %s20 = sshll.u32 %s1, 4
      %s21 = int_to_ptr.hbm [resolvable:$true] %s20
      %s22 = sshll.u32 [#allocation2], 4
      %s23 = int_to_ptr.vmem [resolvable:$true] %s22
      %28 = dma.hbm_to_vmem [thread:$0]  %s21, 1536, %s23, [#allocation3], 192, 192, 12
    $region9: #{_lambda_.34} parent=1 // pred_fallthru
      _
    // Predicated region
    $region10: #{_lambda_.34} parent=1 // pred_check
      _
    $region11: #{_lambda_.34} parent=1 // pred_check_branch
      %30 = sbr.rel (0) target = $region13
    $region12: #{_lambda_.34} parent=1 // pred_region
      _
    $region13: #{_lambda_.34} parent=1 // pred_fallthru
      _
    // Predicated region
    $region14: #{_lambda_.34} parent=1 // pred_check
      _
    $region15: #{_lambda_.34} parent=1 // pred_check_branch
      %32 = sbr.rel (0) target = $region17
    $region16: #{_lambda_.34} parent=1 // pred_region
      %34 = vsyncadd [#allocation5], 0
      %s35 = sshll.u32 %s3, 4
      %s36 = int_to_ptr.hbm [resolvable:$true] %s35
      %s37 = sshll.u32 [#allocation4], 4
      %s38 = int_to_ptr.vmem [resolvable:$true] %s37
      %43 = dma.hbm_to_vmem [thread:$0]  %s36, 432, %s38, [#allocation5], 48, 48, 3
    $region17: #{_lambda_.34} parent=1 // pred_fallthru
      _
    // Predicated region
    $region18: #{_lambda_.34} parent=1 // pred_check
      _
    $region19: #{_lambda_.34} parent=1 // pred_check_branch
      %45 = sbr.rel (0) target = $region21
    $region20: #{_lambda_.34} parent=1 // pred_region
      _
    $region21: #{_lambda_.34} parent=1 // pred_fallthru
      _
    // Predicated region
    $region22: #{_lambda_.34} parent=1 // pred_check
      _
    $region23: #{_lambda_.34} parent=1 // pred_check_branch
      %47 = sbr.rel (0) target = $region25
    $region24: #{_lambda_.34} parent=1 // pred_region
      _
    $region25: #{_lambda_.34} parent=1 // pred_fallthru
      _
    // Predicated region
    $region26: #{_lambda_.34} parent=1 // pred_check
      _
    $region27: #{_lambda_.34} parent=1 // pred_check_branch
      %49 = sbr.rel (0) target = $region29
    $region28: #{_lambda_.34} parent=1 // pred_region
      _
    $region29: #{_lambda_.34} parent=1 // pred_fallthru
      _
    // Predicated region
    $region30: #{_lambda_.34} parent=1 // pred_check
      _
    $region31: #{_lambda_.34} parent=1 // pred_check_branch
      %51 = sbr.rel (0) target = $region33
    $region32: #{_lambda_.34} parent=1 // pred_region
      %53 = dma.done [#allocation3], 1536
    $region33: #{_lambda_.34} parent=1 // pred_fallthru
      _
    // Predicated region
    $region34: #{_lambda_.34} parent=1 // pred_check
      _
    $region35: #{_lambda_.34} parent=1 // pred_check_branch
      %55 = sbr.rel (0) target = $region37
    $region36: #{_lambda_.34} parent=1 // pred_region
      %57 = dma.done [#allocation5], 432
    $region37: #{_lambda_.34} parent=1 // pred_fallthru
      _
    %v59 = vld [vmem:[%s0] sm:$0x3]
    %v60 = vpack.c.bf16 %v59, %v59
    %v61 = vld [vmem:[#allocation2] sm:$0xff]
    %v62 = vld [vmem:[#allocation2 + $0x8] sm:$0xf]
    %v63 = vld [vmem:[#allocation2 + $0xc] sm:$0xff]
    %v64 = vld [vmem:[#allocation2 + $0x14] sm:$0xf]
    %v65 = vld [vmem:[#allocation2 + $0x18] sm:$0xff]
    %v66 = vld [vmem:[#allocation2 + $0x20] sm:$0xf]
    %v67 = vld [vmem:[#allocation2 + $0x24] sm:$0xff]
    %v68 = vld [vmem:[#allocation2 + $0x2c] sm:$0xf]
    %v69 = vld [vmem:[#allocation2 + $0x30] sm:$0xff]
    %v70 = vld [vmem:[#allocation2 + $0x38] sm:$0xf]
    %v71 = vld [vmem:[#allocation2 + $0x3c] sm:$0xff]
    %v72 = vld [vmem:[#allocation2 + $0x44] sm:$0xf]
    %v73 = vld [vmem:[#allocation2 + $0x48] sm:$0xff]
    %v74 = vld [vmem:[#allocation2 + $0x50] sm:$0xf]
    %v75 = vld [vmem:[#allocation2 + $0x54] sm:$0xff]
    %v76 = vld [vmem:[#allocation2 + $0x5c] sm:$0xf]
    %v77 = vld [vmem:[%s2] sm:$0x7]
    %v79 = vperm.slane %v77, 0
    %v80 = vperm.slane %v77, 1
    %v81 = vperm.slane %v77, 2
    %v101 = vunpack.c.l.b16 %v61
    %v102 = vunpack.c.h.b16 %v61
    %v103 = vunpack.c.l.b16 %v62
    %v104 = vunpack.c.l.b16 %v63
    %v105 = vunpack.c.h.b16 %v63
    %v106 = vunpack.c.l.b16 %v64
    %v107 = vunpack.c.l.b16 %v65
    %v108 = vunpack.c.h.b16 %v65
    %v109 = vunpack.c.l.b16 %v66
    %v110 = vunpack.c.l.b16 %v67
    %v111 = vunpack.c.h.b16 %v67
    %v112 = vunpack.c.l.b16 %v68
    %v113 = vunpack.c.l.b16 %v69
    %v114 = vunpack.c.h.b16 %v69
    %v115 = vunpack.c.l.b16 %v70
    %v116 = vunpack.c.l.b16 %v71
    %v117 = vunpack.c.h.b16 %v71
    %v118 = vunpack.c.l.b16 %v72
    %v119 = vunpack.c.l.b16 %v73
    %v120 = vunpack.c.h.b16 %v73
    %v121 = vunpack.c.l.b16 %v74
    %v122 = vunpack.c.l.b16 %v75
    %v123 = vunpack.c.h.b16 %v75
    %v124 = vunpack.c.l.b16 %v76
    %v125 = vpack.c.b16 %v104, %v101
    %v126 = vpack.c.b16 %v105, %v102
    %v127 = vpack.c.b16 %v106, %v103
    %v128 = vpack.c.b16 %v110, %v107
    %v129 = vpack.c.b16 %v111, %v108
    %v130 = vpack.c.b16 %v112, %v109
    %v131 = vpack.c.b16 %v116, %v113
    %v132 = vpack.c.b16 %v117, %v114
    %v133 = vpack.c.b16 %v118, %v115
    %v134 = vpack.c.b16 %v122, %v119
    %v135 = vpack.c.b16 %v123, %v120
    %v136 = vpack.c.b16 %v124, %v121
    %vm149 = vcmask 523264
    %v151 = vsel %vm149, %v60, 0
    %153 = vmatpush.bf16.msra.mxu0 0
    %154 = vmatpush.bf16.msra.mxu0 0
    %155 = vmatpush.bf16.msra.mxu0 0
    %156 = vmatpush.bf16.msra.mxu0 0
    %157 = vmatpush.bf16.msra.mxu0 %v134
    %158 = vmatpush.bf16.msra.mxu0 %v131
    %159 = vmatpush.bf16.msra.mxu0 %v128
    %160 = vmatpush.bf16.msra.mxu0 %v125
    %161 = vmatmul.bf16.gmra.mxu0 %v151
    %v162 = vpop.f32.mrf.mxu0
    %v163 = vadd.f32 %v79, %v162
    %v164 = vpop.f32.mrf.mxu0
    %165 = vdwg.mxu0
    %166 = vmatpush.bf16.msra.mxu0 0
    %167 = vmatpush.bf16.msra.mxu0 0
    %168 = vmatpush.bf16.msra.mxu0 0
    %169 = vmatpush.bf16.msra.mxu0 0
    %170 = vmatpush.bf16.msra.mxu0 %v135
    %171 = vmatpush.bf16.msra.mxu0 %v132
    %172 = vmatpush.bf16.msra.mxu0 %v129
    %173 = vmatpush.bf16.msra.mxu0 %v126
    %174 = vmatmul.bf16.gmra.mxu0 %v151
    %v175 = vpop.f32.mrf.mxu0
    %v176 = vadd.f32 %v80, %v175
    %v177 = vpop.f32.mrf.mxu0
    %178 = vdwg.mxu0
    %179 = vmatpush.bf16.msra.mxu0 0
    %180 = vmatpush.bf16.msra.mxu0 0
    %181 = vmatpush.bf16.msra.mxu0 0
    %182 = vmatpush.bf16.msra.mxu0 0
    %183 = vmatpush.bf16.msra.mxu0 %v136
    %184 = vmatpush.bf16.msra.mxu0 %v133
    %185 = vmatpush.bf16.msra.mxu0 %v130
    %186 = vmatpush.bf16.msra.mxu0 %v127
    %187 = vmatmul.bf16.gmra.mxu0 %v151
    %v188 = vpop.f32.mrf.mxu0
    %v189 = vadd.f32 %v81, %v188
    %v190 = vpop.f32.mrf.mxu0
    %191 = vdwg.mxu0
    %v192 = vmax.f32 %v163, 0.0
    %v193 = vmax.f32 %v176, 0.0
    %v194 = vmax.f32 %v189, 0.0
    %s195 = scalar_lea.vmem [#allocation4], 12
    %v196 = vld [vmem:[%s195] sm:$0x7]
    %v198 = vperm.slane %v196, 0
    %v199 = vperm.slane %v196, 1
    %v200 = vperm.slane %v196, 2
    %v204 = vmul.f32 %v192, %v198
    %v205 = vmul.f32 %v193, %v199
    %v206 = vmul.f32 %v194, %v200
    %v207 = vld [vmem:[%s4] sm:$0x7]
    %v209 = vperm.slane %v207, 0
    %v210 = vperm.slane %v207, 1
    %v211 = vperm.slane %v207, 2
    %v215 = vadd.f32 %v204, %v209
    %v216 = vadd.f32 %v205, %v210
    %v217 = vadd.f32 %v206, %v211
    %v218 = vmax.f32 %v215, 0.0
    %v219 = vmax.f32 %v216, 0.0
    %v220 = vmax.f32 %v217, 0.0
    %v221 = vpack.c.bf16 %v218, %v218
    %v222 = vpack.c.bf16 %v219, %v219
    %v223 = vpack.c.bf16 %v220, %v220
    %v224 = vld [vmem:[%s5] sm:$0xf]
    %v225 = vld [vmem:[%s5 + $0x4] sm:$0xf]
    %v226 = vld [vmem:[%s5 + $0x8] sm:$0xf]
    %v227 = vld [vmem:[%s5 + $0xc] sm:$0xf]
    %v228 = vld [vmem:[%s5 + $0x10] sm:$0xf]
    %v229 = vld [vmem:[%s5 + $0x14] sm:$0xf]
    %v230 = vld [vmem:[%s5 + $0x18] sm:$0xf]
    %v231 = vld [vmem:[%s5 + $0x1c] sm:$0xf]
    %v232 = vld [vmem:[%s5 + $0x20] sm:$0xf]
    %v233 = vld [vmem:[%s5 + $0x24] sm:$0xf]
    %v234 = vld [vmem:[%s5 + $0x28] sm:$0xf]
    %v235 = vld [vmem:[%s5 + $0x2c] sm:$0xf]
    %v236 = vld [vmem:[%s5 + $0x30] sm:$0xf]
    %v237 = vld [vmem:[%s5 + $0x34] sm:$0xf]
    %v238 = vld [vmem:[%s5 + $0x38] sm:$0xf]
    %v239 = vld [vmem:[%s5 + $0x3c] sm:$0xf]
    %v240 = vld [vmem:[%s5 + $0x40] sm:$0xf]
    %v241 = vld [vmem:[%s5 + $0x44] sm:$0xf]
    %v242 = vld [vmem:[%s5 + $0x48] sm:$0xf]
    %v243 = vld [vmem:[%s5 + $0x4c] sm:$0xf]
    %v244 = vld [vmem:[%s5 + $0x50] sm:$0xf]
    %v245 = vld [vmem:[%s5 + $0x54] sm:$0xf]
    %v246 = vld [vmem:[%s5 + $0x58] sm:$0xf]
    %v247 = vld [vmem:[%s5 + $0x5c] sm:$0xf]
    %v248 = vld [vmem:[%s5 + $0x60] sm:$0xf]
    %v249 = vld [vmem:[%s5 + $0x64] sm:$0xf]
    %v250 = vld [vmem:[%s5 + $0x68] sm:$0xf]
    %v251 = vld [vmem:[%s5 + $0x6c] sm:$0xf]
    %v252 = vld [vmem:[%s5 + $0x70] sm:$0xf]
    %v253 = vld [vmem:[%s5 + $0x74] sm:$0xf]
    %v254 = vld [vmem:[%s5 + $0x78] sm:$0xf]
    %v255 = vld [vmem:[%s5 + $0x7c] sm:$0xf]
    %v256 = vld [vmem:[%s5 + $0x80] sm:$0xf]
    %v257 = vld [vmem:[%s5 + $0x84] sm:$0xf]
    %v258 = vld [vmem:[%s5 + $0x88] sm:$0xf]
    %v259 = vld [vmem:[%s5 + $0x8c] sm:$0xf]
    %v260 = vld [vmem:[%s5 + $0x90] sm:$0xf]
    %v261 = vld [vmem:[%s5 + $0x94] sm:$0xf]
    %v262 = vld [vmem:[%s5 + $0x98] sm:$0xf]
    %v263 = vld [vmem:[%s5 + $0x9c] sm:$0xf]
    %v264 = vld [vmem:[%s5 + $0xa0] sm:$0xf]
    %v265 = vld [vmem:[%s5 + $0xa4] sm:$0xf]
    %v266 = vld [vmem:[%s5 + $0xa8] sm:$0xf]
    %v267 = vld [vmem:[%s5 + $0xac] sm:$0xf]
    %v268 = vld [vmem:[%s5 + $0xb0] sm:$0xf]
    %v269 = vld [vmem:[%s5 + $0xb4] sm:$0xf]
    %v270 = vld [vmem:[%s5 + $0xb8] sm:$0xf]
    %v271 = vld [vmem:[%s5 + $0xbc] sm:$0xf]
    %v272 = vld [vmem:[%s6] sm:$0x1]
    %v274 = vperm.slane %v272, 0
    %v324 = vunpack.c.l.b16 %v224
    %v325 = vunpack.c.l.b16 %v225
    %v326 = vunpack.c.l.b16 %v226
    %v327 = vunpack.c.l.b16 %v227
    %v328 = vunpack.c.l.b16 %v228
    %v329 = vunpack.c.l.b16 %v229
    %v330 = vunpack.c.l.b16 %v230
    %v331 = vunpack.c.l.b16 %v231
    %v332 = vunpack.c.l.b16 %v232
    %v333 = vunpack.c.l.b16 %v233
    %v334 = vunpack.c.l.b16 %v234
    %v335 = vunpack.c.l.b16 %v235
    %v336 = vunpack.c.l.b16 %v236
    %v337 = vunpack.c.l.b16 %v237
    %v338 = vunpack.c.l.b16 %v238
    %v339 = vunpack.c.l.b16 %v239
    %v340 = vunpack.c.l.b16 %v240
    %v341 = vunpack.c.l.b16 %v241
    %v342 = vunpack.c.l.b16 %v242
    %v343 = vunpack.c.l.b16 %v243
    %v344 = vunpack.c.l.b16 %v244
    %v345 = vunpack.c.l.b16 %v245
    %v346 = vunpack.c.l.b16 %v246
    %v347 = vunpack.c.l.b16 %v247
    %v348 = vunpack.c.l.b16 %v248
    %v349 = vunpack.c.l.b16 %v249
    %v350 = vunpack.c.l.b16 %v250
    %v351 = vunpack.c.l.b16 %v251
    %v352 = vunpack.c.l.b16 %v252
    %v353 = vunpack.c.l.b16 %v253
    %v354 = vunpack.c.l.b16 %v254
    %v355 = vunpack.c.l.b16 %v255
    %v356 = vunpack.c.l.b16 %v256
    %v357 = vunpack.c.l.b16 %v257
    %v358 = vunpack.c.l.b16 %v258
    %v359 = vunpack.c.l.b16 %v259
    %v360 = vunpack.c.l.b16 %v260
    %v361 = vunpack.c.l.b16 %v261
    %v362 = vunpack.c.l.b16 %v262
    %v363 = vunpack.c.l.b16 %v263
    %v364 = vunpack.c.l.b16 %v264
    %v365 = vunpack.c.l.b16 %v265
    %v366 = vunpack.c.l.b16 %v266
    %v367 = vunpack.c.l.b16 %v267
    %v368 = vunpack.c.l.b16 %v268
    %v369 = vunpack.c.l.b16 %v269
    %v370 = vunpack.c.l.b16 %v270
    %v371 = vunpack.c.l.b16 %v271
    %v372 = vpack.c.b16 %v325, %v324
    %v373 = vpack.c.b16 %v327, %v326
    %v374 = vpack.c.b16 %v329, %v328
    %v375 = vpack.c.b16 %v331, %v330
    %v376 = vpack.c.b16 %v333, %v332
    %v377 = vpack.c.b16 %v335, %v334
    %v378 = vpack.c.b16 %v337, %v336
    %v379 = vpack.c.b16 %v339, %v338
    %v380 = vpack.c.b16 %v341, %v340
    %v381 = vpack.c.b16 %v343, %v342
    %v382 = vpack.c.b16 %v345, %v344
    %v383 = vpack.c.b16 %v347, %v346
    %v384 = vpack.c.b16 %v349, %v348
    %v385 = vpack.c.b16 %v351, %v350
    %v386 = vpack.c.b16 %v353, %v352
    %v387 = vpack.c.b16 %v355, %v354
    %v388 = vpack.c.b16 %v357, %v356
    %v389 = vpack.c.b16 %v359, %v358
    %v390 = vpack.c.b16 %v361, %v360
    %v391 = vpack.c.b16 %v363, %v362
    %v392 = vpack.c.b16 %v365, %v364
    %v393 = vpack.c.b16 %v367, %v366
    %v394 = vpack.c.b16 %v369, %v368
    %v395 = vpack.c.b16 %v371, %v370
    %420 = vmatpush.bf16.msra.mxu0 %v379
    %421 = vmatpush.bf16.msra.mxu0 %v378
    %422 = vmatpush.bf16.msra.mxu0 %v377
    %423 = vmatpush.bf16.msra.mxu0 %v376
    %424 = vmatpush.bf16.msra.mxu0 %v375
    %425 = vmatpush.bf16.msra.mxu0 %v374
    %426 = vmatpush.bf16.msra.mxu0 %v373
    %427 = vmatpush.bf16.msra.mxu0 %v372
    %428 = vmatmul.bf16.gmra.mxu0 %v221
    %v429 = vpop.f32.mrf.mxu0
    %v430 = vadd.f32 %v274, %v429
    %v431 = vpop.f32.mrf.mxu0
    %432 = vdwg.mxu0
    %433 = vmatpush.bf16.msra.mxu0 %v387
    %434 = vmatpush.bf16.msra.mxu0 %v386
    %435 = vmatpush.bf16.msra.mxu0 %v385
    %436 = vmatpush.bf16.msra.mxu0 %v384
    %437 = vmatpush.bf16.msra.mxu0 %v383
    %438 = vmatpush.bf16.msra.mxu0 %v382
    %439 = vmatpush.bf16.msra.mxu0 %v381
    %440 = vmatpush.bf16.msra.mxu0 %v380
    %441 = vmatmul.bf16.gmra.mxu0 %v222
    %v442 = vpop.f32.mrf.mxu0
    %v443 = vadd.f32 %v430, %v442
    %v444 = vpop.f32.mrf.mxu0
    %445 = vdwg.mxu0
    %446 = vmatpush.bf16.msra.mxu0 %v395
    %447 = vmatpush.bf16.msra.mxu0 %v394
    %448 = vmatpush.bf16.msra.mxu0 %v393
    %449 = vmatpush.bf16.msra.mxu0 %v392
    %450 = vmatpush.bf16.msra.mxu0 %v391
    %451 = vmatpush.bf16.msra.mxu0 %v390
    %452 = vmatpush.bf16.msra.mxu0 %v389
    %453 = vmatpush.bf16.msra.mxu0 %v388
    %454 = vmatmul.bf16.gmra.mxu0 %v223
    %v455 = vpop.f32.mrf.mxu0
    %v456 = vadd.f32 %v443, %v455
    %v457 = vpop.f32.mrf.mxu0
    %458 = vdwg.mxu0
    %v459 = vadd.f32 %v456, %v59
    %vm460 = vcmask 517120
    %461 = vst.msk [vmem:[%s7] sm:$0x3] %vm460, %v459
    // Predicated region
    $region38: #{_lambda_.34} parent=1 // pred_check
      _
    $region39: #{_lambda_.34} parent=1 // pred_check_branch
      %463 = sbr.rel (0) target = $region41
    $region40: #{_lambda_.34} parent=1 // pred_region
      _
    $region41: #{_lambda_.34} parent=1 // pred_fallthru
      _
    // Predicated region
    $region42: #{_lambda_.34} parent=1 // pred_check
      _
    $region43: #{_lambda_.34} parent=1 // pred_check_branch
      %465 = sbr.rel (0) target = $region45
    $region44: #{_lambda_.34} parent=1 // pred_region
      _
    $region45: #{_lambda_.34} parent=1 // pred_fallthru
      _
    %466 = vsyncpa [#allocation3], 1
    %467 = vsyncpa [#allocation5], 1

// kernel: _lambda_.36
$region0: #{_lambda_.36}
  #allocation0 [shape = 'u32[]', space=smem, size = 0x4, offset = 0x4, fixed_abs, tag = 'smem constant byte address 0x4 - core index']
  #allocation1 [shape = 'u32[72,128]{1,0:T(1,128)}', space=vmem, size = 0x9000, scoped, tag = 'internal scratch']
  %s0 = inlined_call_operand.vmem [shape: f32[2,64], index: 0, kind: input, shape index: {}]
  %s1 = inlined_call_operand.vmem [shape: bf16[64,384], index: 1, kind: input, shape index: {}]
  %s2 = inlined_call_operand.vmem [shape: f32[1,384], index: 2, kind: input, shape index: {}, may-alias: {2,4}]
  %s3 = inlined_call_operand.hbm [shape: f32[9,1,384], index: 3, kind: input, shape index: {}]
  %s4 = inlined_call_operand.vmem [shape: f32[1,384], index: 4, kind: input, shape index: {}, may-alias: {2,4}]
  %s5 = inlined_call_operand.vmem [shape: bf16[384,128], index: 5, kind: input, shape index: {}]
  %s6 = inlined_call_operand.vmem [shape: f32[1,128], index: 6, kind: input, shape index: {}]
  %s7 = inlined_call_operand.vmem [shape: f32[2,128], index: 7, kind: output, shape index: {}]
  %s8 = sld [smem:[#allocation0]]
  $region42: #{_lambda_.36} parent=0
    _
  %s10 = ssub.s32 1, %s8
  %s11 = scalar_select 0, %s10, %s8
  $region1: #{_lambda_.36} parent=0
    #allocation2 [shape = 'u8[13824]{0}', space=vmem, size = 0x3800, scoped, tag = 'input window, operand 3, single buffered']
    #allocation3 [shape = 's32[1]{0}', space=sflag, size = 0x4, scoped, tag = 'scoped memory for _lambda_.36']
    %12 = vsyncpa [#allocation3], 0
    // Predicated region
    $region2: #{_lambda_.36} parent=1 // pred_check
      _
    $region3: #{_lambda_.36} parent=1 // pred_check_branch
      %14 = sbr.rel (0) target = $region5
    $region4: #{_lambda_.36} parent=1 // pred_region
      _
    $region5: #{_lambda_.36} parent=1 // pred_fallthru
      _
    // Predicated region
    $region6: #{_lambda_.36} parent=1 // pred_check
      _
    $region7: #{_lambda_.36} parent=1 // pred_check_branch
      %16 = sbr.rel (0) target = $region9
    $region8: #{_lambda_.36} parent=1 // pred_region
      _
    $region9: #{_lambda_.36} parent=1 // pred_fallthru
      _
    // Predicated region
    $region10: #{_lambda_.36} parent=1 // pred_check
      _
    $region11: #{_lambda_.36} parent=1 // pred_check_branch
      %18 = sbr.rel (0) target = $region13
    $region12: #{_lambda_.36} parent=1 // pred_region
      _
    $region13: #{_lambda_.36} parent=1 // pred_fallthru
      _
    // Predicated region
    $region14: #{_lambda_.36} parent=1 // pred_check
      _
    $region15: #{_lambda_.36} parent=1 // pred_check_branch
      %20 = sbr.rel (0) target = $region17
    $region16: #{_lambda_.36} parent=1 // pred_region
      %22 = vsyncadd [#allocation3], 0
      %s23 = sshll.u32 %s3, 4
      %s24 = int_to_ptr.hbm [resolvable:$true] %s23
      %s25 = sshll.u32 [#allocation2], 4
      %s26 = int_to_ptr.vmem [resolvable:$true] %s25
      %31 = dma.hbm_to_vmem [thread:$0]  %s24, 432, %s26, [#allocation3], 48, 48, 3
    $region17: #{_lambda_.36} parent=1 // pred_fallthru
      _
    // Predicated region
    $region18: #{_lambda_.36} parent=1 // pred_check
      _
    $region19: #{_lambda_.36} parent=1 // pred_check_branch
      %33 = sbr.rel (0) target = $region21
    $region20: #{_lambda_.36} parent=1 // pred_region
      _
    $region21: #{_lambda_.36} parent=1 // pred_fallthru
      _
    // Predicated region
    $region22: #{_lambda_.36} parent=1 // pred_check
      _
    $region23: #{_lambda_.36} parent=1 // pred_check_branch
      %35 = sbr.rel (0) target = $region25
    $region24: #{_lambda_.36} parent=1 // pred_region
      _
    $region25: #{_lambda_.36} parent=1 // pred_fallthru
      _
    // Predicated region
    $region26: #{_lambda_.36} parent=1 // pred_check
      _
    $region27: #{_lambda_.36} parent=1 // pred_check_branch
      %37 = sbr.rel (0) target = $region29
    $region28: #{_lambda_.36} parent=1 // pred_region
      _
    $region29: #{_lambda_.36} parent=1 // pred_fallthru
      _
    // Predicated region
    $region30: #{_lambda_.36} parent=1 // pred_check
      _
    $region31: #{_lambda_.36} parent=1 // pred_check_branch
      %39 = sbr.rel (0) target = $region33
    $region32: #{_lambda_.36} parent=1 // pred_region
      %41 = dma.done [#allocation3], 432
    $region33: #{_lambda_.36} parent=1 // pred_fallthru
      _
    %v43 = vld [vmem:[%s0] sm:$0x3]
    %v44 = vpack.c.bf16 %v43, %v43
    %v45 = vld [vmem:[%s1] sm:$0xff]
    %v46 = vld [vmem:[%s1 + $0x8] sm:$0xf]
    %v47 = vld [vmem:[%s1 + $0xc] sm:$0xff]
    %v48 = vld [vmem:[%s1 + $0x14] sm:$0xf]
    %v49 = vld [vmem:[%s1 + $0x18] sm:$0xff]
    %v50 = vld [vmem:[%s1 + $0x20] sm:$0xf]
    %v51 = vld [vmem:[%s1 + $0x24] sm:$0xff]
    %v52 = vld [vmem:[%s1 + $0x2c] sm:$0xf]
    %v53 = vld [vmem:[%s1 + $0x30] sm:$0xff]
    %v54 = vld [vmem:[%s1 + $0x38] sm:$0xf]
    %v55 = vld [vmem:[%s1 + $0x3c] sm:$0xff]
    %v56 = vld [vmem:[%s1 + $0x44] sm:$0xf]
    %v57 = vld [vmem:[%s1 + $0x48] sm:$0xff]
    %v58 = vld [vmem:[%s1 + $0x50] sm:$0xf]
    %v59 = vld [vmem:[%s1 + $0x54] sm:$0xff]
    %v60 = vld [vmem:[%s1 + $0x5c] sm:$0xf]
    %v61 = vld [vmem:[%s2] sm:$0x7]
    %v63 = vperm.slane %v61, 0
    %v64 = vperm.slane %v61, 1
    %v65 = vperm.slane %v61, 2
    %v85 = vunpack.c.l.b16 %v45
    %v86 = vunpack.c.h.b16 %v45
    %v87 = vunpack.c.l.b16 %v46
    %v88 = vunpack.c.l.b16 %v47
    %v89 = vunpack.c.h.b16 %v47
    %v90 = vunpack.c.l.b16 %v48
    %v91 = vunpack.c.l.b16 %v49
    %v92 = vunpack.c.h.b16 %v49
    %v93 = vunpack.c.l.b16 %v50
    %v94 = vunpack.c.l.b16 %v51
    %v95 = vunpack.c.h.b16 %v51
    %v96 = vunpack.c.l.b16 %v52
    %v97 = vunpack.c.l.b16 %v53
    %v98 = vunpack.c.h.b16 %v53
    %v99 = vunpack.c.l.b16 %v54
    %v100 = vunpack.c.l.b16 %v55
    %v101 = vunpack.c.h.b16 %v55
    %v102 = vunpack.c.l.b16 %v56
    %v103 = vunpack.c.l.b16 %v57
    %v104 = vunpack.c.h.b16 %v57
    %v105 = vunpack.c.l.b16 %v58
    %v106 = vunpack.c.l.b16 %v59
    %v107 = vunpack.c.h.b16 %v59
    %v108 = vunpack.c.l.b16 %v60
    %v109 = vpack.c.b16 %v88, %v85
    %v110 = vpack.c.b16 %v89, %v86
    %v111 = vpack.c.b16 %v90, %v87
    %v112 = vpack.c.b16 %v94, %v91
    %v113 = vpack.c.b16 %v95, %v92
    %v114 = vpack.c.b16 %v96, %v93
    %v115 = vpack.c.b16 %v100, %v97
    %v116 = vpack.c.b16 %v101, %v98
    %v117 = vpack.c.b16 %v102, %v99
    %v118 = vpack.c.b16 %v106, %v103
    %v119 = vpack.c.b16 %v107, %v104
    %v120 = vpack.c.b16 %v108, %v105
    %vm133 = vcmask 523264
    %v135 = vsel %vm133, %v44, 0
    %137 = vmatpush.bf16.msra.mxu0 0
    %138 = vmatpush.bf16.msra.mxu0 0
    %139 = vmatpush.bf16.msra.mxu0 0
    %140 = vmatpush.bf16.msra.mxu0 0
    %141 = vmatpush.bf16.msra.mxu0 %v118
    %142 = vmatpush.bf16.msra.mxu0 %v115
    %143 = vmatpush.bf16.msra.mxu0 %v112
    %144 = vmatpush.bf16.msra.mxu0 %v109
    %145 = vmatmul.bf16.gmra.mxu0 %v135
    %v146 = vpop.f32.mrf.mxu0
    %v147 = vadd.f32 %v63, %v146
    %v148 = vpop.f32.mrf.mxu0
    %149 = vdwg.mxu0
    %150 = vmatpush.bf16.msra.mxu0 0
    %151 = vmatpush.bf16.msra.mxu0 0
    %152 = vmatpush.bf16.msra.mxu0 0
    %153 = vmatpush.bf16.msra.mxu0 0
    %154 = vmatpush.bf16.msra.mxu0 %v119
    %155 = vmatpush.bf16.msra.mxu0 %v116
    %156 = vmatpush.bf16.msra.mxu0 %v113
    %157 = vmatpush.bf16.msra.mxu0 %v110
    %158 = vmatmul.bf16.gmra.mxu0 %v135
    %v159 = vpop.f32.mrf.mxu0
    %v160 = vadd.f32 %v64, %v159
    %v161 = vpop.f32.mrf.mxu0
    %162 = vdwg.mxu0
    %163 = vmatpush.bf16.msra.mxu0 0
    %164 = vmatpush.bf16.msra.mxu0 0
    %165 = vmatpush.bf16.msra.mxu0 0
    %166 = vmatpush.bf16.msra.mxu0 0
    %167 = vmatpush.bf16.msra.mxu0 %v120
    %168 = vmatpush.bf16.msra.mxu0 %v117
    %169 = vmatpush.bf16.msra.mxu0 %v114
    %170 = vmatpush.bf16.msra.mxu0 %v111
    %171 = vmatmul.bf16.gmra.mxu0 %v135
    %v172 = vpop.f32.mrf.mxu0
    %v173 = vadd.f32 %v65, %v172
    %v174 = vpop.f32.mrf.mxu0
    %175 = vdwg.mxu0
    %v176 = vmax.f32 %v147, 0.0
    %v177 = vmax.f32 %v160, 0.0
    %v178 = vmax.f32 %v173, 0.0
    %s179 = scalar_lea.vmem [#allocation2], 12
    %v180 = vld [vmem:[%s179] sm:$0x7]
    %v182 = vperm.slane %v180, 0
    %v183 = vperm.slane %v180, 1
    %v184 = vperm.slane %v180, 2
    %v188 = vmul.f32 %v176, %v182
    %v189 = vmul.f32 %v177, %v183
    %v190 = vmul.f32 %v178, %v184
    %v191 = vld [vmem:[%s4] sm:$0x7]
    %v193 = vperm.slane %v191, 0
    %v194 = vperm.slane %v191, 1
    %v195 = vperm.slane %v191, 2
    %v199 = vadd.f32 %v188, %v193
    %v200 = vadd.f32 %v189, %v194
    %v201 = vadd.f32 %v190, %v195
    %v202 = vmax.f32 %v199, 0.0
    %v203 = vmax.f32 %v200, 0.0
    %v204 = vmax.f32 %v201, 0.0
    %v205 = vpack.c.bf16 %v202, %v202
    %v206 = vpack.c.bf16 %v203, %v203
    %v207 = vpack.c.bf16 %v204, %v204
    %v208 = vld [vmem:[%s5] sm:$0xf]
    %v209 = vld [vmem:[%s5 + $0x4] sm:$0xf]
    %v210 = vld [vmem:[%s5 + $0x8] sm:$0xf]
    %v211 = vld [vmem:[%s5 + $0xc] sm:$0xf]
    %v212 = vld [vmem:[%s5 + $0x10] sm:$0xf]
    %v213 = vld [vmem:[%s5 + $0x14] sm:$0xf]
    %v214 = vld [vmem:[%s5 + $0x18] sm:$0xf]
    %v215 = vld [vmem:[%s5 + $0x1c] sm:$0xf]
    %v216 = vld [vmem:[%s5 + $0x20] sm:$0xf]
    %v217 = vld [vmem:[%s5 + $0x24] sm:$0xf]
    %v218 = vld [vmem:[%s5 + $0x28] sm:$0xf]
    %v219 = vld [vmem:[%s5 + $0x2c] sm:$0xf]
    %v220 = vld [vmem:[%s5 + $0x30] sm:$0xf]
    %v221 = vld [vmem:[%s5 + $0x34] sm:$0xf]
    %v222 = vld [vmem:[%s5 + $0x38] sm:$0xf]
    %v223 = vld [vmem:[%s5 + $0x3c] sm:$0xf]
    %v224 = vld [vmem:[%s5 + $0x40] sm:$0xf]
    %v225 = vld [vmem:[%s5 + $0x44] sm:$0xf]
    %v226 = vld [vmem:[%s5 + $0x48] sm:$0xf]
    %v227 = vld [vmem:[%s5 + $0x4c] sm:$0xf]
    %v228 = vld [vmem:[%s5 + $0x50] sm:$0xf]
    %v229 = vld [vmem:[%s5 + $0x54] sm:$0xf]
    %v230 = vld [vmem:[%s5 + $0x58] sm:$0xf]
    %v231 = vld [vmem:[%s5 + $0x5c] sm:$0xf]
    %v232 = vld [vmem:[%s5 + $0x60] sm:$0xf]
    %v233 = vld [vmem:[%s5 + $0x64] sm:$0xf]
    %v234 = vld [vmem:[%s5 + $0x68] sm:$0xf]
    %v235 = vld [vmem:[%s5 + $0x6c] sm:$0xf]
    %v236 = vld [vmem:[%s5 + $0x70] sm:$0xf]
    %v237 = vld [vmem:[%s5 + $0x74] sm:$0xf]
    %v238 = vld [vmem:[%s5 + $0x78] sm:$0xf]
    %v239 = vld [vmem:[%s5 + $0x7c] sm:$0xf]
    %v240 = vld [vmem:[%s5 + $0x80] sm:$0xf]
    %v241 = vld [vmem:[%s5 + $0x84] sm:$0xf]
    %v242 = vld [vmem:[%s5 + $0x88] sm:$0xf]
    %v243 = vld [vmem:[%s5 + $0x8c] sm:$0xf]
    %v244 = vld [vmem:[%s5 + $0x90] sm:$0xf]
    %v245 = vld [vmem:[%s5 + $0x94] sm:$0xf]
    %v246 = vld [vmem:[%s5 + $0x98] sm:$0xf]
    %v247 = vld [vmem:[%s5 + $0x9c] sm:$0xf]
    %v248 = vld [vmem:[%s5 + $0xa0] sm:$0xf]
    %v249 = vld [vmem:[%s5 + $0xa4] sm:$0xf]
    %v250 = vld [vmem:[%s5 + $0xa8] sm:$0xf]
    %v251 = vld [vmem:[%s5 + $0xac] sm:$0xf]
    %v252 = vld [vmem:[%s5 + $0xb0] sm:$0xf]
    %v253 = vld [vmem:[%s5 + $0xb4] sm:$0xf]
    %v254 = vld [vmem:[%s5 + $0xb8] sm:$0xf]
    %v255 = vld [vmem:[%s5 + $0xbc] sm:$0xf]
    %v256 = vld [vmem:[%s6] sm:$0x1]
    %v258 = vperm.slane %v256, 0
    %v308 = vunpack.c.l.b16 %v208
    %v309 = vunpack.c.l.b16 %v209
    %v310 = vunpack.c.l.b16 %v210
    %v311 = vunpack.c.l.b16 %v211
    %v312 = vunpack.c.l.b16 %v212
    %v313 = vunpack.c.l.b16 %v213
    %v314 = vunpack.c.l.b16 %v214
    %v315 = vunpack.c.l.b16 %v215
    %v316 = vunpack.c.l.b16 %v216
    %v317 = vunpack.c.l.b16 %v217
    %v318 = vunpack.c.l.b16 %v218
    %v319 = vunpack.c.l.b16 %v219
    %v320 = vunpack.c.l.b16 %v220
    %v321 = vunpack.c.l.b16 %v221
    %v322 = vunpack.c.l.b16 %v222
    %v323 = vunpack.c.l.b16 %v223
    %v324 = vunpack.c.l.b16 %v224
    %v325 = vunpack.c.l.b16 %v225
    %v326 = vunpack.c.l.b16 %v226
    %v327 = vunpack.c.l.b16 %v227
    %v328 = vunpack.c.l.b16 %v228
    %v329 = vunpack.c.l.b16 %v229
    %v330 = vunpack.c.l.b16 %v230
    %v331 = vunpack.c.l.b16 %v231
    %v332 = vunpack.c.l.b16 %v232
    %v333 = vunpack.c.l.b16 %v233
    %v334 = vunpack.c.l.b16 %v234
    %v335 = vunpack.c.l.b16 %v235
    %v336 = vunpack.c.l.b16 %v236
    %v337 = vunpack.c.l.b16 %v237
    %v338 = vunpack.c.l.b16 %v238
    %v339 = vunpack.c.l.b16 %v239
    %v340 = vunpack.c.l.b16 %v240
    %v341 = vunpack.c.l.b16 %v241
    %v342 = vunpack.c.l.b16 %v242
    %v343 = vunpack.c.l.b16 %v243
    %v344 = vunpack.c.l.b16 %v244
    %v345 = vunpack.c.l.b16 %v245
    %v346 = vunpack.c.l.b16 %v246
    %v347 = vunpack.c.l.b16 %v247
    %v348 = vunpack.c.l.b16 %v248
    %v349 = vunpack.c.l.b16 %v249
    %v350 = vunpack.c.l.b16 %v250
    %v351 = vunpack.c.l.b16 %v251
    %v352 = vunpack.c.l.b16 %v252
    %v353 = vunpack.c.l.b16 %v253
    %v354 = vunpack.c.l.b16 %v254
    %v355 = vunpack.c.l.b16 %v255
    %v356 = vpack.c.b16 %v309, %v308
    %v357 = vpack.c.b16 %v311, %v310
    %v358 = vpack.c.b16 %v313, %v312
    %v359 = vpack.c.b16 %v315, %v314
    %v360 = vpack.c.b16 %v317, %v316
    %v361 = vpack.c.b16 %v319, %v318
    %v362 = vpack.c.b16 %v321, %v320
    %v363 = vpack.c.b16 %v323, %v322
    %v364 = vpack.c.b16 %v325, %v324
    %v365 = vpack.c.b16 %v327, %v326
    %v366 = vpack.c.b16 %v329, %v328
    %v367 = vpack.c.b16 %v331, %v330
    %v368 = vpack.c.b16 %v333, %v332
    %v369 = vpack.c.b16 %v335, %v334
    %v370 = vpack.c.b16 %v337, %v336
    %v371 = vpack.c.b16 %v339, %v338
    %v372 = vpack.c.b16 %v341, %v340
    %v373 = vpack.c.b16 %v343, %v342
    %v374 = vpack.c.b16 %v345, %v344
    %v375 = vpack.c.b16 %v347, %v346
    %v376 = vpack.c.b16 %v349, %v348
    %v377 = vpack.c.b16 %v351, %v350
    %v378 = vpack.c.b16 %v353, %v352
    %v379 = vpack.c.b16 %v355, %v354
    %404 = vmatpush.bf16.msra.mxu0 %v363
    %405 = vmatpush.bf16.msra.mxu0 %v362
    %406 = vmatpush.bf16.msra.mxu0 %v361
    %407 = vmatpush.bf16.msra.mxu0 %v360
    %408 = vmatpush.bf16.msra.mxu0 %v359
    %409 = vmatpush.bf16.msra.mxu0 %v358
    %410 = vmatpush.bf16.msra.mxu0 %v357
    %411 = vmatpush.bf16.msra.mxu0 %v356
    %412 = vmatmul.bf16.gmra.mxu0 %v205
    %v413 = vpop.f32.mrf.mxu0
    %v414 = vadd.f32 %v258, %v413
    %v415 = vpop.f32.mrf.mxu0
    %416 = vdwg.mxu0
    %417 = vmatpush.bf16.msra.mxu0 %v371
    %418 = vmatpush.bf16.msra.mxu0 %v370
    %419 = vmatpush.bf16.msra.mxu0 %v369
    %420 = vmatpush.bf16.msra.mxu0 %v368
    %421 = vmatpush.bf16.msra.mxu0 %v367
    %422 = vmatpush.bf16.msra.mxu0 %v366
    %423 = vmatpush.bf16.msra.mxu0 %v365
    %424 = vmatpush.bf16.msra.mxu0 %v364
    %425 = vmatmul.bf16.gmra.mxu0 %v206
    %v426 = vpop.f32.mrf.mxu0
    %v427 = vadd.f32 %v414, %v426
    %v428 = vpop.f32.mrf.mxu0
    %429 = vdwg.mxu0
    %430 = vmatpush.bf16.msra.mxu0 %v379
    %431 = vmatpush.bf16.msra.mxu0 %v378
    %432 = vmatpush.bf16.msra.mxu0 %v377
    %433 = vmatpush.bf16.msra.mxu0 %v376
    %434 = vmatpush.bf16.msra.mxu0 %v375
    %435 = vmatpush.bf16.msra.mxu0 %v374
    %436 = vmatpush.bf16.msra.mxu0 %v373
    %437 = vmatpush.bf16.msra.mxu0 %v372
    %438 = vmatmul.bf16.gmra.mxu0 %v207
    %v439 = vpop.f32.mrf.mxu0
    %v440 = vadd.f32 %v427, %v439
    %v441 = vpop.f32.mrf.mxu0
    %442 = vdwg.mxu0
    %443 = vst [vmem:[%s7] sm:$0x3] %v440
    // Predicated region
    $region34: #{_lambda_.36} parent=1 // pred_check
      _
    $region35: #{_lambda_.36} parent=1 // pred_check_branch
      %445 = sbr.rel (0) target = $region37
    $region36: #{_lambda_.36} parent=1 // pred_region
      _
    $region37: #{_lambda_.36} parent=1 // pred_fallthru
      _
    // Predicated region
    $region38: #{_lambda_.36} parent=1 // pred_check
      _
    $region39: #{_lambda_.36} parent=1 // pred_check_branch
      %447 = sbr.rel (0) target = $region41
    $region40: #{_lambda_.36} parent=1 // pred_region
      _
    $region41: #{_lambda_.36} parent=1 // pred_fallthru
      _
    %448 = vsyncpa [#allocation3], 1

// kernel: _lambda_.37
$region0: #{_lambda_.37}
  #allocation0 [shape = 'u32[]', space=smem, size = 0x4, offset = 0x4, fixed_abs, tag = 'smem constant byte address 0x4 - core index']
  #allocation1 [shape = 'u32[72,128]{1,0:T(1,128)}', space=vmem, size = 0x9000, scoped, tag = 'internal scratch']
  %s0 = inlined_call_operand.vmem [shape: f32[2,128], index: 0, kind: input, shape index: {}]
  %s1 = inlined_call_operand.vmem [shape: bf16[128,256], index: 1, kind: input, shape index: {}]
  %s2 = inlined_call_operand.vmem [shape: f32[1,256], index: 2, kind: input, shape index: {}]
  %s3 = inlined_call_operand.vmem [shape: bf16[2,2], index: 3, kind: input, shape index: {}]
  %s4 = inlined_call_operand.vmem [shape: bf16[256,10], index: 4, kind: input, shape index: {}]
  %s5 = inlined_call_operand.vmem [shape: f32[1,10], index: 5, kind: input, shape index: {}]
  %s6 = inlined_call_operand.hbm [shape: f32[2,10], index: 6, kind: output, shape index: {}]
  %s7 = sld [smem:[#allocation0]]
  $region34: #{_lambda_.37} parent=0
    _
  %s9 = ssub.s32 1, %s7
  %s10 = scalar_select 0, %s9, %s7
  $region1: #{_lambda_.37} parent=0
    #allocation2 [shape = 'u8[1024]{0}', space=vmem, size = 0x400, scoped, tag = 'output window, operand 0, single buffered']
    #allocation3 [shape = 's32[1]{0}', space=sflag, size = 0x4, scoped, tag = 'scoped memory for _lambda_.37']
    %11 = vsyncpa [#allocation3], 0
    // Predicated region
    $region2: #{_lambda_.37} parent=1 // pred_check
      _
    $region3: #{_lambda_.37} parent=1 // pred_check_branch
      %13 = sbr.rel (0) target = $region5
    $region4: #{_lambda_.37} parent=1 // pred_region
      _
    $region5: #{_lambda_.37} parent=1 // pred_fallthru
      _
    // Predicated region
    $region6: #{_lambda_.37} parent=1 // pred_check
      _
    $region7: #{_lambda_.37} parent=1 // pred_check_branch
      %15 = sbr.rel (0) target = $region9
    $region8: #{_lambda_.37} parent=1 // pred_region
      _
    $region9: #{_lambda_.37} parent=1 // pred_fallthru
      _
    // Predicated region
    $region10: #{_lambda_.37} parent=1 // pred_check
      _
    $region11: #{_lambda_.37} parent=1 // pred_check_branch
      %17 = sbr.rel (0) target = $region13
    $region12: #{_lambda_.37} parent=1 // pred_region
      _
    $region13: #{_lambda_.37} parent=1 // pred_fallthru
      _
    // Predicated region
    $region14: #{_lambda_.37} parent=1 // pred_check
      _
    $region15: #{_lambda_.37} parent=1 // pred_check_branch
      %19 = sbr.rel (0) target = $region17
    $region16: #{_lambda_.37} parent=1 // pred_region
      _
    $region17: #{_lambda_.37} parent=1 // pred_fallthru
      _
    // Predicated region
    $region18: #{_lambda_.37} parent=1 // pred_check
      _
    $region19: #{_lambda_.37} parent=1 // pred_check_branch
      %21 = sbr.rel (0) target = $region21
    $region20: #{_lambda_.37} parent=1 // pred_region
      _
    $region21: #{_lambda_.37} parent=1 // pred_fallthru
      _
    // Predicated region
    $region22: #{_lambda_.37} parent=1 // pred_check
      _
    $region23: #{_lambda_.37} parent=1 // pred_check_branch
      %23 = sbr.rel (0) target = $region25
    $region24: #{_lambda_.37} parent=1 // pred_region
      _
    $region25: #{_lambda_.37} parent=1 // pred_fallthru
      _
    %v25 = vld [vmem:[%s0] sm:$0x3]
    %v26 = vpack.c.bf16 %v25, %v25
    %v27 = vld [vmem:[%s1] sm:$0xff]
    %v28 = vld [vmem:[%s1 + $0x8] sm:$0xff]
    %v29 = vld [vmem:[%s1 + $0x10] sm:$0xff]
    %v30 = vld [vmem:[%s1 + $0x18] sm:$0xff]
    %v31 = vld [vmem:[%s1 + $0x20] sm:$0xff]
    %v32 = vld [vmem:[%s1 + $0x28] sm:$0xff]
    %v33 = vld [vmem:[%s1 + $0x30] sm:$0xff]
    %v34 = vld [vmem:[%s1 + $0x38] sm:$0xff]
    %v35 = vld [vmem:[%s1 + $0x40] sm:$0xff]
    %v36 = vld [vmem:[%s1 + $0x48] sm:$0xff]
    %v37 = vld [vmem:[%s1 + $0x50] sm:$0xff]
    %v38 = vld [vmem:[%s1 + $0x58] sm:$0xff]
    %v39 = vld [vmem:[%s1 + $0x60] sm:$0xff]
    %v40 = vld [vmem:[%s1 + $0x68] sm:$0xff]
    %v41 = vld [vmem:[%s1 + $0x70] sm:$0xff]
    %v42 = vld [vmem:[%s1 + $0x78] sm:$0xff]
    %v43 = vld [vmem:[%s2] sm:$0x3]
    %v45 = vperm.slane %v43, 0
    %v46 = vperm.slane %v43, 1
    %v65 = vunpack.c.l.b16 %v27
    %v66 = vunpack.c.h.b16 %v27
    %v67 = vunpack.c.l.b16 %v28
    %v68 = vunpack.c.h.b16 %v28
    %v69 = vunpack.c.l.b16 %v29
    %v70 = vunpack.c.h.b16 %v29
    %v71 = vunpack.c.l.b16 %v30
    %v72 = vunpack.c.h.b16 %v30
    %v73 = vunpack.c.l.b16 %v31
    %v74 = vunpack.c.h.b16 %v31
    %v75 = vunpack.c.l.b16 %v32
    %v76 = vunpack.c.h.b16 %v32
    %v77 = vunpack.c.l.b16 %v33
    %v78 = vunpack.c.h.b16 %v33
    %v79 = vunpack.c.l.b16 %v34
    %v80 = vunpack.c.h.b16 %v34
    %v81 = vunpack.c.l.b16 %v35
    %v82 = vunpack.c.h.b16 %v35
    %v83 = vunpack.c.l.b16 %v36
    %v84 = vunpack.c.h.b16 %v36
    %v85 = vunpack.c.l.b16 %v37
    %v86 = vunpack.c.h.b16 %v37
    %v87 = vunpack.c.l.b16 %v38
    %v88 = vunpack.c.h.b16 %v38
    %v89 = vunpack.c.l.b16 %v39
    %v90 = vunpack.c.h.b16 %v39
    %v91 = vunpack.c.l.b16 %v40
    %v92 = vunpack.c.h.b16 %v40
    %v93 = vunpack.c.l.b16 %v41
    %v94 = vunpack.c.h.b16 %v41
    %v95 = vunpack.c.l.b16 %v42
    %v96 = vunpack.c.h.b16 %v42
    %v97 = vpack.c.b16 %v67, %v65
    %v98 = vpack.c.b16 %v68, %v66
    %v99 = vpack.c.b16 %v71, %v69
    %v100 = vpack.c.b16 %v72, %v70
    %v101 = vpack.c.b16 %v75, %v73
    %v102 = vpack.c.b16 %v76, %v74
    %v103 = vpack.c.b16 %v79, %v77
    %v104 = vpack.c.b16 %v80, %v78
    %v105 = vpack.c.b16 %v83, %v81
    %v106 = vpack.c.b16 %v84, %v82
    %v107 = vpack.c.b16 %v87, %v85
    %v108 = vpack.c.b16 %v88, %v86
    %v109 = vpack.c.b16 %v91, %v89
    %v110 = vpack.c.b16 %v92, %v90
    %v111 = vpack.c.b16 %v95, %v93
    %v112 = vpack.c.b16 %v96, %v94
    %129 = vmatpush.bf16.msra.mxu0 %v111
    %130 = vmatpush.bf16.msra.mxu0 %v109
    %131 = vmatpush.bf16.msra.mxu0 %v107
    %132 = vmatpush.bf16.msra.mxu0 %v105
    %133 = vmatpush.bf16.msra.mxu0 %v103
    %134 = vmatpush.bf16.msra.mxu0 %v101
    %135 = vmatpush.bf16.msra.mxu0 %v99
    %136 = vmatpush.bf16.msra.mxu0 %v97
    %137 = vmatmul.bf16.gmra.mxu0 %v26
    %v138 = vpop.f32.mrf.mxu0
    %v139 = vadd.f32 %v45, %v138
    %v140 = vpop.f32.mrf.mxu0
    %141 = vdwg.mxu0
    %142 = vmatpush.bf16.msra.mxu0 %v112
    %143 = vmatpush.bf16.msra.mxu0 %v110
    %144 = vmatpush.bf16.msra.mxu0 %v108
    %145 = vmatpush.bf16.msra.mxu0 %v106
    %146 = vmatpush.bf16.msra.mxu0 %v104
    %147 = vmatpush.bf16.msra.mxu0 %v102
    %148 = vmatpush.bf16.msra.mxu0 %v100
    %149 = vmatpush.bf16.msra.mxu0 %v98
    %150 = vmatmul.bf16.gmra.mxu0 %v26
    %v151 = vpop.f32.mrf.mxu0
    %v152 = vadd.f32 %v46, %v151
    %v153 = vpop.f32.mrf.mxu0
    %154 = vdwg.mxu0
    %v155 = vmax.f32 %v139, 0.0
    %v156 = vmax.f32 %v152, 0.0
    %v157 = vld [vmem:[%s3] sm:$0x1]
    %v158 = vpack.c.bf16 %v155, %v155
    %v159 = vpack.c.bf16 %v156, %v156
    %vm160 = vcmask 15360
    %v162 = vsel %vm160, %v157, 0
    %vm164 = vcmask 1040384
    %v166 = vsel %vm164, %v158, 0
    %v169 = vsel %vm164, %v159, 0
    %171 = vmatpush.bf16.msra.mxu0 0
    %172 = vmatpush.bf16.msra.mxu0 0
    %173 = vmatpush.bf16.msra.mxu0 0
    %174 = vmatpush.bf16.msra.mxu0 0
    %175 = vmatpush.bf16.msra.mxu0 0
    %176 = vmatpush.bf16.msra.mxu0 0
    %177 = vmatpush.bf16.msra.mxu0 0
    %178 = vmatpush.bf16.msra.mxu0 %v166
    %179 = vmatmul.bf16.gmra.mxu0 %v162
    %v180 = vpop.f32.mrf.mxu0
    %v181 = vadd.f32 0.0, %v180
    %v182 = vpop.f32.mrf.mxu0
    %183 = vdwg.mxu0
    %184 = vmatpush.bf16.msra.mxu0 0
    %185 = vmatpush.bf16.msra.mxu0 0
    %186 = vmatpush.bf16.msra.mxu0 0
    %187 = vmatpush.bf16.msra.mxu0 0
    %188 = vmatpush.bf16.msra.mxu0 0
    %189 = vmatpush.bf16.msra.mxu0 0
    %190 = vmatpush.bf16.msra.mxu0 0
    %191 = vmatpush.bf16.msra.mxu0 %v169
    %192 = vmatmul.bf16.gmra.mxu0 %v162
    %v193 = vpop.f32.mrf.mxu0
    %v194 = vadd.f32 0.0, %v193
    %v195 = vpop.f32.mrf.mxu0
    %196 = vdwg.mxu0
    %v197 = vpack.c.bf16 %v181, %v181
    %v198 = vpack.c.bf16 %v194, %v194
    %v199 = vld [vmem:[%s4] sm:$0xf]
    %v200 = vld [vmem:[%s4 + $0x4] sm:$0xf]
    %v201 = vld [vmem:[%s4 + $0x8] sm:$0xf]
    %v202 = vld [vmem:[%s4 + $0xc] sm:$0xf]
    %v203 = vld [vmem:[%s4 + $0x10] sm:$0xf]
    %v204 = vld [vmem:[%s4 + $0x14] sm:$0xf]
    %v205 = vld [vmem:[%s4 + $0x18] sm:$0xf]
    %v206 = vld [vmem:[%s4 + $0x1c] sm:$0xf]
    %v207 = vld [vmem:[%s4 + $0x20] sm:$0xf]
    %v208 = vld [vmem:[%s4 + $0x24] sm:$0xf]
    %v209 = vld [vmem:[%s4 + $0x28] sm:$0xf]
    %v210 = vld [vmem:[%s4 + $0x2c] sm:$0xf]
    %v211 = vld [vmem:[%s4 + $0x30] sm:$0xf]
    %v212 = vld [vmem:[%s4 + $0x34] sm:$0xf]
    %v213 = vld [vmem:[%s4 + $0x38] sm:$0xf]
    %v214 = vld [vmem:[%s4 + $0x3c] sm:$0xf]
    %v215 = vld [vmem:[%s4 + $0x40] sm:$0xf]
    %v216 = vld [vmem:[%s4 + $0x44] sm:$0xf]
    %v217 = vld [vmem:[%s4 + $0x48] sm:$0xf]
    %v218 = vld [vmem:[%s4 + $0x4c] sm:$0xf]
    %v219 = vld [vmem:[%s4 + $0x50] sm:$0xf]
    %v220 = vld [vmem:[%s4 + $0x54] sm:$0xf]
    %v221 = vld [vmem:[%s4 + $0x58] sm:$0xf]
    %v222 = vld [vmem:[%s4 + $0x5c] sm:$0xf]
    %v223 = vld [vmem:[%s4 + $0x60] sm:$0xf]
    %v224 = vld [vmem:[%s4 + $0x64] sm:$0xf]
    %v225 = vld [vmem:[%s4 + $0x68] sm:$0xf]
    %v226 = vld [vmem:[%s4 + $0x6c] sm:$0xf]
    %v227 = vld [vmem:[%s4 + $0x70] sm:$0xf]
    %v228 = vld [vmem:[%s4 + $0x74] sm:$0xf]
    %v229 = vld [vmem:[%s4 + $0x78] sm:$0xf]
    %v230 = vld [vmem:[%s4 + $0x7c] sm:$0xf]
    %v231 = vld [vmem:[%s5] sm:$0x1]
    %v233 = vperm.slane %v231, 0
    %v267 = vunpack.c.l.b16 %v199
    %v268 = vunpack.c.l.b16 %v200
    %v269 = vunpack.c.l.b16 %v201
    %v270 = vunpack.c.l.b16 %v202
    %v271 = vunpack.c.l.b16 %v203
    %v272 = vunpack.c.l.b16 %v204
    %v273 = vunpack.c.l.b16 %v205
    %v274 = vunpack.c.l.b16 %v206
    %v275 = vunpack.c.l.b16 %v207
    %v276 = vunpack.c.l.b16 %v208
    %v277 = vunpack.c.l.b16 %v209
    %v278 = vunpack.c.l.b16 %v210
    %v279 = vunpack.c.l.b16 %v211
    %v280 = vunpack.c.l.b16 %v212
    %v281 = vunpack.c.l.b16 %v213
    %v282 = vunpack.c.l.b16 %v214
    %v283 = vunpack.c.l.b16 %v215
    %v284 = vunpack.c.l.b16 %v216
    %v285 = vunpack.c.l.b16 %v217
    %v286 = vunpack.c.l.b16 %v218
    %v287 = vunpack.c.l.b16 %v219
    %v288 = vunpack.c.l.b16 %v220
    %v289 = vunpack.c.l.b16 %v221
    %v290 = vunpack.c.l.b16 %v222
    %v291 = vunpack.c.l.b16 %v223
    %v292 = vunpack.c.l.b16 %v224
    %v293 = vunpack.c.l.b16 %v225
    %v294 = vunpack.c.l.b16 %v226
    %v295 = vunpack.c.l.b16 %v227
    %v296 = vunpack.c.l.b16 %v228
    %v297 = vunpack.c.l.b16 %v229
    %v298 = vunpack.c.l.b16 %v230
    %v299 = vpack.c.b16 %v268, %v267
    %v300 = vpack.c.b16 %v270, %v269
    %v301 = vpack.c.b16 %v272, %v271
    %v302 = vpack.c.b16 %v274, %v273
    %v303 = vpack.c.b16 %v276, %v275
    %v304 = vpack.c.b16 %v278, %v277
    %v305 = vpack.c.b16 %v280, %v279
    %v306 = vpack.c.b16 %v282, %v281
    %v307 = vpack.c.b16 %v284, %v283
    %v308 = vpack.c.b16 %v286, %v285
    %v309 = vpack.c.b16 %v288, %v287
    %v310 = vpack.c.b16 %v290, %v289
    %v311 = vpack.c.b16 %v292, %v291
    %v312 = vpack.c.b16 %v294, %v293
    %v313 = vpack.c.b16 %v296, %v295
    %v314 = vpack.c.b16 %v298, %v297
    %331 = vmatpush.bf16.msra.mxu0 %v306
    %332 = vmatpush.bf16.msra.mxu0 %v305
    %333 = vmatpush.bf16.msra.mxu0 %v304
    %334 = vmatpush.bf16.msra.mxu0 %v303
    %335 = vmatpush.bf16.msra.mxu0 %v302
    %336 = vmatpush.bf16.msra.mxu0 %v301
    %337 = vmatpush.bf16.msra.mxu0 %v300
    %338 = vmatpush.bf16.msra.mxu0 %v299
    %339 = vmatmul.bf16.gmra.mxu0 %v197
    %v340 = vpop.f32.mrf.mxu0
    %v341 = vadd.f32 %v233, %v340
    %v342 = vpop.f32.mrf.mxu0
    %343 = vdwg.mxu0
    %344 = vmatpush.bf16.msra.mxu0 %v314
    %345 = vmatpush.bf16.msra.mxu0 %v313
    %346 = vmatpush.bf16.msra.mxu0 %v312
    %347 = vmatpush.bf16.msra.mxu0 %v311
    %348 = vmatpush.bf16.msra.mxu0 %v310
    %349 = vmatpush.bf16.msra.mxu0 %v309
    %350 = vmatpush.bf16.msra.mxu0 %v308
    %351 = vmatpush.bf16.msra.mxu0 %v307
    %352 = vmatmul.bf16.gmra.mxu0 %v198
    %v353 = vpop.f32.mrf.mxu0
    %v354 = vadd.f32 %v341, %v353
    %v355 = vpop.f32.mrf.mxu0
    %356 = vdwg.mxu0
    %vm357 = vcmask 74752
    %358 = vst.msk [vmem:[#allocation2] sm:$0x3] %vm357, %v354
    // Predicated region
    $region26: #{_lambda_.37} parent=1 // pred_check
      _
    $region27: #{_lambda_.37} parent=1 // pred_check_branch
      %360 = sbr.rel (0) target = $region29
    $region28: #{_lambda_.37} parent=1 // pred_region
      %362 = vsyncadd [#allocation3], 0
      %s364 = sshll.u32 [#allocation2], 4
      %s365 = int_to_ptr.vmem [resolvable:$true] %s364
      %s366 = sshll.u32 %s6, 4
      %s367 = int_to_ptr.hbm [resolvable:$true] %s366
      %369 = dma.vmem_to_hbm [thread:$0]  %s365, 32, %s367, [#allocation3]
    $region29: #{_lambda_.37} parent=1 // pred_fallthru
      _
    // Predicated region
    $region30: #{_lambda_.37} parent=1 // pred_check
      _
    $region31: #{_lambda_.37} parent=1 // pred_check_branch
      %371 = sbr.rel (0) target = $region33
    $region32: #{_lambda_.37} parent=1 // pred_region
      %373 = dma.done [#allocation3], 32
    $region33: #{_lambda_.37} parent=1 // pred_fallthru
      _
    %374 = vsyncpa [#allocation3], 1

</llo_original>
